<compile_context>
chip_gen: v5e
topology: v5e:2x2
jax: 0.10.0
libtpu: 0.0.40
codegen_flags: <defaults>
</compile_context>

<pallas_src>
import jax
import jax.numpy as jnp
from jax.experimental import pallas as pl
from jax.experimental.pallas import tpu as pltpu

EPS = 1e-5


def _fused_kernel(x322_ref, x319_ref, x313_ref,
                  w102_ref, b102_ref,
                  w103_ref, g63_ref, b63_ref,
                  w104_hbm_ref, g64_ref, b64_ref,
                  o_ref,
                  w104_vmem, w104_sem):
    # Kick off the second conv weight's HBM->VMEM DMA immediately; it is only
    # needed after matmul1 + BN1 + relu, so its transfer overlaps with them.
    w104_copy = pltpu.make_async_copy(w104_hbm_ref, w104_vmem, w104_sem)
    w104_copy.start()

    hw = o_ref.shape[-1]
    inv_hw = 1.0 / hw

    # conv2d102 (1x1, Cse->C, bias) on the (1, Cse) SE input + sigmoid.
    # w102 is (C, Cse); broadcast the SE row over sublanes, reduce over the
    # Cse lane axis -> (C, 1).  Tiny (VPU mul + XLU reduce).
    se = jnp.sum(w102_ref[...].astype(jnp.float32)
                 * x322_ref[...].astype(jnp.float32),
                 axis=-1, keepdims=True)
    gate = jax.nn.sigmoid(se + b102_ref[...])                      # (C, 1) f32

    # x325 = sigmoid(conv) * x319 : (C, 1) gate broadcasts over the HW lanes.
    x325 = gate * x319_ref[...].astype(jnp.float32)                # (C, HW) f32

    # conv2d103 (1x1, C->C, no bias): bf16 x bf16 MXU matmul, f32 accumulate.
    x326 = jnp.dot(w103_ref[...], x325.astype(jnp.bfloat16),
                   preferred_element_type=jnp.float32)             # (C, HW) f32

    # batchnorm2d63: training-mode batch stats over HW, centered variance,
    # folded into one scale/shift FMA.
    m1 = jnp.sum(x326, axis=-1, keepdims=True) * inv_hw            # (C, 1)
    c1 = x326 - m1
    v1 = jnp.sum(c1 * c1, axis=-1, keepdims=True) * inv_hw
    scale1 = g63_ref[...] * jax.lax.rsqrt(v1 + EPS)
    x327 = c1 * scale1 + b63_ref[...]

    # residual add + relu
    x328 = jnp.maximum(x313_ref[...].astype(jnp.float32) + x327, 0.0)

    # conv2d104 (1x1, C->C, no bias): wait for the prefetched weight only now.
    w104_copy.wait()
    x330 = jnp.dot(w104_vmem[...], x328.astype(jnp.bfloat16),
                   preferred_element_type=jnp.float32)             # (C, HW) f32

    # batchnorm2d64
    m2 = jnp.sum(x330, axis=-1, keepdims=True) * inv_hw
    c2 = x330 - m2
    v2 = jnp.sum(c2 * c2, axis=-1, keepdims=True) * inv_hw
    scale2 = g64_ref[...] * jax.lax.rsqrt(v2 + EPS)

    o_ref[...] = (c2 * scale2 + b64_ref[...]).astype(o_ref.dtype)


@jax.jit
def fused_forward(x322, x319, x313, p):
    """x322: (1, Cse, 1, 1); x319, x313: (1, C, H, W)  -- PyTorch NCHW inputs."""
    n, cse = x322.shape[0], x322.shape[1]
    _, c, h, w = x319.shape
    hw = h * w
    assert n == 1, "kernel is specialized to the module's batch-1 shapes"

    # Channel-major views: with N=1 these reshapes are free (no transposes),
    # and activations keep their upstream dtype (no forced f32 HBM copies).
    x322_cm = x322.reshape(1, cse)                                 # (1, Cse)
    x319_cm = x319.reshape(c, hw)                                  # (C, HW)
    x313_cm = x313.reshape(c, hw)                                  # (C, HW)

    # Weights in bf16 (halves the dominant HBM weight traffic; matmuls
    # accumulate in f32 either way).
    w102 = p["w102"].astype(jnp.bfloat16)
    w103 = p["w103"].astype(jnp.bfloat16)
    w104 = p["w104"].astype(jnp.bfloat16)

    vmem = pl.BlockSpec(memory_space=pltpu.MemorySpace.VMEM)
    hbm = pl.BlockSpec(memory_space=pl.ANY)                        # w104: manual DMA

    act_bytes = x319_cm.dtype.itemsize
    cost = pl.CostEstimate(
        flops=4 * c * c * hw + 2 * c * cse,           # two CxC matmuls + SE conv
        transcendentals=3 * c,                        # sigmoid + 2x rsqrt
        bytes_accessed=(2 * c * hw + cse) * act_bytes # x319, x313, x322 in
                       + c * hw * 4                   # f32 output
                       + (2 * c * c + c * cse) * 2    # bf16 weights
                       + 5 * c * 4,                   # BN/bias vectors
    )

    # Gridless single block: whole working set ~1 MB, far under the scoped
    # VMEM limit on v5e/v6e/v7x, so no grid / dimension_semantics is needed.
    out_cm = pl.pallas_call(
        _fused_kernel,
        out_shape=jax.ShapeDtypeStruct((c, hw), jnp.float32),
        in_specs=[vmem] * 8 + [hbm] + [vmem] * 2,
        out_specs=vmem,
        scratch_shapes=[
            pltpu.VMEM((c, c), jnp.bfloat16),          # w104 staging buffer
            pltpu.SemaphoreType.DMA(()),               # its completion sem
        ],
        cost_estimate=cost,
    )(x322_cm, x319_cm, x313_cm,
      w102, p["b102"],
      w103, p["g63"], p["b63"],
      w104, p["g64"], p["b64"])

    # Free reshape back to NCHW.
    return out_cm.reshape(n, c, h, w)


def init_params(key, c=336, cse=84):
    ks = jax.random.split(key, 6)
    return {
        # 1x1 conv weights stored as (Cout, Cin) matrices (PyTorch layout, 1x1 squeezed)
        "w102": jax.random.normal(ks[0], (c, cse), jnp.float32) / jnp.sqrt(cse),
        "b102": 0.1 * jax.random.normal(ks[1], (c, 1), jnp.float32),
        "w103": jax.random.normal(ks[2], (c, c), jnp.float32) / jnp.sqrt(c),
        "w104": jax.random.normal(ks[3], (c, c), jnp.float32) / jnp.sqrt(c),
        "g63": 1.0 + 0.1 * jax.random.normal(ks[4], (c, 1), jnp.float32),
        "b63": jnp.zeros((c, 1), jnp.float32),
        "g64": 1.0 + 0.1 * jax.random.normal(ks[5], (c, 1), jnp.float32),
        "b64": jnp.zeros((c, 1), jnp.float32),
    }


def reference(x322, x319, x313, p):
    """Pure-JAX reference mirroring the PyTorch forward (training-mode BN)."""
    c = x319.shape[1]
    hp = jax.lax.Precision.HIGHEST
    gate = jax.nn.sigmoid(
        jnp.einsum("oc,ncij->noij", p["w102"], x322, precision=hp)
        + p["b102"].reshape(1, c, 1, 1))
    x325 = gate * x319
    x326 = jnp.einsum("oc,nchw->nohw", p["w103"], x325, precision=hp)
    m1 = jnp.mean(x326, axis=(0, 2, 3), keepdims=True)
    v1 = jnp.mean((x326 - m1) ** 2, axis=(0, 2, 3), keepdims=True)
    x327 = (x326 - m1) / jnp.sqrt(v1 + EPS) * p["g63"].reshape(1, c, 1, 1) \
           + p["b63"].reshape(1, c, 1, 1)
    x328 = jnp.maximum(x313 + x327, 0.0)
    x330 = jnp.einsum("oc,nchw->nohw", p["w104"], x328, precision=hp)
    m2 = jnp.mean(x330, axis=(0, 2, 3), keepdims=True)
    v2 = jnp.mean((x330 - m2) ** 2, axis=(0, 2, 3), keepdims=True)
    return (x330 - m2) / jnp.sqrt(v2 + EPS) * p["g64"].reshape(1, c, 1, 1) \
           + p["b64"].reshape(1, c, 1, 1)


if __name__ == "__main__":
    key = jax.random.PRNGKey(0)
    k_p, k1, k2, k3 = jax.random.split(key, 4)

    N, C, CSE, H, W = 1, 336, 84, 14, 14   # shapes implied by the module
    params = init_params(k_p, c=C, cse=CSE)

    x322 = jax.random.normal(k1, (N, CSE, 1, 1), jnp.float32)
    x319 = jax.random.normal(k2, (N, C, H, W), jnp.float32)
    x313 = jax.random.normal(k3, (N, C, H, W), jnp.float32)

    out = jax.block_until_ready(fused_forward(x322, x319, x313, params))

    ref = reference(x322, x319, x313, params)
    assert out.shape == (N, C, H, W)
    assert bool(jnp.all(jnp.isfinite(out)))
    assert bool(jnp.allclose(out, ref, rtol=5e-2, atol=5e-2)), \
        f"max abs diff {float(jnp.max(jnp.abs(out - ref)))}"

    print("KERNEL_OK")
</pallas_src>

<mosaic_0001>
module attributes {stable_mosaic.version = 11 : i64} {
  func.func @_fused_kernel(%arg0: memref<1x84xf32, #tpu.memory_space<vmem>>, %arg1: memref<336x196xf32, #tpu.memory_space<vmem>>, %arg2: memref<336x196xf32, #tpu.memory_space<vmem>>, %arg3: memref<336x84xbf16, #tpu.memory_space<vmem>>, %arg4: memref<336x1xf32, #tpu.memory_space<vmem>>, %arg5: memref<336x336xbf16, #tpu.memory_space<vmem>>, %arg6: memref<336x1xf32, #tpu.memory_space<vmem>>, %arg7: memref<336x1xf32, #tpu.memory_space<vmem>>, %arg8: memref<336x336xbf16, #tpu.memory_space<any>>, %arg9: memref<336x1xf32, #tpu.memory_space<vmem>>, %arg10: memref<336x1xf32, #tpu.memory_space<vmem>>, %arg11: memref<336x196xf32, #tpu.memory_space<vmem>>, %arg12: memref<336x336xbf16, #tpu.memory_space<vmem>>, %arg13: memref<!tpu.dma_semaphore, #tpu.memory_space<semaphore_mem>>) attributes {dimension_semantics = [], scalar_prefetch = 0 : i64, scratch_operands = 2 : i64, tpu.core_type = #tpu.core_type<tc>} {
    tpu.enqueue_dma source(%arg8 : memref<336x336xbf16, #tpu.memory_space<any>>) target(%arg12 : memref<336x336xbf16, #tpu.memory_space<vmem>>) target_semaphore(%arg13 : memref<!tpu.dma_semaphore, #tpu.memory_space<semaphore_mem>>)
    %c0 = arith.constant 0 : index
    %c0_0 = arith.constant 0 : index
    %0 = vector.load %arg3[%c0, %c0_0] : memref<336x84xbf16, #tpu.memory_space<vmem>>, vector<336x84xbf16>
    %1 = arith.extf %0 : vector<336x84xbf16> to vector<336x84xf32>
    %c0_1 = arith.constant 0 : index
    %c0_2 = arith.constant 0 : index
    %2 = vector.load %arg0[%c0_1, %c0_2] : memref<1x84xf32, #tpu.memory_space<vmem>>, vector<1x84xf32>
    %3 = vector.broadcast %2 : vector<1x84xf32> to vector<336x84xf32>
    %4 = arith.mulf %1, %3 : vector<336x84xf32>
    %cst = arith.constant dense<0.000000e+00> : vector<336xf32>
    %5 = vector.multi_reduction <add>, %4, %cst [1] : vector<336x84xf32> to vector<336xf32>
    %6 = vector.shape_cast %5 : vector<336xf32> to vector<336x1xf32>
    %c0_3 = arith.constant 0 : index
    %c0_4 = arith.constant 0 : index
    %7 = vector.load %arg4[%c0_3, %c0_4] : memref<336x1xf32, #tpu.memory_space<vmem>>, vector<336x1xf32>
    %8 = arith.addf %6, %7 : vector<336x1xf32>
    %9 = arith.negf %8 : vector<336x1xf32>
    %10 = math.exp %9 : vector<336x1xf32>
    %cst_5 = arith.constant 1.000000e+00 : f32
    %11 = vector.broadcast %cst_5 : f32 to vector<336x1xf32>
    %12 = arith.addf %11, %10 : vector<336x1xf32>
    %13 = arith.divf %11, %12 : vector<336x1xf32>
    %c0_6 = arith.constant 0 : index
    %c0_7 = arith.constant 0 : index
    %14 = vector.load %arg1[%c0_6, %c0_7] : memref<336x196xf32, #tpu.memory_space<vmem>>, vector<336x196xf32>
    %15 = vector.broadcast %13 : vector<336x1xf32> to vector<336x196xf32>
    %16 = arith.mulf %15, %14 : vector<336x196xf32>
    %c0_8 = arith.constant 0 : index
    %c0_9 = arith.constant 0 : index
    %17 = vector.load %arg5[%c0_8, %c0_9] : memref<336x336xbf16, #tpu.memory_space<vmem>>, vector<336x336xbf16>
    %18 = arith.truncf %16 : vector<336x196xf32> to vector<336x196xbf16>
    %cst_10 = arith.constant dense<0.000000e+00> : vector<336x196xf32>
    %19 = tpu.matmul %17, %18, %cst_10 {dimension_numbers = #tpu.dot_dimension_numbers<[1], [0], [0], [1], [0, 0, 1, 1], [], []>} : vector<336x336xbf16>, vector<336x196xbf16>, vector<336x196xf32> -> vector<336x196xf32>
    %cst_11 = arith.constant dense<0.000000e+00> : vector<336xf32>
    %20 = vector.multi_reduction <add>, %19, %cst_11 [1] : vector<336x196xf32> to vector<336xf32>
    %21 = vector.shape_cast %20 : vector<336xf32> to vector<336x1xf32>
    %cst_12 = arith.constant 0.00510204071 : f32
    %22 = vector.broadcast %cst_12 : f32 to vector<336x1xf32>
    %23 = arith.mulf %21, %22 : vector<336x1xf32>
    %24 = vector.broadcast %23 : vector<336x1xf32> to vector<336x196xf32>
    %25 = arith.subf %19, %24 : vector<336x196xf32>
    %26 = arith.mulf %25, %25 : vector<336x196xf32>
    %cst_13 = arith.constant dense<0.000000e+00> : vector<336xf32>
    %27 = vector.multi_reduction <add>, %26, %cst_13 [1] : vector<336x196xf32> to vector<336xf32>
    %28 = vector.shape_cast %27 : vector<336xf32> to vector<336x1xf32>
    %cst_14 = arith.constant 0.00510204071 : f32
    %29 = vector.broadcast %cst_14 : f32 to vector<336x1xf32>
    %30 = arith.mulf %28, %29 : vector<336x1xf32>
    %c0_15 = arith.constant 0 : index
    %c0_16 = arith.constant 0 : index
    %31 = vector.load %arg6[%c0_15, %c0_16] : memref<336x1xf32, #tpu.memory_space<vmem>>, vector<336x1xf32>
    %cst_17 = arith.constant 9.99999974E-6 : f32
    %32 = vector.broadcast %cst_17 : f32 to vector<336x1xf32>
    %33 = arith.addf %30, %32 : vector<336x1xf32>
    %34 = math.rsqrt %33 : vector<336x1xf32>
    %35 = arith.mulf %31, %34 : vector<336x1xf32>
    %36 = vector.broadcast %35 : vector<336x1xf32> to vector<336x196xf32>
    %37 = arith.mulf %25, %36 : vector<336x196xf32>
    %c0_18 = arith.constant 0 : index
    %c0_19 = arith.constant 0 : index
    %38 = vector.load %arg7[%c0_18, %c0_19] : memref<336x1xf32, #tpu.memory_space<vmem>>, vector<336x1xf32>
    %39 = vector.broadcast %38 : vector<336x1xf32> to vector<336x196xf32>
    %40 = arith.addf %37, %39 : vector<336x196xf32>
    %c0_20 = arith.constant 0 : index
    %c0_21 = arith.constant 0 : index
    %41 = vector.load %arg2[%c0_20, %c0_21] : memref<336x196xf32, #tpu.memory_space<vmem>>, vector<336x196xf32>
    %42 = arith.addf %41, %40 : vector<336x196xf32>
    %cst_22 = arith.constant 0.000000e+00 : f32
    %43 = vector.broadcast %cst_22 : f32 to vector<336x196xf32>
    %44 = arith.maximumf %42, %43 : vector<336x196xf32>
    tpu.wait_dma2 semaphore(%arg13 : memref<!tpu.dma_semaphore, #tpu.memory_space<semaphore_mem>>) src(%arg8 : memref<336x336xbf16, #tpu.memory_space<any>>) dst(%arg12 : memref<336x336xbf16, #tpu.memory_space<vmem>>)
    %c0_23 = arith.constant 0 : index
    %c0_24 = arith.constant 0 : index
    %45 = vector.load %arg12[%c0_23, %c0_24] : memref<336x336xbf16, #tpu.memory_space<vmem>>, vector<336x336xbf16>
    %46 = arith.truncf %44 : vector<336x196xf32> to vector<336x196xbf16>
    %cst_25 = arith.constant dense<0.000000e+00> : vector<336x196xf32>
    %47 = tpu.matmul %45, %46, %cst_25 {dimension_numbers = #tpu.dot_dimension_numbers<[1], [0], [0], [1], [0, 0, 1, 1], [], []>} : vector<336x336xbf16>, vector<336x196xbf16>, vector<336x196xf32> -> vector<336x196xf32>
    %cst_26 = arith.constant dense<0.000000e+00> : vector<336xf32>
    %48 = vector.multi_reduction <add>, %47, %cst_26 [1] : vector<336x196xf32> to vector<336xf32>
    %49 = vector.shape_cast %48 : vector<336xf32> to vector<336x1xf32>
    %cst_27 = arith.constant 0.00510204071 : f32
    %50 = vector.broadcast %cst_27 : f32 to vector<336x1xf32>
    %51 = arith.mulf %49, %50 : vector<336x1xf32>
    %52 = vector.broadcast %51 : vector<336x1xf32> to vector<336x196xf32>
    %53 = arith.subf %47, %52 : vector<336x196xf32>
    %54 = arith.mulf %53, %53 : vector<336x196xf32>
    %cst_28 = arith.constant dense<0.000000e+00> : vector<336xf32>
    %55 = vector.multi_reduction <add>, %54, %cst_28 [1] : vector<336x196xf32> to vector<336xf32>
    %56 = vector.shape_cast %55 : vector<336xf32> to vector<336x1xf32>
    %cst_29 = arith.constant 0.00510204071 : f32
    %57 = vector.broadcast %cst_29 : f32 to vector<336x1xf32>
    %58 = arith.mulf %56, %57 : vector<336x1xf32>
    %c0_30 = arith.constant 0 : index
    %c0_31 = arith.constant 0 : index
    %59 = vector.load %arg9[%c0_30, %c0_31] : memref<336x1xf32, #tpu.memory_space<vmem>>, vector<336x1xf32>
    %cst_32 = arith.constant 9.99999974E-6 : f32
    %60 = vector.broadcast %cst_32 : f32 to vector<336x1xf32>
    %61 = arith.addf %58, %60 : vector<336x1xf32>
    %62 = math.rsqrt %61 : vector<336x1xf32>
    %63 = arith.mulf %59, %62 : vector<336x1xf32>
    %64 = vector.broadcast %63 : vector<336x1xf32> to vector<336x196xf32>
    %65 = arith.mulf %53, %64 : vector<336x196xf32>
    %c0_33 = arith.constant 0 : index
    %c0_34 = arith.constant 0 : index
    %66 = vector.load %arg10[%c0_33, %c0_34] : memref<336x1xf32, #tpu.memory_space<vmem>>, vector<336x1xf32>
    %67 = vector.broadcast %66 : vector<336x1xf32> to vector<336x196xf32>
    %68 = arith.addf %65, %67 : vector<336x196xf32>
    %c0_35 = arith.constant 0 : index
    %c0_36 = arith.constant 0 : index
    %69 = vector.load %arg11[%c0_35, %c0_36] : memref<336x196xf32, #tpu.memory_space<vmem>>, vector<336x196xf32>
    tpu.vector_store %arg11[%c0_35, %c0_36], %68 {strides = array<i32>} : memref<336x196xf32, #tpu.memory_space<vmem>>, vector<336x196xf32>,
    return
  }
}

</mosaic_0001>

<llo_original>
// kernel: fused_forward.1
$region0: #{fused_forward.1}
  #allocation0 [shape = 'u32[]', space=smem, size = 0x4, offset = 0x4, fixed_abs, tag = 'smem constant byte address 0x4 - core index']
  #allocation1 [shape = 'u32[72,128]{1,0:T(1,128)}', space=vmem, size = 0x9000, scoped, tag = 'internal scratch']
  #allocation2 [shape = 'bf16[336,336]{1,0:T(8,128)(2,1)}', space=vmem, size = 0x3f000, scoped, tag = 'scratch operand']
  #allocation3 [shape = 's32[1]{0}', space=sflag, size = 0x4, scoped, tag = 'scratch operand']
  #allocation4 [shape = 's32[]', space=sflag, size = 0x4, offset = 0, fixed_abs, tag = 'sflag constant byte address 0x0 - dummy sync flag']
  %s0 = inlined_call_operand.vmem [shape: f32[1,84], index: 0, kind: input, shape index: {}]
  %s1 = inlined_call_operand.vmem [shape: f32[336,196], index: 1, kind: input, shape index: {}]
  %s2 = inlined_call_operand.vmem [shape: f32[336,196], index: 2, kind: input, shape index: {}]
  %s3 = inlined_call_operand.vmem [shape: bf16[336,84], index: 3, kind: input, shape index: {}]
  %s4 = inlined_call_operand.vmem [shape: f32[336,1], index: 4, kind: input, shape index: {}]
  %s5 = inlined_call_operand.vmem [shape: bf16[336,336], index: 5, kind: input, shape index: {}]
  %s6 = inlined_call_operand.vmem [shape: f32[336,1], index: 6, kind: input, shape index: {}]
  %s7 = inlined_call_operand.vmem [shape: f32[336,1], index: 7, kind: input, shape index: {}]
  %s8 = inlined_call_operand.vmem [shape: bf16[336,336], index: 8, kind: input, shape index: {}]
  %s9 = inlined_call_operand.vmem [shape: f32[336,1], index: 9, kind: input, shape index: {}]
  %s10 = inlined_call_operand.vmem [shape: f32[336,1], index: 10, kind: input, shape index: {}]
  %s11 = inlined_call_operand.vmem [shape: f32[336,196], index: 11, kind: output, shape index: {}]
  %s12 = sld [smem:[#allocation0]]
  $region69: #{fused_forward.1} parent=0
    _
  %s14 = ssub.s32 1, %s12
  %s15 = scalar_select 0, %s14, %s12
  // Predicated region
  $region2: #{fused_forward.1} parent=0 // pred_check
    _
  $region3: #{fused_forward.1} parent=0 // pred_check_branch
    %17 = sbr.rel (0) target = $region5
  $region4: #{fused_forward.1} parent=0 // pred_region
    _
  $region5: #{fused_forward.1} parent=0 // pred_fallthru
    _
  // Predicated region
  $region6: #{fused_forward.1} parent=0 // pred_check
    _
  $region7: #{fused_forward.1} parent=0 // pred_check_branch
    %19 = sbr.rel (0) target = $region9
  $region8: #{fused_forward.1} parent=0 // pred_region
    _
  $region9: #{fused_forward.1} parent=0 // pred_fallthru
    _
  // Predicated region
  $region10: #{fused_forward.1} parent=0 // pred_check
    _
  $region11: #{fused_forward.1} parent=0 // pred_check_branch
    %21 = sbr.rel (0) target = $region13
  $region12: #{fused_forward.1} parent=0 // pred_region
    _
  $region13: #{fused_forward.1} parent=0 // pred_fallthru
    _
  // Predicated region
  $region14: #{fused_forward.1} parent=0 // pred_check
    _
  $region15: #{fused_forward.1} parent=0 // pred_check_branch
    %23 = sbr.rel (0) target = $region17
  $region16: #{fused_forward.1} parent=0 // pred_region
    _
  $region17: #{fused_forward.1} parent=0 // pred_fallthru
    _
  // Predicated region
  $region18: #{fused_forward.1} parent=0 // pred_check
    _
  $region19: #{fused_forward.1} parent=0 // pred_check_branch
    %25 = sbr.rel (0) target = $region21
  $region20: #{fused_forward.1} parent=0 // pred_region
    _
  $region21: #{fused_forward.1} parent=0 // pred_fallthru
    _
  // Predicated region
  $region22: #{fused_forward.1} parent=0 // pred_check
    _
  $region23: #{fused_forward.1} parent=0 // pred_check_branch
    %27 = sbr.rel (0) target = $region25
  $region24: #{fused_forward.1} parent=0 // pred_region
    _
  $region25: #{fused_forward.1} parent=0 // pred_fallthru
    _
  // Predicated region
  $region26: #{fused_forward.1} parent=0 // pred_check
    _
  $region27: #{fused_forward.1} parent=0 // pred_check_branch
    %29 = sbr.rel (0) target = $region29
  $region28: #{fused_forward.1} parent=0 // pred_region
    _
  $region29: #{fused_forward.1} parent=0 // pred_fallthru
    _
  // Predicated region
  $region30: #{fused_forward.1} parent=0 // pred_check
    _
  $region31: #{fused_forward.1} parent=0 // pred_check_branch
    %31 = sbr.rel (0) target = $region33
  $region32: #{fused_forward.1} parent=0 // pred_region
    _
  $region33: #{fused_forward.1} parent=0 // pred_fallthru
    _
  // Predicated region
  $region34: #{fused_forward.1} parent=0 // pred_check
    _
  $region35: #{fused_forward.1} parent=0 // pred_check_branch
    %33 = sbr.rel (0) target = $region37
  $region36: #{fused_forward.1} parent=0 // pred_region
    _
  $region37: #{fused_forward.1} parent=0 // pred_fallthru
    _
  // Predicated region
  $region38: #{fused_forward.1} parent=0 // pred_check
    _
  $region39: #{fused_forward.1} parent=0 // pred_check_branch
    %35 = sbr.rel (0) target = $region41
  $region40: #{fused_forward.1} parent=0 // pred_region
    _
  $region41: #{fused_forward.1} parent=0 // pred_fallthru
    _
  // Predicated region
  $region42: #{fused_forward.1} parent=0 // pred_check
    _
  $region43: #{fused_forward.1} parent=0 // pred_check_branch
    %38 = sbr.rel (0) target = $region45
  $region44: #{fused_forward.1} parent=0 // pred_region
    loop: start=0, step=1, limit=1
    $region46: #{fused_forward.1} parent=44 // loop_pre_header
      _
    $region47: #{fused_forward.1} parent=44 // loop_header
      %s40 = sphi 0, %s44
      %p41 = scmp.ge.s32.totalorder %s40, 1
      %s45 = sphi %s8, %s8
      %s46 = sphi [#allocation2], [#allocation2]
    $region48: #{fused_forward.1} parent=44 // loop_header_branch
      %43 = sbr.rel (%p41) target = $region52
    $region49: #{fused_forward.1} parent=44 // loop_body
      %v47 = vld [vmem:[%s45] sm:$0xff]
      %48 = vst [vmem:[%s46] sm:$0xff] %v47
      %v49 = vld [vmem:[%s45 + $0x8] sm:$0xff]
      %50 = vst [vmem:[%s46 + $0x8] sm:$0xff] %v49
      %v51 = vld [vmem:[%s45 + $0x10] sm:$0xff]
      %52 = vst [vmem:[%s46 + $0x10] sm:$0xff] %v51
      %v53 = vld [vmem:[%s45 + $0x18] sm:$0xff]
      %54 = vst [vmem:[%s46 + $0x18] sm:$0xff] %v53
      %v55 = vld [vmem:[%s45 + $0x20] sm:$0xff]
      %56 = vst [vmem:[%s46 + $0x20] sm:$0xff] %v55
      %v57 = vld [vmem:[%s45 + $0x28] sm:$0xff]
      %58 = vst [vmem:[%s46 + $0x28] sm:$0xff] %v57
      %v59 = vld [vmem:[%s45 + $0x30] sm:$0xff]
      %60 = vst [vmem:[%s46 + $0x30] sm:$0xff] %v59
      %v61 = vld [vmem:[%s45 + $0x38] sm:$0xff]
      %62 = vst [vmem:[%s46 + $0x38] sm:$0xff] %v61
      %v63 = vld [vmem:[%s45 + $0x40] sm:$0xff]
      %64 = vst [vmem:[%s46 + $0x40] sm:$0xff] %v63
      %v65 = vld [vmem:[%s45 + $0x48] sm:$0xff]
      %66 = vst [vmem:[%s46 + $0x48] sm:$0xff] %v65
      %v67 = vld [vmem:[%s45 + $0x50] sm:$0xff]
      %68 = vst [vmem:[%s46 + $0x50] sm:$0xff] %v67
      %v69 = vld [vmem:[%s45 + $0x58] sm:$0xff]
      %70 = vst [vmem:[%s46 + $0x58] sm:$0xff] %v69
      %v71 = vld [vmem:[%s45 + $0x60] sm:$0xff]
      %72 = vst [vmem:[%s46 + $0x60] sm:$0xff] %v71
      %v73 = vld [vmem:[%s45 + $0x68] sm:$0xff]
      %74 = vst [vmem:[%s46 + $0x68] sm:$0xff] %v73
      %v75 = vld [vmem:[%s45 + $0x70] sm:$0xff]
      %76 = vst [vmem:[%s46 + $0x70] sm:$0xff] %v75
      %v77 = vld [vmem:[%s45 + $0x78] sm:$0xff]
      %78 = vst [vmem:[%s46 + $0x78] sm:$0xff] %v77
      %v79 = vld [vmem:[%s45 + $0x80] sm:$0xff]
      %80 = vst [vmem:[%s46 + $0x80] sm:$0xff] %v79
      %v81 = vld [vmem:[%s45 + $0x88] sm:$0xff]
      %82 = vst [vmem:[%s46 + $0x88] sm:$0xff] %v81
      %v83 = vld [vmem:[%s45 + $0x90] sm:$0xff]
      %84 = vst [vmem:[%s46 + $0x90] sm:$0xff] %v83
      %v85 = vld [vmem:[%s45 + $0x98] sm:$0xff]
      %86 = vst [vmem:[%s46 + $0x98] sm:$0xff] %v85
      %v87 = vld [vmem:[%s45 + $0xa0] sm:$0xff]
      %88 = vst [vmem:[%s46 + $0xa0] sm:$0xff] %v87
      %v89 = vld [vmem:[%s45 + $0xa8] sm:$0xff]
      %90 = vst [vmem:[%s46 + $0xa8] sm:$0xff] %v89
      %v91 = vld [vmem:[%s45 + $0xb0] sm:$0xff]
      %92 = vst [vmem:[%s46 + $0xb0] sm:$0xff] %v91
      %v93 = vld [vmem:[%s45 + $0xb8] sm:$0xff]
      %94 = vst [vmem:[%s46 + $0xb8] sm:$0xff] %v93
      %v95 = vld [vmem:[%s45 + $0xc0] sm:$0xff]
      %96 = vst [vmem:[%s46 + $0xc0] sm:$0xff] %v95
      %v97 = vld [vmem:[%s45 + $0xc8] sm:$0xff]
      %98 = vst [vmem:[%s46 + $0xc8] sm:$0xff] %v97
      %v99 = vld [vmem:[%s45 + $0xd0] sm:$0xff]
      %100 = vst [vmem:[%s46 + $0xd0] sm:$0xff] %v99
      %v101 = vld [vmem:[%s45 + $0xd8] sm:$0xff]
      %102 = vst [vmem:[%s46 + $0xd8] sm:$0xff] %v101
      %v103 = vld [vmem:[%s45 + $0xe0] sm:$0xff]
      %104 = vst [vmem:[%s46 + $0xe0] sm:$0xff] %v103
      %v105 = vld [vmem:[%s45 + $0xe8] sm:$0xff]
      %106 = vst [vmem:[%s46 + $0xe8] sm:$0xff] %v105
      %v107 = vld [vmem:[%s45 + $0xf0] sm:$0xff]
      %108 = vst [vmem:[%s46 + $0xf0] sm:$0xff] %v107
      %v109 = vld [vmem:[%s45 + $0xf8] sm:$0xff]
      %110 = vst [vmem:[%s46 + $0xf8] sm:$0xff] %v109
      %v111 = vld [vmem:[%s45 + $0x100] sm:$0xff]
      %112 = vst [vmem:[%s46 + $0x100] sm:$0xff] %v111
      %v113 = vld [vmem:[%s45 + $0x108] sm:$0xff]
      %114 = vst [vmem:[%s46 + $0x108] sm:$0xff] %v113
      %v115 = vld [vmem:[%s45 + $0x110] sm:$0xff]
      %116 = vst [vmem:[%s46 + $0x110] sm:$0xff] %v115
      %v117 = vld [vmem:[%s45 + $0x118] sm:$0xff]
      %118 = vst [vmem:[%s46 + $0x118] sm:$0xff] %v117
      %v119 = vld [vmem:[%s45 + $0x120] sm:$0xff]
      %120 = vst [vmem:[%s46 + $0x120] sm:$0xff] %v119
      %v121 = vld [vmem:[%s45 + $0x128] sm:$0xff]
      %122 = vst [vmem:[%s46 + $0x128] sm:$0xff] %v121
      %v123 = vld [vmem:[%s45 + $0x130] sm:$0xff]
      %124 = vst [vmem:[%s46 + $0x130] sm:$0xff] %v123
      %v125 = vld [vmem:[%s45 + $0x138] sm:$0xff]
      %126 = vst [vmem:[%s46 + $0x138] sm:$0xff] %v125
      %v127 = vld [vmem:[%s45 + $0x140] sm:$0xff]
      %128 = vst [vmem:[%s46 + $0x140] sm:$0xff] %v127
      %v129 = vld [vmem:[%s45 + $0x148] sm:$0xff]
      %130 = vst [vmem:[%s46 + $0x148] sm:$0xff] %v129
      %v131 = vld [vmem:[%s45 + $0x150] sm:$0xff]
      %132 = vst [vmem:[%s46 + $0x150] sm:$0xff] %v131
      %v133 = vld [vmem:[%s45 + $0x158] sm:$0xff]
      %134 = vst [vmem:[%s46 + $0x158] sm:$0xff] %v133
      %v135 = vld [vmem:[%s45 + $0x160] sm:$0xff]
      %136 = vst [vmem:[%s46 + $0x160] sm:$0xff] %v135
      %v137 = vld [vmem:[%s45 + $0x168] sm:$0xff]
      %138 = vst [vmem:[%s46 + $0x168] sm:$0xff] %v137
      %v139 = vld [vmem:[%s45 + $0x170] sm:$0xff]
      %140 = vst [vmem:[%s46 + $0x170] sm:$0xff] %v139
      %v141 = vld [vmem:[%s45 + $0x178] sm:$0xff]
      %142 = vst [vmem:[%s46 + $0x178] sm:$0xff] %v141
      %v143 = vld [vmem:[%s45 + $0x180] sm:$0xff]
      %144 = vst [vmem:[%s46 + $0x180] sm:$0xff] %v143
      %v145 = vld [vmem:[%s45 + $0x188] sm:$0xff]
      %146 = vst [vmem:[%s46 + $0x188] sm:$0xff] %v145
      %v147 = vld [vmem:[%s45 + $0x190] sm:$0xff]
      %148 = vst [vmem:[%s46 + $0x190] sm:$0xff] %v147
      %v149 = vld [vmem:[%s45 + $0x198] sm:$0xff]
      %150 = vst [vmem:[%s46 + $0x198] sm:$0xff] %v149
      %v151 = vld [vmem:[%s45 + $0x1a0] sm:$0xff]
      %152 = vst [vmem:[%s46 + $0x1a0] sm:$0xff] %v151
      %v153 = vld [vmem:[%s45 + $0x1a8] sm:$0xff]
      %154 = vst [vmem:[%s46 + $0x1a8] sm:$0xff] %v153
      %v155 = vld [vmem:[%s45 + $0x1b0] sm:$0xff]
      %156 = vst [vmem:[%s46 + $0x1b0] sm:$0xff] %v155
      %v157 = vld [vmem:[%s45 + $0x1b8] sm:$0xff]
      %158 = vst [vmem:[%s46 + $0x1b8] sm:$0xff] %v157
      %v159 = vld [vmem:[%s45 + $0x1c0] sm:$0xff]
      %160 = vst [vmem:[%s46 + $0x1c0] sm:$0xff] %v159
      %v161 = vld [vmem:[%s45 + $0x1c8] sm:$0xff]
      %162 = vst [vmem:[%s46 + $0x1c8] sm:$0xff] %v161
      %v163 = vld [vmem:[%s45 + $0x1d0] sm:$0xff]
      %164 = vst [vmem:[%s46 + $0x1d0] sm:$0xff] %v163
      %v165 = vld [vmem:[%s45 + $0x1d8] sm:$0xff]
      %166 = vst [vmem:[%s46 + $0x1d8] sm:$0xff] %v165
      %v167 = vld [vmem:[%s45 + $0x1e0] sm:$0xff]
      %168 = vst [vmem:[%s46 + $0x1e0] sm:$0xff] %v167
      %v169 = vld [vmem:[%s45 + $0x1e8] sm:$0xff]
      %170 = vst [vmem:[%s46 + $0x1e8] sm:$0xff] %v169
      %v171 = vld [vmem:[%s45 + $0x1f0] sm:$0xff]
      %172 = vst [vmem:[%s46 + $0x1f0] sm:$0xff] %v171
    $region50: #{fused_forward.1} parent=44 // loop_footer
      %s44 = sadd.s32 1, %s40
    $region51: #{fused_forward.1} parent=44 // loop_footer_branch
      %39 = sbr.rel target = $region47
    $region52: #{fused_forward.1} parent=44 // loop_exit
      _
  $region45: #{fused_forward.1} parent=0 // pred_fallthru
    _
  // Predicated region
  $region53: #{fused_forward.1} parent=0 // pred_check
    _
  $region54: #{fused_forward.1} parent=0 // pred_check_branch
    %174 = sbr.rel target = $region56
  $region55: #{fused_forward.1} parent=0 // pred_region
    _
  $region56: #{fused_forward.1} parent=0 // pred_fallthru
    _
  // Predicated region
  $region57: #{fused_forward.1} parent=0 // pred_check
    _
  $region58: #{fused_forward.1} parent=0 // pred_check_branch
    %177 = sbr.rel (0) target = $region60
  $region59: #{fused_forward.1} parent=0 // pred_region
    %178 = vsyncadd [#allocation3], 8064
  $region60: #{fused_forward.1} parent=0 // pred_fallthru
    _
  %v179 = vld [vmem:[%s3] sm:$0xf]
  %v180 = vld [vmem:[%s3 + $0x4] sm:$0xf]
  %v181 = vld [vmem:[%s3 + $0x8] sm:$0xf]
  %v182 = vld [vmem:[%s3 + $0xc] sm:$0xf]
  %v183 = vld [vmem:[%s3 + $0x10] sm:$0xf]
  %v184 = vld [vmem:[%s3 + $0x14] sm:$0xf]
  %v185 = vld [vmem:[%s3 + $0x18] sm:$0xf]
  %v186 = vld [vmem:[%s3 + $0x1c] sm:$0xf]
  %v187 = vld [vmem:[%s3 + $0x20] sm:$0xf]
  %v188 = vld [vmem:[%s3 + $0x24] sm:$0xf]
  %v189 = vld [vmem:[%s3 + $0x28] sm:$0xf]
  %v190 = vld [vmem:[%s3 + $0x2c] sm:$0xf]
  %v191 = vld [vmem:[%s3 + $0x30] sm:$0xf]
  %v192 = vld [vmem:[%s3 + $0x34] sm:$0xf]
  %v193 = vld [vmem:[%s3 + $0x38] sm:$0xf]
  %v194 = vld [vmem:[%s3 + $0x3c] sm:$0xf]
  %v195 = vld [vmem:[%s3 + $0x40] sm:$0xf]
  %v196 = vld [vmem:[%s3 + $0x44] sm:$0xf]
  %v197 = vld [vmem:[%s3 + $0x48] sm:$0xf]
  %v198 = vld [vmem:[%s3 + $0x4c] sm:$0xf]
  %v199 = vld [vmem:[%s3 + $0x50] sm:$0xf]
  %v200 = vld [vmem:[%s3 + $0x54] sm:$0xf]
  %v201 = vld [vmem:[%s3 + $0x58] sm:$0xf]
  %v202 = vld [vmem:[%s3 + $0x5c] sm:$0xf]
  %v203 = vld [vmem:[%s3 + $0x60] sm:$0xf]
  %v204 = vld [vmem:[%s3 + $0x64] sm:$0xf]
  %v205 = vld [vmem:[%s3 + $0x68] sm:$0xf]
  %v206 = vld [vmem:[%s3 + $0x6c] sm:$0xf]
  %v207 = vld [vmem:[%s3 + $0x70] sm:$0xf]
  %v208 = vld [vmem:[%s3 + $0x74] sm:$0xf]
  %v209 = vld [vmem:[%s3 + $0x78] sm:$0xf]
  %v210 = vld [vmem:[%s3 + $0x7c] sm:$0xf]
  %v211 = vld [vmem:[%s3 + $0x80] sm:$0xf]
  %v212 = vld [vmem:[%s3 + $0x84] sm:$0xf]
  %v213 = vld [vmem:[%s3 + $0x88] sm:$0xf]
  %v214 = vld [vmem:[%s3 + $0x8c] sm:$0xf]
  %v215 = vld [vmem:[%s3 + $0x90] sm:$0xf]
  %v216 = vld [vmem:[%s3 + $0x94] sm:$0xf]
  %v217 = vld [vmem:[%s3 + $0x98] sm:$0xf]
  %v218 = vld [vmem:[%s3 + $0x9c] sm:$0xf]
  %v219 = vld [vmem:[%s3 + $0xa0] sm:$0xf]
  %v220 = vld [vmem:[%s3 + $0xa4] sm:$0xf]
  %v221 = vunpack.c.l.bf16 %v179
  %v222 = vunpack.c.l.bf16 %v180
  %v223 = vunpack.c.l.bf16 %v181
  %v224 = vunpack.c.l.bf16 %v182
  %v225 = vunpack.c.l.bf16 %v183
  %v226 = vunpack.c.l.bf16 %v184
  %v227 = vunpack.c.l.bf16 %v185
  %v228 = vunpack.c.l.bf16 %v186
  %v229 = vunpack.c.l.bf16 %v187
  %v230 = vunpack.c.l.bf16 %v188
  %v231 = vunpack.c.l.bf16 %v189
  %v232 = vunpack.c.l.bf16 %v190
  %v233 = vunpack.c.l.bf16 %v191
  %v234 = vunpack.c.l.bf16 %v192
  %v235 = vunpack.c.l.bf16 %v193
  %v236 = vunpack.c.l.bf16 %v194
  %v237 = vunpack.c.l.bf16 %v195
  %v238 = vunpack.c.l.bf16 %v196
  %v239 = vunpack.c.l.bf16 %v197
  %v240 = vunpack.c.l.bf16 %v198
  %v241 = vunpack.c.l.bf16 %v199
  %v242 = vunpack.c.l.bf16 %v200
  %v243 = vunpack.c.l.bf16 %v201
  %v244 = vunpack.c.l.bf16 %v202
  %v245 = vunpack.c.l.bf16 %v203
  %v246 = vunpack.c.l.bf16 %v204
  %v247 = vunpack.c.l.bf16 %v205
  %v248 = vunpack.c.l.bf16 %v206
  %v249 = vunpack.c.l.bf16 %v207
  %v250 = vunpack.c.l.bf16 %v208
  %v251 = vunpack.c.l.bf16 %v209
  %v252 = vunpack.c.l.bf16 %v210
  %v253 = vunpack.c.l.bf16 %v211
  %v254 = vunpack.c.l.bf16 %v212
  %v255 = vunpack.c.l.bf16 %v213
  %v256 = vunpack.c.l.bf16 %v214
  %v257 = vunpack.c.l.bf16 %v215
  %v258 = vunpack.c.l.bf16 %v216
  %v259 = vunpack.c.l.bf16 %v217
  %v260 = vunpack.c.l.bf16 %v218
  %v261 = vunpack.c.l.bf16 %v219
  %v262 = vunpack.c.l.bf16 %v220
  %v263 = vld [vmem:[%s0] sm:$0x1]
  %v265 = vperm.slane %v263, 0
  %v267 = vmul.f32 %v221, %v265
  %v268 = vmul.f32 %v222, %v265
  %v269 = vmul.f32 %v223, %v265
  %v270 = vmul.f32 %v224, %v265
  %v271 = vmul.f32 %v225, %v265
  %v272 = vmul.f32 %v226, %v265
  %v273 = vmul.f32 %v227, %v265
  %v274 = vmul.f32 %v228, %v265
  %v275 = vmul.f32 %v229, %v265
  %v276 = vmul.f32 %v230, %v265
  %v277 = vmul.f32 %v231, %v265
  %v278 = vmul.f32 %v232, %v265
  %v279 = vmul.f32 %v233, %v265
  %v280 = vmul.f32 %v234, %v265
  %v281 = vmul.f32 %v235, %v265
  %v282 = vmul.f32 %v236, %v265
  %v283 = vmul.f32 %v237, %v265
  %v284 = vmul.f32 %v238, %v265
  %v285 = vmul.f32 %v239, %v265
  %v286 = vmul.f32 %v240, %v265
  %v287 = vmul.f32 %v241, %v265
  %v288 = vmul.f32 %v242, %v265
  %v289 = vmul.f32 %v243, %v265
  %v290 = vmul.f32 %v244, %v265
  %v291 = vmul.f32 %v245, %v265
  %v292 = vmul.f32 %v246, %v265
  %v293 = vmul.f32 %v247, %v265
  %v294 = vmul.f32 %v248, %v265
  %v295 = vmul.f32 %v249, %v265
  %v296 = vmul.f32 %v250, %v265
  %v297 = vmul.f32 %v251, %v265
  %v298 = vmul.f32 %v252, %v265
  %v299 = vmul.f32 %v253, %v265
  %v300 = vmul.f32 %v254, %v265
  %v301 = vmul.f32 %v255, %v265
  %v302 = vmul.f32 %v256, %v265
  %v303 = vmul.f32 %v257, %v265
  %v304 = vmul.f32 %v258, %v265
  %v305 = vmul.f32 %v259, %v265
  %v306 = vmul.f32 %v260, %v265
  %v307 = vmul.f32 %v261, %v265
  %v308 = vmul.f32 %v262, %v265
  %vm309 = vcmask 687104
  %v310 = vsel %vm309, %v267, 0.0
  %311 = vadd.xlane.f32.xlu0 %v310
  %v312 = vpop.xlane.xlu0 %311
  %v313 = vsel %vm309, %v268, 0.0
  %314 = vadd.xlane.f32.xlu0 %v313
  %v315 = vpop.xlane.xlu0 %314
  %v316 = vsel %vm309, %v269, 0.0
  %317 = vadd.xlane.f32.xlu0 %v316
  %v318 = vpop.xlane.xlu0 %317
  %v319 = vsel %vm309, %v270, 0.0
  %320 = vadd.xlane.f32.xlu0 %v319
  %v321 = vpop.xlane.xlu0 %320
  %v322 = vsel %vm309, %v271, 0.0
  %323 = vadd.xlane.f32.xlu0 %v322
  %v324 = vpop.xlane.xlu0 %323
  %v325 = vsel %vm309, %v272, 0.0
  %326 = vadd.xlane.f32.xlu0 %v325
  %v327 = vpop.xlane.xlu0 %326
  %v328 = vsel %vm309, %v273, 0.0
  %329 = vadd.xlane.f32.xlu0 %v328
  %v330 = vpop.xlane.xlu0 %329
  %v331 = vsel %vm309, %v274, 0.0
  %332 = vadd.xlane.f32.xlu0 %v331
  %v333 = vpop.xlane.xlu0 %332
  %v334 = vsel %vm309, %v275, 0.0
  %335 = vadd.xlane.f32.xlu0 %v334
  %v336 = vpop.xlane.xlu0 %335
  %v337 = vsel %vm309, %v276, 0.0
  %338 = vadd.xlane.f32.xlu0 %v337
  %v339 = vpop.xlane.xlu0 %338
  %v340 = vsel %vm309, %v277, 0.0
  %341 = vadd.xlane.f32.xlu0 %v340
  %v342 = vpop.xlane.xlu0 %341
  %v343 = vsel %vm309, %v278, 0.0
  %344 = vadd.xlane.f32.xlu0 %v343
  %v345 = vpop.xlane.xlu0 %344
  %v346 = vsel %vm309, %v279, 0.0
  %347 = vadd.xlane.f32.xlu0 %v346
  %v348 = vpop.xlane.xlu0 %347
  %v349 = vsel %vm309, %v280, 0.0
  %350 = vadd.xlane.f32.xlu0 %v349
  %v351 = vpop.xlane.xlu0 %350
  %v352 = vsel %vm309, %v281, 0.0
  %353 = vadd.xlane.f32.xlu0 %v352
  %v354 = vpop.xlane.xlu0 %353
  %v355 = vsel %vm309, %v282, 0.0
  %356 = vadd.xlane.f32.xlu0 %v355
  %v357 = vpop.xlane.xlu0 %356
  %v358 = vsel %vm309, %v283, 0.0
  %359 = vadd.xlane.f32.xlu0 %v358
  %v360 = vpop.xlane.xlu0 %359
  %v361 = vsel %vm309, %v284, 0.0
  %362 = vadd.xlane.f32.xlu0 %v361
  %v363 = vpop.xlane.xlu0 %362
  %v364 = vsel %vm309, %v285, 0.0
  %365 = vadd.xlane.f32.xlu0 %v364
  %v366 = vpop.xlane.xlu0 %365
  %v367 = vsel %vm309, %v286, 0.0
  %368 = vadd.xlane.f32.xlu0 %v367
  %v369 = vpop.xlane.xlu0 %368
  %v370 = vsel %vm309, %v287, 0.0
  %371 = vadd.xlane.f32.xlu0 %v370
  %v372 = vpop.xlane.xlu0 %371
  %v373 = vsel %vm309, %v288, 0.0
  %374 = vadd.xlane.f32.xlu0 %v373
  %v375 = vpop.xlane.xlu0 %374
  %v376 = vsel %vm309, %v289, 0.0
  %377 = vadd.xlane.f32.xlu0 %v376
  %v378 = vpop.xlane.xlu0 %377
  %v379 = vsel %vm309, %v290, 0.0
  %380 = vadd.xlane.f32.xlu0 %v379
  %v381 = vpop.xlane.xlu0 %380
  %v382 = vsel %vm309, %v291, 0.0
  %383 = vadd.xlane.f32.xlu0 %v382
  %v384 = vpop.xlane.xlu0 %383
  %v385 = vsel %vm309, %v292, 0.0
  %386 = vadd.xlane.f32.xlu0 %v385
  %v387 = vpop.xlane.xlu0 %386
  %v388 = vsel %vm309, %v293, 0.0
  %389 = vadd.xlane.f32.xlu0 %v388
  %v390 = vpop.xlane.xlu0 %389
  %v391 = vsel %vm309, %v294, 0.0
  %392 = vadd.xlane.f32.xlu0 %v391
  %v393 = vpop.xlane.xlu0 %392
  %v394 = vsel %vm309, %v295, 0.0
  %395 = vadd.xlane.f32.xlu0 %v394
  %v396 = vpop.xlane.xlu0 %395
  %v397 = vsel %vm309, %v296, 0.0
  %398 = vadd.xlane.f32.xlu0 %v397
  %v399 = vpop.xlane.xlu0 %398
  %v400 = vsel %vm309, %v297, 0.0
  %401 = vadd.xlane.f32.xlu0 %v400
  %v402 = vpop.xlane.xlu0 %401
  %v403 = vsel %vm309, %v298, 0.0
  %404 = vadd.xlane.f32.xlu0 %v403
  %v405 = vpop.xlane.xlu0 %404
  %v406 = vsel %vm309, %v299, 0.0
  %407 = vadd.xlane.f32.xlu0 %v406
  %v408 = vpop.xlane.xlu0 %407
  %v409 = vsel %vm309, %v300, 0.0
  %410 = vadd.xlane.f32.xlu0 %v409
  %v411 = vpop.xlane.xlu0 %410
  %v412 = vsel %vm309, %v301, 0.0
  %413 = vadd.xlane.f32.xlu0 %v412
  %v414 = vpop.xlane.xlu0 %413
  %v415 = vsel %vm309, %v302, 0.0
  %416 = vadd.xlane.f32.xlu0 %v415
  %v417 = vpop.xlane.xlu0 %416
  %v418 = vsel %vm309, %v303, 0.0
  %419 = vadd.xlane.f32.xlu0 %v418
  %v420 = vpop.xlane.xlu0 %419
  %v421 = vsel %vm309, %v304, 0.0
  %422 = vadd.xlane.f32.xlu0 %v421
  %v423 = vpop.xlane.xlu0 %422
  %v424 = vsel %vm309, %v305, 0.0
  %425 = vadd.xlane.f32.xlu0 %v424
  %v426 = vpop.xlane.xlu0 %425
  %v427 = vsel %vm309, %v306, 0.0
  %428 = vadd.xlane.f32.xlu0 %v427
  %v429 = vpop.xlane.xlu0 %428
  %v430 = vsel %vm309, %v307, 0.0
  %431 = vadd.xlane.f32.xlu0 %v430
  %v432 = vpop.xlane.xlu0 %431
  %v433 = vsel %vm309, %v308, 0.0
  %434 = vadd.xlane.f32.xlu0 %v433
  %v435 = vpop.xlane.xlu0 %434
  %v436 = vld [vmem:[%s4] sm:$0xff]
  %v437 = vld [vmem:[%s4 + $0x8] sm:$0xff]
  %v438 = vld [vmem:[%s4 + $0x10] sm:$0xff]
  %v439 = vld [vmem:[%s4 + $0x18] sm:$0xff]
  %v440 = vld [vmem:[%s4 + $0x20] sm:$0xff]
  %v441 = vld [vmem:[%s4 + $0x28] sm:$0xff]
  %v442 = vld [vmem:[%s4 + $0x30] sm:$0xff]
  %v443 = vld [vmem:[%s4 + $0x38] sm:$0xff]
  %v444 = vld [vmem:[%s4 + $0x40] sm:$0xff]
  %v445 = vld [vmem:[%s4 + $0x48] sm:$0xff]
  %v446 = vld [vmem:[%s4 + $0x50] sm:$0xff]
  %v447 = vld [vmem:[%s4 + $0x58] sm:$0xff]
  %v448 = vld [vmem:[%s4 + $0x60] sm:$0xff]
  %v449 = vld [vmem:[%s4 + $0x68] sm:$0xff]
  %v450 = vld [vmem:[%s4 + $0x70] sm:$0xff]
  %v451 = vld [vmem:[%s4 + $0x78] sm:$0xff]
  %v452 = vld [vmem:[%s4 + $0x80] sm:$0xff]
  %v453 = vld [vmem:[%s4 + $0x88] sm:$0xff]
  %v454 = vld [vmem:[%s4 + $0x90] sm:$0xff]
  %v455 = vld [vmem:[%s4 + $0x98] sm:$0xff]
  %v456 = vld [vmem:[%s4 + $0xa0] sm:$0xff]
  %v457 = vld [vmem:[%s4 + $0xa8] sm:$0xff]
  %v458 = vld [vmem:[%s4 + $0xb0] sm:$0xff]
  %v459 = vld [vmem:[%s4 + $0xb8] sm:$0xff]
  %v460 = vld [vmem:[%s4 + $0xc0] sm:$0xff]
  %v461 = vld [vmem:[%s4 + $0xc8] sm:$0xff]
  %v462 = vld [vmem:[%s4 + $0xd0] sm:$0xff]
  %v463 = vld [vmem:[%s4 + $0xd8] sm:$0xff]
  %v464 = vld [vmem:[%s4 + $0xe0] sm:$0xff]
  %v465 = vld [vmem:[%s4 + $0xe8] sm:$0xff]
  %v466 = vld [vmem:[%s4 + $0xf0] sm:$0xff]
  %v467 = vld [vmem:[%s4 + $0xf8] sm:$0xff]
  %v468 = vld [vmem:[%s4 + $0x100] sm:$0xff]
  %v469 = vld [vmem:[%s4 + $0x108] sm:$0xff]
  %v470 = vld [vmem:[%s4 + $0x110] sm:$0xff]
  %v471 = vld [vmem:[%s4 + $0x118] sm:$0xff]
  %v472 = vld [vmem:[%s4 + $0x120] sm:$0xff]
  %v473 = vld [vmem:[%s4 + $0x128] sm:$0xff]
  %v474 = vld [vmem:[%s4 + $0x130] sm:$0xff]
  %v475 = vld [vmem:[%s4 + $0x138] sm:$0xff]
  %v476 = vld [vmem:[%s4 + $0x140] sm:$0xff]
  %v477 = vld [vmem:[%s4 + $0x148] sm:$0xff]
  %v478 = vadd.f32 %v312, %v436
  %v479 = vadd.f32 %v315, %v437
  %v480 = vadd.f32 %v318, %v438
  %v481 = vadd.f32 %v321, %v439
  %v482 = vadd.f32 %v324, %v440
  %v483 = vadd.f32 %v327, %v441
  %v484 = vadd.f32 %v330, %v442
  %v485 = vadd.f32 %v333, %v443
  %v486 = vadd.f32 %v336, %v444
  %v487 = vadd.f32 %v339, %v445
  %v488 = vadd.f32 %v342, %v446
  %v489 = vadd.f32 %v345, %v447
  %v490 = vadd.f32 %v348, %v448
  %v491 = vadd.f32 %v351, %v449
  %v492 = vadd.f32 %v354, %v450
  %v493 = vadd.f32 %v357, %v451
  %v494 = vadd.f32 %v360, %v452
  %v495 = vadd.f32 %v363, %v453
  %v496 = vadd.f32 %v366, %v454
  %v497 = vadd.f32 %v369, %v455
  %v498 = vadd.f32 %v372, %v456
  %v499 = vadd.f32 %v375, %v457
  %v500 = vadd.f32 %v378, %v458
  %v501 = vadd.f32 %v381, %v459
  %v502 = vadd.f32 %v384, %v460
  %v503 = vadd.f32 %v387, %v461
  %v504 = vadd.f32 %v390, %v462
  %v505 = vadd.f32 %v393, %v463
  %v506 = vadd.f32 %v396, %v464
  %v507 = vadd.f32 %v399, %v465
  %v508 = vadd.f32 %v402, %v466
  %v509 = vadd.f32 %v405, %v467
  %v510 = vadd.f32 %v408, %v468
  %v511 = vadd.f32 %v411, %v469
  %v512 = vadd.f32 %v414, %v470
  %v513 = vadd.f32 %v417, %v471
  %v514 = vadd.f32 %v420, %v472
  %v515 = vadd.f32 %v423, %v473
  %v516 = vadd.f32 %v426, %v474
  %v517 = vadd.f32 %v429, %v475
  %v518 = vadd.f32 %v432, %v476
  %v519 = vadd.f32 %v435, %v477
  %v520 = vxor.u32 %v478, 2147483648
  %v521 = vxor.u32 %v479, 2147483648
  %v522 = vxor.u32 %v480, 2147483648
  %v523 = vxor.u32 %v481, 2147483648
  %v524 = vxor.u32 %v482, 2147483648
  %v525 = vxor.u32 %v483, 2147483648
  %v526 = vxor.u32 %v484, 2147483648
  %v527 = vxor.u32 %v485, 2147483648
  %v528 = vxor.u32 %v486, 2147483648
  %v529 = vxor.u32 %v487, 2147483648
  %v530 = vxor.u32 %v488, 2147483648
  %v531 = vxor.u32 %v489, 2147483648
  %v532 = vxor.u32 %v490, 2147483648
  %v533 = vxor.u32 %v491, 2147483648
  %v534 = vxor.u32 %v492, 2147483648
  %v535 = vxor.u32 %v493, 2147483648
  %v536 = vxor.u32 %v494, 2147483648
  %v537 = vxor.u32 %v495, 2147483648
  %v538 = vxor.u32 %v496, 2147483648
  %v539 = vxor.u32 %v497, 2147483648
  %v540 = vxor.u32 %v498, 2147483648
  %v541 = vxor.u32 %v499, 2147483648
  %v542 = vxor.u32 %v500, 2147483648
  %v543 = vxor.u32 %v501, 2147483648
  %v544 = vxor.u32 %v502, 2147483648
  %v545 = vxor.u32 %v503, 2147483648
  %v546 = vxor.u32 %v504, 2147483648
  %v547 = vxor.u32 %v505, 2147483648
  %v548 = vxor.u32 %v506, 2147483648
  %v549 = vxor.u32 %v507, 2147483648
  %v550 = vxor.u32 %v508, 2147483648
  %v551 = vxor.u32 %v509, 2147483648
  %v552 = vxor.u32 %v510, 2147483648
  %v553 = vxor.u32 %v511, 2147483648
  %v554 = vxor.u32 %v512, 2147483648
  %v555 = vxor.u32 %v513, 2147483648
  %v556 = vxor.u32 %v514, 2147483648
  %v557 = vxor.u32 %v515, 2147483648
  %v558 = vxor.u32 %v516, 2147483648
  %v559 = vxor.u32 %v517, 2147483648
  %v560 = vxor.u32 %v518, 2147483648
  %v561 = vxor.u32 %v519, 2147483648
  %v562 = vmul.f32 %v520, 1.442695
  %v563 = vpow.pop %v562
  %v564 = vmul.f32 %v521, 1.442695
  %v565 = vpow.pop %v564
  %v566 = vmul.f32 %v522, 1.442695
  %v567 = vpow.pop %v566
  %v568 = vmul.f32 %v523, 1.442695
  %v569 = vpow.pop %v568
  %v570 = vmul.f32 %v524, 1.442695
  %v571 = vpow.pop %v570
  %v572 = vmul.f32 %v525, 1.442695
  %v573 = vpow.pop %v572
  %v574 = vmul.f32 %v526, 1.442695
  %v575 = vpow.pop %v574
  %v576 = vmul.f32 %v527, 1.442695
  %v577 = vpow.pop %v576
  %v578 = vmul.f32 %v528, 1.442695
  %v579 = vpow.pop %v578
  %v580 = vmul.f32 %v529, 1.442695
  %v581 = vpow.pop %v580
  %v582 = vmul.f32 %v530, 1.442695
  %v583 = vpow.pop %v582
  %v584 = vmul.f32 %v531, 1.442695
  %v585 = vpow.pop %v584
  %v586 = vmul.f32 %v532, 1.442695
  %v587 = vpow.pop %v586
  %v588 = vmul.f32 %v533, 1.442695
  %v589 = vpow.pop %v588
  %v590 = vmul.f32 %v534, 1.442695
  %v591 = vpow.pop %v590
  %v592 = vmul.f32 %v535, 1.442695
  %v593 = vpow.pop %v592
  %v594 = vmul.f32 %v536, 1.442695
  %v595 = vpow.pop %v594
  %v596 = vmul.f32 %v537, 1.442695
  %v597 = vpow.pop %v596
  %v598 = vmul.f32 %v538, 1.442695
  %v599 = vpow.pop %v598
  %v600 = vmul.f32 %v539, 1.442695
  %v601 = vpow.pop %v600
  %v602 = vmul.f32 %v540, 1.442695
  %v603 = vpow.pop %v602
  %v604 = vmul.f32 %v541, 1.442695
  %v605 = vpow.pop %v604
  %v606 = vmul.f32 %v542, 1.442695
  %v607 = vpow.pop %v606
  %v608 = vmul.f32 %v543, 1.442695
  %v609 = vpow.pop %v608
  %v610 = vmul.f32 %v544, 1.442695
  %v611 = vpow.pop %v610
  %v612 = vmul.f32 %v545, 1.442695
  %v613 = vpow.pop %v612
  %v614 = vmul.f32 %v546, 1.442695
  %v615 = vpow.pop %v614
  %v616 = vmul.f32 %v547, 1.442695
  %v617 = vpow.pop %v616
  %v618 = vmul.f32 %v548, 1.442695
  %v619 = vpow.pop %v618
  %v620 = vmul.f32 %v549, 1.442695
  %v621 = vpow.pop %v620
  %v622 = vmul.f32 %v550, 1.442695
  %v623 = vpow.pop %v622
  %v624 = vmul.f32 %v551, 1.442695
  %v625 = vpow.pop %v624
  %v626 = vmul.f32 %v552, 1.442695
  %v627 = vpow.pop %v626
  %v628 = vmul.f32 %v553, 1.442695
  %v629 = vpow.pop %v628
  %v630 = vmul.f32 %v554, 1.442695
  %v631 = vpow.pop %v630
  %v632 = vmul.f32 %v555, 1.442695
  %v633 = vpow.pop %v632
  %v634 = vmul.f32 %v556, 1.442695
  %v635 = vpow.pop %v634
  %v636 = vmul.f32 %v557, 1.442695
  %v637 = vpow.pop %v636
  %v638 = vmul.f32 %v558, 1.442695
  %v639 = vpow.pop %v638
  %v640 = vmul.f32 %v559, 1.442695
  %v641 = vpow.pop %v640
  %v642 = vmul.f32 %v560, 1.442695
  %v643 = vpow.pop %v642
  %v644 = vmul.f32 %v561, 1.442695
  %v645 = vpow.pop %v644
  %v646 = vadd.f32 %v563, 1.0
  %v647 = vadd.f32 %v565, 1.0
  %v648 = vadd.f32 %v567, 1.0
  %v649 = vadd.f32 %v569, 1.0
  %v650 = vadd.f32 %v571, 1.0
  %v651 = vadd.f32 %v573, 1.0
  %v652 = vadd.f32 %v575, 1.0
  %v653 = vadd.f32 %v577, 1.0
  %v654 = vadd.f32 %v579, 1.0
  %v655 = vadd.f32 %v581, 1.0
  %v656 = vadd.f32 %v583, 1.0
  %v657 = vadd.f32 %v585, 1.0
  %v658 = vadd.f32 %v587, 1.0
  %v659 = vadd.f32 %v589, 1.0
  %v660 = vadd.f32 %v591, 1.0
  %v661 = vadd.f32 %v593, 1.0
  %v662 = vadd.f32 %v595, 1.0
  %v663 = vadd.f32 %v597, 1.0
  %v664 = vadd.f32 %v599, 1.0
  %v665 = vadd.f32 %v601, 1.0
  %v666 = vadd.f32 %v603, 1.0
  %v667 = vadd.f32 %v605, 1.0
  %v668 = vadd.f32 %v607, 1.0
  %v669 = vadd.f32 %v609, 1.0
  %v670 = vadd.f32 %v611, 1.0
  %v671 = vadd.f32 %v613, 1.0
  %v672 = vadd.f32 %v615, 1.0
  %v673 = vadd.f32 %v617, 1.0
  %v674 = vadd.f32 %v619, 1.0
  %v675 = vadd.f32 %v621, 1.0
  %v676 = vadd.f32 %v623, 1.0
  %v677 = vadd.f32 %v625, 1.0
  %v678 = vadd.f32 %v627, 1.0
  %v679 = vadd.f32 %v629, 1.0
  %v680 = vadd.f32 %v631, 1.0
  %v681 = vadd.f32 %v633, 1.0
  %v682 = vadd.f32 %v635, 1.0
  %v683 = vadd.f32 %v637, 1.0
  %v684 = vadd.f32 %v639, 1.0
  %v685 = vadd.f32 %v641, 1.0
  %v686 = vadd.f32 %v643, 1.0
  %v687 = vadd.f32 %v645, 1.0
  %v688 = vrcp.pop %v646
  %v689 = vmul.f32 %v646, %v688
  %v690 = vsub.f32 1.0, %v689
  %v691 = vmul.f32 %v688, %v690
  %v692 = vadd.f32 %v688, %v691
  %vm693 = vweird.f32 %v646
  %vm694 = vweird.f32 %v688
  %vm695 = vmor %vm693, %vm694
  %v696 = vsel %vm695, %v688, %v692
  %v697 = vand.u32 2147483647, %v646
  %vm698 = vcmp.eq.f32.partialorder %v697, 8.507059e+37
  %v699 = vand.u32 %v646, 2147483648
  %v700 = vor.u32 1.1754944e-38, %v699
  %v701 = vsel %vm698, %v700, %v696
  %v702 = vmul.f32 1.0, %v701
  %v703 = vrcp.pop %v647
  %v704 = vmul.f32 %v647, %v703
  %v705 = vsub.f32 1.0, %v704
  %v706 = vmul.f32 %v703, %v705
  %v707 = vadd.f32 %v703, %v706
  %vm708 = vweird.f32 %v647
  %vm709 = vweird.f32 %v703
  %vm710 = vmor %vm708, %vm709
  %v711 = vsel %vm710, %v703, %v707
  %v712 = vand.u32 2147483647, %v647
  %vm713 = vcmp.eq.f32.partialorder %v712, 8.507059e+37
  %v714 = vand.u32 %v647, 2147483648
  %v715 = vor.u32 1.1754944e-38, %v714
  %v716 = vsel %vm713, %v715, %v711
  %v717 = vmul.f32 1.0, %v716
  %v718 = vrcp.pop %v648
  %v719 = vmul.f32 %v648, %v718
  %v720 = vsub.f32 1.0, %v719
  %v721 = vmul.f32 %v718, %v720
  %v722 = vadd.f32 %v718, %v721
  %vm723 = vweird.f32 %v648
  %vm724 = vweird.f32 %v718
  %vm725 = vmor %vm723, %vm724
  %v726 = vsel %vm725, %v718, %v722
  %v727 = vand.u32 2147483647, %v648
  %vm728 = vcmp.eq.f32.partialorder %v727, 8.507059e+37
  %v729 = vand.u32 %v648, 2147483648
  %v730 = vor.u32 1.1754944e-38, %v729
  %v731 = vsel %vm728, %v730, %v726
  %v732 = vmul.f32 1.0, %v731
  %v733 = vrcp.pop %v649
  %v734 = vmul.f32 %v649, %v733
  %v735 = vsub.f32 1.0, %v734
  %v736 = vmul.f32 %v733, %v735
  %v737 = vadd.f32 %v733, %v736
  %vm738 = vweird.f32 %v649
  %vm739 = vweird.f32 %v733
  %vm740 = vmor %vm738, %vm739
  %v741 = vsel %vm740, %v733, %v737
  %v742 = vand.u32 2147483647, %v649
  %vm743 = vcmp.eq.f32.partialorder %v742, 8.507059e+37
  %v744 = vand.u32 %v649, 2147483648
  %v745 = vor.u32 1.1754944e-38, %v744
  %v746 = vsel %vm743, %v745, %v741
  %v747 = vmul.f32 1.0, %v746
  %v748 = vrcp.pop %v650
  %v749 = vmul.f32 %v650, %v748
  %v750 = vsub.f32 1.0, %v749
  %v751 = vmul.f32 %v748, %v750
  %v752 = vadd.f32 %v748, %v751
  %vm753 = vweird.f32 %v650
  %vm754 = vweird.f32 %v748
  %vm755 = vmor %vm753, %vm754
  %v756 = vsel %vm755, %v748, %v752
  %v757 = vand.u32 2147483647, %v650
  %vm758 = vcmp.eq.f32.partialorder %v757, 8.507059e+37
  %v759 = vand.u32 %v650, 2147483648
  %v760 = vor.u32 1.1754944e-38, %v759
  %v761 = vsel %vm758, %v760, %v756
  %v762 = vmul.f32 1.0, %v761
  %v763 = vrcp.pop %v651
  %v764 = vmul.f32 %v651, %v763
  %v765 = vsub.f32 1.0, %v764
  %v766 = vmul.f32 %v763, %v765
  %v767 = vadd.f32 %v763, %v766
  %vm768 = vweird.f32 %v651
  %vm769 = vweird.f32 %v763
  %vm770 = vmor %vm768, %vm769
  %v771 = vsel %vm770, %v763, %v767
  %v772 = vand.u32 2147483647, %v651
  %vm773 = vcmp.eq.f32.partialorder %v772, 8.507059e+37
  %v774 = vand.u32 %v651, 2147483648
  %v775 = vor.u32 1.1754944e-38, %v774
  %v776 = vsel %vm773, %v775, %v771
  %v777 = vmul.f32 1.0, %v776
  %v778 = vrcp.pop %v652
  %v779 = vmul.f32 %v652, %v778
  %v780 = vsub.f32 1.0, %v779
  %v781 = vmul.f32 %v778, %v780
  %v782 = vadd.f32 %v778, %v781
  %vm783 = vweird.f32 %v652
  %vm784 = vweird.f32 %v778
  %vm785 = vmor %vm783, %vm784
  %v786 = vsel %vm785, %v778, %v782
  %v787 = vand.u32 2147483647, %v652
  %vm788 = vcmp.eq.f32.partialorder %v787, 8.507059e+37
  %v789 = vand.u32 %v652, 2147483648
  %v790 = vor.u32 1.1754944e-38, %v789
  %v791 = vsel %vm788, %v790, %v786
  %v792 = vmul.f32 1.0, %v791
  %v793 = vrcp.pop %v653
  %v794 = vmul.f32 %v653, %v793
  %v795 = vsub.f32 1.0, %v794
  %v796 = vmul.f32 %v793, %v795
  %v797 = vadd.f32 %v793, %v796
  %vm798 = vweird.f32 %v653
  %vm799 = vweird.f32 %v793
  %vm800 = vmor %vm798, %vm799
  %v801 = vsel %vm800, %v793, %v797
  %v802 = vand.u32 2147483647, %v653
  %vm803 = vcmp.eq.f32.partialorder %v802, 8.507059e+37
  %v804 = vand.u32 %v653, 2147483648
  %v805 = vor.u32 1.1754944e-38, %v804
  %v806 = vsel %vm803, %v805, %v801
  %v807 = vmul.f32 1.0, %v806
  %v808 = vrcp.pop %v654
  %v809 = vmul.f32 %v654, %v808
  %v810 = vsub.f32 1.0, %v809
  %v811 = vmul.f32 %v808, %v810
  %v812 = vadd.f32 %v808, %v811
  %vm813 = vweird.f32 %v654
  %vm814 = vweird.f32 %v808
  %vm815 = vmor %vm813, %vm814
  %v816 = vsel %vm815, %v808, %v812
  %v817 = vand.u32 2147483647, %v654
  %vm818 = vcmp.eq.f32.partialorder %v817, 8.507059e+37
  %v819 = vand.u32 %v654, 2147483648
  %v820 = vor.u32 1.1754944e-38, %v819
  %v821 = vsel %vm818, %v820, %v816
  %v822 = vmul.f32 1.0, %v821
  %v823 = vrcp.pop %v655
  %v824 = vmul.f32 %v655, %v823
  %v825 = vsub.f32 1.0, %v824
  %v826 = vmul.f32 %v823, %v825
  %v827 = vadd.f32 %v823, %v826
  %vm828 = vweird.f32 %v655
  %vm829 = vweird.f32 %v823
  %vm830 = vmor %vm828, %vm829
  %v831 = vsel %vm830, %v823, %v827
  %v832 = vand.u32 2147483647, %v655
  %vm833 = vcmp.eq.f32.partialorder %v832, 8.507059e+37
  %v834 = vand.u32 %v655, 2147483648
  %v835 = vor.u32 1.1754944e-38, %v834
  %v836 = vsel %vm833, %v835, %v831
  %v837 = vmul.f32 1.0, %v836
  %v838 = vrcp.pop %v656
  %v839 = vmul.f32 %v656, %v838
  %v840 = vsub.f32 1.0, %v839
  %v841 = vmul.f32 %v838, %v840
  %v842 = vadd.f32 %v838, %v841
  %vm843 = vweird.f32 %v656
  %vm844 = vweird.f32 %v838
  %vm845 = vmor %vm843, %vm844
  %v846 = vsel %vm845, %v838, %v842
  %v847 = vand.u32 2147483647, %v656
  %vm848 = vcmp.eq.f32.partialorder %v847, 8.507059e+37
  %v849 = vand.u32 %v656, 2147483648
  %v850 = vor.u32 1.1754944e-38, %v849
  %v851 = vsel %vm848, %v850, %v846
  %v852 = vmul.f32 1.0, %v851
  %v853 = vrcp.pop %v657
  %v854 = vmul.f32 %v657, %v853
  %v855 = vsub.f32 1.0, %v854
  %v856 = vmul.f32 %v853, %v855
  %v857 = vadd.f32 %v853, %v856
  %vm858 = vweird.f32 %v657
  %vm859 = vweird.f32 %v853
  %vm860 = vmor %vm858, %vm859
  %v861 = vsel %vm860, %v853, %v857
  %v862 = vand.u32 2147483647, %v657
  %vm863 = vcmp.eq.f32.partialorder %v862, 8.507059e+37
  %v864 = vand.u32 %v657, 2147483648
  %v865 = vor.u32 1.1754944e-38, %v864
  %v866 = vsel %vm863, %v865, %v861
  %v867 = vmul.f32 1.0, %v866
  %v868 = vrcp.pop %v658
  %v869 = vmul.f32 %v658, %v868
  %v870 = vsub.f32 1.0, %v869
  %v871 = vmul.f32 %v868, %v870
  %v872 = vadd.f32 %v868, %v871
  %vm873 = vweird.f32 %v658
  %vm874 = vweird.f32 %v868
  %vm875 = vmor %vm873, %vm874
  %v876 = vsel %vm875, %v868, %v872
  %v877 = vand.u32 2147483647, %v658
  %vm878 = vcmp.eq.f32.partialorder %v877, 8.507059e+37
  %v879 = vand.u32 %v658, 2147483648
  %v880 = vor.u32 1.1754944e-38, %v879
  %v881 = vsel %vm878, %v880, %v876
  %v882 = vmul.f32 1.0, %v881
  %v883 = vrcp.pop %v659
  %v884 = vmul.f32 %v659, %v883
  %v885 = vsub.f32 1.0, %v884
  %v886 = vmul.f32 %v883, %v885
  %v887 = vadd.f32 %v883, %v886
  %vm888 = vweird.f32 %v659
  %vm889 = vweird.f32 %v883
  %vm890 = vmor %vm888, %vm889
  %v891 = vsel %vm890, %v883, %v887
  %v892 = vand.u32 2147483647, %v659
  %vm893 = vcmp.eq.f32.partialorder %v892, 8.507059e+37
  %v894 = vand.u32 %v659, 2147483648
  %v895 = vor.u32 1.1754944e-38, %v894
  %v896 = vsel %vm893, %v895, %v891
  %v897 = vmul.f32 1.0, %v896
  %v898 = vrcp.pop %v660
  %v899 = vmul.f32 %v660, %v898
  %v900 = vsub.f32 1.0, %v899
  %v901 = vmul.f32 %v898, %v900
  %v902 = vadd.f32 %v898, %v901
  %vm903 = vweird.f32 %v660
  %vm904 = vweird.f32 %v898
  %vm905 = vmor %vm903, %vm904
  %v906 = vsel %vm905, %v898, %v902
  %v907 = vand.u32 2147483647, %v660
  %vm908 = vcmp.eq.f32.partialorder %v907, 8.507059e+37
  %v909 = vand.u32 %v660, 2147483648
  %v910 = vor.u32 1.1754944e-38, %v909
  %v911 = vsel %vm908, %v910, %v906
  %v912 = vmul.f32 1.0, %v911
  %v913 = vrcp.pop %v661
  %v914 = vmul.f32 %v661, %v913
  %v915 = vsub.f32 1.0, %v914
  %v916 = vmul.f32 %v913, %v915
  %v917 = vadd.f32 %v913, %v916
  %vm918 = vweird.f32 %v661
  %vm919 = vweird.f32 %v913
  %vm920 = vmor %vm918, %vm919
  %v921 = vsel %vm920, %v913, %v917
  %v922 = vand.u32 2147483647, %v661
  %vm923 = vcmp.eq.f32.partialorder %v922, 8.507059e+37
  %v924 = vand.u32 %v661, 2147483648
  %v925 = vor.u32 1.1754944e-38, %v924
  %v926 = vsel %vm923, %v925, %v921
  %v927 = vmul.f32 1.0, %v926
  %v928 = vrcp.pop %v662
  %v929 = vmul.f32 %v662, %v928
  %v930 = vsub.f32 1.0, %v929
  %v931 = vmul.f32 %v928, %v930
  %v932 = vadd.f32 %v928, %v931
  %vm933 = vweird.f32 %v662
  %vm934 = vweird.f32 %v928
  %vm935 = vmor %vm933, %vm934
  %v936 = vsel %vm935, %v928, %v932
  %v937 = vand.u32 2147483647, %v662
  %vm938 = vcmp.eq.f32.partialorder %v937, 8.507059e+37
  %v939 = vand.u32 %v662, 2147483648
  %v940 = vor.u32 1.1754944e-38, %v939
  %v941 = vsel %vm938, %v940, %v936
  %v942 = vmul.f32 1.0, %v941
  %v943 = vrcp.pop %v663
  %v944 = vmul.f32 %v663, %v943
  %v945 = vsub.f32 1.0, %v944
  %v946 = vmul.f32 %v943, %v945
  %v947 = vadd.f32 %v943, %v946
  %vm948 = vweird.f32 %v663
  %vm949 = vweird.f32 %v943
  %vm950 = vmor %vm948, %vm949
  %v951 = vsel %vm950, %v943, %v947
  %v952 = vand.u32 2147483647, %v663
  %vm953 = vcmp.eq.f32.partialorder %v952, 8.507059e+37
  %v954 = vand.u32 %v663, 2147483648
  %v955 = vor.u32 1.1754944e-38, %v954
  %v956 = vsel %vm953, %v955, %v951
  %v957 = vmul.f32 1.0, %v956
  %v958 = vrcp.pop %v664
  %v959 = vmul.f32 %v664, %v958
  %v960 = vsub.f32 1.0, %v959
  %v961 = vmul.f32 %v958, %v960
  %v962 = vadd.f32 %v958, %v961
  %vm963 = vweird.f32 %v664
  %vm964 = vweird.f32 %v958
  %vm965 = vmor %vm963, %vm964
  %v966 = vsel %vm965, %v958, %v962
  %v967 = vand.u32 2147483647, %v664
  %vm968 = vcmp.eq.f32.partialorder %v967, 8.507059e+37
  %v969 = vand.u32 %v664, 2147483648
  %v970 = vor.u32 1.1754944e-38, %v969
  %v971 = vsel %vm968, %v970, %v966
  %v972 = vmul.f32 1.0, %v971
  %v973 = vrcp.pop %v665
  %v974 = vmul.f32 %v665, %v973
  %v975 = vsub.f32 1.0, %v974
  %v976 = vmul.f32 %v973, %v975
  %v977 = vadd.f32 %v973, %v976
  %vm978 = vweird.f32 %v665
  %vm979 = vweird.f32 %v973
  %vm980 = vmor %vm978, %vm979
  %v981 = vsel %vm980, %v973, %v977
  %v982 = vand.u32 2147483647, %v665
  %vm983 = vcmp.eq.f32.partialorder %v982, 8.507059e+37
  %v984 = vand.u32 %v665, 2147483648
  %v985 = vor.u32 1.1754944e-38, %v984
  %v986 = vsel %vm983, %v985, %v981
  %v987 = vmul.f32 1.0, %v986
  %v988 = vrcp.pop %v666
  %v989 = vmul.f32 %v666, %v988
  %v990 = vsub.f32 1.0, %v989
  %v991 = vmul.f32 %v988, %v990
  %v992 = vadd.f32 %v988, %v991
  %vm993 = vweird.f32 %v666
  %vm994 = vweird.f32 %v988
  %vm995 = vmor %vm993, %vm994
  %v996 = vsel %vm995, %v988, %v992
  %v997 = vand.u32 2147483647, %v666
  %vm998 = vcmp.eq.f32.partialorder %v997, 8.507059e+37
  %v999 = vand.u32 %v666, 2147483648
  %v1000 = vor.u32 1.1754944e-38, %v999
  %v1001 = vsel %vm998, %v1000, %v996
  %v1002 = vmul.f32 1.0, %v1001
  %v1003 = vrcp.pop %v667
  %v1004 = vmul.f32 %v667, %v1003
  %v1005 = vsub.f32 1.0, %v1004
  %v1006 = vmul.f32 %v1003, %v1005
  %v1007 = vadd.f32 %v1003, %v1006
  %vm1008 = vweird.f32 %v667
  %vm1009 = vweird.f32 %v1003
  %vm1010 = vmor %vm1008, %vm1009
  %v1011 = vsel %vm1010, %v1003, %v1007
  %v1012 = vand.u32 2147483647, %v667
  %vm1013 = vcmp.eq.f32.partialorder %v1012, 8.507059e+37
  %v1014 = vand.u32 %v667, 2147483648
  %v1015 = vor.u32 1.1754944e-38, %v1014
  %v1016 = vsel %vm1013, %v1015, %v1011
  %v1017 = vmul.f32 1.0, %v1016
  %v1018 = vrcp.pop %v668
  %v1019 = vmul.f32 %v668, %v1018
  %v1020 = vsub.f32 1.0, %v1019
  %v1021 = vmul.f32 %v1018, %v1020
  %v1022 = vadd.f32 %v1018, %v1021
  %vm1023 = vweird.f32 %v668
  %vm1024 = vweird.f32 %v1018
  %vm1025 = vmor %vm1023, %vm1024
  %v1026 = vsel %vm1025, %v1018, %v1022
  %v1027 = vand.u32 2147483647, %v668
  %vm1028 = vcmp.eq.f32.partialorder %v1027, 8.507059e+37
  %v1029 = vand.u32 %v668, 2147483648
  %v1030 = vor.u32 1.1754944e-38, %v1029
  %v1031 = vsel %vm1028, %v1030, %v1026
  %v1032 = vmul.f32 1.0, %v1031
  %v1033 = vrcp.pop %v669
  %v1034 = vmul.f32 %v669, %v1033
  %v1035 = vsub.f32 1.0, %v1034
  %v1036 = vmul.f32 %v1033, %v1035
  %v1037 = vadd.f32 %v1033, %v1036
  %vm1038 = vweird.f32 %v669
  %vm1039 = vweird.f32 %v1033
  %vm1040 = vmor %vm1038, %vm1039
  %v1041 = vsel %vm1040, %v1033, %v1037
  %v1042 = vand.u32 2147483647, %v669
  %vm1043 = vcmp.eq.f32.partialorder %v1042, 8.507059e+37
  %v1044 = vand.u32 %v669, 2147483648
  %v1045 = vor.u32 1.1754944e-38, %v1044
  %v1046 = vsel %vm1043, %v1045, %v1041
  %v1047 = vmul.f32 1.0, %v1046
  %v1048 = vrcp.pop %v670
  %v1049 = vmul.f32 %v670, %v1048
  %v1050 = vsub.f32 1.0, %v1049
  %v1051 = vmul.f32 %v1048, %v1050
  %v1052 = vadd.f32 %v1048, %v1051
  %vm1053 = vweird.f32 %v670
  %vm1054 = vweird.f32 %v1048
  %vm1055 = vmor %vm1053, %vm1054
  %v1056 = vsel %vm1055, %v1048, %v1052
  %v1057 = vand.u32 2147483647, %v670
  %vm1058 = vcmp.eq.f32.partialorder %v1057, 8.507059e+37
  %v1059 = vand.u32 %v670, 2147483648
  %v1060 = vor.u32 1.1754944e-38, %v1059
  %v1061 = vsel %vm1058, %v1060, %v1056
  %v1062 = vmul.f32 1.0, %v1061
  %v1063 = vrcp.pop %v671
  %v1064 = vmul.f32 %v671, %v1063
  %v1065 = vsub.f32 1.0, %v1064
  %v1066 = vmul.f32 %v1063, %v1065
  %v1067 = vadd.f32 %v1063, %v1066
  %vm1068 = vweird.f32 %v671
  %vm1069 = vweird.f32 %v1063
  %vm1070 = vmor %vm1068, %vm1069
  %v1071 = vsel %vm1070, %v1063, %v1067
  %v1072 = vand.u32 2147483647, %v671
  %vm1073 = vcmp.eq.f32.partialorder %v1072, 8.507059e+37
  %v1074 = vand.u32 %v671, 2147483648
  %v1075 = vor.u32 1.1754944e-38, %v1074
  %v1076 = vsel %vm1073, %v1075, %v1071
  %v1077 = vmul.f32 1.0, %v1076
  %v1078 = vrcp.pop %v672
  %v1079 = vmul.f32 %v672, %v1078
  %v1080 = vsub.f32 1.0, %v1079
  %v1081 = vmul.f32 %v1078, %v1080
  %v1082 = vadd.f32 %v1078, %v1081
  %vm1083 = vweird.f32 %v672
  %vm1084 = vweird.f32 %v1078
  %vm1085 = vmor %vm1083, %vm1084
  %v1086 = vsel %vm1085, %v1078, %v1082
  %v1087 = vand.u32 2147483647, %v672
  %vm1088 = vcmp.eq.f32.partialorder %v1087, 8.507059e+37
  %v1089 = vand.u32 %v672, 2147483648
  %v1090 = vor.u32 1.1754944e-38, %v1089
  %v1091 = vsel %vm1088, %v1090, %v1086
  %v1092 = vmul.f32 1.0, %v1091
  %v1093 = vrcp.pop %v673
  %v1094 = vmul.f32 %v673, %v1093
  %v1095 = vsub.f32 1.0, %v1094
  %v1096 = vmul.f32 %v1093, %v1095
  %v1097 = vadd.f32 %v1093, %v1096
  %vm1098 = vweird.f32 %v673
  %vm1099 = vweird.f32 %v1093
  %vm1100 = vmor %vm1098, %vm1099
  %v1101 = vsel %vm1100, %v1093, %v1097
  %v1102 = vand.u32 2147483647, %v673
  %vm1103 = vcmp.eq.f32.partialorder %v1102, 8.507059e+37
  %v1104 = vand.u32 %v673, 2147483648
  %v1105 = vor.u32 1.1754944e-38, %v1104
  %v1106 = vsel %vm1103, %v1105, %v1101
  %v1107 = vmul.f32 1.0, %v1106
  %v1108 = vrcp.pop %v674
  %v1109 = vmul.f32 %v674, %v1108
  %v1110 = vsub.f32 1.0, %v1109
  %v1111 = vmul.f32 %v1108, %v1110
  %v1112 = vadd.f32 %v1108, %v1111
  %vm1113 = vweird.f32 %v674
  %vm1114 = vweird.f32 %v1108
  %vm1115 = vmor %vm1113, %vm1114
  %v1116 = vsel %vm1115, %v1108, %v1112
  %v1117 = vand.u32 2147483647, %v674
  %vm1118 = vcmp.eq.f32.partialorder %v1117, 8.507059e+37
  %v1119 = vand.u32 %v674, 2147483648
  %v1120 = vor.u32 1.1754944e-38, %v1119
  %v1121 = vsel %vm1118, %v1120, %v1116
  %v1122 = vmul.f32 1.0, %v1121
  %v1123 = vrcp.pop %v675
  %v1124 = vmul.f32 %v675, %v1123
  %v1125 = vsub.f32 1.0, %v1124
  %v1126 = vmul.f32 %v1123, %v1125
  %v1127 = vadd.f32 %v1123, %v1126
  %vm1128 = vweird.f32 %v675
  %vm1129 = vweird.f32 %v1123
  %vm1130 = vmor %vm1128, %vm1129
  %v1131 = vsel %vm1130, %v1123, %v1127
  %v1132 = vand.u32 2147483647, %v675
  %vm1133 = vcmp.eq.f32.partialorder %v1132, 8.507059e+37
  %v1134 = vand.u32 %v675, 2147483648
  %v1135 = vor.u32 1.1754944e-38, %v1134
  %v1136 = vsel %vm1133, %v1135, %v1131
  %v1137 = vmul.f32 1.0, %v1136
  %v1138 = vrcp.pop %v676
  %v1139 = vmul.f32 %v676, %v1138
  %v1140 = vsub.f32 1.0, %v1139
  %v1141 = vmul.f32 %v1138, %v1140
  %v1142 = vadd.f32 %v1138, %v1141
  %vm1143 = vweird.f32 %v676
  %vm1144 = vweird.f32 %v1138
  %vm1145 = vmor %vm1143, %vm1144
  %v1146 = vsel %vm1145, %v1138, %v1142
  %v1147 = vand.u32 2147483647, %v676
  %vm1148 = vcmp.eq.f32.partialorder %v1147, 8.507059e+37
  %v1149 = vand.u32 %v676, 2147483648
  %v1150 = vor.u32 1.1754944e-38, %v1149
  %v1151 = vsel %vm1148, %v1150, %v1146
  %v1152 = vmul.f32 1.0, %v1151
  %v1153 = vrcp.pop %v677
  %v1154 = vmul.f32 %v677, %v1153
  %v1155 = vsub.f32 1.0, %v1154
  %v1156 = vmul.f32 %v1153, %v1155
  %v1157 = vadd.f32 %v1153, %v1156
  %vm1158 = vweird.f32 %v677
  %vm1159 = vweird.f32 %v1153
  %vm1160 = vmor %vm1158, %vm1159
  %v1161 = vsel %vm1160, %v1153, %v1157
  %v1162 = vand.u32 2147483647, %v677
  %vm1163 = vcmp.eq.f32.partialorder %v1162, 8.507059e+37
  %v1164 = vand.u32 %v677, 2147483648
  %v1165 = vor.u32 1.1754944e-38, %v1164
  %v1166 = vsel %vm1163, %v1165, %v1161
  %v1167 = vmul.f32 1.0, %v1166
  %v1168 = vrcp.pop %v678
  %v1169 = vmul.f32 %v678, %v1168
  %v1170 = vsub.f32 1.0, %v1169
  %v1171 = vmul.f32 %v1168, %v1170
  %v1172 = vadd.f32 %v1168, %v1171
  %vm1173 = vweird.f32 %v678
  %vm1174 = vweird.f32 %v1168
  %vm1175 = vmor %vm1173, %vm1174
  %v1176 = vsel %vm1175, %v1168, %v1172
  %v1177 = vand.u32 2147483647, %v678
  %vm1178 = vcmp.eq.f32.partialorder %v1177, 8.507059e+37
  %v1179 = vand.u32 %v678, 2147483648
  %v1180 = vor.u32 1.1754944e-38, %v1179
  %v1181 = vsel %vm1178, %v1180, %v1176
  %v1182 = vmul.f32 1.0, %v1181
  %v1183 = vrcp.pop %v679
  %v1184 = vmul.f32 %v679, %v1183
  %v1185 = vsub.f32 1.0, %v1184
  %v1186 = vmul.f32 %v1183, %v1185
  %v1187 = vadd.f32 %v1183, %v1186
  %vm1188 = vweird.f32 %v679
  %vm1189 = vweird.f32 %v1183
  %vm1190 = vmor %vm1188, %vm1189
  %v1191 = vsel %vm1190, %v1183, %v1187
  %v1192 = vand.u32 2147483647, %v679
  %vm1193 = vcmp.eq.f32.partialorder %v1192, 8.507059e+37
  %v1194 = vand.u32 %v679, 2147483648
  %v1195 = vor.u32 1.1754944e-38, %v1194
  %v1196 = vsel %vm1193, %v1195, %v1191
  %v1197 = vmul.f32 1.0, %v1196
  %v1198 = vrcp.pop %v680
  %v1199 = vmul.f32 %v680, %v1198
  %v1200 = vsub.f32 1.0, %v1199
  %v1201 = vmul.f32 %v1198, %v1200
  %v1202 = vadd.f32 %v1198, %v1201
  %vm1203 = vweird.f32 %v680
  %vm1204 = vweird.f32 %v1198
  %vm1205 = vmor %vm1203, %vm1204
  %v1206 = vsel %vm1205, %v1198, %v1202
  %v1207 = vand.u32 2147483647, %v680
  %vm1208 = vcmp.eq.f32.partialorder %v1207, 8.507059e+37
  %v1209 = vand.u32 %v680, 2147483648
  %v1210 = vor.u32 1.1754944e-38, %v1209
  %v1211 = vsel %vm1208, %v1210, %v1206
  %v1212 = vmul.f32 1.0, %v1211
  %v1213 = vrcp.pop %v681
  %v1214 = vmul.f32 %v681, %v1213
  %v1215 = vsub.f32 1.0, %v1214
  %v1216 = vmul.f32 %v1213, %v1215
  %v1217 = vadd.f32 %v1213, %v1216
  %vm1218 = vweird.f32 %v681
  %vm1219 = vweird.f32 %v1213
  %vm1220 = vmor %vm1218, %vm1219
  %v1221 = vsel %vm1220, %v1213, %v1217
  %v1222 = vand.u32 2147483647, %v681
  %vm1223 = vcmp.eq.f32.partialorder %v1222, 8.507059e+37
  %v1224 = vand.u32 %v681, 2147483648
  %v1225 = vor.u32 1.1754944e-38, %v1224
  %v1226 = vsel %vm1223, %v1225, %v1221
  %v1227 = vmul.f32 1.0, %v1226
  %v1228 = vrcp.pop %v682
  %v1229 = vmul.f32 %v682, %v1228
  %v1230 = vsub.f32 1.0, %v1229
  %v1231 = vmul.f32 %v1228, %v1230
  %v1232 = vadd.f32 %v1228, %v1231
  %vm1233 = vweird.f32 %v682
  %vm1234 = vweird.f32 %v1228
  %vm1235 = vmor %vm1233, %vm1234
  %v1236 = vsel %vm1235, %v1228, %v1232
  %v1237 = vand.u32 2147483647, %v682
  %vm1238 = vcmp.eq.f32.partialorder %v1237, 8.507059e+37
  %v1239 = vand.u32 %v682, 2147483648
  %v1240 = vor.u32 1.1754944e-38, %v1239
  %v1241 = vsel %vm1238, %v1240, %v1236
  %v1242 = vmul.f32 1.0, %v1241
  %v1243 = vrcp.pop %v683
  %v1244 = vmul.f32 %v683, %v1243
  %v1245 = vsub.f32 1.0, %v1244
  %v1246 = vmul.f32 %v1243, %v1245
  %v1247 = vadd.f32 %v1243, %v1246
  %vm1248 = vweird.f32 %v683
  %vm1249 = vweird.f32 %v1243
  %vm1250 = vmor %vm1248, %vm1249
  %v1251 = vsel %vm1250, %v1243, %v1247
  %v1252 = vand.u32 2147483647, %v683
  %vm1253 = vcmp.eq.f32.partialorder %v1252, 8.507059e+37
  %v1254 = vand.u32 %v683, 2147483648
  %v1255 = vor.u32 1.1754944e-38, %v1254
  %v1256 = vsel %vm1253, %v1255, %v1251
  %v1257 = vmul.f32 1.0, %v1256
  %v1258 = vrcp.pop %v684
  %v1259 = vmul.f32 %v684, %v1258
  %v1260 = vsub.f32 1.0, %v1259
  %v1261 = vmul.f32 %v1258, %v1260
  %v1262 = vadd.f32 %v1258, %v1261
  %vm1263 = vweird.f32 %v684
  %vm1264 = vweird.f32 %v1258
  %vm1265 = vmor %vm1263, %vm1264
  %v1266 = vsel %vm1265, %v1258, %v1262
  %v1267 = vand.u32 2147483647, %v684
  %vm1268 = vcmp.eq.f32.partialorder %v1267, 8.507059e+37
  %v1269 = vand.u32 %v684, 2147483648
  %v1270 = vor.u32 1.1754944e-38, %v1269
  %v1271 = vsel %vm1268, %v1270, %v1266
  %v1272 = vmul.f32 1.0, %v1271
  %v1273 = vrcp.pop %v685
  %v1274 = vmul.f32 %v685, %v1273
  %v1275 = vsub.f32 1.0, %v1274
  %v1276 = vmul.f32 %v1273, %v1275
  %v1277 = vadd.f32 %v1273, %v1276
  %vm1278 = vweird.f32 %v685
  %vm1279 = vweird.f32 %v1273
  %vm1280 = vmor %vm1278, %vm1279
  %v1281 = vsel %vm1280, %v1273, %v1277
  %v1282 = vand.u32 2147483647, %v685
  %vm1283 = vcmp.eq.f32.partialorder %v1282, 8.507059e+37
  %v1284 = vand.u32 %v685, 2147483648
  %v1285 = vor.u32 1.1754944e-38, %v1284
  %v1286 = vsel %vm1283, %v1285, %v1281
  %v1287 = vmul.f32 1.0, %v1286
  %v1288 = vrcp.pop %v686
  %v1289 = vmul.f32 %v686, %v1288
  %v1290 = vsub.f32 1.0, %v1289
  %v1291 = vmul.f32 %v1288, %v1290
  %v1292 = vadd.f32 %v1288, %v1291
  %vm1293 = vweird.f32 %v686
  %vm1294 = vweird.f32 %v1288
  %vm1295 = vmor %vm1293, %vm1294
  %v1296 = vsel %vm1295, %v1288, %v1292
  %v1297 = vand.u32 2147483647, %v686
  %vm1298 = vcmp.eq.f32.partialorder %v1297, 8.507059e+37
  %v1299 = vand.u32 %v686, 2147483648
  %v1300 = vor.u32 1.1754944e-38, %v1299
  %v1301 = vsel %vm1298, %v1300, %v1296
  %v1302 = vmul.f32 1.0, %v1301
  %v1303 = vrcp.pop %v687
  %v1304 = vmul.f32 %v687, %v1303
  %v1305 = vsub.f32 1.0, %v1304
  %v1306 = vmul.f32 %v1303, %v1305
  %v1307 = vadd.f32 %v1303, %v1306
  %vm1308 = vweird.f32 %v687
  %vm1309 = vweird.f32 %v1303
  %vm1310 = vmor %vm1308, %vm1309
  %v1311 = vsel %vm1310, %v1303, %v1307
  %v1312 = vand.u32 2147483647, %v687
  %vm1313 = vcmp.eq.f32.partialorder %v1312, 8.507059e+37
  %v1314 = vand.u32 %v687, 2147483648
  %v1315 = vor.u32 1.1754944e-38, %v1314
  %v1316 = vsel %vm1313, %v1315, %v1311
  %v1317 = vmul.f32 1.0, %v1316
  %v1318 = vld [vmem:[%s1] sm:$0xff]
  %v1319 = vld [vmem:[%s1 + $0x8] sm:$0xff]
  %v1320 = vld [vmem:[%s1 + $0x10] sm:$0xff]
  %v1321 = vld [vmem:[%s1 + $0x18] sm:$0xff]
  %v1322 = vld [vmem:[%s1 + $0x20] sm:$0xff]
  %v1323 = vld [vmem:[%s1 + $0x28] sm:$0xff]
  %v1324 = vld [vmem:[%s1 + $0x30] sm:$0xff]
  %v1325 = vld [vmem:[%s1 + $0x38] sm:$0xff]
  %v1326 = vld [vmem:[%s1 + $0x40] sm:$0xff]
  %v1327 = vld [vmem:[%s1 + $0x48] sm:$0xff]
  %v1328 = vld [vmem:[%s1 + $0x50] sm:$0xff]
  %v1329 = vld [vmem:[%s1 + $0x58] sm:$0xff]
  %v1330 = vld [vmem:[%s1 + $0x60] sm:$0xff]
  %v1331 = vld [vmem:[%s1 + $0x68] sm:$0xff]
  %v1332 = vld [vmem:[%s1 + $0x70] sm:$0xff]
  %v1333 = vld [vmem:[%s1 + $0x78] sm:$0xff]
  %v1334 = vld [vmem:[%s1 + $0x80] sm:$0xff]
  %v1335 = vld [vmem:[%s1 + $0x88] sm:$0xff]
  %v1336 = vld [vmem:[%s1 + $0x90] sm:$0xff]
  %v1337 = vld [vmem:[%s1 + $0x98] sm:$0xff]
  %v1338 = vld [vmem:[%s1 + $0xa0] sm:$0xff]
  %v1339 = vld [vmem:[%s1 + $0xa8] sm:$0xff]
  %v1340 = vld [vmem:[%s1 + $0xb0] sm:$0xff]
  %v1341 = vld [vmem:[%s1 + $0xb8] sm:$0xff]
  %v1342 = vld [vmem:[%s1 + $0xc0] sm:$0xff]
  %v1343 = vld [vmem:[%s1 + $0xc8] sm:$0xff]
  %v1344 = vld [vmem:[%s1 + $0xd0] sm:$0xff]
  %v1345 = vld [vmem:[%s1 + $0xd8] sm:$0xff]
  %v1346 = vld [vmem:[%s1 + $0xe0] sm:$0xff]
  %v1347 = vld [vmem:[%s1 + $0xe8] sm:$0xff]
  %v1348 = vld [vmem:[%s1 + $0xf0] sm:$0xff]
  %v1349 = vld [vmem:[%s1 + $0xf8] sm:$0xff]
  %v1350 = vld [vmem:[%s1 + $0x100] sm:$0xff]
  %v1351 = vld [vmem:[%s1 + $0x108] sm:$0xff]
  %v1352 = vld [vmem:[%s1 + $0x110] sm:$0xff]
  %v1353 = vld [vmem:[%s1 + $0x118] sm:$0xff]
  %v1354 = vld [vmem:[%s1 + $0x120] sm:$0xff]
  %v1355 = vld [vmem:[%s1 + $0x128] sm:$0xff]
  %v1356 = vld [vmem:[%s1 + $0x130] sm:$0xff]
  %v1357 = vld [vmem:[%s1 + $0x138] sm:$0xff]
  %v1358 = vld [vmem:[%s1 + $0x140] sm:$0xff]
  %v1359 = vld [vmem:[%s1 + $0x148] sm:$0xff]
  %v1360 = vld [vmem:[%s1 + $0x150] sm:$0xff]
  %v1361 = vld [vmem:[%s1 + $0x158] sm:$0xff]
  %v1362 = vld [vmem:[%s1 + $0x160] sm:$0xff]
  %v1363 = vld [vmem:[%s1 + $0x168] sm:$0xff]
  %v1364 = vld [vmem:[%s1 + $0x170] sm:$0xff]
  %v1365 = vld [vmem:[%s1 + $0x178] sm:$0xff]
  %v1366 = vld [vmem:[%s1 + $0x180] sm:$0xff]
  %v1367 = vld [vmem:[%s1 + $0x188] sm:$0xff]
  %v1368 = vld [vmem:[%s1 + $0x190] sm:$0xff]
  %v1369 = vld [vmem:[%s1 + $0x198] sm:$0xff]
  %v1370 = vld [vmem:[%s1 + $0x1a0] sm:$0xff]
  %v1371 = vld [vmem:[%s1 + $0x1a8] sm:$0xff]
  %v1372 = vld [vmem:[%s1 + $0x1b0] sm:$0xff]
  %v1373 = vld [vmem:[%s1 + $0x1b8] sm:$0xff]
  %v1374 = vld [vmem:[%s1 + $0x1c0] sm:$0xff]
  %v1375 = vld [vmem:[%s1 + $0x1c8] sm:$0xff]
  %v1376 = vld [vmem:[%s1 + $0x1d0] sm:$0xff]
  %v1377 = vld [vmem:[%s1 + $0x1d8] sm:$0xff]
  %v1378 = vld [vmem:[%s1 + $0x1e0] sm:$0xff]
  %v1379 = vld [vmem:[%s1 + $0x1e8] sm:$0xff]
  %v1380 = vld [vmem:[%s1 + $0x1f0] sm:$0xff]
  %v1381 = vld [vmem:[%s1 + $0x1f8] sm:$0xff]
  %v1382 = vld [vmem:[%s1 + $0x200] sm:$0xff]
  %v1383 = vld [vmem:[%s1 + $0x208] sm:$0xff]
  %v1384 = vld [vmem:[%s1 + $0x210] sm:$0xff]
  %v1385 = vld [vmem:[%s1 + $0x218] sm:$0xff]
  %v1386 = vld [vmem:[%s1 + $0x220] sm:$0xff]
  %v1387 = vld [vmem:[%s1 + $0x228] sm:$0xff]
  %v1388 = vld [vmem:[%s1 + $0x230] sm:$0xff]
  %v1389 = vld [vmem:[%s1 + $0x238] sm:$0xff]
  %v1390 = vld [vmem:[%s1 + $0x240] sm:$0xff]
  %v1391 = vld [vmem:[%s1 + $0x248] sm:$0xff]
  %v1392 = vld [vmem:[%s1 + $0x250] sm:$0xff]
  %v1393 = vld [vmem:[%s1 + $0x258] sm:$0xff]
  %v1394 = vld [vmem:[%s1 + $0x260] sm:$0xff]
  %v1395 = vld [vmem:[%s1 + $0x268] sm:$0xff]
  %v1396 = vld [vmem:[%s1 + $0x270] sm:$0xff]
  %v1397 = vld [vmem:[%s1 + $0x278] sm:$0xff]
  %v1398 = vld [vmem:[%s1 + $0x280] sm:$0xff]
  %v1399 = vld [vmem:[%s1 + $0x288] sm:$0xff]
  %v1400 = vld [vmem:[%s1 + $0x290] sm:$0xff]
  %v1401 = vld [vmem:[%s1 + $0x298] sm:$0xff]
  %1403 = vset.pattern.permute.xlu0 0
  %1404 = vperm.xlu0 %1403, %v702
  %v1405 = vpop.permute.xlu0 %1404
  %1408 = vset.pattern.permute.xlu0 0
  %1409 = vperm.xlu0 %1408, %v717
  %v1410 = vpop.permute.xlu0 %1409
  %1413 = vset.pattern.permute.xlu0 0
  %1414 = vperm.xlu0 %1413, %v732
  %v1415 = vpop.permute.xlu0 %1414
  %1418 = vset.pattern.permute.xlu0 0
  %1419 = vperm.xlu0 %1418, %v747
  %v1420 = vpop.permute.xlu0 %1419
  %1423 = vset.pattern.permute.xlu0 0
  %1424 = vperm.xlu0 %1423, %v762
  %v1425 = vpop.permute.xlu0 %1424
  %1428 = vset.pattern.permute.xlu0 0
  %1429 = vperm.xlu0 %1428, %v777
  %v1430 = vpop.permute.xlu0 %1429
  %1433 = vset.pattern.permute.xlu0 0
  %1434 = vperm.xlu0 %1433, %v792
  %v1435 = vpop.permute.xlu0 %1434
  %1438 = vset.pattern.permute.xlu0 0
  %1439 = vperm.xlu0 %1438, %v807
  %v1440 = vpop.permute.xlu0 %1439
  %1443 = vset.pattern.permute.xlu0 0
  %1444 = vperm.xlu0 %1443, %v822
  %v1445 = vpop.permute.xlu0 %1444
  %1448 = vset.pattern.permute.xlu0 0
  %1449 = vperm.xlu0 %1448, %v837
  %v1450 = vpop.permute.xlu0 %1449
  %1453 = vset.pattern.permute.xlu0 0
  %1454 = vperm.xlu0 %1453, %v852
  %v1455 = vpop.permute.xlu0 %1454
  %1458 = vset.pattern.permute.xlu0 0
  %1459 = vperm.xlu0 %1458, %v867
  %v1460 = vpop.permute.xlu0 %1459
  %1463 = vset.pattern.permute.xlu0 0
  %1464 = vperm.xlu0 %1463, %v882
  %v1465 = vpop.permute.xlu0 %1464
  %1468 = vset.pattern.permute.xlu0 0
  %1469 = vperm.xlu0 %1468, %v897
  %v1470 = vpop.permute.xlu0 %1469
  %1473 = vset.pattern.permute.xlu0 0
  %1474 = vperm.xlu0 %1473, %v912
  %v1475 = vpop.permute.xlu0 %1474
  %1478 = vset.pattern.permute.xlu0 0
  %1479 = vperm.xlu0 %1478, %v927
  %v1480 = vpop.permute.xlu0 %1479
  %1483 = vset.pattern.permute.xlu0 0
  %1484 = vperm.xlu0 %1483, %v942
  %v1485 = vpop.permute.xlu0 %1484
  %1488 = vset.pattern.permute.xlu0 0
  %1489 = vperm.xlu0 %1488, %v957
  %v1490 = vpop.permute.xlu0 %1489
  %1493 = vset.pattern.permute.xlu0 0
  %1494 = vperm.xlu0 %1493, %v972
  %v1495 = vpop.permute.xlu0 %1494
  %1498 = vset.pattern.permute.xlu0 0
  %1499 = vperm.xlu0 %1498, %v987
  %v1500 = vpop.permute.xlu0 %1499
  %1503 = vset.pattern.permute.xlu0 0
  %1504 = vperm.xlu0 %1503, %v1002
  %v1505 = vpop.permute.xlu0 %1504
  %1508 = vset.pattern.permute.xlu0 0
  %1509 = vperm.xlu0 %1508, %v1017
  %v1510 = vpop.permute.xlu0 %1509
  %1513 = vset.pattern.permute.xlu0 0
  %1514 = vperm.xlu0 %1513, %v1032
  %v1515 = vpop.permute.xlu0 %1514
  %1518 = vset.pattern.permute.xlu0 0
  %1519 = vperm.xlu0 %1518, %v1047
  %v1520 = vpop.permute.xlu0 %1519
  %1523 = vset.pattern.permute.xlu0 0
  %1524 = vperm.xlu0 %1523, %v1062
  %v1525 = vpop.permute.xlu0 %1524
  %1528 = vset.pattern.permute.xlu0 0
  %1529 = vperm.xlu0 %1528, %v1077
  %v1530 = vpop.permute.xlu0 %1529
  %1533 = vset.pattern.permute.xlu0 0
  %1534 = vperm.xlu0 %1533, %v1092
  %v1535 = vpop.permute.xlu0 %1534
  %1538 = vset.pattern.permute.xlu0 0
  %1539 = vperm.xlu0 %1538, %v1107
  %v1540 = vpop.permute.xlu0 %1539
  %1543 = vset.pattern.permute.xlu0 0
  %1544 = vperm.xlu0 %1543, %v1122
  %v1545 = vpop.permute.xlu0 %1544
  %1548 = vset.pattern.permute.xlu0 0
  %1549 = vperm.xlu0 %1548, %v1137
  %v1550 = vpop.permute.xlu0 %1549
  %1553 = vset.pattern.permute.xlu0 0
  %1554 = vperm.xlu0 %1553, %v1152
  %v1555 = vpop.permute.xlu0 %1554
  %1558 = vset.pattern.permute.xlu0 0
  %1559 = vperm.xlu0 %1558, %v1167
  %v1560 = vpop.permute.xlu0 %1559
  %1563 = vset.pattern.permute.xlu0 0
  %1564 = vperm.xlu0 %1563, %v1182
  %v1565 = vpop.permute.xlu0 %1564
  %1568 = vset.pattern.permute.xlu0 0
  %1569 = vperm.xlu0 %1568, %v1197
  %v1570 = vpop.permute.xlu0 %1569
  %1573 = vset.pattern.permute.xlu0 0
  %1574 = vperm.xlu0 %1573, %v1212
  %v1575 = vpop.permute.xlu0 %1574
  %1578 = vset.pattern.permute.xlu0 0
  %1579 = vperm.xlu0 %1578, %v1227
  %v1580 = vpop.permute.xlu0 %1579
  %1583 = vset.pattern.permute.xlu0 0
  %1584 = vperm.xlu0 %1583, %v1242
  %v1585 = vpop.permute.xlu0 %1584
  %1588 = vset.pattern.permute.xlu0 0
  %1589 = vperm.xlu0 %1588, %v1257
  %v1590 = vpop.permute.xlu0 %1589
  %1593 = vset.pattern.permute.xlu0 0
  %1594 = vperm.xlu0 %1593, %v1272
  %v1595 = vpop.permute.xlu0 %1594
  %1598 = vset.pattern.permute.xlu0 0
  %1599 = vperm.xlu0 %1598, %v1287
  %v1600 = vpop.permute.xlu0 %1599
  %1603 = vset.pattern.permute.xlu0 0
  %1604 = vperm.xlu0 %1603, %v1302
  %v1605 = vpop.permute.xlu0 %1604
  %1608 = vset.pattern.permute.xlu0 0
  %1609 = vperm.xlu0 %1608, %v1317
  %v1610 = vpop.permute.xlu0 %1609
  %v1612 = vmul.f32 %v1405, %v1318
  %v1613 = vmul.f32 %v1405, %v1319
  %v1614 = vmul.f32 %v1410, %v1320
  %v1615 = vmul.f32 %v1410, %v1321
  %v1616 = vmul.f32 %v1415, %v1322
  %v1617 = vmul.f32 %v1415, %v1323
  %v1618 = vmul.f32 %v1420, %v1324
  %v1619 = vmul.f32 %v1420, %v1325
  %v1620 = vmul.f32 %v1425, %v1326
  %v1621 = vmul.f32 %v1425, %v1327
  %v1622 = vmul.f32 %v1430, %v1328
  %v1623 = vmul.f32 %v1430, %v1329
  %v1624 = vmul.f32 %v1435, %v1330
  %v1625 = vmul.f32 %v1435, %v1331
  %v1626 = vmul.f32 %v1440, %v1332
  %v1627 = vmul.f32 %v1440, %v1333
  %v1628 = vmul.f32 %v1445, %v1334
  %v1629 = vmul.f32 %v1445, %v1335
  %v1630 = vmul.f32 %v1450, %v1336
  %v1631 = vmul.f32 %v1450, %v1337
  %v1632 = vmul.f32 %v1455, %v1338
  %v1633 = vmul.f32 %v1455, %v1339
  %v1634 = vmul.f32 %v1460, %v1340
  %v1635 = vmul.f32 %v1460, %v1341
  %v1636 = vmul.f32 %v1465, %v1342
  %v1637 = vmul.f32 %v1465, %v1343
  %v1638 = vmul.f32 %v1470, %v1344
  %v1639 = vmul.f32 %v1470, %v1345
  %v1640 = vmul.f32 %v1475, %v1346
  %v1641 = vmul.f32 %v1475, %v1347
  %v1642 = vmul.f32 %v1480, %v1348
  %v1643 = vmul.f32 %v1480, %v1349
  %v1644 = vmul.f32 %v1485, %v1350
  %v1645 = vmul.f32 %v1485, %v1351
  %v1646 = vmul.f32 %v1490, %v1352
  %v1647 = vmul.f32 %v1490, %v1353
  %v1648 = vmul.f32 %v1495, %v1354
  %v1649 = vmul.f32 %v1495, %v1355
  %v1650 = vmul.f32 %v1500, %v1356
  %v1651 = vmul.f32 %v1500, %v1357
  %v1652 = vmul.f32 %v1505, %v1358
  %v1653 = vmul.f32 %v1505, %v1359
  %v1654 = vmul.f32 %v1510, %v1360
  %v1655 = vmul.f32 %v1510, %v1361
  %v1656 = vmul.f32 %v1515, %v1362
  %v1657 = vmul.f32 %v1515, %v1363
  %v1658 = vmul.f32 %v1520, %v1364
  %v1659 = vmul.f32 %v1520, %v1365
  %v1660 = vmul.f32 %v1525, %v1366
  %v1661 = vmul.f32 %v1525, %v1367
  %v1662 = vmul.f32 %v1530, %v1368
  %v1663 = vmul.f32 %v1530, %v1369
  %v1664 = vmul.f32 %v1535, %v1370
  %v1665 = vmul.f32 %v1535, %v1371
  %v1666 = vmul.f32 %v1540, %v1372
  %v1667 = vmul.f32 %v1540, %v1373
  %v1668 = vmul.f32 %v1545, %v1374
  %v1669 = vmul.f32 %v1545, %v1375
  %v1670 = vmul.f32 %v1550, %v1376
  %v1671 = vmul.f32 %v1550, %v1377
  %v1672 = vmul.f32 %v1555, %v1378
  %v1673 = vmul.f32 %v1555, %v1379
  %v1674 = vmul.f32 %v1560, %v1380
  %v1675 = vmul.f32 %v1560, %v1381
  %v1676 = vmul.f32 %v1565, %v1382
  %v1677 = vmul.f32 %v1565, %v1383
  %v1678 = vmul.f32 %v1570, %v1384
  %v1679 = vmul.f32 %v1570, %v1385
  %v1680 = vmul.f32 %v1575, %v1386
  %v1681 = vmul.f32 %v1575, %v1387
  %v1682 = vmul.f32 %v1580, %v1388
  %v1683 = vmul.f32 %v1580, %v1389
  %v1684 = vmul.f32 %v1585, %v1390
  %v1685 = vmul.f32 %v1585, %v1391
  %v1686 = vmul.f32 %v1590, %v1392
  %v1687 = vmul.f32 %v1590, %v1393
  %v1688 = vmul.f32 %v1595, %v1394
  %v1689 = vmul.f32 %v1595, %v1395
  %v1690 = vmul.f32 %v1600, %v1396
  %v1691 = vmul.f32 %v1600, %v1397
  %v1692 = vmul.f32 %v1605, %v1398
  %v1693 = vmul.f32 %v1605, %v1399
  %v1694 = vmul.f32 %v1610, %v1400
  %v1695 = vmul.f32 %v1610, %v1401
  %v1696 = vld [vmem:[%s5] sm:$0xff]
  %v1697 = vld [vmem:[%s5 + $0x8] sm:$0xf]
  %v1698 = vld [vmem:[%s5 + $0xc] sm:$0xff]
  %v1699 = vld [vmem:[%s5 + $0x14] sm:$0xf]
  %v1700 = vld [vmem:[%s5 + $0x18] sm:$0xff]
  %v1701 = vld [vmem:[%s5 + $0x20] sm:$0xf]
  %v1702 = vld [vmem:[%s5 + $0x24] sm:$0xff]
  %v1703 = vld [vmem:[%s5 + $0x2c] sm:$0xf]
  %v1704 = vld [vmem:[%s5 + $0x30] sm:$0xff]
  %v1705 = vld [vmem:[%s5 + $0x38] sm:$0xf]
  %v1706 = vld [vmem:[%s5 + $0x3c] sm:$0xff]
  %v1707 = vld [vmem:[%s5 + $0x44] sm:$0xf]
  %v1708 = vld [vmem:[%s5 + $0x48] sm:$0xff]
  %v1709 = vld [vmem:[%s5 + $0x50] sm:$0xf]
  %v1710 = vld [vmem:[%s5 + $0x54] sm:$0xff]
  %v1711 = vld [vmem:[%s5 + $0x5c] sm:$0xf]
  %v1712 = vld [vmem:[%s5 + $0x60] sm:$0xff]
  %v1713 = vld [vmem:[%s5 + $0x68] sm:$0xf]
  %v1714 = vld [vmem:[%s5 + $0x6c] sm:$0xff]
  %v1715 = vld [vmem:[%s5 + $0x74] sm:$0xf]
  %v1716 = vld [vmem:[%s5 + $0x78] sm:$0xff]
  %v1717 = vld [vmem:[%s5 + $0x80] sm:$0xf]
  %v1718 = vld [vmem:[%s5 + $0x84] sm:$0xff]
  %v1719 = vld [vmem:[%s5 + $0x8c] sm:$0xf]
  %v1720 = vld [vmem:[%s5 + $0x90] sm:$0xff]
  %v1721 = vld [vmem:[%s5 + $0x98] sm:$0xf]
  %v1722 = vld [vmem:[%s5 + $0x9c] sm:$0xff]
  %v1723 = vld [vmem:[%s5 + $0xa4] sm:$0xf]
  %v1724 = vld [vmem:[%s5 + $0xa8] sm:$0xff]
  %v1725 = vld [vmem:[%s5 + $0xb0] sm:$0xf]
  %v1726 = vld [vmem:[%s5 + $0xb4] sm:$0xff]
  %v1727 = vld [vmem:[%s5 + $0xbc] sm:$0xf]
  %v1728 = vld [vmem:[%s5 + $0xc0] sm:$0xff]
  %v1729 = vld [vmem:[%s5 + $0xc8] sm:$0xf]
  %v1730 = vld [vmem:[%s5 + $0xcc] sm:$0xff]
  %v1731 = vld [vmem:[%s5 + $0xd4] sm:$0xf]
  %v1732 = vld [vmem:[%s5 + $0xd8] sm:$0xff]
  %v1733 = vld [vmem:[%s5 + $0xe0] sm:$0xf]
  %v1734 = vld [vmem:[%s5 + $0xe4] sm:$0xff]
  %v1735 = vld [vmem:[%s5 + $0xec] sm:$0xf]
  %v1736 = vld [vmem:[%s5 + $0xf0] sm:$0xff]
  %v1737 = vld [vmem:[%s5 + $0xf8] sm:$0xf]
  %v1738 = vld [vmem:[%s5 + $0xfc] sm:$0xff]
  %v1739 = vld [vmem:[%s5 + $0x104] sm:$0xf]
  %v1740 = vld [vmem:[%s5 + $0x108] sm:$0xff]
  %v1741 = vld [vmem:[%s5 + $0x110] sm:$0xf]
  %v1742 = vld [vmem:[%s5 + $0x114] sm:$0xff]
  %v1743 = vld [vmem:[%s5 + $0x11c] sm:$0xf]
  %v1744 = vld [vmem:[%s5 + $0x120] sm:$0xff]
  %v1745 = vld [vmem:[%s5 + $0x128] sm:$0xf]
  %v1746 = vld [vmem:[%s5 + $0x12c] sm:$0xff]
  %v1747 = vld [vmem:[%s5 + $0x134] sm:$0xf]
  %v1748 = vld [vmem:[%s5 + $0x138] sm:$0xff]
  %v1749 = vld [vmem:[%s5 + $0x140] sm:$0xf]
  %v1750 = vld [vmem:[%s5 + $0x144] sm:$0xff]
  %v1751 = vld [vmem:[%s5 + $0x14c] sm:$0xf]
  %v1752 = vld [vmem:[%s5 + $0x150] sm:$0xff]
  %v1753 = vld [vmem:[%s5 + $0x158] sm:$0xf]
  %v1754 = vld [vmem:[%s5 + $0x15c] sm:$0xff]
  %v1755 = vld [vmem:[%s5 + $0x164] sm:$0xf]
  %v1756 = vld [vmem:[%s5 + $0x168] sm:$0xff]
  %v1757 = vld [vmem:[%s5 + $0x170] sm:$0xf]
  %v1758 = vld [vmem:[%s5 + $0x174] sm:$0xff]
  %v1759 = vld [vmem:[%s5 + $0x17c] sm:$0xf]
  %v1760 = vld [vmem:[%s5 + $0x180] sm:$0xff]
  %v1761 = vld [vmem:[%s5 + $0x188] sm:$0xf]
  %v1762 = vld [vmem:[%s5 + $0x18c] sm:$0xff]
  %v1763 = vld [vmem:[%s5 + $0x194] sm:$0xf]
  %v1764 = vld [vmem:[%s5 + $0x198] sm:$0xff]
  %v1765 = vld [vmem:[%s5 + $0x1a0] sm:$0xf]
  %v1766 = vld [vmem:[%s5 + $0x1a4] sm:$0xff]
  %v1767 = vld [vmem:[%s5 + $0x1ac] sm:$0xf]
  %v1768 = vld [vmem:[%s5 + $0x1b0] sm:$0xff]
  %v1769 = vld [vmem:[%s5 + $0x1b8] sm:$0xf]
  %v1770 = vld [vmem:[%s5 + $0x1bc] sm:$0xff]
  %v1771 = vld [vmem:[%s5 + $0x1c4] sm:$0xf]
  %v1772 = vld [vmem:[%s5 + $0x1c8] sm:$0xff]
  %v1773 = vld [vmem:[%s5 + $0x1d0] sm:$0xf]
  %v1774 = vld [vmem:[%s5 + $0x1d4] sm:$0xff]
  %v1775 = vld [vmem:[%s5 + $0x1dc] sm:$0xf]
  %v1776 = vld [vmem:[%s5 + $0x1e0] sm:$0xff]
  %v1777 = vld [vmem:[%s5 + $0x1e8] sm:$0xf]
  %v1778 = vld [vmem:[%s5 + $0x1ec] sm:$0xff]
  %v1779 = vld [vmem:[%s5 + $0x1f4] sm:$0xf]
  %v1780 = vpack.c.bf16 %v1614, %v1612
  %v1781 = vpack.c.bf16 %v1615, %v1613
  %v1782 = vpack.c.bf16 %v1618, %v1616
  %v1783 = vpack.c.bf16 %v1619, %v1617
  %v1784 = vpack.c.bf16 %v1622, %v1620
  %v1785 = vpack.c.bf16 %v1623, %v1621
  %v1786 = vpack.c.bf16 %v1626, %v1624
  %v1787 = vpack.c.bf16 %v1627, %v1625
  %v1788 = vpack.c.bf16 %v1630, %v1628
  %v1789 = vpack.c.bf16 %v1631, %v1629
  %v1790 = vpack.c.bf16 %v1634, %v1632
  %v1791 = vpack.c.bf16 %v1635, %v1633
  %v1792 = vpack.c.bf16 %v1638, %v1636
  %v1793 = vpack.c.bf16 %v1639, %v1637
  %v1794 = vpack.c.bf16 %v1642, %v1640
  %v1795 = vpack.c.bf16 %v1643, %v1641
  %v1796 = vpack.c.bf16 %v1646, %v1644
  %v1797 = vpack.c.bf16 %v1647, %v1645
  %v1798 = vpack.c.bf16 %v1650, %v1648
  %v1799 = vpack.c.bf16 %v1651, %v1649
  %v1800 = vpack.c.bf16 %v1654, %v1652
  %v1801 = vpack.c.bf16 %v1655, %v1653
  %v1802 = vpack.c.bf16 %v1658, %v1656
  %v1803 = vpack.c.bf16 %v1659, %v1657
  %v1804 = vpack.c.bf16 %v1662, %v1660
  %v1805 = vpack.c.bf16 %v1663, %v1661
  %v1806 = vpack.c.bf16 %v1666, %v1664
  %v1807 = vpack.c.bf16 %v1667, %v1665
  %v1808 = vpack.c.bf16 %v1670, %v1668
  %v1809 = vpack.c.bf16 %v1671, %v1669
  %v1810 = vpack.c.bf16 %v1674, %v1672
  %v1811 = vpack.c.bf16 %v1675, %v1673
  %v1812 = vpack.c.bf16 %v1678, %v1676
  %v1813 = vpack.c.bf16 %v1679, %v1677
  %v1814 = vpack.c.bf16 %v1682, %v1680
  %v1815 = vpack.c.bf16 %v1683, %v1681
  %v1816 = vpack.c.bf16 %v1686, %v1684
  %v1817 = vpack.c.bf16 %v1687, %v1685
  %v1818 = vpack.c.bf16 %v1690, %v1688
  %v1819 = vpack.c.bf16 %v1691, %v1689
  %v1820 = vpack.c.bf16 %v1694, %v1692
  %v1821 = vpack.c.bf16 %v1695, %v1693
  %v1906 = vunpack.c.l.b16 %v1696
  %v1907 = vunpack.c.h.b16 %v1696
  %v1908 = vunpack.c.l.b16 %v1697
  %v1909 = vunpack.c.l.b16 %v1698
  %v1910 = vunpack.c.h.b16 %v1698
  %v1911 = vunpack.c.l.b16 %v1699
  %v1912 = vunpack.c.l.b16 %v1700
  %v1913 = vunpack.c.h.b16 %v1700
  %v1914 = vunpack.c.l.b16 %v1701
  %v1915 = vunpack.c.l.b16 %v1702
  %v1916 = vunpack.c.h.b16 %v1702
  %v1917 = vunpack.c.l.b16 %v1703
  %v1918 = vunpack.c.l.b16 %v1704
  %v1919 = vunpack.c.h.b16 %v1704
  %v1920 = vunpack.c.l.b16 %v1705
  %v1921 = vunpack.c.l.b16 %v1706
  %v1922 = vunpack.c.h.b16 %v1706
  %v1923 = vunpack.c.l.b16 %v1707
  %v1924 = vunpack.c.l.b16 %v1708
  %v1925 = vunpack.c.h.b16 %v1708
  %v1926 = vunpack.c.l.b16 %v1709
  %v1927 = vunpack.c.l.b16 %v1710
  %v1928 = vunpack.c.h.b16 %v1710
  %v1929 = vunpack.c.l.b16 %v1711
  %v1930 = vunpack.c.l.b16 %v1712
  %v1931 = vunpack.c.h.b16 %v1712
  %v1932 = vunpack.c.l.b16 %v1713
  %v1933 = vunpack.c.l.b16 %v1714
  %v1934 = vunpack.c.h.b16 %v1714
  %v1935 = vunpack.c.l.b16 %v1715
  %v1936 = vunpack.c.l.b16 %v1716
  %v1937 = vunpack.c.h.b16 %v1716
  %v1938 = vunpack.c.l.b16 %v1717
  %v1939 = vunpack.c.l.b16 %v1718
  %v1940 = vunpack.c.h.b16 %v1718
  %v1941 = vunpack.c.l.b16 %v1719
  %v1942 = vunpack.c.l.b16 %v1720
  %v1943 = vunpack.c.h.b16 %v1720
  %v1944 = vunpack.c.l.b16 %v1721
  %v1945 = vunpack.c.l.b16 %v1722
  %v1946 = vunpack.c.h.b16 %v1722
  %v1947 = vunpack.c.l.b16 %v1723
  %v1948 = vunpack.c.l.b16 %v1724
  %v1949 = vunpack.c.h.b16 %v1724
  %v1950 = vunpack.c.l.b16 %v1725
  %v1951 = vunpack.c.l.b16 %v1726
  %v1952 = vunpack.c.h.b16 %v1726
  %v1953 = vunpack.c.l.b16 %v1727
  %v1954 = vunpack.c.l.b16 %v1728
  %v1955 = vunpack.c.h.b16 %v1728
  %v1956 = vunpack.c.l.b16 %v1729
  %v1957 = vunpack.c.l.b16 %v1730
  %v1958 = vunpack.c.h.b16 %v1730
  %v1959 = vunpack.c.l.b16 %v1731
  %v1960 = vunpack.c.l.b16 %v1732
  %v1961 = vunpack.c.h.b16 %v1732
  %v1962 = vunpack.c.l.b16 %v1733
  %v1963 = vunpack.c.l.b16 %v1734
  %v1964 = vunpack.c.h.b16 %v1734
  %v1965 = vunpack.c.l.b16 %v1735
  %v1966 = vunpack.c.l.b16 %v1736
  %v1967 = vunpack.c.h.b16 %v1736
  %v1968 = vunpack.c.l.b16 %v1737
  %v1969 = vunpack.c.l.b16 %v1738
  %v1970 = vunpack.c.h.b16 %v1738
  %v1971 = vunpack.c.l.b16 %v1739
  %v1972 = vunpack.c.l.b16 %v1740
  %v1973 = vunpack.c.h.b16 %v1740
  %v1974 = vunpack.c.l.b16 %v1741
  %v1975 = vunpack.c.l.b16 %v1742
  %v1976 = vunpack.c.h.b16 %v1742
  %v1977 = vunpack.c.l.b16 %v1743
  %v1978 = vunpack.c.l.b16 %v1744
  %v1979 = vunpack.c.h.b16 %v1744
  %v1980 = vunpack.c.l.b16 %v1745
  %v1981 = vunpack.c.l.b16 %v1746
  %v1982 = vunpack.c.h.b16 %v1746
  %v1983 = vunpack.c.l.b16 %v1747
  %v1984 = vunpack.c.l.b16 %v1748
  %v1985 = vunpack.c.h.b16 %v1748
  %v1986 = vunpack.c.l.b16 %v1749
  %v1987 = vunpack.c.l.b16 %v1750
  %v1988 = vunpack.c.h.b16 %v1750
  %v1989 = vunpack.c.l.b16 %v1751
  %v1990 = vunpack.c.l.b16 %v1752
  %v1991 = vunpack.c.h.b16 %v1752
  %v1992 = vunpack.c.l.b16 %v1753
  %v1993 = vunpack.c.l.b16 %v1754
  %v1994 = vunpack.c.h.b16 %v1754
  %v1995 = vunpack.c.l.b16 %v1755
  %v1996 = vunpack.c.l.b16 %v1756
  %v1997 = vunpack.c.h.b16 %v1756
  %v1998 = vunpack.c.l.b16 %v1757
  %v1999 = vunpack.c.l.b16 %v1758
  %v2000 = vunpack.c.h.b16 %v1758
  %v2001 = vunpack.c.l.b16 %v1759
  %v2002 = vunpack.c.l.b16 %v1760
  %v2003 = vunpack.c.h.b16 %v1760
  %v2004 = vunpack.c.l.b16 %v1761
  %v2005 = vunpack.c.l.b16 %v1762
  %v2006 = vunpack.c.h.b16 %v1762
  %v2007 = vunpack.c.l.b16 %v1763
  %v2008 = vunpack.c.l.b16 %v1764
  %v2009 = vunpack.c.h.b16 %v1764
  %v2010 = vunpack.c.l.b16 %v1765
  %v2011 = vunpack.c.l.b16 %v1766
  %v2012 = vunpack.c.h.b16 %v1766
  %v2013 = vunpack.c.l.b16 %v1767
  %v2014 = vunpack.c.l.b16 %v1768
  %v2015 = vunpack.c.h.b16 %v1768
  %v2016 = vunpack.c.l.b16 %v1769
  %v2017 = vunpack.c.l.b16 %v1770
  %v2018 = vunpack.c.h.b16 %v1770
  %v2019 = vunpack.c.l.b16 %v1771
  %v2020 = vunpack.c.l.b16 %v1772
  %v2021 = vunpack.c.h.b16 %v1772
  %v2022 = vunpack.c.l.b16 %v1773
  %v2023 = vunpack.c.l.b16 %v1774
  %v2024 = vunpack.c.h.b16 %v1774
  %v2025 = vunpack.c.l.b16 %v1775
  %v2026 = vunpack.c.l.b16 %v1776
  %v2027 = vunpack.c.h.b16 %v1776
  %v2028 = vunpack.c.l.b16 %v1777
  %v2029 = vunpack.c.l.b16 %v1778
  %v2030 = vunpack.c.h.b16 %v1778
  %v2031 = vunpack.c.l.b16 %v1779
  %v2032 = vpack.c.b16 %v1909, %v1906
  %v2033 = vpack.c.b16 %v1910, %v1907
  %v2034 = vpack.c.b16 %v1911, %v1908
  %v2035 = vpack.c.b16 %v1915, %v1912
  %v2036 = vpack.c.b16 %v1916, %v1913
  %v2037 = vpack.c.b16 %v1917, %v1914
  %v2038 = vpack.c.b16 %v1921, %v1918
  %v2039 = vpack.c.b16 %v1922, %v1919
  %v2040 = vpack.c.b16 %v1923, %v1920
  %v2041 = vpack.c.b16 %v1927, %v1924
  %v2042 = vpack.c.b16 %v1928, %v1925
  %v2043 = vpack.c.b16 %v1929, %v1926
  %v2044 = vpack.c.b16 %v1933, %v1930
  %v2045 = vpack.c.b16 %v1934, %v1931
  %v2046 = vpack.c.b16 %v1935, %v1932
  %v2047 = vpack.c.b16 %v1939, %v1936
  %v2048 = vpack.c.b16 %v1940, %v1937
  %v2049 = vpack.c.b16 %v1941, %v1938
  %v2050 = vpack.c.b16 %v1945, %v1942
  %v2051 = vpack.c.b16 %v1946, %v1943
  %v2052 = vpack.c.b16 %v1947, %v1944
  %v2053 = vpack.c.b16 %v1951, %v1948
  %v2054 = vpack.c.b16 %v1952, %v1949
  %v2055 = vpack.c.b16 %v1953, %v1950
  %v2056 = vpack.c.b16 %v1957, %v1954
  %v2057 = vpack.c.b16 %v1958, %v1955
  %v2058 = vpack.c.b16 %v1959, %v1956
  %v2059 = vpack.c.b16 %v1963, %v1960
  %v2060 = vpack.c.b16 %v1964, %v1961
  %v2061 = vpack.c.b16 %v1965, %v1962
  %v2062 = vpack.c.b16 %v1969, %v1966
  %v2063 = vpack.c.b16 %v1970, %v1967
  %v2064 = vpack.c.b16 %v1971, %v1968
  %v2065 = vpack.c.b16 %v1975, %v1972
  %v2066 = vpack.c.b16 %v1976, %v1973
  %v2067 = vpack.c.b16 %v1977, %v1974
  %v2068 = vpack.c.b16 %v1981, %v1978
  %v2069 = vpack.c.b16 %v1982, %v1979
  %v2070 = vpack.c.b16 %v1983, %v1980
  %v2071 = vpack.c.b16 %v1987, %v1984
  %v2072 = vpack.c.b16 %v1988, %v1985
  %v2073 = vpack.c.b16 %v1989, %v1986
  %v2074 = vpack.c.b16 %v1993, %v1990
  %v2075 = vpack.c.b16 %v1994, %v1991
  %v2076 = vpack.c.b16 %v1995, %v1992
  %v2077 = vpack.c.b16 %v1999, %v1996
  %v2078 = vpack.c.b16 %v2000, %v1997
  %v2079 = vpack.c.b16 %v2001, %v1998
  %v2080 = vpack.c.b16 %v2005, %v2002
  %v2081 = vpack.c.b16 %v2006, %v2003
  %v2082 = vpack.c.b16 %v2007, %v2004
  %v2083 = vpack.c.b16 %v2011, %v2008
  %v2084 = vpack.c.b16 %v2012, %v2009
  %v2085 = vpack.c.b16 %v2013, %v2010
  %v2086 = vpack.c.b16 %v2017, %v2014
  %v2087 = vpack.c.b16 %v2018, %v2015
  %v2088 = vpack.c.b16 %v2019, %v2016
  %v2089 = vpack.c.b16 %v2023, %v2020
  %v2090 = vpack.c.b16 %v2024, %v2021
  %v2091 = vpack.c.b16 %v2025, %v2022
  %v2092 = vpack.c.b16 %v2029, %v2026
  %v2093 = vpack.c.b16 %v2030, %v2027
  %v2094 = vpack.c.b16 %v2031, %v2028
  %vm2137 = vcmask 654336
  %v2139 = vsel %vm2137, %v2034, 0
  %v2142 = vsel %vm2137, %v2037, 0
  %v2145 = vsel %vm2137, %v2040, 0
  %v2148 = vsel %vm2137, %v2043, 0
  %v2151 = vsel %vm2137, %v2046, 0
  %v2154 = vsel %vm2137, %v2049, 0
  %v2157 = vsel %vm2137, %v2052, 0
  %v2160 = vsel %vm2137, %v2055, 0
  %v2163 = vsel %vm2137, %v2058, 0
  %v2166 = vsel %vm2137, %v2061, 0
  %v2169 = vsel %vm2137, %v2064, 0
  %v2172 = vsel %vm2137, %v2067, 0
  %v2175 = vsel %vm2137, %v2070, 0
  %v2178 = vsel %vm2137, %v2073, 0
  %v2181 = vsel %vm2137, %v2076, 0
  %v2184 = vsel %vm2137, %v2079, 0
  %v2187 = vsel %vm2137, %v2082, 0
  %v2190 = vsel %vm2137, %v2085, 0
  %v2193 = vsel %vm2137, %v2088, 0
  %v2196 = vsel %vm2137, %v2091, 0
  %v2199 = vsel %vm2137, %v2094, 0
  %2201 = vmatpush.bf16.msra.mxu0 %v1794
  %2202 = vmatpush.bf16.msra.mxu0 %v1792
  %2203 = vmatpush.bf16.msra.mxu0 %v1790
  %2204 = vmatpush.bf16.msra.mxu0 %v1788
  %2205 = vmatpush.bf16.msra.mxu0 %v1786
  %2206 = vmatpush.bf16.msra.mxu0 %v1784
  %2207 = vmatpush.bf16.msra.mxu0 %v1782
  %2208 = vmatpush.bf16.msra.mxu0 %v1780
  %2209 = vmatmul.bf16.gmra.mxu0 %v2032
  %v2210 = vpop.f32.mrf.mxu0
  %v2211 = vadd.f32 0.0, %v2210
  %v2212 = vpop.f32.mrf.mxu0
  %v2213 = vadd.f32 0.0, %v2212
  %2214 = vmatmul.bf16.gmra.mxu0 %v2035
  %v2215 = vpop.f32.mrf.mxu0
  %v2216 = vadd.f32 0.0, %v2215
  %v2217 = vpop.f32.mrf.mxu0
  %v2218 = vadd.f32 0.0, %v2217
  %2219 = vmatmul.bf16.gmra.mxu0 %v2038
  %v2220 = vpop.f32.mrf.mxu0
  %v2221 = vadd.f32 0.0, %v2220
  %v2222 = vpop.f32.mrf.mxu0
  %v2223 = vadd.f32 0.0, %v2222
  %2224 = vmatmul.bf16.gmra.mxu0 %v2041
  %v2225 = vpop.f32.mrf.mxu0
  %v2226 = vadd.f32 0.0, %v2225
  %v2227 = vpop.f32.mrf.mxu0
  %v2228 = vadd.f32 0.0, %v2227
  %2229 = vmatmul.bf16.gmra.mxu0 %v2044
  %v2230 = vpop.f32.mrf.mxu0
  %v2231 = vadd.f32 0.0, %v2230
  %v2232 = vpop.f32.mrf.mxu0
  %v2233 = vadd.f32 0.0, %v2232
  %2234 = vmatmul.bf16.gmra.mxu0 %v2047
  %v2235 = vpop.f32.mrf.mxu0
  %v2236 = vadd.f32 0.0, %v2235
  %v2237 = vpop.f32.mrf.mxu0
  %v2238 = vadd.f32 0.0, %v2237
  %2239 = vmatmul.bf16.gmra.mxu0 %v2050
  %v2240 = vpop.f32.mrf.mxu0
  %v2241 = vadd.f32 0.0, %v2240
  %v2242 = vpop.f32.mrf.mxu0
  %v2243 = vadd.f32 0.0, %v2242
  %2244 = vmatmul.bf16.gmra.mxu0 %v2053
  %v2245 = vpop.f32.mrf.mxu0
  %v2246 = vadd.f32 0.0, %v2245
  %v2247 = vpop.f32.mrf.mxu0
  %v2248 = vadd.f32 0.0, %v2247
  %2249 = vmatmul.bf16.gmra.mxu0 %v2056
  %v2250 = vpop.f32.mrf.mxu0
  %v2251 = vadd.f32 0.0, %v2250
  %v2252 = vpop.f32.mrf.mxu0
  %v2253 = vadd.f32 0.0, %v2252
  %2254 = vmatmul.bf16.gmra.mxu0 %v2059
  %v2255 = vpop.f32.mrf.mxu0
  %v2256 = vadd.f32 0.0, %v2255
  %v2257 = vpop.f32.mrf.mxu0
  %v2258 = vadd.f32 0.0, %v2257
  %2259 = vmatmul.bf16.gmra.mxu0 %v2062
  %v2260 = vpop.f32.mrf.mxu0
  %v2261 = vadd.f32 0.0, %v2260
  %v2262 = vpop.f32.mrf.mxu0
  %v2263 = vadd.f32 0.0, %v2262
  %2264 = vmatmul.bf16.gmra.mxu0 %v2065
  %v2265 = vpop.f32.mrf.mxu0
  %v2266 = vadd.f32 0.0, %v2265
  %v2267 = vpop.f32.mrf.mxu0
  %v2268 = vadd.f32 0.0, %v2267
  %2269 = vmatmul.bf16.gmra.mxu0 %v2068
  %v2270 = vpop.f32.mrf.mxu0
  %v2271 = vadd.f32 0.0, %v2270
  %v2272 = vpop.f32.mrf.mxu0
  %v2273 = vadd.f32 0.0, %v2272
  %2274 = vmatmul.bf16.gmra.mxu0 %v2071
  %v2275 = vpop.f32.mrf.mxu0
  %v2276 = vadd.f32 0.0, %v2275
  %v2277 = vpop.f32.mrf.mxu0
  %v2278 = vadd.f32 0.0, %v2277
  %2279 = vmatmul.bf16.gmra.mxu0 %v2074
  %v2280 = vpop.f32.mrf.mxu0
  %v2281 = vadd.f32 0.0, %v2280
  %v2282 = vpop.f32.mrf.mxu0
  %v2283 = vadd.f32 0.0, %v2282
  %2284 = vmatmul.bf16.gmra.mxu0 %v2077
  %v2285 = vpop.f32.mrf.mxu0
  %v2286 = vadd.f32 0.0, %v2285
  %v2287 = vpop.f32.mrf.mxu0
  %v2288 = vadd.f32 0.0, %v2287
  %2289 = vmatmul.bf16.gmra.mxu0 %v2080
  %v2290 = vpop.f32.mrf.mxu0
  %v2291 = vadd.f32 0.0, %v2290
  %v2292 = vpop.f32.mrf.mxu0
  %v2293 = vadd.f32 0.0, %v2292
  %2294 = vmatmul.bf16.gmra.mxu0 %v2083
  %v2295 = vpop.f32.mrf.mxu0
  %v2296 = vadd.f32 0.0, %v2295
  %v2297 = vpop.f32.mrf.mxu0
  %v2298 = vadd.f32 0.0, %v2297
  %2299 = vmatmul.bf16.gmra.mxu0 %v2086
  %v2300 = vpop.f32.mrf.mxu0
  %v2301 = vadd.f32 0.0, %v2300
  %v2302 = vpop.f32.mrf.mxu0
  %v2303 = vadd.f32 0.0, %v2302
  %2304 = vmatmul.bf16.gmra.mxu0 %v2089
  %v2305 = vpop.f32.mrf.mxu0
  %v2306 = vadd.f32 0.0, %v2305
  %v2307 = vpop.f32.mrf.mxu0
  %v2308 = vadd.f32 0.0, %v2307
  %2309 = vmatmul.bf16.gmra.mxu0 %v2092
  %v2310 = vpop.f32.mrf.mxu0
  %v2311 = vadd.f32 0.0, %v2310
  %v2312 = vpop.f32.mrf.mxu0
  %v2313 = vadd.f32 0.0, %v2312
  %2314 = vdwg.mxu0
  %2315 = vmatpush.bf16.msra.mxu0 %v1810
  %2316 = vmatpush.bf16.msra.mxu0 %v1808
  %2317 = vmatpush.bf16.msra.mxu0 %v1806
  %2318 = vmatpush.bf16.msra.mxu0 %v1804
  %2319 = vmatpush.bf16.msra.mxu0 %v1802
  %2320 = vmatpush.bf16.msra.mxu0 %v1800
  %2321 = vmatpush.bf16.msra.mxu0 %v1798
  %2322 = vmatpush.bf16.msra.mxu0 %v1796
  %2323 = vmatmul.bf16.gmra.mxu0 %v2033
  %v2324 = vpop.f32.mrf.mxu0
  %v2325 = vadd.f32 %v2211, %v2324
  %v2326 = vpop.f32.mrf.mxu0
  %v2327 = vadd.f32 %v2213, %v2326
  %2328 = vmatmul.bf16.gmra.mxu0 %v2036
  %v2329 = vpop.f32.mrf.mxu0
  %v2330 = vadd.f32 %v2216, %v2329
  %v2331 = vpop.f32.mrf.mxu0
  %v2332 = vadd.f32 %v2218, %v2331
  %2333 = vmatmul.bf16.gmra.mxu0 %v2039
  %v2334 = vpop.f32.mrf.mxu0
  %v2335 = vadd.f32 %v2221, %v2334
  %v2336 = vpop.f32.mrf.mxu0
  %v2337 = vadd.f32 %v2223, %v2336
  %2338 = vmatmul.bf16.gmra.mxu0 %v2042
  %v2339 = vpop.f32.mrf.mxu0
  %v2340 = vadd.f32 %v2226, %v2339
  %v2341 = vpop.f32.mrf.mxu0
  %v2342 = vadd.f32 %v2228, %v2341
  %2343 = vmatmul.bf16.gmra.mxu0 %v2045
  %v2344 = vpop.f32.mrf.mxu0
  %v2345 = vadd.f32 %v2231, %v2344
  %v2346 = vpop.f32.mrf.mxu0
  %v2347 = vadd.f32 %v2233, %v2346
  %2348 = vmatmul.bf16.gmra.mxu0 %v2048
  %v2349 = vpop.f32.mrf.mxu0
  %v2350 = vadd.f32 %v2236, %v2349
  %v2351 = vpop.f32.mrf.mxu0
  %v2352 = vadd.f32 %v2238, %v2351
  %2353 = vmatmul.bf16.gmra.mxu0 %v2051
  %v2354 = vpop.f32.mrf.mxu0
  %v2355 = vadd.f32 %v2241, %v2354
  %v2356 = vpop.f32.mrf.mxu0
  %v2357 = vadd.f32 %v2243, %v2356
  %2358 = vmatmul.bf16.gmra.mxu0 %v2054
  %v2359 = vpop.f32.mrf.mxu0
  %v2360 = vadd.f32 %v2246, %v2359
  %v2361 = vpop.f32.mrf.mxu0
  %v2362 = vadd.f32 %v2248, %v2361
  %2363 = vmatmul.bf16.gmra.mxu0 %v2057
  %v2364 = vpop.f32.mrf.mxu0
  %v2365 = vadd.f32 %v2251, %v2364
  %v2366 = vpop.f32.mrf.mxu0
  %v2367 = vadd.f32 %v2253, %v2366
  %2368 = vmatmul.bf16.gmra.mxu0 %v2060
  %v2369 = vpop.f32.mrf.mxu0
  %v2370 = vadd.f32 %v2256, %v2369
  %v2371 = vpop.f32.mrf.mxu0
  %v2372 = vadd.f32 %v2258, %v2371
  %2373 = vmatmul.bf16.gmra.mxu0 %v2063
  %v2374 = vpop.f32.mrf.mxu0
  %v2375 = vadd.f32 %v2261, %v2374
  %v2376 = vpop.f32.mrf.mxu0
  %v2377 = vadd.f32 %v2263, %v2376
  %2378 = vmatmul.bf16.gmra.mxu0 %v2066
  %v2379 = vpop.f32.mrf.mxu0
  %v2380 = vadd.f32 %v2266, %v2379
  %v2381 = vpop.f32.mrf.mxu0
  %v2382 = vadd.f32 %v2268, %v2381
  %2383 = vmatmul.bf16.gmra.mxu0 %v2069
  %v2384 = vpop.f32.mrf.mxu0
  %v2385 = vadd.f32 %v2271, %v2384
  %v2386 = vpop.f32.mrf.mxu0
  %v2387 = vadd.f32 %v2273, %v2386
  %2388 = vmatmul.bf16.gmra.mxu0 %v2072
  %v2389 = vpop.f32.mrf.mxu0
  %v2390 = vadd.f32 %v2276, %v2389
  %v2391 = vpop.f32.mrf.mxu0
  %v2392 = vadd.f32 %v2278, %v2391
  %2393 = vmatmul.bf16.gmra.mxu0 %v2075
  %v2394 = vpop.f32.mrf.mxu0
  %v2395 = vadd.f32 %v2281, %v2394
  %v2396 = vpop.f32.mrf.mxu0
  %v2397 = vadd.f32 %v2283, %v2396
  %2398 = vmatmul.bf16.gmra.mxu0 %v2078
  %v2399 = vpop.f32.mrf.mxu0
  %v2400 = vadd.f32 %v2286, %v2399
  %v2401 = vpop.f32.mrf.mxu0
  %v2402 = vadd.f32 %v2288, %v2401
  %2403 = vmatmul.bf16.gmra.mxu0 %v2081
  %v2404 = vpop.f32.mrf.mxu0
  %v2405 = vadd.f32 %v2291, %v2404
  %v2406 = vpop.f32.mrf.mxu0
  %v2407 = vadd.f32 %v2293, %v2406
  %2408 = vmatmul.bf16.gmra.mxu0 %v2084
  %v2409 = vpop.f32.mrf.mxu0
  %v2410 = vadd.f32 %v2296, %v2409
  %v2411 = vpop.f32.mrf.mxu0
  %v2412 = vadd.f32 %v2298, %v2411
  %2413 = vmatmul.bf16.gmra.mxu0 %v2087
  %v2414 = vpop.f32.mrf.mxu0
  %v2415 = vadd.f32 %v2301, %v2414
  %v2416 = vpop.f32.mrf.mxu0
  %v2417 = vadd.f32 %v2303, %v2416
  %2418 = vmatmul.bf16.gmra.mxu0 %v2090
  %v2419 = vpop.f32.mrf.mxu0
  %v2420 = vadd.f32 %v2306, %v2419
  %v2421 = vpop.f32.mrf.mxu0
  %v2422 = vadd.f32 %v2308, %v2421
  %2423 = vmatmul.bf16.gmra.mxu0 %v2093
  %v2424 = vpop.f32.mrf.mxu0
  %v2425 = vadd.f32 %v2311, %v2424
  %v2426 = vpop.f32.mrf.mxu0
  %v2427 = vadd.f32 %v2313, %v2426
  %2428 = vdwg.mxu0
  %2429 = vmatpush.bf16.msra.mxu0 0
  %2430 = vmatpush.bf16.msra.mxu0 0
  %2431 = vmatpush.bf16.msra.mxu0 0
  %2432 = vmatpush.bf16.msra.mxu0 %v1820
  %2433 = vmatpush.bf16.msra.mxu0 %v1818
  %2434 = vmatpush.bf16.msra.mxu0 %v1816
  %2435 = vmatpush.bf16.msra.mxu0 %v1814
  %2436 = vmatpush.bf16.msra.mxu0 %v1812
  %2437 = vmatmul.bf16.gmra.mxu0 %v2139
  %v2438 = vpop.f32.mrf.mxu0
  %v2439 = vadd.f32 %v2325, %v2438
  %v2440 = vpop.f32.mrf.mxu0
  %v2441 = vadd.f32 %v2327, %v2440
  %2442 = vmatmul.bf16.gmra.mxu0 %v2142
  %v2443 = vpop.f32.mrf.mxu0
  %v2444 = vadd.f32 %v2330, %v2443
  %v2445 = vpop.f32.mrf.mxu0
  %v2446 = vadd.f32 %v2332, %v2445
  %2447 = vmatmul.bf16.gmra.mxu0 %v2145
  %v2448 = vpop.f32.mrf.mxu0
  %v2449 = vadd.f32 %v2335, %v2448
  %v2450 = vpop.f32.mrf.mxu0
  %v2451 = vadd.f32 %v2337, %v2450
  %2452 = vmatmul.bf16.gmra.mxu0 %v2148
  %v2453 = vpop.f32.mrf.mxu0
  %v2454 = vadd.f32 %v2340, %v2453
  %v2455 = vpop.f32.mrf.mxu0
  %v2456 = vadd.f32 %v2342, %v2455
  %2457 = vmatmul.bf16.gmra.mxu0 %v2151
  %v2458 = vpop.f32.mrf.mxu0
  %v2459 = vadd.f32 %v2345, %v2458
  %v2460 = vpop.f32.mrf.mxu0
  %v2461 = vadd.f32 %v2347, %v2460
  %2462 = vmatmul.bf16.gmra.mxu0 %v2154
  %v2463 = vpop.f32.mrf.mxu0
  %v2464 = vadd.f32 %v2350, %v2463
  %v2465 = vpop.f32.mrf.mxu0
  %v2466 = vadd.f32 %v2352, %v2465
  %2467 = vmatmul.bf16.gmra.mxu0 %v2157
  %v2468 = vpop.f32.mrf.mxu0
  %v2469 = vadd.f32 %v2355, %v2468
  %v2470 = vpop.f32.mrf.mxu0
  %v2471 = vadd.f32 %v2357, %v2470
  %2472 = vmatmul.bf16.gmra.mxu0 %v2160
  %v2473 = vpop.f32.mrf.mxu0
  %v2474 = vadd.f32 %v2360, %v2473
  %v2475 = vpop.f32.mrf.mxu0
  %v2476 = vadd.f32 %v2362, %v2475
  %2477 = vmatmul.bf16.gmra.mxu0 %v2163
  %v2478 = vpop.f32.mrf.mxu0
  %v2479 = vadd.f32 %v2365, %v2478
  %v2480 = vpop.f32.mrf.mxu0
  %v2481 = vadd.f32 %v2367, %v2480
  %2482 = vmatmul.bf16.gmra.mxu0 %v2166
  %v2483 = vpop.f32.mrf.mxu0
  %v2484 = vadd.f32 %v2370, %v2483
  %v2485 = vpop.f32.mrf.mxu0
  %v2486 = vadd.f32 %v2372, %v2485
  %2487 = vmatmul.bf16.gmra.mxu0 %v2169
  %v2488 = vpop.f32.mrf.mxu0
  %v2489 = vadd.f32 %v2375, %v2488
  %v2490 = vpop.f32.mrf.mxu0
  %v2491 = vadd.f32 %v2377, %v2490
  %2492 = vmatmul.bf16.gmra.mxu0 %v2172
  %v2493 = vpop.f32.mrf.mxu0
  %v2494 = vadd.f32 %v2380, %v2493
  %v2495 = vpop.f32.mrf.mxu0
  %v2496 = vadd.f32 %v2382, %v2495
  %2497 = vmatmul.bf16.gmra.mxu0 %v2175
  %v2498 = vpop.f32.mrf.mxu0
  %v2499 = vadd.f32 %v2385, %v2498
  %v2500 = vpop.f32.mrf.mxu0
  %v2501 = vadd.f32 %v2387, %v2500
  %2502 = vmatmul.bf16.gmra.mxu0 %v2178
  %v2503 = vpop.f32.mrf.mxu0
  %v2504 = vadd.f32 %v2390, %v2503
  %v2505 = vpop.f32.mrf.mxu0
  %v2506 = vadd.f32 %v2392, %v2505
  %2507 = vmatmul.bf16.gmra.mxu0 %v2181
  %v2508 = vpop.f32.mrf.mxu0
  %v2509 = vadd.f32 %v2395, %v2508
  %v2510 = vpop.f32.mrf.mxu0
  %v2511 = vadd.f32 %v2397, %v2510
  %2512 = vmatmul.bf16.gmra.mxu0 %v2184
  %v2513 = vpop.f32.mrf.mxu0
  %v2514 = vadd.f32 %v2400, %v2513
  %v2515 = vpop.f32.mrf.mxu0
  %v2516 = vadd.f32 %v2402, %v2515
  %2517 = vmatmul.bf16.gmra.mxu0 %v2187
  %v2518 = vpop.f32.mrf.mxu0
  %v2519 = vadd.f32 %v2405, %v2518
  %v2520 = vpop.f32.mrf.mxu0
  %v2521 = vadd.f32 %v2407, %v2520
  %2522 = vmatmul.bf16.gmra.mxu0 %v2190
  %v2523 = vpop.f32.mrf.mxu0
  %v2524 = vadd.f32 %v2410, %v2523
  %v2525 = vpop.f32.mrf.mxu0
  %v2526 = vadd.f32 %v2412, %v2525
  %2527 = vmatmul.bf16.gmra.mxu0 %v2193
  %v2528 = vpop.f32.mrf.mxu0
  %v2529 = vadd.f32 %v2415, %v2528
  %v2530 = vpop.f32.mrf.mxu0
  %v2531 = vadd.f32 %v2417, %v2530
  %2532 = vmatmul.bf16.gmra.mxu0 %v2196
  %v2533 = vpop.f32.mrf.mxu0
  %v2534 = vadd.f32 %v2420, %v2533
  %v2535 = vpop.f32.mrf.mxu0
  %v2536 = vadd.f32 %v2422, %v2535
  %2537 = vmatmul.bf16.gmra.mxu0 %v2199
  %v2538 = vpop.f32.mrf.mxu0
  %v2539 = vadd.f32 %v2425, %v2538
  %v2540 = vpop.f32.mrf.mxu0
  %v2541 = vadd.f32 %v2427, %v2540
  %2542 = vdwg.mxu0
  %2543 = vmatpush.bf16.msra.mxu0 %v1795
  %2544 = vmatpush.bf16.msra.mxu0 %v1793
  %2545 = vmatpush.bf16.msra.mxu0 %v1791
  %2546 = vmatpush.bf16.msra.mxu0 %v1789
  %2547 = vmatpush.bf16.msra.mxu0 %v1787
  %2548 = vmatpush.bf16.msra.mxu0 %v1785
  %2549 = vmatpush.bf16.msra.mxu0 %v1783
  %2550 = vmatpush.bf16.msra.mxu0 %v1781
  %2551 = vmatmul.bf16.gmra.mxu0 %v2032
  %v2552 = vpop.f32.mrf.mxu0
  %v2553 = vadd.f32 0.0, %v2552
  %v2554 = vpop.f32.mrf.mxu0
  %v2555 = vadd.f32 0.0, %v2554
  %2556 = vmatmul.bf16.gmra.mxu0 %v2035
  %v2557 = vpop.f32.mrf.mxu0
  %v2558 = vadd.f32 0.0, %v2557
  %v2559 = vpop.f32.mrf.mxu0
  %v2560 = vadd.f32 0.0, %v2559
  %2561 = vmatmul.bf16.gmra.mxu0 %v2038
  %v2562 = vpop.f32.mrf.mxu0
  %v2563 = vadd.f32 0.0, %v2562
  %v2564 = vpop.f32.mrf.mxu0
  %v2565 = vadd.f32 0.0, %v2564
  %2566 = vmatmul.bf16.gmra.mxu0 %v2041
  %v2567 = vpop.f32.mrf.mxu0
  %v2568 = vadd.f32 0.0, %v2567
  %v2569 = vpop.f32.mrf.mxu0
  %v2570 = vadd.f32 0.0, %v2569
  %2571 = vmatmul.bf16.gmra.mxu0 %v2044
  %v2572 = vpop.f32.mrf.mxu0
  %v2573 = vadd.f32 0.0, %v2572
  %v2574 = vpop.f32.mrf.mxu0
  %v2575 = vadd.f32 0.0, %v2574
  %2576 = vmatmul.bf16.gmra.mxu0 %v2047
  %v2577 = vpop.f32.mrf.mxu0
  %v2578 = vadd.f32 0.0, %v2577
  %v2579 = vpop.f32.mrf.mxu0
  %v2580 = vadd.f32 0.0, %v2579
  %2581 = vmatmul.bf16.gmra.mxu0 %v2050
  %v2582 = vpop.f32.mrf.mxu0
  %v2583 = vadd.f32 0.0, %v2582
  %v2584 = vpop.f32.mrf.mxu0
  %v2585 = vadd.f32 0.0, %v2584
  %2586 = vmatmul.bf16.gmra.mxu0 %v2053
  %v2587 = vpop.f32.mrf.mxu0
  %v2588 = vadd.f32 0.0, %v2587
  %v2589 = vpop.f32.mrf.mxu0
  %v2590 = vadd.f32 0.0, %v2589
  %2591 = vmatmul.bf16.gmra.mxu0 %v2056
  %v2592 = vpop.f32.mrf.mxu0
  %v2593 = vadd.f32 0.0, %v2592
  %v2594 = vpop.f32.mrf.mxu0
  %v2595 = vadd.f32 0.0, %v2594
  %2596 = vmatmul.bf16.gmra.mxu0 %v2059
  %v2597 = vpop.f32.mrf.mxu0
  %v2598 = vadd.f32 0.0, %v2597
  %v2599 = vpop.f32.mrf.mxu0
  %v2600 = vadd.f32 0.0, %v2599
  %2601 = vmatmul.bf16.gmra.mxu0 %v2062
  %v2602 = vpop.f32.mrf.mxu0
  %v2603 = vadd.f32 0.0, %v2602
  %v2604 = vpop.f32.mrf.mxu0
  %v2605 = vadd.f32 0.0, %v2604
  %2606 = vmatmul.bf16.gmra.mxu0 %v2065
  %v2607 = vpop.f32.mrf.mxu0
  %v2608 = vadd.f32 0.0, %v2607
  %v2609 = vpop.f32.mrf.mxu0
  %v2610 = vadd.f32 0.0, %v2609
  %2611 = vmatmul.bf16.gmra.mxu0 %v2068
  %v2612 = vpop.f32.mrf.mxu0
  %v2613 = vadd.f32 0.0, %v2612
  %v2614 = vpop.f32.mrf.mxu0
  %v2615 = vadd.f32 0.0, %v2614
  %2616 = vmatmul.bf16.gmra.mxu0 %v2071
  %v2617 = vpop.f32.mrf.mxu0
  %v2618 = vadd.f32 0.0, %v2617
  %v2619 = vpop.f32.mrf.mxu0
  %v2620 = vadd.f32 0.0, %v2619
  %2621 = vmatmul.bf16.gmra.mxu0 %v2074
  %v2622 = vpop.f32.mrf.mxu0
  %v2623 = vadd.f32 0.0, %v2622
  %v2624 = vpop.f32.mrf.mxu0
  %v2625 = vadd.f32 0.0, %v2624
  %2626 = vmatmul.bf16.gmra.mxu0 %v2077
  %v2627 = vpop.f32.mrf.mxu0
  %v2628 = vadd.f32 0.0, %v2627
  %v2629 = vpop.f32.mrf.mxu0
  %v2630 = vadd.f32 0.0, %v2629
  %2631 = vmatmul.bf16.gmra.mxu0 %v2080
  %v2632 = vpop.f32.mrf.mxu0
  %v2633 = vadd.f32 0.0, %v2632
  %v2634 = vpop.f32.mrf.mxu0
  %v2635 = vadd.f32 0.0, %v2634
  %2636 = vmatmul.bf16.gmra.mxu0 %v2083
  %v2637 = vpop.f32.mrf.mxu0
  %v2638 = vadd.f32 0.0, %v2637
  %v2639 = vpop.f32.mrf.mxu0
  %v2640 = vadd.f32 0.0, %v2639
  %2641 = vmatmul.bf16.gmra.mxu0 %v2086
  %v2642 = vpop.f32.mrf.mxu0
  %v2643 = vadd.f32 0.0, %v2642
  %v2644 = vpop.f32.mrf.mxu0
  %v2645 = vadd.f32 0.0, %v2644
  %2646 = vmatmul.bf16.gmra.mxu0 %v2089
  %v2647 = vpop.f32.mrf.mxu0
  %v2648 = vadd.f32 0.0, %v2647
  %v2649 = vpop.f32.mrf.mxu0
  %v2650 = vadd.f32 0.0, %v2649
  %2651 = vmatmul.bf16.gmra.mxu0 %v2092
  %v2652 = vpop.f32.mrf.mxu0
  %v2653 = vadd.f32 0.0, %v2652
  %v2654 = vpop.f32.mrf.mxu0
  %v2655 = vadd.f32 0.0, %v2654
  %2656 = vdwg.mxu0
  %2657 = vmatpush.bf16.msra.mxu0 %v1811
  %2658 = vmatpush.bf16.msra.mxu0 %v1809
  %2659 = vmatpush.bf16.msra.mxu0 %v1807
  %2660 = vmatpush.bf16.msra.mxu0 %v1805
  %2661 = vmatpush.bf16.msra.mxu0 %v1803
  %2662 = vmatpush.bf16.msra.mxu0 %v1801
  %2663 = vmatpush.bf16.msra.mxu0 %v1799
  %2664 = vmatpush.bf16.msra.mxu0 %v1797
  %2665 = vmatmul.bf16.gmra.mxu0 %v2033
  %v2666 = vpop.f32.mrf.mxu0
  %v2667 = vadd.f32 %v2553, %v2666
  %v2668 = vpop.f32.mrf.mxu0
  %v2669 = vadd.f32 %v2555, %v2668
  %2670 = vmatmul.bf16.gmra.mxu0 %v2036
  %v2671 = vpop.f32.mrf.mxu0
  %v2672 = vadd.f32 %v2558, %v2671
  %v2673 = vpop.f32.mrf.mxu0
  %v2674 = vadd.f32 %v2560, %v2673
  %2675 = vmatmul.bf16.gmra.mxu0 %v2039
  %v2676 = vpop.f32.mrf.mxu0
  %v2677 = vadd.f32 %v2563, %v2676
  %v2678 = vpop.f32.mrf.mxu0
  %v2679 = vadd.f32 %v2565, %v2678
  %2680 = vmatmul.bf16.gmra.mxu0 %v2042
  %v2681 = vpop.f32.mrf.mxu0
  %v2682 = vadd.f32 %v2568, %v2681
  %v2683 = vpop.f32.mrf.mxu0
  %v2684 = vadd.f32 %v2570, %v2683
  %2685 = vmatmul.bf16.gmra.mxu0 %v2045
  %v2686 = vpop.f32.mrf.mxu0
  %v2687 = vadd.f32 %v2573, %v2686
  %v2688 = vpop.f32.mrf.mxu0
  %v2689 = vadd.f32 %v2575, %v2688
  %2690 = vmatmul.bf16.gmra.mxu0 %v2048
  %v2691 = vpop.f32.mrf.mxu0
  %v2692 = vadd.f32 %v2578, %v2691
  %v2693 = vpop.f32.mrf.mxu0
  %v2694 = vadd.f32 %v2580, %v2693
  %2695 = vmatmul.bf16.gmra.mxu0 %v2051
  %v2696 = vpop.f32.mrf.mxu0
  %v2697 = vadd.f32 %v2583, %v2696
  %v2698 = vpop.f32.mrf.mxu0
  %v2699 = vadd.f32 %v2585, %v2698
  %2700 = vmatmul.bf16.gmra.mxu0 %v2054
  %v2701 = vpop.f32.mrf.mxu0
  %v2702 = vadd.f32 %v2588, %v2701
  %v2703 = vpop.f32.mrf.mxu0
  %v2704 = vadd.f32 %v2590, %v2703
  %2705 = vmatmul.bf16.gmra.mxu0 %v2057
  %v2706 = vpop.f32.mrf.mxu0
  %v2707 = vadd.f32 %v2593, %v2706
  %v2708 = vpop.f32.mrf.mxu0
  %v2709 = vadd.f32 %v2595, %v2708
  %2710 = vmatmul.bf16.gmra.mxu0 %v2060
  %v2711 = vpop.f32.mrf.mxu0
  %v2712 = vadd.f32 %v2598, %v2711
  %v2713 = vpop.f32.mrf.mxu0
  %v2714 = vadd.f32 %v2600, %v2713
  %2715 = vmatmul.bf16.gmra.mxu0 %v2063
  %v2716 = vpop.f32.mrf.mxu0
  %v2717 = vadd.f32 %v2603, %v2716
  %v2718 = vpop.f32.mrf.mxu0
  %v2719 = vadd.f32 %v2605, %v2718
  %2720 = vmatmul.bf16.gmra.mxu0 %v2066
  %v2721 = vpop.f32.mrf.mxu0
  %v2722 = vadd.f32 %v2608, %v2721
  %v2723 = vpop.f32.mrf.mxu0
  %v2724 = vadd.f32 %v2610, %v2723
  %2725 = vmatmul.bf16.gmra.mxu0 %v2069
  %v2726 = vpop.f32.mrf.mxu0
  %v2727 = vadd.f32 %v2613, %v2726
  %v2728 = vpop.f32.mrf.mxu0
  %v2729 = vadd.f32 %v2615, %v2728
  %2730 = vmatmul.bf16.gmra.mxu0 %v2072
  %v2731 = vpop.f32.mrf.mxu0
  %v2732 = vadd.f32 %v2618, %v2731
  %v2733 = vpop.f32.mrf.mxu0
  %v2734 = vadd.f32 %v2620, %v2733
  %2735 = vmatmul.bf16.gmra.mxu0 %v2075
  %v2736 = vpop.f32.mrf.mxu0
  %v2737 = vadd.f32 %v2623, %v2736
  %v2738 = vpop.f32.mrf.mxu0
  %v2739 = vadd.f32 %v2625, %v2738
  %2740 = vmatmul.bf16.gmra.mxu0 %v2078
  %v2741 = vpop.f32.mrf.mxu0
  %v2742 = vadd.f32 %v2628, %v2741
  %v2743 = vpop.f32.mrf.mxu0
  %v2744 = vadd.f32 %v2630, %v2743
  %2745 = vmatmul.bf16.gmra.mxu0 %v2081
  %v2746 = vpop.f32.mrf.mxu0
  %v2747 = vadd.f32 %v2633, %v2746
  %v2748 = vpop.f32.mrf.mxu0
  %v2749 = vadd.f32 %v2635, %v2748
  %2750 = vmatmul.bf16.gmra.mxu0 %v2084
  %v2751 = vpop.f32.mrf.mxu0
  %v2752 = vadd.f32 %v2638, %v2751
  %v2753 = vpop.f32.mrf.mxu0
  %v2754 = vadd.f32 %v2640, %v2753
  %2755 = vmatmul.bf16.gmra.mxu0 %v2087
  %v2756 = vpop.f32.mrf.mxu0
  %v2757 = vadd.f32 %v2643, %v2756
  %v2758 = vpop.f32.mrf.mxu0
  %v2759 = vadd.f32 %v2645, %v2758
  %2760 = vmatmul.bf16.gmra.mxu0 %v2090
  %v2761 = vpop.f32.mrf.mxu0
  %v2762 = vadd.f32 %v2648, %v2761
  %v2763 = vpop.f32.mrf.mxu0
  %v2764 = vadd.f32 %v2650, %v2763
  %2765 = vmatmul.bf16.gmra.mxu0 %v2093
  %v2766 = vpop.f32.mrf.mxu0
  %v2767 = vadd.f32 %v2653, %v2766
  %v2768 = vpop.f32.mrf.mxu0
  %v2769 = vadd.f32 %v2655, %v2768
  %2770 = vdwg.mxu0
  %2771 = vmatpush.bf16.msra.mxu0 0
  %2772 = vmatpush.bf16.msra.mxu0 0
  %2773 = vmatpush.bf16.msra.mxu0 0
  %2774 = vmatpush.bf16.msra.mxu0 %v1821
  %2775 = vmatpush.bf16.msra.mxu0 %v1819
  %2776 = vmatpush.bf16.msra.mxu0 %v1817
  %2777 = vmatpush.bf16.msra.mxu0 %v1815
  %2778 = vmatpush.bf16.msra.mxu0 %v1813
  %2779 = vmatmul.bf16.gmra.mxu0 %v2139
  %v2780 = vpop.f32.mrf.mxu0
  %v2781 = vadd.f32 %v2667, %v2780
  %v2782 = vpop.f32.mrf.mxu0
  %v2783 = vadd.f32 %v2669, %v2782
  %2784 = vmatmul.bf16.gmra.mxu0 %v2142
  %v2785 = vpop.f32.mrf.mxu0
  %v2786 = vadd.f32 %v2672, %v2785
  %v2787 = vpop.f32.mrf.mxu0
  %v2788 = vadd.f32 %v2674, %v2787
  %2789 = vmatmul.bf16.gmra.mxu0 %v2145
  %v2790 = vpop.f32.mrf.mxu0
  %v2791 = vadd.f32 %v2677, %v2790
  %v2792 = vpop.f32.mrf.mxu0
  %v2793 = vadd.f32 %v2679, %v2792
  %2794 = vmatmul.bf16.gmra.mxu0 %v2148
  %v2795 = vpop.f32.mrf.mxu0
  %v2796 = vadd.f32 %v2682, %v2795
  %v2797 = vpop.f32.mrf.mxu0
  %v2798 = vadd.f32 %v2684, %v2797
  %2799 = vmatmul.bf16.gmra.mxu0 %v2151
  %v2800 = vpop.f32.mrf.mxu0
  %v2801 = vadd.f32 %v2687, %v2800
  %v2802 = vpop.f32.mrf.mxu0
  %v2803 = vadd.f32 %v2689, %v2802
  %2804 = vmatmul.bf16.gmra.mxu0 %v2154
  %v2805 = vpop.f32.mrf.mxu0
  %v2806 = vadd.f32 %v2692, %v2805
  %v2807 = vpop.f32.mrf.mxu0
  %v2808 = vadd.f32 %v2694, %v2807
  %2809 = vmatmul.bf16.gmra.mxu0 %v2157
  %v2810 = vpop.f32.mrf.mxu0
  %v2811 = vadd.f32 %v2697, %v2810
  %v2812 = vpop.f32.mrf.mxu0
  %v2813 = vadd.f32 %v2699, %v2812
  %2814 = vmatmul.bf16.gmra.mxu0 %v2160
  %v2815 = vpop.f32.mrf.mxu0
  %v2816 = vadd.f32 %v2702, %v2815
  %v2817 = vpop.f32.mrf.mxu0
  %v2818 = vadd.f32 %v2704, %v2817
  %2819 = vmatmul.bf16.gmra.mxu0 %v2163
  %v2820 = vpop.f32.mrf.mxu0
  %v2821 = vadd.f32 %v2707, %v2820
  %v2822 = vpop.f32.mrf.mxu0
  %v2823 = vadd.f32 %v2709, %v2822
  %2824 = vmatmul.bf16.gmra.mxu0 %v2166
  %v2825 = vpop.f32.mrf.mxu0
  %v2826 = vadd.f32 %v2712, %v2825
  %v2827 = vpop.f32.mrf.mxu0
  %v2828 = vadd.f32 %v2714, %v2827
  %2829 = vmatmul.bf16.gmra.mxu0 %v2169
  %v2830 = vpop.f32.mrf.mxu0
  %v2831 = vadd.f32 %v2717, %v2830
  %v2832 = vpop.f32.mrf.mxu0
  %v2833 = vadd.f32 %v2719, %v2832
  %2834 = vmatmul.bf16.gmra.mxu0 %v2172
  %v2835 = vpop.f32.mrf.mxu0
  %v2836 = vadd.f32 %v2722, %v2835
  %v2837 = vpop.f32.mrf.mxu0
  %v2838 = vadd.f32 %v2724, %v2837
  %2839 = vmatmul.bf16.gmra.mxu0 %v2175
  %v2840 = vpop.f32.mrf.mxu0
  %v2841 = vadd.f32 %v2727, %v2840
  %v2842 = vpop.f32.mrf.mxu0
  %v2843 = vadd.f32 %v2729, %v2842
  %2844 = vmatmul.bf16.gmra.mxu0 %v2178
  %v2845 = vpop.f32.mrf.mxu0
  %v2846 = vadd.f32 %v2732, %v2845
  %v2847 = vpop.f32.mrf.mxu0
  %v2848 = vadd.f32 %v2734, %v2847
  %2849 = vmatmul.bf16.gmra.mxu0 %v2181
  %v2850 = vpop.f32.mrf.mxu0
  %v2851 = vadd.f32 %v2737, %v2850
  %v2852 = vpop.f32.mrf.mxu0
  %v2853 = vadd.f32 %v2739, %v2852
  %2854 = vmatmul.bf16.gmra.mxu0 %v2184
  %v2855 = vpop.f32.mrf.mxu0
  %v2856 = vadd.f32 %v2742, %v2855
  %v2857 = vpop.f32.mrf.mxu0
  %v2858 = vadd.f32 %v2744, %v2857
  %2859 = vmatmul.bf16.gmra.mxu0 %v2187
  %v2860 = vpop.f32.mrf.mxu0
  %v2861 = vadd.f32 %v2747, %v2860
  %v2862 = vpop.f32.mrf.mxu0
  %v2863 = vadd.f32 %v2749, %v2862
  %2864 = vmatmul.bf16.gmra.mxu0 %v2190
  %v2865 = vpop.f32.mrf.mxu0
  %v2866 = vadd.f32 %v2752, %v2865
  %v2867 = vpop.f32.mrf.mxu0
  %v2868 = vadd.f32 %v2754, %v2867
  %2869 = vmatmul.bf16.gmra.mxu0 %v2193
  %v2870 = vpop.f32.mrf.mxu0
  %v2871 = vadd.f32 %v2757, %v2870
  %v2872 = vpop.f32.mrf.mxu0
  %v2873 = vadd.f32 %v2759, %v2872
  %2874 = vmatmul.bf16.gmra.mxu0 %v2196
  %v2875 = vpop.f32.mrf.mxu0
  %v2876 = vadd.f32 %v2762, %v2875
  %v2877 = vpop.f32.mrf.mxu0
  %v2878 = vadd.f32 %v2764, %v2877
  %2879 = vmatmul.bf16.gmra.mxu0 %v2199
  %v2880 = vpop.f32.mrf.mxu0
  %v2881 = vadd.f32 %v2767, %v2880
  %v2882 = vpop.f32.mrf.mxu0
  %v2883 = vadd.f32 %v2769, %v2882
  %2884 = vdwg.mxu0
  %vm2885 = vcmask 556032
  %v2886 = vsel %vm2885, %v2781, 0.0
  %v2887 = vadd.f32 %v2439, %v2886
  %2888 = vadd.xlane.f32.xlu0 %v2887
  %v2889 = vpop.xlane.xlu0 %2888
  %v2890 = vsel %vm2885, %v2783, 0.0
  %v2891 = vadd.f32 %v2441, %v2890
  %2892 = vadd.xlane.f32.xlu0 %v2891
  %v2893 = vpop.xlane.xlu0 %2892
  %v2894 = vsel %vm2885, %v2786, 0.0
  %v2895 = vadd.f32 %v2444, %v2894
  %2896 = vadd.xlane.f32.xlu0 %v2895
  %v2897 = vpop.xlane.xlu0 %2896
  %v2898 = vsel %vm2885, %v2788, 0.0
  %v2899 = vadd.f32 %v2446, %v2898
  %2900 = vadd.xlane.f32.xlu0 %v2899
  %v2901 = vpop.xlane.xlu0 %2900
  %v2902 = vsel %vm2885, %v2791, 0.0
  %v2903 = vadd.f32 %v2449, %v2902
  %2904 = vadd.xlane.f32.xlu0 %v2903
  %v2905 = vpop.xlane.xlu0 %2904
  %v2906 = vsel %vm2885, %v2793, 0.0
  %v2907 = vadd.f32 %v2451, %v2906
  %2908 = vadd.xlane.f32.xlu0 %v2907
  %v2909 = vpop.xlane.xlu0 %2908
  %v2910 = vsel %vm2885, %v2796, 0.0
  %v2911 = vadd.f32 %v2454, %v2910
  %2912 = vadd.xlane.f32.xlu0 %v2911
  %v2913 = vpop.xlane.xlu0 %2912
  %v2914 = vsel %vm2885, %v2798, 0.0
  %v2915 = vadd.f32 %v2456, %v2914
  %2916 = vadd.xlane.f32.xlu0 %v2915
  %v2917 = vpop.xlane.xlu0 %2916
  %v2918 = vsel %vm2885, %v2801, 0.0
  %v2919 = vadd.f32 %v2459, %v2918
  %2920 = vadd.xlane.f32.xlu0 %v2919
  %v2921 = vpop.xlane.xlu0 %2920
  %v2922 = vsel %vm2885, %v2803, 0.0
  %v2923 = vadd.f32 %v2461, %v2922
  %2924 = vadd.xlane.f32.xlu0 %v2923
  %v2925 = vpop.xlane.xlu0 %2924
  %v2926 = vsel %vm2885, %v2806, 0.0
  %v2927 = vadd.f32 %v2464, %v2926
  %2928 = vadd.xlane.f32.xlu0 %v2927
  %v2929 = vpop.xlane.xlu0 %2928
  %v2930 = vsel %vm2885, %v2808, 0.0
  %v2931 = vadd.f32 %v2466, %v2930
  %2932 = vadd.xlane.f32.xlu0 %v2931
  %v2933 = vpop.xlane.xlu0 %2932
  %v2934 = vsel %vm2885, %v2811, 0.0
  %v2935 = vadd.f32 %v2469, %v2934
  %2936 = vadd.xlane.f32.xlu0 %v2935
  %v2937 = vpop.xlane.xlu0 %2936
  %v2938 = vsel %vm2885, %v2813, 0.0
  %v2939 = vadd.f32 %v2471, %v2938
  %2940 = vadd.xlane.f32.xlu0 %v2939
  %v2941 = vpop.xlane.xlu0 %2940
  %v2942 = vsel %vm2885, %v2816, 0.0
  %v2943 = vadd.f32 %v2474, %v2942
  %2944 = vadd.xlane.f32.xlu0 %v2943
  %v2945 = vpop.xlane.xlu0 %2944
  %v2946 = vsel %vm2885, %v2818, 0.0
  %v2947 = vadd.f32 %v2476, %v2946
  %2948 = vadd.xlane.f32.xlu0 %v2947
  %v2949 = vpop.xlane.xlu0 %2948
  %v2950 = vsel %vm2885, %v2821, 0.0
  %v2951 = vadd.f32 %v2479, %v2950
  %2952 = vadd.xlane.f32.xlu0 %v2951
  %v2953 = vpop.xlane.xlu0 %2952
  %v2954 = vsel %vm2885, %v2823, 0.0
  %v2955 = vadd.f32 %v2481, %v2954
  %2956 = vadd.xlane.f32.xlu0 %v2955
  %v2957 = vpop.xlane.xlu0 %2956
  %v2958 = vsel %vm2885, %v2826, 0.0
  %v2959 = vadd.f32 %v2484, %v2958
  %2960 = vadd.xlane.f32.xlu0 %v2959
  %v2961 = vpop.xlane.xlu0 %2960
  %v2962 = vsel %vm2885, %v2828, 0.0
  %v2963 = vadd.f32 %v2486, %v2962
  %2964 = vadd.xlane.f32.xlu0 %v2963
  %v2965 = vpop.xlane.xlu0 %2964
  %v2966 = vsel %vm2885, %v2831, 0.0
  %v2967 = vadd.f32 %v2489, %v2966
  %2968 = vadd.xlane.f32.xlu0 %v2967
  %v2969 = vpop.xlane.xlu0 %2968
  %v2970 = vsel %vm2885, %v2833, 0.0
  %v2971 = vadd.f32 %v2491, %v2970
  %2972 = vadd.xlane.f32.xlu0 %v2971
  %v2973 = vpop.xlane.xlu0 %2972
  %v2974 = vsel %vm2885, %v2836, 0.0
  %v2975 = vadd.f32 %v2494, %v2974
  %2976 = vadd.xlane.f32.xlu0 %v2975
  %v2977 = vpop.xlane.xlu0 %2976
  %v2978 = vsel %vm2885, %v2838, 0.0
  %v2979 = vadd.f32 %v2496, %v2978
  %2980 = vadd.xlane.f32.xlu0 %v2979
  %v2981 = vpop.xlane.xlu0 %2980
  %v2982 = vsel %vm2885, %v2841, 0.0
  %v2983 = vadd.f32 %v2499, %v2982
  %2984 = vadd.xlane.f32.xlu0 %v2983
  %v2985 = vpop.xlane.xlu0 %2984
  %v2986 = vsel %vm2885, %v2843, 0.0
  %v2987 = vadd.f32 %v2501, %v2986
  %2988 = vadd.xlane.f32.xlu0 %v2987
  %v2989 = vpop.xlane.xlu0 %2988
  %v2990 = vsel %vm2885, %v2846, 0.0
  %v2991 = vadd.f32 %v2504, %v2990
  %2992 = vadd.xlane.f32.xlu0 %v2991
  %v2993 = vpop.xlane.xlu0 %2992
  %v2994 = vsel %vm2885, %v2848, 0.0
  %v2995 = vadd.f32 %v2506, %v2994
  %2996 = vadd.xlane.f32.xlu0 %v2995
  %v2997 = vpop.xlane.xlu0 %2996
  %v2998 = vsel %vm2885, %v2851, 0.0
  %v2999 = vadd.f32 %v2509, %v2998
  %3000 = vadd.xlane.f32.xlu0 %v2999
  %v3001 = vpop.xlane.xlu0 %3000
  %v3002 = vsel %vm2885, %v2853, 0.0
  %v3003 = vadd.f32 %v2511, %v3002
  %3004 = vadd.xlane.f32.xlu0 %v3003
  %v3005 = vpop.xlane.xlu0 %3004
  %v3006 = vsel %vm2885, %v2856, 0.0
  %v3007 = vadd.f32 %v2514, %v3006
  %3008 = vadd.xlane.f32.xlu0 %v3007
  %v3009 = vpop.xlane.xlu0 %3008
  %v3010 = vsel %vm2885, %v2858, 0.0
  %v3011 = vadd.f32 %v2516, %v3010
  %3012 = vadd.xlane.f32.xlu0 %v3011
  %v3013 = vpop.xlane.xlu0 %3012
  %v3014 = vsel %vm2885, %v2861, 0.0
  %v3015 = vadd.f32 %v2519, %v3014
  %3016 = vadd.xlane.f32.xlu0 %v3015
  %v3017 = vpop.xlane.xlu0 %3016
  %v3018 = vsel %vm2885, %v2863, 0.0
  %v3019 = vadd.f32 %v2521, %v3018
  %3020 = vadd.xlane.f32.xlu0 %v3019
  %v3021 = vpop.xlane.xlu0 %3020
  %v3022 = vsel %vm2885, %v2866, 0.0
  %v3023 = vadd.f32 %v2524, %v3022
  %3024 = vadd.xlane.f32.xlu0 %v3023
  %v3025 = vpop.xlane.xlu0 %3024
  %v3026 = vsel %vm2885, %v2868, 0.0
  %v3027 = vadd.f32 %v2526, %v3026
  %3028 = vadd.xlane.f32.xlu0 %v3027
  %v3029 = vpop.xlane.xlu0 %3028
  %v3030 = vsel %vm2885, %v2871, 0.0
  %v3031 = vadd.f32 %v2529, %v3030
  %3032 = vadd.xlane.f32.xlu0 %v3031
  %v3033 = vpop.xlane.xlu0 %3032
  %v3034 = vsel %vm2885, %v2873, 0.0
  %v3035 = vadd.f32 %v2531, %v3034
  %3036 = vadd.xlane.f32.xlu0 %v3035
  %v3037 = vpop.xlane.xlu0 %3036
  %v3038 = vsel %vm2885, %v2876, 0.0
  %v3039 = vadd.f32 %v2534, %v3038
  %3040 = vadd.xlane.f32.xlu0 %v3039
  %v3041 = vpop.xlane.xlu0 %3040
  %v3042 = vsel %vm2885, %v2878, 0.0
  %v3043 = vadd.f32 %v2536, %v3042
  %3044 = vadd.xlane.f32.xlu0 %v3043
  %v3045 = vpop.xlane.xlu0 %3044
  %v3046 = vsel %vm2885, %v2881, 0.0
  %v3047 = vadd.f32 %v2539, %v3046
  %3048 = vadd.xlane.f32.xlu0 %v3047
  %v3049 = vpop.xlane.xlu0 %3048
  %v3050 = vsel %vm2885, %v2883, 0.0
  %v3051 = vadd.f32 %v2541, %v3050
  %3052 = vadd.xlane.f32.xlu0 %v3051
  %v3053 = vpop.xlane.xlu0 %3052
  %v3054 = vmul.f32 %v2889, 0.0051020407
  %v3055 = vmul.f32 %v2893, 0.0051020407
  %v3056 = vmul.f32 %v2897, 0.0051020407
  %v3057 = vmul.f32 %v2901, 0.0051020407
  %v3058 = vmul.f32 %v2905, 0.0051020407
  %v3059 = vmul.f32 %v2909, 0.0051020407
  %v3060 = vmul.f32 %v2913, 0.0051020407
  %v3061 = vmul.f32 %v2917, 0.0051020407
  %v3062 = vmul.f32 %v2921, 0.0051020407
  %v3063 = vmul.f32 %v2925, 0.0051020407
  %v3064 = vmul.f32 %v2929, 0.0051020407
  %v3065 = vmul.f32 %v2933, 0.0051020407
  %v3066 = vmul.f32 %v2937, 0.0051020407
  %v3067 = vmul.f32 %v2941, 0.0051020407
  %v3068 = vmul.f32 %v2945, 0.0051020407
  %v3069 = vmul.f32 %v2949, 0.0051020407
  %v3070 = vmul.f32 %v2953, 0.0051020407
  %v3071 = vmul.f32 %v2957, 0.0051020407
  %v3072 = vmul.f32 %v2961, 0.0051020407
  %v3073 = vmul.f32 %v2965, 0.0051020407
  %v3074 = vmul.f32 %v2969, 0.0051020407
  %v3075 = vmul.f32 %v2973, 0.0051020407
  %v3076 = vmul.f32 %v2977, 0.0051020407
  %v3077 = vmul.f32 %v2981, 0.0051020407
  %v3078 = vmul.f32 %v2985, 0.0051020407
  %v3079 = vmul.f32 %v2989, 0.0051020407
  %v3080 = vmul.f32 %v2993, 0.0051020407
  %v3081 = vmul.f32 %v2997, 0.0051020407
  %v3082 = vmul.f32 %v3001, 0.0051020407
  %v3083 = vmul.f32 %v3005, 0.0051020407
  %v3084 = vmul.f32 %v3009, 0.0051020407
  %v3085 = vmul.f32 %v3013, 0.0051020407
  %v3086 = vmul.f32 %v3017, 0.0051020407
  %v3087 = vmul.f32 %v3021, 0.0051020407
  %v3088 = vmul.f32 %v3025, 0.0051020407
  %v3089 = vmul.f32 %v3029, 0.0051020407
  %v3090 = vmul.f32 %v3033, 0.0051020407
  %v3091 = vmul.f32 %v3037, 0.0051020407
  %v3092 = vmul.f32 %v3041, 0.0051020407
  %v3093 = vmul.f32 %v3045, 0.0051020407
  %v3094 = vmul.f32 %v3049, 0.0051020407
  %v3095 = vmul.f32 %v3053, 0.0051020407
  %v3096 = vsub.f32 %v2439, %v3054
  %v3097 = vsub.f32 %v2781, %v3054
  %v3098 = vsub.f32 %v2441, %v3055
  %v3099 = vsub.f32 %v2783, %v3055
  %v3100 = vsub.f32 %v2444, %v3056
  %v3101 = vsub.f32 %v2786, %v3056
  %v3102 = vsub.f32 %v2446, %v3057
  %v3103 = vsub.f32 %v2788, %v3057
  %v3104 = vsub.f32 %v2449, %v3058
  %v3105 = vsub.f32 %v2791, %v3058
  %v3106 = vsub.f32 %v2451, %v3059
  %v3107 = vsub.f32 %v2793, %v3059
  %v3108 = vsub.f32 %v2454, %v3060
  %v3109 = vsub.f32 %v2796, %v3060
  %v3110 = vsub.f32 %v2456, %v3061
  %v3111 = vsub.f32 %v2798, %v3061
  %v3112 = vsub.f32 %v2459, %v3062
  %v3113 = vsub.f32 %v2801, %v3062
  %v3114 = vsub.f32 %v2461, %v3063
  %v3115 = vsub.f32 %v2803, %v3063
  %v3116 = vsub.f32 %v2464, %v3064
  %v3117 = vsub.f32 %v2806, %v3064
  %v3118 = vsub.f32 %v2466, %v3065
  %v3119 = vsub.f32 %v2808, %v3065
  %v3120 = vsub.f32 %v2469, %v3066
  %v3121 = vsub.f32 %v2811, %v3066
  %v3122 = vsub.f32 %v2471, %v3067
  %v3123 = vsub.f32 %v2813, %v3067
  %v3124 = vsub.f32 %v2474, %v3068
  %v3125 = vsub.f32 %v2816, %v3068
  %v3126 = vsub.f32 %v2476, %v3069
  %v3127 = vsub.f32 %v2818, %v3069
  %v3128 = vsub.f32 %v2479, %v3070
  %v3129 = vsub.f32 %v2821, %v3070
  %v3130 = vsub.f32 %v2481, %v3071
  %v3131 = vsub.f32 %v2823, %v3071
  %v3132 = vsub.f32 %v2484, %v3072
  %v3133 = vsub.f32 %v2826, %v3072
  %v3134 = vsub.f32 %v2486, %v3073
  %v3135 = vsub.f32 %v2828, %v3073
  %v3136 = vsub.f32 %v2489, %v3074
  %v3137 = vsub.f32 %v2831, %v3074
  %v3138 = vsub.f32 %v2491, %v3075
  %v3139 = vsub.f32 %v2833, %v3075
  %v3140 = vsub.f32 %v2494, %v3076
  %v3141 = vsub.f32 %v2836, %v3076
  %v3142 = vsub.f32 %v2496, %v3077
  %v3143 = vsub.f32 %v2838, %v3077
  %v3144 = vsub.f32 %v2499, %v3078
  %v3145 = vsub.f32 %v2841, %v3078
  %v3146 = vsub.f32 %v2501, %v3079
  %v3147 = vsub.f32 %v2843, %v3079
  %v3148 = vsub.f32 %v2504, %v3080
  %v3149 = vsub.f32 %v2846, %v3080
  %v3150 = vsub.f32 %v2506, %v3081
  %v3151 = vsub.f32 %v2848, %v3081
  %v3152 = vsub.f32 %v2509, %v3082
  %v3153 = vsub.f32 %v2851, %v3082
  %v3154 = vsub.f32 %v2511, %v3083
  %v3155 = vsub.f32 %v2853, %v3083
  %v3156 = vsub.f32 %v2514, %v3084
  %v3157 = vsub.f32 %v2856, %v3084
  %v3158 = vsub.f32 %v2516, %v3085
  %v3159 = vsub.f32 %v2858, %v3085
  %v3160 = vsub.f32 %v2519, %v3086
  %v3161 = vsub.f32 %v2861, %v3086
  %v3162 = vsub.f32 %v2521, %v3087
  %v3163 = vsub.f32 %v2863, %v3087
  %v3164 = vsub.f32 %v2524, %v3088
  %v3165 = vsub.f32 %v2866, %v3088
  %v3166 = vsub.f32 %v2526, %v3089
  %v3167 = vsub.f32 %v2868, %v3089
  %v3168 = vsub.f32 %v2529, %v3090
  %v3169 = vsub.f32 %v2871, %v3090
  %v3170 = vsub.f32 %v2531, %v3091
  %v3171 = vsub.f32 %v2873, %v3091
  %v3172 = vsub.f32 %v2534, %v3092
  %v3173 = vsub.f32 %v2876, %v3092
  %v3174 = vsub.f32 %v2536, %v3093
  %v3175 = vsub.f32 %v2878, %v3093
  %v3176 = vsub.f32 %v2539, %v3094
  %v3177 = vsub.f32 %v2881, %v3094
  %v3178 = vsub.f32 %v2541, %v3095
  %v3179 = vsub.f32 %v2883, %v3095
  %v3180 = vmul.f32 %v3096, %v3096
  %v3181 = vmul.f32 %v3097, %v3097
  %v3182 = vmul.f32 %v3098, %v3098
  %v3183 = vmul.f32 %v3099, %v3099
  %v3184 = vmul.f32 %v3100, %v3100
  %v3185 = vmul.f32 %v3101, %v3101
  %v3186 = vmul.f32 %v3102, %v3102
  %v3187 = vmul.f32 %v3103, %v3103
  %v3188 = vmul.f32 %v3104, %v3104
  %v3189 = vmul.f32 %v3105, %v3105
  %v3190 = vmul.f32 %v3106, %v3106
  %v3191 = vmul.f32 %v3107, %v3107
  %v3192 = vmul.f32 %v3108, %v3108
  %v3193 = vmul.f32 %v3109, %v3109
  %v3194 = vmul.f32 %v3110, %v3110
  %v3195 = vmul.f32 %v3111, %v3111
  %v3196 = vmul.f32 %v3112, %v3112
  %v3197 = vmul.f32 %v3113, %v3113
  %v3198 = vmul.f32 %v3114, %v3114
  %v3199 = vmul.f32 %v3115, %v3115
  %v3200 = vmul.f32 %v3116, %v3116
  %v3201 = vmul.f32 %v3117, %v3117
  %v3202 = vmul.f32 %v3118, %v3118
  %v3203 = vmul.f32 %v3119, %v3119
  %v3204 = vmul.f32 %v3120, %v3120
  %v3205 = vmul.f32 %v3121, %v3121
  %v3206 = vmul.f32 %v3122, %v3122
  %v3207 = vmul.f32 %v3123, %v3123
  %v3208 = vmul.f32 %v3124, %v3124
  %v3209 = vmul.f32 %v3125, %v3125
  %v3210 = vmul.f32 %v3126, %v3126
  %v3211 = vmul.f32 %v3127, %v3127
  %v3212 = vmul.f32 %v3128, %v3128
  %v3213 = vmul.f32 %v3129, %v3129
  %v3214 = vmul.f32 %v3130, %v3130
  %v3215 = vmul.f32 %v3131, %v3131
  %v3216 = vmul.f32 %v3132, %v3132
  %v3217 = vmul.f32 %v3133, %v3133
  %v3218 = vmul.f32 %v3134, %v3134
  %v3219 = vmul.f32 %v3135, %v3135
  %v3220 = vmul.f32 %v3136, %v3136
  %v3221 = vmul.f32 %v3137, %v3137
  %v3222 = vmul.f32 %v3138, %v3138
  %v3223 = vmul.f32 %v3139, %v3139
  %v3224 = vmul.f32 %v3140, %v3140
  %v3225 = vmul.f32 %v3141, %v3141
  %v3226 = vmul.f32 %v3142, %v3142
  %v3227 = vmul.f32 %v3143, %v3143
  %v3228 = vmul.f32 %v3144, %v3144
  %v3229 = vmul.f32 %v3145, %v3145
  %v3230 = vmul.f32 %v3146, %v3146
  %v3231 = vmul.f32 %v3147, %v3147
  %v3232 = vmul.f32 %v3148, %v3148
  %v3233 = vmul.f32 %v3149, %v3149
  %v3234 = vmul.f32 %v3150, %v3150
  %v3235 = vmul.f32 %v3151, %v3151
  %v3236 = vmul.f32 %v3152, %v3152
  %v3237 = vmul.f32 %v3153, %v3153
  %v3238 = vmul.f32 %v3154, %v3154
  %v3239 = vmul.f32 %v3155, %v3155
  %v3240 = vmul.f32 %v3156, %v3156
  %v3241 = vmul.f32 %v3157, %v3157
  %v3242 = vmul.f32 %v3158, %v3158
  %v3243 = vmul.f32 %v3159, %v3159
  %v3244 = vmul.f32 %v3160, %v3160
  %v3245 = vmul.f32 %v3161, %v3161
  %v3246 = vmul.f32 %v3162, %v3162
  %v3247 = vmul.f32 %v3163, %v3163
  %v3248 = vmul.f32 %v3164, %v3164
  %v3249 = vmul.f32 %v3165, %v3165
  %v3250 = vmul.f32 %v3166, %v3166
  %v3251 = vmul.f32 %v3167, %v3167
  %v3252 = vmul.f32 %v3168, %v3168
  %v3253 = vmul.f32 %v3169, %v3169
  %v3254 = vmul.f32 %v3170, %v3170
  %v3255 = vmul.f32 %v3171, %v3171
  %v3256 = vmul.f32 %v3172, %v3172
  %v3257 = vmul.f32 %v3173, %v3173
  %v3258 = vmul.f32 %v3174, %v3174
  %v3259 = vmul.f32 %v3175, %v3175
  %v3260 = vmul.f32 %v3176, %v3176
  %v3261 = vmul.f32 %v3177, %v3177
  %v3262 = vmul.f32 %v3178, %v3178
  %v3263 = vmul.f32 %v3179, %v3179
  %v3264 = vsel %vm2885, %v3181, 0.0
  %v3265 = vadd.f32 %v3180, %v3264
  %3266 = vadd.xlane.f32.xlu0 %v3265
  %v3267 = vpop.xlane.xlu0 %3266
  %v3268 = vsel %vm2885, %v3183, 0.0
  %v3269 = vadd.f32 %v3182, %v3268
  %3270 = vadd.xlane.f32.xlu0 %v3269
  %v3271 = vpop.xlane.xlu0 %3270
  %v3272 = vsel %vm2885, %v3185, 0.0
  %v3273 = vadd.f32 %v3184, %v3272
  %3274 = vadd.xlane.f32.xlu0 %v3273
  %v3275 = vpop.xlane.xlu0 %3274
  %v3276 = vsel %vm2885, %v3187, 0.0
  %v3277 = vadd.f32 %v3186, %v3276
  %3278 = vadd.xlane.f32.xlu0 %v3277
  %v3279 = vpop.xlane.xlu0 %3278
  %v3280 = vsel %vm2885, %v3189, 0.0
  %v3281 = vadd.f32 %v3188, %v3280
  %3282 = vadd.xlane.f32.xlu0 %v3281
  %v3283 = vpop.xlane.xlu0 %3282
  %v3284 = vsel %vm2885, %v3191, 0.0
  %v3285 = vadd.f32 %v3190, %v3284
  %3286 = vadd.xlane.f32.xlu0 %v3285
  %v3287 = vpop.xlane.xlu0 %3286
  %v3288 = vsel %vm2885, %v3193, 0.0
  %v3289 = vadd.f32 %v3192, %v3288
  %3290 = vadd.xlane.f32.xlu0 %v3289
  %v3291 = vpop.xlane.xlu0 %3290
  %v3292 = vsel %vm2885, %v3195, 0.0
  %v3293 = vadd.f32 %v3194, %v3292
  %3294 = vadd.xlane.f32.xlu0 %v3293
  %v3295 = vpop.xlane.xlu0 %3294
  %v3296 = vsel %vm2885, %v3197, 0.0
  %v3297 = vadd.f32 %v3196, %v3296
  %3298 = vadd.xlane.f32.xlu0 %v3297
  %v3299 = vpop.xlane.xlu0 %3298
  %v3300 = vsel %vm2885, %v3199, 0.0
  %v3301 = vadd.f32 %v3198, %v3300
  %3302 = vadd.xlane.f32.xlu0 %v3301
  %v3303 = vpop.xlane.xlu0 %3302
  %v3304 = vsel %vm2885, %v3201, 0.0
  %v3305 = vadd.f32 %v3200, %v3304
  %3306 = vadd.xlane.f32.xlu0 %v3305
  %v3307 = vpop.xlane.xlu0 %3306
  %v3308 = vsel %vm2885, %v3203, 0.0
  %v3309 = vadd.f32 %v3202, %v3308
  %3310 = vadd.xlane.f32.xlu0 %v3309
  %v3311 = vpop.xlane.xlu0 %3310
  %v3312 = vsel %vm2885, %v3205, 0.0
  %v3313 = vadd.f32 %v3204, %v3312
  %3314 = vadd.xlane.f32.xlu0 %v3313
  %v3315 = vpop.xlane.xlu0 %3314
  %v3316 = vsel %vm2885, %v3207, 0.0
  %v3317 = vadd.f32 %v3206, %v3316
  %3318 = vadd.xlane.f32.xlu0 %v3317
  %v3319 = vpop.xlane.xlu0 %3318
  %v3320 = vsel %vm2885, %v3209, 0.0
  %v3321 = vadd.f32 %v3208, %v3320
  %3322 = vadd.xlane.f32.xlu0 %v3321
  %v3323 = vpop.xlane.xlu0 %3322
  %v3324 = vsel %vm2885, %v3211, 0.0
  %v3325 = vadd.f32 %v3210, %v3324
  %3326 = vadd.xlane.f32.xlu0 %v3325
  %v3327 = vpop.xlane.xlu0 %3326
  %v3328 = vsel %vm2885, %v3213, 0.0
  %v3329 = vadd.f32 %v3212, %v3328
  %3330 = vadd.xlane.f32.xlu0 %v3329
  %v3331 = vpop.xlane.xlu0 %3330
  %v3332 = vsel %vm2885, %v3215, 0.0
  %v3333 = vadd.f32 %v3214, %v3332
  %3334 = vadd.xlane.f32.xlu0 %v3333
  %v3335 = vpop.xlane.xlu0 %3334
  %v3336 = vsel %vm2885, %v3217, 0.0
  %v3337 = vadd.f32 %v3216, %v3336
  %3338 = vadd.xlane.f32.xlu0 %v3337
  %v3339 = vpop.xlane.xlu0 %3338
  %v3340 = vsel %vm2885, %v3219, 0.0
  %v3341 = vadd.f32 %v3218, %v3340
  %3342 = vadd.xlane.f32.xlu0 %v3341
  %v3343 = vpop.xlane.xlu0 %3342
  %v3344 = vsel %vm2885, %v3221, 0.0
  %v3345 = vadd.f32 %v3220, %v3344
  %3346 = vadd.xlane.f32.xlu0 %v3345
  %v3347 = vpop.xlane.xlu0 %3346
  %v3348 = vsel %vm2885, %v3223, 0.0
  %v3349 = vadd.f32 %v3222, %v3348
  %3350 = vadd.xlane.f32.xlu0 %v3349
  %v3351 = vpop.xlane.xlu0 %3350
  %v3352 = vsel %vm2885, %v3225, 0.0
  %v3353 = vadd.f32 %v3224, %v3352
  %3354 = vadd.xlane.f32.xlu0 %v3353
  %v3355 = vpop.xlane.xlu0 %3354
  %v3356 = vsel %vm2885, %v3227, 0.0
  %v3357 = vadd.f32 %v3226, %v3356
  %3358 = vadd.xlane.f32.xlu0 %v3357
  %v3359 = vpop.xlane.xlu0 %3358
  %v3360 = vsel %vm2885, %v3229, 0.0
  %v3361 = vadd.f32 %v3228, %v3360
  %3362 = vadd.xlane.f32.xlu0 %v3361
  %v3363 = vpop.xlane.xlu0 %3362
  %v3364 = vsel %vm2885, %v3231, 0.0
  %v3365 = vadd.f32 %v3230, %v3364
  %3366 = vadd.xlane.f32.xlu0 %v3365
  %v3367 = vpop.xlane.xlu0 %3366
  %v3368 = vsel %vm2885, %v3233, 0.0
  %v3369 = vadd.f32 %v3232, %v3368
  %3370 = vadd.xlane.f32.xlu0 %v3369
  %v3371 = vpop.xlane.xlu0 %3370
  %v3372 = vsel %vm2885, %v3235, 0.0
  %v3373 = vadd.f32 %v3234, %v3372
  %3374 = vadd.xlane.f32.xlu0 %v3373
  %v3375 = vpop.xlane.xlu0 %3374
  %v3376 = vsel %vm2885, %v3237, 0.0
  %v3377 = vadd.f32 %v3236, %v3376
  %3378 = vadd.xlane.f32.xlu0 %v3377
  %v3379 = vpop.xlane.xlu0 %3378
  %v3380 = vsel %vm2885, %v3239, 0.0
  %v3381 = vadd.f32 %v3238, %v3380
  %3382 = vadd.xlane.f32.xlu0 %v3381
  %v3383 = vpop.xlane.xlu0 %3382
  %v3384 = vsel %vm2885, %v3241, 0.0
  %v3385 = vadd.f32 %v3240, %v3384
  %3386 = vadd.xlane.f32.xlu0 %v3385
  %v3387 = vpop.xlane.xlu0 %3386
  %v3388 = vsel %vm2885, %v3243, 0.0
  %v3389 = vadd.f32 %v3242, %v3388
  %3390 = vadd.xlane.f32.xlu0 %v3389
  %v3391 = vpop.xlane.xlu0 %3390
  %v3392 = vsel %vm2885, %v3245, 0.0
  %v3393 = vadd.f32 %v3244, %v3392
  %3394 = vadd.xlane.f32.xlu0 %v3393
  %v3395 = vpop.xlane.xlu0 %3394
  %v3396 = vsel %vm2885, %v3247, 0.0
  %v3397 = vadd.f32 %v3246, %v3396
  %3398 = vadd.xlane.f32.xlu0 %v3397
  %v3399 = vpop.xlane.xlu0 %3398
  %v3400 = vsel %vm2885, %v3249, 0.0
  %v3401 = vadd.f32 %v3248, %v3400
  %3402 = vadd.xlane.f32.xlu0 %v3401
  %v3403 = vpop.xlane.xlu0 %3402
  %v3404 = vsel %vm2885, %v3251, 0.0
  %v3405 = vadd.f32 %v3250, %v3404
  %3406 = vadd.xlane.f32.xlu0 %v3405
  %v3407 = vpop.xlane.xlu0 %3406
  %v3408 = vsel %vm2885, %v3253, 0.0
  %v3409 = vadd.f32 %v3252, %v3408
  %3410 = vadd.xlane.f32.xlu0 %v3409
  %v3411 = vpop.xlane.xlu0 %3410
  %v3412 = vsel %vm2885, %v3255, 0.0
  %v3413 = vadd.f32 %v3254, %v3412
  %3414 = vadd.xlane.f32.xlu0 %v3413
  %v3415 = vpop.xlane.xlu0 %3414
  %v3416 = vsel %vm2885, %v3257, 0.0
  %v3417 = vadd.f32 %v3256, %v3416
  %3418 = vadd.xlane.f32.xlu0 %v3417
  %v3419 = vpop.xlane.xlu0 %3418
  %v3420 = vsel %vm2885, %v3259, 0.0
  %v3421 = vadd.f32 %v3258, %v3420
  %3422 = vadd.xlane.f32.xlu0 %v3421
  %v3423 = vpop.xlane.xlu0 %3422
  %v3424 = vsel %vm2885, %v3261, 0.0
  %v3425 = vadd.f32 %v3260, %v3424
  %3426 = vadd.xlane.f32.xlu0 %v3425
  %v3427 = vpop.xlane.xlu0 %3426
  %v3428 = vsel %vm2885, %v3263, 0.0
  %v3429 = vadd.f32 %v3262, %v3428
  %3430 = vadd.xlane.f32.xlu0 %v3429
  %v3431 = vpop.xlane.xlu0 %3430
  %v3432 = vmul.f32 %v3267, 0.0051020407
  %v3433 = vmul.f32 %v3271, 0.0051020407
  %v3434 = vmul.f32 %v3275, 0.0051020407
  %v3435 = vmul.f32 %v3279, 0.0051020407
  %v3436 = vmul.f32 %v3283, 0.0051020407
  %v3437 = vmul.f32 %v3287, 0.0051020407
  %v3438 = vmul.f32 %v3291, 0.0051020407
  %v3439 = vmul.f32 %v3295, 0.0051020407
  %v3440 = vmul.f32 %v3299, 0.0051020407
  %v3441 = vmul.f32 %v3303, 0.0051020407
  %v3442 = vmul.f32 %v3307, 0.0051020407
  %v3443 = vmul.f32 %v3311, 0.0051020407
  %v3444 = vmul.f32 %v3315, 0.0051020407
  %v3445 = vmul.f32 %v3319, 0.0051020407
  %v3446 = vmul.f32 %v3323, 0.0051020407
  %v3447 = vmul.f32 %v3327, 0.0051020407
  %v3448 = vmul.f32 %v3331, 0.0051020407
  %v3449 = vmul.f32 %v3335, 0.0051020407
  %v3450 = vmul.f32 %v3339, 0.0051020407
  %v3451 = vmul.f32 %v3343, 0.0051020407
  %v3452 = vmul.f32 %v3347, 0.0051020407
  %v3453 = vmul.f32 %v3351, 0.0051020407
  %v3454 = vmul.f32 %v3355, 0.0051020407
  %v3455 = vmul.f32 %v3359, 0.0051020407
  %v3456 = vmul.f32 %v3363, 0.0051020407
  %v3457 = vmul.f32 %v3367, 0.0051020407
  %v3458 = vmul.f32 %v3371, 0.0051020407
  %v3459 = vmul.f32 %v3375, 0.0051020407
  %v3460 = vmul.f32 %v3379, 0.0051020407
  %v3461 = vmul.f32 %v3383, 0.0051020407
  %v3462 = vmul.f32 %v3387, 0.0051020407
  %v3463 = vmul.f32 %v3391, 0.0051020407
  %v3464 = vmul.f32 %v3395, 0.0051020407
  %v3465 = vmul.f32 %v3399, 0.0051020407
  %v3466 = vmul.f32 %v3403, 0.0051020407
  %v3467 = vmul.f32 %v3407, 0.0051020407
  %v3468 = vmul.f32 %v3411, 0.0051020407
  %v3469 = vmul.f32 %v3415, 0.0051020407
  %v3470 = vmul.f32 %v3419, 0.0051020407
  %v3471 = vmul.f32 %v3423, 0.0051020407
  %v3472 = vmul.f32 %v3427, 0.0051020407
  %v3473 = vmul.f32 %v3431, 0.0051020407
  %v3474 = vld [vmem:[%s6] sm:$0xff]
  %v3475 = vld [vmem:[%s6 + $0x8] sm:$0xff]
  %v3476 = vld [vmem:[%s6 + $0x10] sm:$0xff]
  %v3477 = vld [vmem:[%s6 + $0x18] sm:$0xff]
  %v3478 = vld [vmem:[%s6 + $0x20] sm:$0xff]
  %v3479 = vld [vmem:[%s6 + $0x28] sm:$0xff]
  %v3480 = vld [vmem:[%s6 + $0x30] sm:$0xff]
  %v3481 = vld [vmem:[%s6 + $0x38] sm:$0xff]
  %v3482 = vld [vmem:[%s6 + $0x40] sm:$0xff]
  %v3483 = vld [vmem:[%s6 + $0x48] sm:$0xff]
  %v3484 = vld [vmem:[%s6 + $0x50] sm:$0xff]
  %v3485 = vld [vmem:[%s6 + $0x58] sm:$0xff]
  %v3486 = vld [vmem:[%s6 + $0x60] sm:$0xff]
  %v3487 = vld [vmem:[%s6 + $0x68] sm:$0xff]
  %v3488 = vld [vmem:[%s6 + $0x70] sm:$0xff]
  %v3489 = vld [vmem:[%s6 + $0x78] sm:$0xff]
  %v3490 = vld [vmem:[%s6 + $0x80] sm:$0xff]
  %v3491 = vld [vmem:[%s6 + $0x88] sm:$0xff]
  %v3492 = vld [vmem:[%s6 + $0x90] sm:$0xff]
  %v3493 = vld [vmem:[%s6 + $0x98] sm:$0xff]
  %v3494 = vld [vmem:[%s6 + $0xa0] sm:$0xff]
  %v3495 = vld [vmem:[%s6 + $0xa8] sm:$0xff]
  %v3496 = vld [vmem:[%s6 + $0xb0] sm:$0xff]
  %v3497 = vld [vmem:[%s6 + $0xb8] sm:$0xff]
  %v3498 = vld [vmem:[%s6 + $0xc0] sm:$0xff]
  %v3499 = vld [vmem:[%s6 + $0xc8] sm:$0xff]
  %v3500 = vld [vmem:[%s6 + $0xd0] sm:$0xff]
  %v3501 = vld [vmem:[%s6 + $0xd8] sm:$0xff]
  %v3502 = vld [vmem:[%s6 + $0xe0] sm:$0xff]
  %v3503 = vld [vmem:[%s6 + $0xe8] sm:$0xff]
  %v3504 = vld [vmem:[%s6 + $0xf0] sm:$0xff]
  %v3505 = vld [vmem:[%s6 + $0xf8] sm:$0xff]
  %v3506 = vld [vmem:[%s6 + $0x100] sm:$0xff]
  %v3507 = vld [vmem:[%s6 + $0x108] sm:$0xff]
  %v3508 = vld [vmem:[%s6 + $0x110] sm:$0xff]
  %v3509 = vld [vmem:[%s6 + $0x118] sm:$0xff]
  %v3510 = vld [vmem:[%s6 + $0x120] sm:$0xff]
  %v3511 = vld [vmem:[%s6 + $0x128] sm:$0xff]
  %v3512 = vld [vmem:[%s6 + $0x130] sm:$0xff]
  %v3513 = vld [vmem:[%s6 + $0x138] sm:$0xff]
  %v3514 = vld [vmem:[%s6 + $0x140] sm:$0xff]
  %v3515 = vld [vmem:[%s6 + $0x148] sm:$0xff]
  %v3516 = vadd.f32 %v3432, 1e-05
  %v3517 = vadd.f32 %v3433, 1e-05
  %v3518 = vadd.f32 %v3434, 1e-05
  %v3519 = vadd.f32 %v3435, 1e-05
  %v3520 = vadd.f32 %v3436, 1e-05
  %v3521 = vadd.f32 %v3437, 1e-05
  %v3522 = vadd.f32 %v3438, 1e-05
  %v3523 = vadd.f32 %v3439, 1e-05
  %v3524 = vadd.f32 %v3440, 1e-05
  %v3525 = vadd.f32 %v3441, 1e-05
  %v3526 = vadd.f32 %v3442, 1e-05
  %v3527 = vadd.f32 %v3443, 1e-05
  %v3528 = vadd.f32 %v3444, 1e-05
  %v3529 = vadd.f32 %v3445, 1e-05
  %v3530 = vadd.f32 %v3446, 1e-05
  %v3531 = vadd.f32 %v3447, 1e-05
  %v3532 = vadd.f32 %v3448, 1e-05
  %v3533 = vadd.f32 %v3449, 1e-05
  %v3534 = vadd.f32 %v3450, 1e-05
  %v3535 = vadd.f32 %v3451, 1e-05
  %v3536 = vadd.f32 %v3452, 1e-05
  %v3537 = vadd.f32 %v3453, 1e-05
  %v3538 = vadd.f32 %v3454, 1e-05
  %v3539 = vadd.f32 %v3455, 1e-05
  %v3540 = vadd.f32 %v3456, 1e-05
  %v3541 = vadd.f32 %v3457, 1e-05
  %v3542 = vadd.f32 %v3458, 1e-05
  %v3543 = vadd.f32 %v3459, 1e-05
  %v3544 = vadd.f32 %v3460, 1e-05
  %v3545 = vadd.f32 %v3461, 1e-05
  %v3546 = vadd.f32 %v3462, 1e-05
  %v3547 = vadd.f32 %v3463, 1e-05
  %v3548 = vadd.f32 %v3464, 1e-05
  %v3549 = vadd.f32 %v3465, 1e-05
  %v3550 = vadd.f32 %v3466, 1e-05
  %v3551 = vadd.f32 %v3467, 1e-05
  %v3552 = vadd.f32 %v3468, 1e-05
  %v3553 = vadd.f32 %v3469, 1e-05
  %v3554 = vadd.f32 %v3470, 1e-05
  %v3555 = vadd.f32 %v3471, 1e-05
  %v3556 = vadd.f32 %v3472, 1e-05
  %v3557 = vadd.f32 %v3473, 1e-05
  %v3558 = vrsqrt.pop %v3516
  %v3559 = vmul.f32 %v3558, %v3516
  %v3560 = vmul.f32 %v3559, %v3558
  %v3561 = vmul.f32 0.5, %v3560
  %v3562 = vsub.f32 1.5, %v3561
  %v3563 = vmul.f32 %v3558, %v3562
  %vm3564 = vweird.f32 %v3516
  %vm3565 = vweird.f32 %v3558
  %vm3566 = vmor %vm3564, %vm3565
  %v3567 = vsel %vm3566, %v3558, %v3563
  %v3568 = vrsqrt.pop %v3517
  %v3569 = vmul.f32 %v3568, %v3517
  %v3570 = vmul.f32 %v3569, %v3568
  %v3571 = vmul.f32 0.5, %v3570
  %v3572 = vsub.f32 1.5, %v3571
  %v3573 = vmul.f32 %v3568, %v3572
  %vm3574 = vweird.f32 %v3517
  %vm3575 = vweird.f32 %v3568
  %vm3576 = vmor %vm3574, %vm3575
  %v3577 = vsel %vm3576, %v3568, %v3573
  %v3578 = vrsqrt.pop %v3518
  %v3579 = vmul.f32 %v3578, %v3518
  %v3580 = vmul.f32 %v3579, %v3578
  %v3581 = vmul.f32 0.5, %v3580
  %v3582 = vsub.f32 1.5, %v3581
  %v3583 = vmul.f32 %v3578, %v3582
  %vm3584 = vweird.f32 %v3518
  %vm3585 = vweird.f32 %v3578
  %vm3586 = vmor %vm3584, %vm3585
  %v3587 = vsel %vm3586, %v3578, %v3583
  %v3588 = vrsqrt.pop %v3519
  %v3589 = vmul.f32 %v3588, %v3519
  %v3590 = vmul.f32 %v3589, %v3588
  %v3591 = vmul.f32 0.5, %v3590
  %v3592 = vsub.f32 1.5, %v3591
  %v3593 = vmul.f32 %v3588, %v3592
  %vm3594 = vweird.f32 %v3519
  %vm3595 = vweird.f32 %v3588
  %vm3596 = vmor %vm3594, %vm3595
  %v3597 = vsel %vm3596, %v3588, %v3593
  %v3598 = vrsqrt.pop %v3520
  %v3599 = vmul.f32 %v3598, %v3520
  %v3600 = vmul.f32 %v3599, %v3598
  %v3601 = vmul.f32 0.5, %v3600
  %v3602 = vsub.f32 1.5, %v3601
  %v3603 = vmul.f32 %v3598, %v3602
  %vm3604 = vweird.f32 %v3520
  %vm3605 = vweird.f32 %v3598
  %vm3606 = vmor %vm3604, %vm3605
  %v3607 = vsel %vm3606, %v3598, %v3603
  %v3608 = vrsqrt.pop %v3521
  %v3609 = vmul.f32 %v3608, %v3521
  %v3610 = vmul.f32 %v3609, %v3608
  %v3611 = vmul.f32 0.5, %v3610
  %v3612 = vsub.f32 1.5, %v3611
  %v3613 = vmul.f32 %v3608, %v3612
  %vm3614 = vweird.f32 %v3521
  %vm3615 = vweird.f32 %v3608
  %vm3616 = vmor %vm3614, %vm3615
  %v3617 = vsel %vm3616, %v3608, %v3613
  %v3618 = vrsqrt.pop %v3522
  %v3619 = vmul.f32 %v3618, %v3522
  %v3620 = vmul.f32 %v3619, %v3618
  %v3621 = vmul.f32 0.5, %v3620
  %v3622 = vsub.f32 1.5, %v3621
  %v3623 = vmul.f32 %v3618, %v3622
  %vm3624 = vweird.f32 %v3522
  %vm3625 = vweird.f32 %v3618
  %vm3626 = vmor %vm3624, %vm3625
  %v3627 = vsel %vm3626, %v3618, %v3623
  %v3628 = vrsqrt.pop %v3523
  %v3629 = vmul.f32 %v3628, %v3523
  %v3630 = vmul.f32 %v3629, %v3628
  %v3631 = vmul.f32 0.5, %v3630
  %v3632 = vsub.f32 1.5, %v3631
  %v3633 = vmul.f32 %v3628, %v3632
  %vm3634 = vweird.f32 %v3523
  %vm3635 = vweird.f32 %v3628
  %vm3636 = vmor %vm3634, %vm3635
  %v3637 = vsel %vm3636, %v3628, %v3633
  %v3638 = vrsqrt.pop %v3524
  %v3639 = vmul.f32 %v3638, %v3524
  %v3640 = vmul.f32 %v3639, %v3638
  %v3641 = vmul.f32 0.5, %v3640
  %v3642 = vsub.f32 1.5, %v3641
  %v3643 = vmul.f32 %v3638, %v3642
  %vm3644 = vweird.f32 %v3524
  %vm3645 = vweird.f32 %v3638
  %vm3646 = vmor %vm3644, %vm3645
  %v3647 = vsel %vm3646, %v3638, %v3643
  %v3648 = vrsqrt.pop %v3525
  %v3649 = vmul.f32 %v3648, %v3525
  %v3650 = vmul.f32 %v3649, %v3648
  %v3651 = vmul.f32 0.5, %v3650
  %v3652 = vsub.f32 1.5, %v3651
  %v3653 = vmul.f32 %v3648, %v3652
  %vm3654 = vweird.f32 %v3525
  %vm3655 = vweird.f32 %v3648
  %vm3656 = vmor %vm3654, %vm3655
  %v3657 = vsel %vm3656, %v3648, %v3653
  %v3658 = vrsqrt.pop %v3526
  %v3659 = vmul.f32 %v3658, %v3526
  %v3660 = vmul.f32 %v3659, %v3658
  %v3661 = vmul.f32 0.5, %v3660
  %v3662 = vsub.f32 1.5, %v3661
  %v3663 = vmul.f32 %v3658, %v3662
  %vm3664 = vweird.f32 %v3526
  %vm3665 = vweird.f32 %v3658
  %vm3666 = vmor %vm3664, %vm3665
  %v3667 = vsel %vm3666, %v3658, %v3663
  %v3668 = vrsqrt.pop %v3527
  %v3669 = vmul.f32 %v3668, %v3527
  %v3670 = vmul.f32 %v3669, %v3668
  %v3671 = vmul.f32 0.5, %v3670
  %v3672 = vsub.f32 1.5, %v3671
  %v3673 = vmul.f32 %v3668, %v3672
  %vm3674 = vweird.f32 %v3527
  %vm3675 = vweird.f32 %v3668
  %vm3676 = vmor %vm3674, %vm3675
  %v3677 = vsel %vm3676, %v3668, %v3673
  %v3678 = vrsqrt.pop %v3528
  %v3679 = vmul.f32 %v3678, %v3528
  %v3680 = vmul.f32 %v3679, %v3678
  %v3681 = vmul.f32 0.5, %v3680
  %v3682 = vsub.f32 1.5, %v3681
  %v3683 = vmul.f32 %v3678, %v3682
  %vm3684 = vweird.f32 %v3528
  %vm3685 = vweird.f32 %v3678
  %vm3686 = vmor %vm3684, %vm3685
  %v3687 = vsel %vm3686, %v3678, %v3683
  %v3688 = vrsqrt.pop %v3529
  %v3689 = vmul.f32 %v3688, %v3529
  %v3690 = vmul.f32 %v3689, %v3688
  %v3691 = vmul.f32 0.5, %v3690
  %v3692 = vsub.f32 1.5, %v3691
  %v3693 = vmul.f32 %v3688, %v3692
  %vm3694 = vweird.f32 %v3529
  %vm3695 = vweird.f32 %v3688
  %vm3696 = vmor %vm3694, %vm3695
  %v3697 = vsel %vm3696, %v3688, %v3693
  %v3698 = vrsqrt.pop %v3530
  %v3699 = vmul.f32 %v3698, %v3530
  %v3700 = vmul.f32 %v3699, %v3698
  %v3701 = vmul.f32 0.5, %v3700
  %v3702 = vsub.f32 1.5, %v3701
  %v3703 = vmul.f32 %v3698, %v3702
  %vm3704 = vweird.f32 %v3530
  %vm3705 = vweird.f32 %v3698
  %vm3706 = vmor %vm3704, %vm3705
  %v3707 = vsel %vm3706, %v3698, %v3703
  %v3708 = vrsqrt.pop %v3531
  %v3709 = vmul.f32 %v3708, %v3531
  %v3710 = vmul.f32 %v3709, %v3708
  %v3711 = vmul.f32 0.5, %v3710
  %v3712 = vsub.f32 1.5, %v3711
  %v3713 = vmul.f32 %v3708, %v3712
  %vm3714 = vweird.f32 %v3531
  %vm3715 = vweird.f32 %v3708
  %vm3716 = vmor %vm3714, %vm3715
  %v3717 = vsel %vm3716, %v3708, %v3713
  %v3718 = vrsqrt.pop %v3532
  %v3719 = vmul.f32 %v3718, %v3532
  %v3720 = vmul.f32 %v3719, %v3718
  %v3721 = vmul.f32 0.5, %v3720
  %v3722 = vsub.f32 1.5, %v3721
  %v3723 = vmul.f32 %v3718, %v3722
  %vm3724 = vweird.f32 %v3532
  %vm3725 = vweird.f32 %v3718
  %vm3726 = vmor %vm3724, %vm3725
  %v3727 = vsel %vm3726, %v3718, %v3723
  %v3728 = vrsqrt.pop %v3533
  %v3729 = vmul.f32 %v3728, %v3533
  %v3730 = vmul.f32 %v3729, %v3728
  %v3731 = vmul.f32 0.5, %v3730
  %v3732 = vsub.f32 1.5, %v3731
  %v3733 = vmul.f32 %v3728, %v3732
  %vm3734 = vweird.f32 %v3533
  %vm3735 = vweird.f32 %v3728
  %vm3736 = vmor %vm3734, %vm3735
  %v3737 = vsel %vm3736, %v3728, %v3733
  %v3738 = vrsqrt.pop %v3534
  %v3739 = vmul.f32 %v3738, %v3534
  %v3740 = vmul.f32 %v3739, %v3738
  %v3741 = vmul.f32 0.5, %v3740
  %v3742 = vsub.f32 1.5, %v3741
  %v3743 = vmul.f32 %v3738, %v3742
  %vm3744 = vweird.f32 %v3534
  %vm3745 = vweird.f32 %v3738
  %vm3746 = vmor %vm3744, %vm3745
  %v3747 = vsel %vm3746, %v3738, %v3743
  %v3748 = vrsqrt.pop %v3535
  %v3749 = vmul.f32 %v3748, %v3535
  %v3750 = vmul.f32 %v3749, %v3748
  %v3751 = vmul.f32 0.5, %v3750
  %v3752 = vsub.f32 1.5, %v3751
  %v3753 = vmul.f32 %v3748, %v3752
  %vm3754 = vweird.f32 %v3535
  %vm3755 = vweird.f32 %v3748
  %vm3756 = vmor %vm3754, %vm3755
  %v3757 = vsel %vm3756, %v3748, %v3753
  %v3758 = vrsqrt.pop %v3536
  %v3759 = vmul.f32 %v3758, %v3536
  %v3760 = vmul.f32 %v3759, %v3758
  %v3761 = vmul.f32 0.5, %v3760
  %v3762 = vsub.f32 1.5, %v3761
  %v3763 = vmul.f32 %v3758, %v3762
  %vm3764 = vweird.f32 %v3536
  %vm3765 = vweird.f32 %v3758
  %vm3766 = vmor %vm3764, %vm3765
  %v3767 = vsel %vm3766, %v3758, %v3763
  %v3768 = vrsqrt.pop %v3537
  %v3769 = vmul.f32 %v3768, %v3537
  %v3770 = vmul.f32 %v3769, %v3768
  %v3771 = vmul.f32 0.5, %v3770
  %v3772 = vsub.f32 1.5, %v3771
  %v3773 = vmul.f32 %v3768, %v3772
  %vm3774 = vweird.f32 %v3537
  %vm3775 = vweird.f32 %v3768
  %vm3776 = vmor %vm3774, %vm3775
  %v3777 = vsel %vm3776, %v3768, %v3773
  %v3778 = vrsqrt.pop %v3538
  %v3779 = vmul.f32 %v3778, %v3538
  %v3780 = vmul.f32 %v3779, %v3778
  %v3781 = vmul.f32 0.5, %v3780
  %v3782 = vsub.f32 1.5, %v3781
  %v3783 = vmul.f32 %v3778, %v3782
  %vm3784 = vweird.f32 %v3538
  %vm3785 = vweird.f32 %v3778
  %vm3786 = vmor %vm3784, %vm3785
  %v3787 = vsel %vm3786, %v3778, %v3783
  %v3788 = vrsqrt.pop %v3539
  %v3789 = vmul.f32 %v3788, %v3539
  %v3790 = vmul.f32 %v3789, %v3788
  %v3791 = vmul.f32 0.5, %v3790
  %v3792 = vsub.f32 1.5, %v3791
  %v3793 = vmul.f32 %v3788, %v3792
  %vm3794 = vweird.f32 %v3539
  %vm3795 = vweird.f32 %v3788
  %vm3796 = vmor %vm3794, %vm3795
  %v3797 = vsel %vm3796, %v3788, %v3793
  %v3798 = vrsqrt.pop %v3540
  %v3799 = vmul.f32 %v3798, %v3540
  %v3800 = vmul.f32 %v3799, %v3798
  %v3801 = vmul.f32 0.5, %v3800
  %v3802 = vsub.f32 1.5, %v3801
  %v3803 = vmul.f32 %v3798, %v3802
  %vm3804 = vweird.f32 %v3540
  %vm3805 = vweird.f32 %v3798
  %vm3806 = vmor %vm3804, %vm3805
  %v3807 = vsel %vm3806, %v3798, %v3803
  %v3808 = vrsqrt.pop %v3541
  %v3809 = vmul.f32 %v3808, %v3541
  %v3810 = vmul.f32 %v3809, %v3808
  %v3811 = vmul.f32 0.5, %v3810
  %v3812 = vsub.f32 1.5, %v3811
  %v3813 = vmul.f32 %v3808, %v3812
  %vm3814 = vweird.f32 %v3541
  %vm3815 = vweird.f32 %v3808
  %vm3816 = vmor %vm3814, %vm3815
  %v3817 = vsel %vm3816, %v3808, %v3813
  %v3818 = vrsqrt.pop %v3542
  %v3819 = vmul.f32 %v3818, %v3542
  %v3820 = vmul.f32 %v3819, %v3818
  %v3821 = vmul.f32 0.5, %v3820
  %v3822 = vsub.f32 1.5, %v3821
  %v3823 = vmul.f32 %v3818, %v3822
  %vm3824 = vweird.f32 %v3542
  %vm3825 = vweird.f32 %v3818
  %vm3826 = vmor %vm3824, %vm3825
  %v3827 = vsel %vm3826, %v3818, %v3823
  %v3828 = vrsqrt.pop %v3543
  %v3829 = vmul.f32 %v3828, %v3543
  %v3830 = vmul.f32 %v3829, %v3828
  %v3831 = vmul.f32 0.5, %v3830
  %v3832 = vsub.f32 1.5, %v3831
  %v3833 = vmul.f32 %v3828, %v3832
  %vm3834 = vweird.f32 %v3543
  %vm3835 = vweird.f32 %v3828
  %vm3836 = vmor %vm3834, %vm3835
  %v3837 = vsel %vm3836, %v3828, %v3833
  %v3838 = vrsqrt.pop %v3544
  %v3839 = vmul.f32 %v3838, %v3544
  %v3840 = vmul.f32 %v3839, %v3838
  %v3841 = vmul.f32 0.5, %v3840
  %v3842 = vsub.f32 1.5, %v3841
  %v3843 = vmul.f32 %v3838, %v3842
  %vm3844 = vweird.f32 %v3544
  %vm3845 = vweird.f32 %v3838
  %vm3846 = vmor %vm3844, %vm3845
  %v3847 = vsel %vm3846, %v3838, %v3843
  %v3848 = vrsqrt.pop %v3545
  %v3849 = vmul.f32 %v3848, %v3545
  %v3850 = vmul.f32 %v3849, %v3848
  %v3851 = vmul.f32 0.5, %v3850
  %v3852 = vsub.f32 1.5, %v3851
  %v3853 = vmul.f32 %v3848, %v3852
  %vm3854 = vweird.f32 %v3545
  %vm3855 = vweird.f32 %v3848
  %vm3856 = vmor %vm3854, %vm3855
  %v3857 = vsel %vm3856, %v3848, %v3853
  %v3858 = vrsqrt.pop %v3546
  %v3859 = vmul.f32 %v3858, %v3546
  %v3860 = vmul.f32 %v3859, %v3858
  %v3861 = vmul.f32 0.5, %v3860
  %v3862 = vsub.f32 1.5, %v3861
  %v3863 = vmul.f32 %v3858, %v3862
  %vm3864 = vweird.f32 %v3546
  %vm3865 = vweird.f32 %v3858
  %vm3866 = vmor %vm3864, %vm3865
  %v3867 = vsel %vm3866, %v3858, %v3863
  %v3868 = vrsqrt.pop %v3547
  %v3869 = vmul.f32 %v3868, %v3547
  %v3870 = vmul.f32 %v3869, %v3868
  %v3871 = vmul.f32 0.5, %v3870
  %v3872 = vsub.f32 1.5, %v3871
  %v3873 = vmul.f32 %v3868, %v3872
  %vm3874 = vweird.f32 %v3547
  %vm3875 = vweird.f32 %v3868
  %vm3876 = vmor %vm3874, %vm3875
  %v3877 = vsel %vm3876, %v3868, %v3873
  %v3878 = vrsqrt.pop %v3548
  %v3879 = vmul.f32 %v3878, %v3548
  %v3880 = vmul.f32 %v3879, %v3878
  %v3881 = vmul.f32 0.5, %v3880
  %v3882 = vsub.f32 1.5, %v3881
  %v3883 = vmul.f32 %v3878, %v3882
  %vm3884 = vweird.f32 %v3548
  %vm3885 = vweird.f32 %v3878
  %vm3886 = vmor %vm3884, %vm3885
  %v3887 = vsel %vm3886, %v3878, %v3883
  %v3888 = vrsqrt.pop %v3549
  %v3889 = vmul.f32 %v3888, %v3549
  %v3890 = vmul.f32 %v3889, %v3888
  %v3891 = vmul.f32 0.5, %v3890
  %v3892 = vsub.f32 1.5, %v3891
  %v3893 = vmul.f32 %v3888, %v3892
  %vm3894 = vweird.f32 %v3549
  %vm3895 = vweird.f32 %v3888
  %vm3896 = vmor %vm3894, %vm3895
  %v3897 = vsel %vm3896, %v3888, %v3893
  %v3898 = vrsqrt.pop %v3550
  %v3899 = vmul.f32 %v3898, %v3550
  %v3900 = vmul.f32 %v3899, %v3898
  %v3901 = vmul.f32 0.5, %v3900
  %v3902 = vsub.f32 1.5, %v3901
  %v3903 = vmul.f32 %v3898, %v3902
  %vm3904 = vweird.f32 %v3550
  %vm3905 = vweird.f32 %v3898
  %vm3906 = vmor %vm3904, %vm3905
  %v3907 = vsel %vm3906, %v3898, %v3903
  %v3908 = vrsqrt.pop %v3551
  %v3909 = vmul.f32 %v3908, %v3551
  %v3910 = vmul.f32 %v3909, %v3908
  %v3911 = vmul.f32 0.5, %v3910
  %v3912 = vsub.f32 1.5, %v3911
  %v3913 = vmul.f32 %v3908, %v3912
  %vm3914 = vweird.f32 %v3551
  %vm3915 = vweird.f32 %v3908
  %vm3916 = vmor %vm3914, %vm3915
  %v3917 = vsel %vm3916, %v3908, %v3913
  %v3918 = vrsqrt.pop %v3552
  %v3919 = vmul.f32 %v3918, %v3552
  %v3920 = vmul.f32 %v3919, %v3918
  %v3921 = vmul.f32 0.5, %v3920
  %v3922 = vsub.f32 1.5, %v3921
  %v3923 = vmul.f32 %v3918, %v3922
  %vm3924 = vweird.f32 %v3552
  %vm3925 = vweird.f32 %v3918
  %vm3926 = vmor %vm3924, %vm3925
  %v3927 = vsel %vm3926, %v3918, %v3923
  %v3928 = vrsqrt.pop %v3553
  %v3929 = vmul.f32 %v3928, %v3553
  %v3930 = vmul.f32 %v3929, %v3928
  %v3931 = vmul.f32 0.5, %v3930
  %v3932 = vsub.f32 1.5, %v3931
  %v3933 = vmul.f32 %v3928, %v3932
  %vm3934 = vweird.f32 %v3553
  %vm3935 = vweird.f32 %v3928
  %vm3936 = vmor %vm3934, %vm3935
  %v3937 = vsel %vm3936, %v3928, %v3933
  %v3938 = vrsqrt.pop %v3554
  %v3939 = vmul.f32 %v3938, %v3554
  %v3940 = vmul.f32 %v3939, %v3938
  %v3941 = vmul.f32 0.5, %v3940
  %v3942 = vsub.f32 1.5, %v3941
  %v3943 = vmul.f32 %v3938, %v3942
  %vm3944 = vweird.f32 %v3554
  %vm3945 = vweird.f32 %v3938
  %vm3946 = vmor %vm3944, %vm3945
  %v3947 = vsel %vm3946, %v3938, %v3943
  %v3948 = vrsqrt.pop %v3555
  %v3949 = vmul.f32 %v3948, %v3555
  %v3950 = vmul.f32 %v3949, %v3948
  %v3951 = vmul.f32 0.5, %v3950
  %v3952 = vsub.f32 1.5, %v3951
  %v3953 = vmul.f32 %v3948, %v3952
  %vm3954 = vweird.f32 %v3555
  %vm3955 = vweird.f32 %v3948
  %vm3956 = vmor %vm3954, %vm3955
  %v3957 = vsel %vm3956, %v3948, %v3953
  %v3958 = vrsqrt.pop %v3556
  %v3959 = vmul.f32 %v3958, %v3556
  %v3960 = vmul.f32 %v3959, %v3958
  %v3961 = vmul.f32 0.5, %v3960
  %v3962 = vsub.f32 1.5, %v3961
  %v3963 = vmul.f32 %v3958, %v3962
  %vm3964 = vweird.f32 %v3556
  %vm3965 = vweird.f32 %v3958
  %vm3966 = vmor %vm3964, %vm3965
  %v3967 = vsel %vm3966, %v3958, %v3963
  %v3968 = vrsqrt.pop %v3557
  %v3969 = vmul.f32 %v3968, %v3557
  %v3970 = vmul.f32 %v3969, %v3968
  %v3971 = vmul.f32 0.5, %v3970
  %v3972 = vsub.f32 1.5, %v3971
  %v3973 = vmul.f32 %v3968, %v3972
  %vm3974 = vweird.f32 %v3557
  %vm3975 = vweird.f32 %v3968
  %vm3976 = vmor %vm3974, %vm3975
  %v3977 = vsel %vm3976, %v3968, %v3973
  %v3978 = vmul.f32 %v3474, %v3567
  %v3979 = vmul.f32 %v3475, %v3577
  %v3980 = vmul.f32 %v3476, %v3587
  %v3981 = vmul.f32 %v3477, %v3597
  %v3982 = vmul.f32 %v3478, %v3607
  %v3983 = vmul.f32 %v3479, %v3617
  %v3984 = vmul.f32 %v3480, %v3627
  %v3985 = vmul.f32 %v3481, %v3637
  %v3986 = vmul.f32 %v3482, %v3647
  %v3987 = vmul.f32 %v3483, %v3657
  %v3988 = vmul.f32 %v3484, %v3667
  %v3989 = vmul.f32 %v3485, %v3677
  %v3990 = vmul.f32 %v3486, %v3687
  %v3991 = vmul.f32 %v3487, %v3697
  %v3992 = vmul.f32 %v3488, %v3707
  %v3993 = vmul.f32 %v3489, %v3717
  %v3994 = vmul.f32 %v3490, %v3727
  %v3995 = vmul.f32 %v3491, %v3737
  %v3996 = vmul.f32 %v3492, %v3747
  %v3997 = vmul.f32 %v3493, %v3757
  %v3998 = vmul.f32 %v3494, %v3767
  %v3999 = vmul.f32 %v3495, %v3777
  %v4000 = vmul.f32 %v3496, %v3787
  %v4001 = vmul.f32 %v3497, %v3797
  %v4002 = vmul.f32 %v3498, %v3807
  %v4003 = vmul.f32 %v3499, %v3817
  %v4004 = vmul.f32 %v3500, %v3827
  %v4005 = vmul.f32 %v3501, %v3837
  %v4006 = vmul.f32 %v3502, %v3847
  %v4007 = vmul.f32 %v3503, %v3857
  %v4008 = vmul.f32 %v3504, %v3867
  %v4009 = vmul.f32 %v3505, %v3877
  %v4010 = vmul.f32 %v3506, %v3887
  %v4011 = vmul.f32 %v3507, %v3897
  %v4012 = vmul.f32 %v3508, %v3907
  %v4013 = vmul.f32 %v3509, %v3917
  %v4014 = vmul.f32 %v3510, %v3927
  %v4015 = vmul.f32 %v3511, %v3937
  %v4016 = vmul.f32 %v3512, %v3947
  %v4017 = vmul.f32 %v3513, %v3957
  %v4018 = vmul.f32 %v3514, %v3967
  %v4019 = vmul.f32 %v3515, %v3977
  %4021 = vset.pattern.permute.xlu0 0
  %4022 = vperm.xlu0 %4021, %v3978
  %v4023 = vpop.permute.xlu0 %4022
  %4026 = vset.pattern.permute.xlu0 0
  %4027 = vperm.xlu0 %4026, %v3979
  %v4028 = vpop.permute.xlu0 %4027
  %4031 = vset.pattern.permute.xlu0 0
  %4032 = vperm.xlu0 %4031, %v3980
  %v4033 = vpop.permute.xlu0 %4032
  %4036 = vset.pattern.permute.xlu0 0
  %4037 = vperm.xlu0 %4036, %v3981
  %v4038 = vpop.permute.xlu0 %4037
  %4041 = vset.pattern.permute.xlu0 0
  %4042 = vperm.xlu0 %4041, %v3982
  %v4043 = vpop.permute.xlu0 %4042
  %4046 = vset.pattern.permute.xlu0 0
  %4047 = vperm.xlu0 %4046, %v3983
  %v4048 = vpop.permute.xlu0 %4047
  %4051 = vset.pattern.permute.xlu0 0
  %4052 = vperm.xlu0 %4051, %v3984
  %v4053 = vpop.permute.xlu0 %4052
  %4056 = vset.pattern.permute.xlu0 0
  %4057 = vperm.xlu0 %4056, %v3985
  %v4058 = vpop.permute.xlu0 %4057
  %4061 = vset.pattern.permute.xlu0 0
  %4062 = vperm.xlu0 %4061, %v3986
  %v4063 = vpop.permute.xlu0 %4062
  %4066 = vset.pattern.permute.xlu0 0
  %4067 = vperm.xlu0 %4066, %v3987
  %v4068 = vpop.permute.xlu0 %4067
  %4071 = vset.pattern.permute.xlu0 0
  %4072 = vperm.xlu0 %4071, %v3988
  %v4073 = vpop.permute.xlu0 %4072
  %4076 = vset.pattern.permute.xlu0 0
  %4077 = vperm.xlu0 %4076, %v3989
  %v4078 = vpop.permute.xlu0 %4077
  %4081 = vset.pattern.permute.xlu0 0
  %4082 = vperm.xlu0 %4081, %v3990
  %v4083 = vpop.permute.xlu0 %4082
  %4086 = vset.pattern.permute.xlu0 0
  %4087 = vperm.xlu0 %4086, %v3991
  %v4088 = vpop.permute.xlu0 %4087
  %4091 = vset.pattern.permute.xlu0 0
  %4092 = vperm.xlu0 %4091, %v3992
  %v4093 = vpop.permute.xlu0 %4092
  %4096 = vset.pattern.permute.xlu0 0
  %4097 = vperm.xlu0 %4096, %v3993
  %v4098 = vpop.permute.xlu0 %4097
  %4101 = vset.pattern.permute.xlu0 0
  %4102 = vperm.xlu0 %4101, %v3994
  %v4103 = vpop.permute.xlu0 %4102
  %4106 = vset.pattern.permute.xlu0 0
  %4107 = vperm.xlu0 %4106, %v3995
  %v4108 = vpop.permute.xlu0 %4107
  %4111 = vset.pattern.permute.xlu0 0
  %4112 = vperm.xlu0 %4111, %v3996
  %v4113 = vpop.permute.xlu0 %4112
  %4116 = vset.pattern.permute.xlu0 0
  %4117 = vperm.xlu0 %4116, %v3997
  %v4118 = vpop.permute.xlu0 %4117
  %4121 = vset.pattern.permute.xlu0 0
  %4122 = vperm.xlu0 %4121, %v3998
  %v4123 = vpop.permute.xlu0 %4122
  %4126 = vset.pattern.permute.xlu0 0
  %4127 = vperm.xlu0 %4126, %v3999
  %v4128 = vpop.permute.xlu0 %4127
  %4131 = vset.pattern.permute.xlu0 0
  %4132 = vperm.xlu0 %4131, %v4000
  %v4133 = vpop.permute.xlu0 %4132
  %4136 = vset.pattern.permute.xlu0 0
  %4137 = vperm.xlu0 %4136, %v4001
  %v4138 = vpop.permute.xlu0 %4137
  %4141 = vset.pattern.permute.xlu0 0
  %4142 = vperm.xlu0 %4141, %v4002
  %v4143 = vpop.permute.xlu0 %4142
  %4146 = vset.pattern.permute.xlu0 0
  %4147 = vperm.xlu0 %4146, %v4003
  %v4148 = vpop.permute.xlu0 %4147
  %4151 = vset.pattern.permute.xlu0 0
  %4152 = vperm.xlu0 %4151, %v4004
  %v4153 = vpop.permute.xlu0 %4152
  %4156 = vset.pattern.permute.xlu0 0
  %4157 = vperm.xlu0 %4156, %v4005
  %v4158 = vpop.permute.xlu0 %4157
  %4161 = vset.pattern.permute.xlu0 0
  %4162 = vperm.xlu0 %4161, %v4006
  %v4163 = vpop.permute.xlu0 %4162
  %4166 = vset.pattern.permute.xlu0 0
  %4167 = vperm.xlu0 %4166, %v4007
  %v4168 = vpop.permute.xlu0 %4167
  %4171 = vset.pattern.permute.xlu0 0
  %4172 = vperm.xlu0 %4171, %v4008
  %v4173 = vpop.permute.xlu0 %4172
  %4176 = vset.pattern.permute.xlu0 0
  %4177 = vperm.xlu0 %4176, %v4009
  %v4178 = vpop.permute.xlu0 %4177
  %4181 = vset.pattern.permute.xlu0 0
  %4182 = vperm.xlu0 %4181, %v4010
  %v4183 = vpop.permute.xlu0 %4182
  %4186 = vset.pattern.permute.xlu0 0
  %4187 = vperm.xlu0 %4186, %v4011
  %v4188 = vpop.permute.xlu0 %4187
  %4191 = vset.pattern.permute.xlu0 0
  %4192 = vperm.xlu0 %4191, %v4012
  %v4193 = vpop.permute.xlu0 %4192
  %4196 = vset.pattern.permute.xlu0 0
  %4197 = vperm.xlu0 %4196, %v4013
  %v4198 = vpop.permute.xlu0 %4197
  %4201 = vset.pattern.permute.xlu0 0
  %4202 = vperm.xlu0 %4201, %v4014
  %v4203 = vpop.permute.xlu0 %4202
  %4206 = vset.pattern.permute.xlu0 0
  %4207 = vperm.xlu0 %4206, %v4015
  %v4208 = vpop.permute.xlu0 %4207
  %4211 = vset.pattern.permute.xlu0 0
  %4212 = vperm.xlu0 %4211, %v4016
  %v4213 = vpop.permute.xlu0 %4212
  %4216 = vset.pattern.permute.xlu0 0
  %4217 = vperm.xlu0 %4216, %v4017
  %v4218 = vpop.permute.xlu0 %4217
  %4221 = vset.pattern.permute.xlu0 0
  %4222 = vperm.xlu0 %4221, %v4018
  %v4223 = vpop.permute.xlu0 %4222
  %4226 = vset.pattern.permute.xlu0 0
  %4227 = vperm.xlu0 %4226, %v4019
  %v4228 = vpop.permute.xlu0 %4227
  %v4230 = vmul.f32 %v3096, %v4023
  %v4231 = vmul.f32 %v3097, %v4023
  %v4232 = vmul.f32 %v3098, %v4028
  %v4233 = vmul.f32 %v3099, %v4028
  %v4234 = vmul.f32 %v3100, %v4033
  %v4235 = vmul.f32 %v3101, %v4033
  %v4236 = vmul.f32 %v3102, %v4038
  %v4237 = vmul.f32 %v3103, %v4038
  %v4238 = vmul.f32 %v3104, %v4043
  %v4239 = vmul.f32 %v3105, %v4043
  %v4240 = vmul.f32 %v3106, %v4048
  %v4241 = vmul.f32 %v3107, %v4048
  %v4242 = vmul.f32 %v3108, %v4053
  %v4243 = vmul.f32 %v3109, %v4053
  %v4244 = vmul.f32 %v3110, %v4058
  %v4245 = vmul.f32 %v3111, %v4058
  %v4246 = vmul.f32 %v3112, %v4063
  %v4247 = vmul.f32 %v3113, %v4063
  %v4248 = vmul.f32 %v3114, %v4068
  %v4249 = vmul.f32 %v3115, %v4068
  %v4250 = vmul.f32 %v3116, %v4073
  %v4251 = vmul.f32 %v3117, %v4073
  %v4252 = vmul.f32 %v3118, %v4078
  %v4253 = vmul.f32 %v3119, %v4078
  %v4254 = vmul.f32 %v3120, %v4083
  %v4255 = vmul.f32 %v3121, %v4083
  %v4256 = vmul.f32 %v3122, %v4088
  %v4257 = vmul.f32 %v3123, %v4088
  %v4258 = vmul.f32 %v3124, %v4093
  %v4259 = vmul.f32 %v3125, %v4093
  %v4260 = vmul.f32 %v3126, %v4098
  %v4261 = vmul.f32 %v3127, %v4098
  %v4262 = vmul.f32 %v3128, %v4103
  %v4263 = vmul.f32 %v3129, %v4103
  %v4264 = vmul.f32 %v3130, %v4108
  %v4265 = vmul.f32 %v3131, %v4108
  %v4266 = vmul.f32 %v3132, %v4113
  %v4267 = vmul.f32 %v3133, %v4113
  %v4268 = vmul.f32 %v3134, %v4118
  %v4269 = vmul.f32 %v3135, %v4118
  %v4270 = vmul.f32 %v3136, %v4123
  %v4271 = vmul.f32 %v3137, %v4123
  %v4272 = vmul.f32 %v3138, %v4128
  %v4273 = vmul.f32 %v3139, %v4128
  %v4274 = vmul.f32 %v3140, %v4133
  %v4275 = vmul.f32 %v3141, %v4133
  %v4276 = vmul.f32 %v3142, %v4138
  %v4277 = vmul.f32 %v3143, %v4138
  %v4278 = vmul.f32 %v3144, %v4143
  %v4279 = vmul.f32 %v3145, %v4143
  %v4280 = vmul.f32 %v3146, %v4148
  %v4281 = vmul.f32 %v3147, %v4148
  %v4282 = vmul.f32 %v3148, %v4153
  %v4283 = vmul.f32 %v3149, %v4153
  %v4284 = vmul.f32 %v3150, %v4158
  %v4285 = vmul.f32 %v3151, %v4158
  %v4286 = vmul.f32 %v3152, %v4163
  %v4287 = vmul.f32 %v3153, %v4163
  %v4288 = vmul.f32 %v3154, %v4168
  %v4289 = vmul.f32 %v3155, %v4168
  %v4290 = vmul.f32 %v3156, %v4173
  %v4291 = vmul.f32 %v3157, %v4173
  %v4292 = vmul.f32 %v3158, %v4178
  %v4293 = vmul.f32 %v3159, %v4178
  %v4294 = vmul.f32 %v3160, %v4183
  %v4295 = vmul.f32 %v3161, %v4183
  %v4296 = vmul.f32 %v3162, %v4188
  %v4297 = vmul.f32 %v3163, %v4188
  %v4298 = vmul.f32 %v3164, %v4193
  %v4299 = vmul.f32 %v3165, %v4193
  %v4300 = vmul.f32 %v3166, %v4198
  %v4301 = vmul.f32 %v3167, %v4198
  %v4302 = vmul.f32 %v3168, %v4203
  %v4303 = vmul.f32 %v3169, %v4203
  %v4304 = vmul.f32 %v3170, %v4208
  %v4305 = vmul.f32 %v3171, %v4208
  %v4306 = vmul.f32 %v3172, %v4213
  %v4307 = vmul.f32 %v3173, %v4213
  %v4308 = vmul.f32 %v3174, %v4218
  %v4309 = vmul.f32 %v3175, %v4218
  %v4310 = vmul.f32 %v3176, %v4223
  %v4311 = vmul.f32 %v3177, %v4223
  %v4312 = vmul.f32 %v3178, %v4228
  %v4313 = vmul.f32 %v3179, %v4228
  %v4314 = vld [vmem:[%s7] sm:$0xff]
  %v4315 = vld [vmem:[%s7 + $0x8] sm:$0xff]
  %v4316 = vld [vmem:[%s7 + $0x10] sm:$0xff]
  %v4317 = vld [vmem:[%s7 + $0x18] sm:$0xff]
  %v4318 = vld [vmem:[%s7 + $0x20] sm:$0xff]
  %v4319 = vld [vmem:[%s7 + $0x28] sm:$0xff]
  %v4320 = vld [vmem:[%s7 + $0x30] sm:$0xff]
  %v4321 = vld [vmem:[%s7 + $0x38] sm:$0xff]
  %v4322 = vld [vmem:[%s7 + $0x40] sm:$0xff]
  %v4323 = vld [vmem:[%s7 + $0x48] sm:$0xff]
  %v4324 = vld [vmem:[%s7 + $0x50] sm:$0xff]
  %v4325 = vld [vmem:[%s7 + $0x58] sm:$0xff]
  %v4326 = vld [vmem:[%s7 + $0x60] sm:$0xff]
  %v4327 = vld [vmem:[%s7 + $0x68] sm:$0xff]
  %v4328 = vld [vmem:[%s7 + $0x70] sm:$0xff]
  %v4329 = vld [vmem:[%s7 + $0x78] sm:$0xff]
  %v4330 = vld [vmem:[%s7 + $0x80] sm:$0xff]
  %v4331 = vld [vmem:[%s7 + $0x88] sm:$0xff]
  %v4332 = vld [vmem:[%s7 + $0x90] sm:$0xff]
  %v4333 = vld [vmem:[%s7 + $0x98] sm:$0xff]
  %v4334 = vld [vmem:[%s7 + $0xa0] sm:$0xff]
  %v4335 = vld [vmem:[%s7 + $0xa8] sm:$0xff]
  %v4336 = vld [vmem:[%s7 + $0xb0] sm:$0xff]
  %v4337 = vld [vmem:[%s7 + $0xb8] sm:$0xff]
  %v4338 = vld [vmem:[%s7 + $0xc0] sm:$0xff]
  %v4339 = vld [vmem:[%s7 + $0xc8] sm:$0xff]
  %v4340 = vld [vmem:[%s7 + $0xd0] sm:$0xff]
  %v4341 = vld [vmem:[%s7 + $0xd8] sm:$0xff]
  %v4342 = vld [vmem:[%s7 + $0xe0] sm:$0xff]
  %v4343 = vld [vmem:[%s7 + $0xe8] sm:$0xff]
  %v4344 = vld [vmem:[%s7 + $0xf0] sm:$0xff]
  %v4345 = vld [vmem:[%s7 + $0xf8] sm:$0xff]
  %v4346 = vld [vmem:[%s7 + $0x100] sm:$0xff]
  %v4347 = vld [vmem:[%s7 + $0x108] sm:$0xff]
  %v4348 = vld [vmem:[%s7 + $0x110] sm:$0xff]
  %v4349 = vld [vmem:[%s7 + $0x118] sm:$0xff]
  %v4350 = vld [vmem:[%s7 + $0x120] sm:$0xff]
  %v4351 = vld [vmem:[%s7 + $0x128] sm:$0xff]
  %v4352 = vld [vmem:[%s7 + $0x130] sm:$0xff]
  %v4353 = vld [vmem:[%s7 + $0x138] sm:$0xff]
  %v4354 = vld [vmem:[%s7 + $0x140] sm:$0xff]
  %v4355 = vld [vmem:[%s7 + $0x148] sm:$0xff]
  %4357 = vset.pattern.permute.xlu0 0
  %4358 = vperm.xlu0 %4357, %v4314
  %v4359 = vpop.permute.xlu0 %4358
  %4362 = vset.pattern.permute.xlu0 0
  %4363 = vperm.xlu0 %4362, %v4315
  %v4364 = vpop.permute.xlu0 %4363
  %4367 = vset.pattern.permute.xlu0 0
  %4368 = vperm.xlu0 %4367, %v4316
  %v4369 = vpop.permute.xlu0 %4368
  %4372 = vset.pattern.permute.xlu0 0
  %4373 = vperm.xlu0 %4372, %v4317
  %v4374 = vpop.permute.xlu0 %4373
  %4377 = vset.pattern.permute.xlu0 0
  %4378 = vperm.xlu0 %4377, %v4318
  %v4379 = vpop.permute.xlu0 %4378
  %4382 = vset.pattern.permute.xlu0 0
  %4383 = vperm.xlu0 %4382, %v4319
  %v4384 = vpop.permute.xlu0 %4383
  %4387 = vset.pattern.permute.xlu0 0
  %4388 = vperm.xlu0 %4387, %v4320
  %v4389 = vpop.permute.xlu0 %4388
  %4392 = vset.pattern.permute.xlu0 0
  %4393 = vperm.xlu0 %4392, %v4321
  %v4394 = vpop.permute.xlu0 %4393
  %4397 = vset.pattern.permute.xlu0 0
  %4398 = vperm.xlu0 %4397, %v4322
  %v4399 = vpop.permute.xlu0 %4398
  %4402 = vset.pattern.permute.xlu0 0
  %4403 = vperm.xlu0 %4402, %v4323
  %v4404 = vpop.permute.xlu0 %4403
  %4407 = vset.pattern.permute.xlu0 0
  %4408 = vperm.xlu0 %4407, %v4324
  %v4409 = vpop.permute.xlu0 %4408
  %4412 = vset.pattern.permute.xlu0 0
  %4413 = vperm.xlu0 %4412, %v4325
  %v4414 = vpop.permute.xlu0 %4413
  %4417 = vset.pattern.permute.xlu0 0
  %4418 = vperm.xlu0 %4417, %v4326
  %v4419 = vpop.permute.xlu0 %4418
  %4422 = vset.pattern.permute.xlu0 0
  %4423 = vperm.xlu0 %4422, %v4327
  %v4424 = vpop.permute.xlu0 %4423
  %4427 = vset.pattern.permute.xlu0 0
  %4428 = vperm.xlu0 %4427, %v4328
  %v4429 = vpop.permute.xlu0 %4428
  %4432 = vset.pattern.permute.xlu0 0
  %4433 = vperm.xlu0 %4432, %v4329
  %v4434 = vpop.permute.xlu0 %4433
  %4437 = vset.pattern.permute.xlu0 0
  %4438 = vperm.xlu0 %4437, %v4330
  %v4439 = vpop.permute.xlu0 %4438
  %4442 = vset.pattern.permute.xlu0 0
  %4443 = vperm.xlu0 %4442, %v4331
  %v4444 = vpop.permute.xlu0 %4443
  %4447 = vset.pattern.permute.xlu0 0
  %4448 = vperm.xlu0 %4447, %v4332
  %v4449 = vpop.permute.xlu0 %4448
  %4452 = vset.pattern.permute.xlu0 0
  %4453 = vperm.xlu0 %4452, %v4333
  %v4454 = vpop.permute.xlu0 %4453
  %4457 = vset.pattern.permute.xlu0 0
  %4458 = vperm.xlu0 %4457, %v4334
  %v4459 = vpop.permute.xlu0 %4458
  %4462 = vset.pattern.permute.xlu0 0
  %4463 = vperm.xlu0 %4462, %v4335
  %v4464 = vpop.permute.xlu0 %4463
  %4467 = vset.pattern.permute.xlu0 0
  %4468 = vperm.xlu0 %4467, %v4336
  %v4469 = vpop.permute.xlu0 %4468
  %4472 = vset.pattern.permute.xlu0 0
  %4473 = vperm.xlu0 %4472, %v4337
  %v4474 = vpop.permute.xlu0 %4473
  %4477 = vset.pattern.permute.xlu0 0
  %4478 = vperm.xlu0 %4477, %v4338
  %v4479 = vpop.permute.xlu0 %4478
  %4482 = vset.pattern.permute.xlu0 0
  %4483 = vperm.xlu0 %4482, %v4339
  %v4484 = vpop.permute.xlu0 %4483
  %4487 = vset.pattern.permute.xlu0 0
  %4488 = vperm.xlu0 %4487, %v4340
  %v4489 = vpop.permute.xlu0 %4488
  %4492 = vset.pattern.permute.xlu0 0
  %4493 = vperm.xlu0 %4492, %v4341
  %v4494 = vpop.permute.xlu0 %4493
  %4497 = vset.pattern.permute.xlu0 0
  %4498 = vperm.xlu0 %4497, %v4342
  %v4499 = vpop.permute.xlu0 %4498
  %4502 = vset.pattern.permute.xlu0 0
  %4503 = vperm.xlu0 %4502, %v4343
  %v4504 = vpop.permute.xlu0 %4503
  %4507 = vset.pattern.permute.xlu0 0
  %4508 = vperm.xlu0 %4507, %v4344
  %v4509 = vpop.permute.xlu0 %4508
  %4512 = vset.pattern.permute.xlu0 0
  %4513 = vperm.xlu0 %4512, %v4345
  %v4514 = vpop.permute.xlu0 %4513
  %4517 = vset.pattern.permute.xlu0 0
  %4518 = vperm.xlu0 %4517, %v4346
  %v4519 = vpop.permute.xlu0 %4518
  %4522 = vset.pattern.permute.xlu0 0
  %4523 = vperm.xlu0 %4522, %v4347
  %v4524 = vpop.permute.xlu0 %4523
  %4527 = vset.pattern.permute.xlu0 0
  %4528 = vperm.xlu0 %4527, %v4348
  %v4529 = vpop.permute.xlu0 %4528
  %4532 = vset.pattern.permute.xlu0 0
  %4533 = vperm.xlu0 %4532, %v4349
  %v4534 = vpop.permute.xlu0 %4533
  %4537 = vset.pattern.permute.xlu0 0
  %4538 = vperm.xlu0 %4537, %v4350
  %v4539 = vpop.permute.xlu0 %4538
  %4542 = vset.pattern.permute.xlu0 0
  %4543 = vperm.xlu0 %4542, %v4351
  %v4544 = vpop.permute.xlu0 %4543
  %4547 = vset.pattern.permute.xlu0 0
  %4548 = vperm.xlu0 %4547, %v4352
  %v4549 = vpop.permute.xlu0 %4548
  %4552 = vset.pattern.permute.xlu0 0
  %4553 = vperm.xlu0 %4552, %v4353
  %v4554 = vpop.permute.xlu0 %4553
  %4557 = vset.pattern.permute.xlu0 0
  %4558 = vperm.xlu0 %4557, %v4354
  %v4559 = vpop.permute.xlu0 %4558
  %4562 = vset.pattern.permute.xlu0 0
  %4563 = vperm.xlu0 %4562, %v4355
  %v4564 = vpop.permute.xlu0 %4563
  %v4566 = vadd.f32 %v4230, %v4359
  %v4567 = vadd.f32 %v4231, %v4359
  %v4568 = vadd.f32 %v4232, %v4364
  %v4569 = vadd.f32 %v4233, %v4364
  %v4570 = vadd.f32 %v4234, %v4369
  %v4571 = vadd.f32 %v4235, %v4369
  %v4572 = vadd.f32 %v4236, %v4374
  %v4573 = vadd.f32 %v4237, %v4374
  %v4574 = vadd.f32 %v4238, %v4379
  %v4575 = vadd.f32 %v4239, %v4379
  %v4576 = vadd.f32 %v4240, %v4384
  %v4577 = vadd.f32 %v4241, %v4384
  %v4578 = vadd.f32 %v4242, %v4389
  %v4579 = vadd.f32 %v4243, %v4389
  %v4580 = vadd.f32 %v4244, %v4394
  %v4581 = vadd.f32 %v4245, %v4394
  %v4582 = vadd.f32 %v4246, %v4399
  %v4583 = vadd.f32 %v4247, %v4399
  %v4584 = vadd.f32 %v4248, %v4404
  %v4585 = vadd.f32 %v4249, %v4404
  %v4586 = vadd.f32 %v4250, %v4409
  %v4587 = vadd.f32 %v4251, %v4409
  %v4588 = vadd.f32 %v4252, %v4414
  %v4589 = vadd.f32 %v4253, %v4414
  %v4590 = vadd.f32 %v4254, %v4419
  %v4591 = vadd.f32 %v4255, %v4419
  %v4592 = vadd.f32 %v4256, %v4424
  %v4593 = vadd.f32 %v4257, %v4424
  %v4594 = vadd.f32 %v4258, %v4429
  %v4595 = vadd.f32 %v4259, %v4429
  %v4596 = vadd.f32 %v4260, %v4434
  %v4597 = vadd.f32 %v4261, %v4434
  %v4598 = vadd.f32 %v4262, %v4439
  %v4599 = vadd.f32 %v4263, %v4439
  %v4600 = vadd.f32 %v4264, %v4444
  %v4601 = vadd.f32 %v4265, %v4444
  %v4602 = vadd.f32 %v4266, %v4449
  %v4603 = vadd.f32 %v4267, %v4449
  %v4604 = vadd.f32 %v4268, %v4454
  %v4605 = vadd.f32 %v4269, %v4454
  %v4606 = vadd.f32 %v4270, %v4459
  %v4607 = vadd.f32 %v4271, %v4459
  %v4608 = vadd.f32 %v4272, %v4464
  %v4609 = vadd.f32 %v4273, %v4464
  %v4610 = vadd.f32 %v4274, %v4469
  %v4611 = vadd.f32 %v4275, %v4469
  %v4612 = vadd.f32 %v4276, %v4474
  %v4613 = vadd.f32 %v4277, %v4474
  %v4614 = vadd.f32 %v4278, %v4479
  %v4615 = vadd.f32 %v4279, %v4479
  %v4616 = vadd.f32 %v4280, %v4484
  %v4617 = vadd.f32 %v4281, %v4484
  %v4618 = vadd.f32 %v4282, %v4489
  %v4619 = vadd.f32 %v4283, %v4489
  %v4620 = vadd.f32 %v4284, %v4494
  %v4621 = vadd.f32 %v4285, %v4494
  %v4622 = vadd.f32 %v4286, %v4499
  %v4623 = vadd.f32 %v4287, %v4499
  %v4624 = vadd.f32 %v4288, %v4504
  %v4625 = vadd.f32 %v4289, %v4504
  %v4626 = vadd.f32 %v4290, %v4509
  %v4627 = vadd.f32 %v4291, %v4509
  %v4628 = vadd.f32 %v4292, %v4514
  %v4629 = vadd.f32 %v4293, %v4514
  %v4630 = vadd.f32 %v4294, %v4519
  %v4631 = vadd.f32 %v4295, %v4519
  %v4632 = vadd.f32 %v4296, %v4524
  %v4633 = vadd.f32 %v4297, %v4524
  %v4634 = vadd.f32 %v4298, %v4529
  %v4635 = vadd.f32 %v4299, %v4529
  %v4636 = vadd.f32 %v4300, %v4534
  %v4637 = vadd.f32 %v4301, %v4534
  %v4638 = vadd.f32 %v4302, %v4539
  %v4639 = vadd.f32 %v4303, %v4539
  %v4640 = vadd.f32 %v4304, %v4544
  %v4641 = vadd.f32 %v4305, %v4544
  %v4642 = vadd.f32 %v4306, %v4549
  %v4643 = vadd.f32 %v4307, %v4549
  %v4644 = vadd.f32 %v4308, %v4554
  %v4645 = vadd.f32 %v4309, %v4554
  %v4646 = vadd.f32 %v4310, %v4559
  %v4647 = vadd.f32 %v4311, %v4559
  %v4648 = vadd.f32 %v4312, %v4564
  %v4649 = vadd.f32 %v4313, %v4564
  %v4650 = vld [vmem:[%s2] sm:$0xff]
  %v4651 = vld [vmem:[%s2 + $0x8] sm:$0xff]
  %v4652 = vld [vmem:[%s2 + $0x10] sm:$0xff]
  %v4653 = vld [vmem:[%s2 + $0x18] sm:$0xff]
  %v4654 = vld [vmem:[%s2 + $0x20] sm:$0xff]
  %v4655 = vld [vmem:[%s2 + $0x28] sm:$0xff]
  %v4656 = vld [vmem:[%s2 + $0x30] sm:$0xff]
  %v4657 = vld [vmem:[%s2 + $0x38] sm:$0xff]
  %v4658 = vld [vmem:[%s2 + $0x40] sm:$0xff]
  %v4659 = vld [vmem:[%s2 + $0x48] sm:$0xff]
  %v4660 = vld [vmem:[%s2 + $0x50] sm:$0xff]
  %v4661 = vld [vmem:[%s2 + $0x58] sm:$0xff]
  %v4662 = vld [vmem:[%s2 + $0x60] sm:$0xff]
  %v4663 = vld [vmem:[%s2 + $0x68] sm:$0xff]
  %v4664 = vld [vmem:[%s2 + $0x70] sm:$0xff]
  %v4665 = vld [vmem:[%s2 + $0x78] sm:$0xff]
  %v4666 = vld [vmem:[%s2 + $0x80] sm:$0xff]
  %v4667 = vld [vmem:[%s2 + $0x88] sm:$0xff]
  %v4668 = vld [vmem:[%s2 + $0x90] sm:$0xff]
  %v4669 = vld [vmem:[%s2 + $0x98] sm:$0xff]
  %v4670 = vld [vmem:[%s2 + $0xa0] sm:$0xff]
  %v4671 = vld [vmem:[%s2 + $0xa8] sm:$0xff]
  %v4672 = vld [vmem:[%s2 + $0xb0] sm:$0xff]
  %v4673 = vld [vmem:[%s2 + $0xb8] sm:$0xff]
  %v4674 = vld [vmem:[%s2 + $0xc0] sm:$0xff]
  %v4675 = vld [vmem:[%s2 + $0xc8] sm:$0xff]
  %v4676 = vld [vmem:[%s2 + $0xd0] sm:$0xff]
  %v4677 = vld [vmem:[%s2 + $0xd8] sm:$0xff]
  %v4678 = vld [vmem:[%s2 + $0xe0] sm:$0xff]
  %v4679 = vld [vmem:[%s2 + $0xe8] sm:$0xff]
  %v4680 = vld [vmem:[%s2 + $0xf0] sm:$0xff]
  %v4681 = vld [vmem:[%s2 + $0xf8] sm:$0xff]
  %v4682 = vld [vmem:[%s2 + $0x100] sm:$0xff]
  %v4683 = vld [vmem:[%s2 + $0x108] sm:$0xff]
  %v4684 = vld [vmem:[%s2 + $0x110] sm:$0xff]
  %v4685 = vld [vmem:[%s2 + $0x118] sm:$0xff]
  %v4686 = vld [vmem:[%s2 + $0x120] sm:$0xff]
  %v4687 = vld [vmem:[%s2 + $0x128] sm:$0xff]
  %v4688 = vld [vmem:[%s2 + $0x130] sm:$0xff]
  %v4689 = vld [vmem:[%s2 + $0x138] sm:$0xff]
  %v4690 = vld [vmem:[%s2 + $0x140] sm:$0xff]
  %v4691 = vld [vmem:[%s2 + $0x148] sm:$0xff]
  %v4692 = vld [vmem:[%s2 + $0x150] sm:$0xff]
  %v4693 = vld [vmem:[%s2 + $0x158] sm:$0xff]
  %v4694 = vld [vmem:[%s2 + $0x160] sm:$0xff]
  %v4695 = vld [vmem:[%s2 + $0x168] sm:$0xff]
  %v4696 = vld [vmem:[%s2 + $0x170] sm:$0xff]
  %v4697 = vld [vmem:[%s2 + $0x178] sm:$0xff]
  %v4698 = vld [vmem:[%s2 + $0x180] sm:$0xff]
  %v4699 = vld [vmem:[%s2 + $0x188] sm:$0xff]
  %v4700 = vld [vmem:[%s2 + $0x190] sm:$0xff]
  %v4701 = vld [vmem:[%s2 + $0x198] sm:$0xff]
  %v4702 = vld [vmem:[%s2 + $0x1a0] sm:$0xff]
  %v4703 = vld [vmem:[%s2 + $0x1a8] sm:$0xff]
  %v4704 = vld [vmem:[%s2 + $0x1b0] sm:$0xff]
  %v4705 = vld [vmem:[%s2 + $0x1b8] sm:$0xff]
  %v4706 = vld [vmem:[%s2 + $0x1c0] sm:$0xff]
  %v4707 = vld [vmem:[%s2 + $0x1c8] sm:$0xff]
  %v4708 = vld [vmem:[%s2 + $0x1d0] sm:$0xff]
  %v4709 = vld [vmem:[%s2 + $0x1d8] sm:$0xff]
  %v4710 = vld [vmem:[%s2 + $0x1e0] sm:$0xff]
  %v4711 = vld [vmem:[%s2 + $0x1e8] sm:$0xff]
  %v4712 = vld [vmem:[%s2 + $0x1f0] sm:$0xff]
  %v4713 = vld [vmem:[%s2 + $0x1f8] sm:$0xff]
  %v4714 = vld [vmem:[%s2 + $0x200] sm:$0xff]
  %v4715 = vld [vmem:[%s2 + $0x208] sm:$0xff]
  %v4716 = vld [vmem:[%s2 + $0x210] sm:$0xff]
  %v4717 = vld [vmem:[%s2 + $0x218] sm:$0xff]
  %v4718 = vld [vmem:[%s2 + $0x220] sm:$0xff]
  %v4719 = vld [vmem:[%s2 + $0x228] sm:$0xff]
  %v4720 = vld [vmem:[%s2 + $0x230] sm:$0xff]
  %v4721 = vld [vmem:[%s2 + $0x238] sm:$0xff]
  %v4722 = vld [vmem:[%s2 + $0x240] sm:$0xff]
  %v4723 = vld [vmem:[%s2 + $0x248] sm:$0xff]
  %v4724 = vld [vmem:[%s2 + $0x250] sm:$0xff]
  %v4725 = vld [vmem:[%s2 + $0x258] sm:$0xff]
  %v4726 = vld [vmem:[%s2 + $0x260] sm:$0xff]
  %v4727 = vld [vmem:[%s2 + $0x268] sm:$0xff]
  %v4728 = vld [vmem:[%s2 + $0x270] sm:$0xff]
  %v4729 = vld [vmem:[%s2 + $0x278] sm:$0xff]
  %v4730 = vld [vmem:[%s2 + $0x280] sm:$0xff]
  %v4731 = vld [vmem:[%s2 + $0x288] sm:$0xff]
  %v4732 = vld [vmem:[%s2 + $0x290] sm:$0xff]
  %v4733 = vld [vmem:[%s2 + $0x298] sm:$0xff]
  %v4734 = vadd.f32 %v4650, %v4566
  %v4735 = vadd.f32 %v4651, %v4567
  %v4736 = vadd.f32 %v4652, %v4568
  %v4737 = vadd.f32 %v4653, %v4569
  %v4738 = vadd.f32 %v4654, %v4570
  %v4739 = vadd.f32 %v4655, %v4571
  %v4740 = vadd.f32 %v4656, %v4572
  %v4741 = vadd.f32 %v4657, %v4573
  %v4742 = vadd.f32 %v4658, %v4574
  %v4743 = vadd.f32 %v4659, %v4575
  %v4744 = vadd.f32 %v4660, %v4576
  %v4745 = vadd.f32 %v4661, %v4577
  %v4746 = vadd.f32 %v4662, %v4578
  %v4747 = vadd.f32 %v4663, %v4579
  %v4748 = vadd.f32 %v4664, %v4580
  %v4749 = vadd.f32 %v4665, %v4581
  %v4750 = vadd.f32 %v4666, %v4582
  %v4751 = vadd.f32 %v4667, %v4583
  %v4752 = vadd.f32 %v4668, %v4584
  %v4753 = vadd.f32 %v4669, %v4585
  %v4754 = vadd.f32 %v4670, %v4586
  %v4755 = vadd.f32 %v4671, %v4587
  %v4756 = vadd.f32 %v4672, %v4588
  %v4757 = vadd.f32 %v4673, %v4589
  %v4758 = vadd.f32 %v4674, %v4590
  %v4759 = vadd.f32 %v4675, %v4591
  %v4760 = vadd.f32 %v4676, %v4592
  %v4761 = vadd.f32 %v4677, %v4593
  %v4762 = vadd.f32 %v4678, %v4594
  %v4763 = vadd.f32 %v4679, %v4595
  %v4764 = vadd.f32 %v4680, %v4596
  %v4765 = vadd.f32 %v4681, %v4597
  %v4766 = vadd.f32 %v4682, %v4598
  %v4767 = vadd.f32 %v4683, %v4599
  %v4768 = vadd.f32 %v4684, %v4600
  %v4769 = vadd.f32 %v4685, %v4601
  %v4770 = vadd.f32 %v4686, %v4602
  %v4771 = vadd.f32 %v4687, %v4603
  %v4772 = vadd.f32 %v4688, %v4604
  %v4773 = vadd.f32 %v4689, %v4605
  %v4774 = vadd.f32 %v4690, %v4606
  %v4775 = vadd.f32 %v4691, %v4607
  %v4776 = vadd.f32 %v4692, %v4608
  %v4777 = vadd.f32 %v4693, %v4609
  %v4778 = vadd.f32 %v4694, %v4610
  %v4779 = vadd.f32 %v4695, %v4611
  %v4780 = vadd.f32 %v4696, %v4612
  %v4781 = vadd.f32 %v4697, %v4613
  %v4782 = vadd.f32 %v4698, %v4614
  %v4783 = vadd.f32 %v4699, %v4615
  %v4784 = vadd.f32 %v4700, %v4616
  %v4785 = vadd.f32 %v4701, %v4617
  %v4786 = vadd.f32 %v4702, %v4618
  %v4787 = vadd.f32 %v4703, %v4619
  %v4788 = vadd.f32 %v4704, %v4620
  %v4789 = vadd.f32 %v4705, %v4621
  %v4790 = vadd.f32 %v4706, %v4622
  %v4791 = vadd.f32 %v4707, %v4623
  %v4792 = vadd.f32 %v4708, %v4624
  %v4793 = vadd.f32 %v4709, %v4625
  %v4794 = vadd.f32 %v4710, %v4626
  %v4795 = vadd.f32 %v4711, %v4627
  %v4796 = vadd.f32 %v4712, %v4628
  %v4797 = vadd.f32 %v4713, %v4629
  %v4798 = vadd.f32 %v4714, %v4630
  %v4799 = vadd.f32 %v4715, %v4631
  %v4800 = vadd.f32 %v4716, %v4632
  %v4801 = vadd.f32 %v4717, %v4633
  %v4802 = vadd.f32 %v4718, %v4634
  %v4803 = vadd.f32 %v4719, %v4635
  %v4804 = vadd.f32 %v4720, %v4636
  %v4805 = vadd.f32 %v4721, %v4637
  %v4806 = vadd.f32 %v4722, %v4638
  %v4807 = vadd.f32 %v4723, %v4639
  %v4808 = vadd.f32 %v4724, %v4640
  %v4809 = vadd.f32 %v4725, %v4641
  %v4810 = vadd.f32 %v4726, %v4642
  %v4811 = vadd.f32 %v4727, %v4643
  %v4812 = vadd.f32 %v4728, %v4644
  %v4813 = vadd.f32 %v4729, %v4645
  %v4814 = vadd.f32 %v4730, %v4646
  %v4815 = vadd.f32 %v4731, %v4647
  %v4816 = vadd.f32 %v4732, %v4648
  %v4817 = vadd.f32 %v4733, %v4649
  %v4818 = vmax.f32 %v4734, 0.0
  %v4819 = vmax.f32 %v4735, 0.0
  %v4820 = vmax.f32 %v4736, 0.0
  %v4821 = vmax.f32 %v4737, 0.0
  %v4822 = vmax.f32 %v4738, 0.0
  %v4823 = vmax.f32 %v4739, 0.0
  %v4824 = vmax.f32 %v4740, 0.0
  %v4825 = vmax.f32 %v4741, 0.0
  %v4826 = vmax.f32 %v4742, 0.0
  %v4827 = vmax.f32 %v4743, 0.0
  %v4828 = vmax.f32 %v4744, 0.0
  %v4829 = vmax.f32 %v4745, 0.0
  %v4830 = vmax.f32 %v4746, 0.0
  %v4831 = vmax.f32 %v4747, 0.0
  %v4832 = vmax.f32 %v4748, 0.0
  %v4833 = vmax.f32 %v4749, 0.0
  %v4834 = vmax.f32 %v4750, 0.0
  %v4835 = vmax.f32 %v4751, 0.0
  %v4836 = vmax.f32 %v4752, 0.0
  %v4837 = vmax.f32 %v4753, 0.0
  %v4838 = vmax.f32 %v4754, 0.0
  %v4839 = vmax.f32 %v4755, 0.0
  %v4840 = vmax.f32 %v4756, 0.0
  %v4841 = vmax.f32 %v4757, 0.0
  %v4842 = vmax.f32 %v4758, 0.0
  %v4843 = vmax.f32 %v4759, 0.0
  %v4844 = vmax.f32 %v4760, 0.0
  %v4845 = vmax.f32 %v4761, 0.0
  %v4846 = vmax.f32 %v4762, 0.0
  %v4847 = vmax.f32 %v4763, 0.0
  %v4848 = vmax.f32 %v4764, 0.0
  %v4849 = vmax.f32 %v4765, 0.0
  %v4850 = vmax.f32 %v4766, 0.0
  %v4851 = vmax.f32 %v4767, 0.0
  %v4852 = vmax.f32 %v4768, 0.0
  %v4853 = vmax.f32 %v4769, 0.0
  %v4854 = vmax.f32 %v4770, 0.0
  %v4855 = vmax.f32 %v4771, 0.0
  %v4856 = vmax.f32 %v4772, 0.0
  %v4857 = vmax.f32 %v4773, 0.0
  %v4858 = vmax.f32 %v4774, 0.0
  %v4859 = vmax.f32 %v4775, 0.0
  %v4860 = vmax.f32 %v4776, 0.0
  %v4861 = vmax.f32 %v4777, 0.0
  %v4862 = vmax.f32 %v4778, 0.0
  %v4863 = vmax.f32 %v4779, 0.0
  %v4864 = vmax.f32 %v4780, 0.0
  %v4865 = vmax.f32 %v4781, 0.0
  %v4866 = vmax.f32 %v4782, 0.0
  %v4867 = vmax.f32 %v4783, 0.0
  %v4868 = vmax.f32 %v4784, 0.0
  %v4869 = vmax.f32 %v4785, 0.0
  %v4870 = vmax.f32 %v4786, 0.0
  %v4871 = vmax.f32 %v4787, 0.0
  %v4872 = vmax.f32 %v4788, 0.0
  %v4873 = vmax.f32 %v4789, 0.0
  %v4874 = vmax.f32 %v4790, 0.0
  %v4875 = vmax.f32 %v4791, 0.0
  %v4876 = vmax.f32 %v4792, 0.0
  %v4877 = vmax.f32 %v4793, 0.0
  %v4878 = vmax.f32 %v4794, 0.0
  %v4879 = vmax.f32 %v4795, 0.0
  %v4880 = vmax.f32 %v4796, 0.0
  %v4881 = vmax.f32 %v4797, 0.0
  %v4882 = vmax.f32 %v4798, 0.0
  %v4883 = vmax.f32 %v4799, 0.0
  %v4884 = vmax.f32 %v4800, 0.0
  %v4885 = vmax.f32 %v4801, 0.0
  %v4886 = vmax.f32 %v4802, 0.0
  %v4887 = vmax.f32 %v4803, 0.0
  %v4888 = vmax.f32 %v4804, 0.0
  %v4889 = vmax.f32 %v4805, 0.0
  %v4890 = vmax.f32 %v4806, 0.0
  %v4891 = vmax.f32 %v4807, 0.0
  %v4892 = vmax.f32 %v4808, 0.0
  %v4893 = vmax.f32 %v4809, 0.0
  %v4894 = vmax.f32 %v4810, 0.0
  %v4895 = vmax.f32 %v4811, 0.0
  %v4896 = vmax.f32 %v4812, 0.0
  %v4897 = vmax.f32 %v4813, 0.0
  %v4898 = vmax.f32 %v4814, 0.0
  %v4899 = vmax.f32 %v4815, 0.0
  %v4900 = vmax.f32 %v4816, 0.0
  %v4901 = vmax.f32 %v4817, 0.0
  %s4902 = smul.u32 4, 42
  %s4903 = smul.u32 %s4902, 3
  %s4904 = sshll.u32 %s4903, 4
  %4905 = dma.done [#allocation3], %s4904
  %v4906 = vld [vmem:[#allocation2] sm:$0xff]
  %v4907 = vld [vmem:[#allocation2 + $0x8] sm:$0xf]
  %v4908 = vld [vmem:[#allocation2 + $0xc] sm:$0xff]
  %v4909 = vld [vmem:[#allocation2 + $0x14] sm:$0xf]
  %v4910 = vld [vmem:[#allocation2 + $0x18] sm:$0xff]
  %v4911 = vld [vmem:[#allocation2 + $0x20] sm:$0xf]
  %v4912 = vld [vmem:[#allocation2 + $0x24] sm:$0xff]
  %v4913 = vld [vmem:[#allocation2 + $0x2c] sm:$0xf]
  %v4914 = vld [vmem:[#allocation2 + $0x30] sm:$0xff]
  %v4915 = vld [vmem:[#allocation2 + $0x38] sm:$0xf]
  %v4916 = vld [vmem:[#allocation2 + $0x3c] sm:$0xff]
  %v4917 = vld [vmem:[#allocation2 + $0x44] sm:$0xf]
  %v4918 = vld [vmem:[#allocation2 + $0x48] sm:$0xff]
  %v4919 = vld [vmem:[#allocation2 + $0x50] sm:$0xf]
  %v4920 = vld [vmem:[#allocation2 + $0x54] sm:$0xff]
  %v4921 = vld [vmem:[#allocation2 + $0x5c] sm:$0xf]
  %v4922 = vld [vmem:[#allocation2 + $0x60] sm:$0xff]
  %v4923 = vld [vmem:[#allocation2 + $0x68] sm:$0xf]
  %v4924 = vld [vmem:[#allocation2 + $0x6c] sm:$0xff]
  %v4925 = vld [vmem:[#allocation2 + $0x74] sm:$0xf]
  %v4926 = vld [vmem:[#allocation2 + $0x78] sm:$0xff]
  %v4927 = vld [vmem:[#allocation2 + $0x80] sm:$0xf]
  %v4928 = vld [vmem:[#allocation2 + $0x84] sm:$0xff]
  %v4929 = vld [vmem:[#allocation2 + $0x8c] sm:$0xf]
  %v4930 = vld [vmem:[#allocation2 + $0x90] sm:$0xff]
  %v4931 = vld [vmem:[#allocation2 + $0x98] sm:$0xf]
  %v4932 = vld [vmem:[#allocation2 + $0x9c] sm:$0xff]
  %v4933 = vld [vmem:[#allocation2 + $0xa4] sm:$0xf]
  %v4934 = vld [vmem:[#allocation2 + $0xa8] sm:$0xff]
  %v4935 = vld [vmem:[#allocation2 + $0xb0] sm:$0xf]
  %v4936 = vld [vmem:[#allocation2 + $0xb4] sm:$0xff]
  %v4937 = vld [vmem:[#allocation2 + $0xbc] sm:$0xf]
  %v4938 = vld [vmem:[#allocation2 + $0xc0] sm:$0xff]
  %v4939 = vld [vmem:[#allocation2 + $0xc8] sm:$0xf]
  %v4940 = vld [vmem:[#allocation2 + $0xcc] sm:$0xff]
  %v4941 = vld [vmem:[#allocation2 + $0xd4] sm:$0xf]
  %v4942 = vld [vmem:[#allocation2 + $0xd8] sm:$0xff]
  %v4943 = vld [vmem:[#allocation2 + $0xe0] sm:$0xf]
  %v4944 = vld [vmem:[#allocation2 + $0xe4] sm:$0xff]
  %v4945 = vld [vmem:[#allocation2 + $0xec] sm:$0xf]
  %v4946 = vld [vmem:[#allocation2 + $0xf0] sm:$0xff]
  %v4947 = vld [vmem:[#allocation2 + $0xf8] sm:$0xf]
  %v4948 = vld [vmem:[#allocation2 + $0xfc] sm:$0xff]
  %v4949 = vld [vmem:[#allocation2 + $0x104] sm:$0xf]
  %v4950 = vld [vmem:[#allocation2 + $0x108] sm:$0xff]
  %v4951 = vld [vmem:[#allocation2 + $0x110] sm:$0xf]
  %v4952 = vld [vmem:[#allocation2 + $0x114] sm:$0xff]
  %v4953 = vld [vmem:[#allocation2 + $0x11c] sm:$0xf]
  %v4954 = vld [vmem:[#allocation2 + $0x120] sm:$0xff]
  %v4955 = vld [vmem:[#allocation2 + $0x128] sm:$0xf]
  %v4956 = vld [vmem:[#allocation2 + $0x12c] sm:$0xff]
  %v4957 = vld [vmem:[#allocation2 + $0x134] sm:$0xf]
  %v4958 = vld [vmem:[#allocation2 + $0x138] sm:$0xff]
  %v4959 = vld [vmem:[#allocation2 + $0x140] sm:$0xf]
  %v4960 = vld [vmem:[#allocation2 + $0x144] sm:$0xff]
  %v4961 = vld [vmem:[#allocation2 + $0x14c] sm:$0xf]
  %v4962 = vld [vmem:[#allocation2 + $0x150] sm:$0xff]
  %v4963 = vld [vmem:[#allocation2 + $0x158] sm:$0xf]
  %v4964 = vld [vmem:[#allocation2 + $0x15c] sm:$0xff]
  %v4965 = vld [vmem:[#allocation2 + $0x164] sm:$0xf]
  %v4966 = vld [vmem:[#allocation2 + $0x168] sm:$0xff]
  %v4967 = vld [vmem:[#allocation2 + $0x170] sm:$0xf]
  %v4968 = vld [vmem:[#allocation2 + $0x174] sm:$0xff]
  %v4969 = vld [vmem:[#allocation2 + $0x17c] sm:$0xf]
  %v4970 = vld [vmem:[#allocation2 + $0x180] sm:$0xff]
  %v4971 = vld [vmem:[#allocation2 + $0x188] sm:$0xf]
  %v4972 = vld [vmem:[#allocation2 + $0x18c] sm:$0xff]
  %v4973 = vld [vmem:[#allocation2 + $0x194] sm:$0xf]
  %v4974 = vld [vmem:[#allocation2 + $0x198] sm:$0xff]
  %v4975 = vld [vmem:[#allocation2 + $0x1a0] sm:$0xf]
  %v4976 = vld [vmem:[#allocation2 + $0x1a4] sm:$0xff]
  %v4977 = vld [vmem:[#allocation2 + $0x1ac] sm:$0xf]
  %v4978 = vld [vmem:[#allocation2 + $0x1b0] sm:$0xff]
  %v4979 = vld [vmem:[#allocation2 + $0x1b8] sm:$0xf]
  %v4980 = vld [vmem:[#allocation2 + $0x1bc] sm:$0xff]
  %v4981 = vld [vmem:[#allocation2 + $0x1c4] sm:$0xf]
  %v4982 = vld [vmem:[#allocation2 + $0x1c8] sm:$0xff]
  %v4983 = vld [vmem:[#allocation2 + $0x1d0] sm:$0xf]
  %v4984 = vld [vmem:[#allocation2 + $0x1d4] sm:$0xff]
  %v4985 = vld [vmem:[#allocation2 + $0x1dc] sm:$0xf]
  %v4986 = vld [vmem:[#allocation2 + $0x1e0] sm:$0xff]
  %v4987 = vld [vmem:[#allocation2 + $0x1e8] sm:$0xf]
  %v4988 = vld [vmem:[#allocation2 + $0x1ec] sm:$0xff]
  %v4989 = vld [vmem:[#allocation2 + $0x1f4] sm:$0xf]
  %v4990 = vpack.c.bf16 %v4820, %v4818
  %v4991 = vpack.c.bf16 %v4821, %v4819
  %v4992 = vpack.c.bf16 %v4824, %v4822
  %v4993 = vpack.c.bf16 %v4825, %v4823
  %v4994 = vpack.c.bf16 %v4828, %v4826
  %v4995 = vpack.c.bf16 %v4829, %v4827
  %v4996 = vpack.c.bf16 %v4832, %v4830
  %v4997 = vpack.c.bf16 %v4833, %v4831
  %v4998 = vpack.c.bf16 %v4836, %v4834
  %v4999 = vpack.c.bf16 %v4837, %v4835
  %v5000 = vpack.c.bf16 %v4840, %v4838
  %v5001 = vpack.c.bf16 %v4841, %v4839
  %v5002 = vpack.c.bf16 %v4844, %v4842
  %v5003 = vpack.c.bf16 %v4845, %v4843
  %v5004 = vpack.c.bf16 %v4848, %v4846
  %v5005 = vpack.c.bf16 %v4849, %v4847
  %v5006 = vpack.c.bf16 %v4852, %v4850
  %v5007 = vpack.c.bf16 %v4853, %v4851
  %v5008 = vpack.c.bf16 %v4856, %v4854
  %v5009 = vpack.c.bf16 %v4857, %v4855
  %v5010 = vpack.c.bf16 %v4860, %v4858
  %v5011 = vpack.c.bf16 %v4861, %v4859
  %v5012 = vpack.c.bf16 %v4864, %v4862
  %v5013 = vpack.c.bf16 %v4865, %v4863
  %v5014 = vpack.c.bf16 %v4868, %v4866
  %v5015 = vpack.c.bf16 %v4869, %v4867
  %v5016 = vpack.c.bf16 %v4872, %v4870
  %v5017 = vpack.c.bf16 %v4873, %v4871
  %v5018 = vpack.c.bf16 %v4876, %v4874
  %v5019 = vpack.c.bf16 %v4877, %v4875
  %v5020 = vpack.c.bf16 %v4880, %v4878
  %v5021 = vpack.c.bf16 %v4881, %v4879
  %v5022 = vpack.c.bf16 %v4884, %v4882
  %v5023 = vpack.c.bf16 %v4885, %v4883
  %v5024 = vpack.c.bf16 %v4888, %v4886
  %v5025 = vpack.c.bf16 %v4889, %v4887
  %v5026 = vpack.c.bf16 %v4892, %v4890
  %v5027 = vpack.c.bf16 %v4893, %v4891
  %v5028 = vpack.c.bf16 %v4896, %v4894
  %v5029 = vpack.c.bf16 %v4897, %v4895
  %v5030 = vpack.c.bf16 %v4900, %v4898
  %v5031 = vpack.c.bf16 %v4901, %v4899
  %v5116 = vunpack.c.l.b16 %v4906
  %v5117 = vunpack.c.h.b16 %v4906
  %v5118 = vunpack.c.l.b16 %v4907
  %v5119 = vunpack.c.l.b16 %v4908
  %v5120 = vunpack.c.h.b16 %v4908
  %v5121 = vunpack.c.l.b16 %v4909
  %v5122 = vunpack.c.l.b16 %v4910
  %v5123 = vunpack.c.h.b16 %v4910
  %v5124 = vunpack.c.l.b16 %v4911
  %v5125 = vunpack.c.l.b16 %v4912
  %v5126 = vunpack.c.h.b16 %v4912
  %v5127 = vunpack.c.l.b16 %v4913
  %v5128 = vunpack.c.l.b16 %v4914
  %v5129 = vunpack.c.h.b16 %v4914
  %v5130 = vunpack.c.l.b16 %v4915
  %v5131 = vunpack.c.l.b16 %v4916
  %v5132 = vunpack.c.h.b16 %v4916
  %v5133 = vunpack.c.l.b16 %v4917
  %v5134 = vunpack.c.l.b16 %v4918
  %v5135 = vunpack.c.h.b16 %v4918
  %v5136 = vunpack.c.l.b16 %v4919
  %v5137 = vunpack.c.l.b16 %v4920
  %v5138 = vunpack.c.h.b16 %v4920
  %v5139 = vunpack.c.l.b16 %v4921
  %v5140 = vunpack.c.l.b16 %v4922
  %v5141 = vunpack.c.h.b16 %v4922
  %v5142 = vunpack.c.l.b16 %v4923
  %v5143 = vunpack.c.l.b16 %v4924
  %v5144 = vunpack.c.h.b16 %v4924
  %v5145 = vunpack.c.l.b16 %v4925
  %v5146 = vunpack.c.l.b16 %v4926
  %v5147 = vunpack.c.h.b16 %v4926
  %v5148 = vunpack.c.l.b16 %v4927
  %v5149 = vunpack.c.l.b16 %v4928
  %v5150 = vunpack.c.h.b16 %v4928
  %v5151 = vunpack.c.l.b16 %v4929
  %v5152 = vunpack.c.l.b16 %v4930
  %v5153 = vunpack.c.h.b16 %v4930
  %v5154 = vunpack.c.l.b16 %v4931
  %v5155 = vunpack.c.l.b16 %v4932
  %v5156 = vunpack.c.h.b16 %v4932
  %v5157 = vunpack.c.l.b16 %v4933
  %v5158 = vunpack.c.l.b16 %v4934
  %v5159 = vunpack.c.h.b16 %v4934
  %v5160 = vunpack.c.l.b16 %v4935
  %v5161 = vunpack.c.l.b16 %v4936
  %v5162 = vunpack.c.h.b16 %v4936
  %v5163 = vunpack.c.l.b16 %v4937
  %v5164 = vunpack.c.l.b16 %v4938
  %v5165 = vunpack.c.h.b16 %v4938
  %v5166 = vunpack.c.l.b16 %v4939
  %v5167 = vunpack.c.l.b16 %v4940
  %v5168 = vunpack.c.h.b16 %v4940
  %v5169 = vunpack.c.l.b16 %v4941
  %v5170 = vunpack.c.l.b16 %v4942
  %v5171 = vunpack.c.h.b16 %v4942
  %v5172 = vunpack.c.l.b16 %v4943
  %v5173 = vunpack.c.l.b16 %v4944
  %v5174 = vunpack.c.h.b16 %v4944
  %v5175 = vunpack.c.l.b16 %v4945
  %v5176 = vunpack.c.l.b16 %v4946
  %v5177 = vunpack.c.h.b16 %v4946
  %v5178 = vunpack.c.l.b16 %v4947
  %v5179 = vunpack.c.l.b16 %v4948
  %v5180 = vunpack.c.h.b16 %v4948
  %v5181 = vunpack.c.l.b16 %v4949
  %v5182 = vunpack.c.l.b16 %v4950
  %v5183 = vunpack.c.h.b16 %v4950
  %v5184 = vunpack.c.l.b16 %v4951
  %v5185 = vunpack.c.l.b16 %v4952
  %v5186 = vunpack.c.h.b16 %v4952
  %v5187 = vunpack.c.l.b16 %v4953
  %v5188 = vunpack.c.l.b16 %v4954
  %v5189 = vunpack.c.h.b16 %v4954
  %v5190 = vunpack.c.l.b16 %v4955
  %v5191 = vunpack.c.l.b16 %v4956
  %v5192 = vunpack.c.h.b16 %v4956
  %v5193 = vunpack.c.l.b16 %v4957
  %v5194 = vunpack.c.l.b16 %v4958
  %v5195 = vunpack.c.h.b16 %v4958
  %v5196 = vunpack.c.l.b16 %v4959
  %v5197 = vunpack.c.l.b16 %v4960
  %v5198 = vunpack.c.h.b16 %v4960
  %v5199 = vunpack.c.l.b16 %v4961
  %v5200 = vunpack.c.l.b16 %v4962
  %v5201 = vunpack.c.h.b16 %v4962
  %v5202 = vunpack.c.l.b16 %v4963
  %v5203 = vunpack.c.l.b16 %v4964
  %v5204 = vunpack.c.h.b16 %v4964
  %v5205 = vunpack.c.l.b16 %v4965
  %v5206 = vunpack.c.l.b16 %v4966
  %v5207 = vunpack.c.h.b16 %v4966
  %v5208 = vunpack.c.l.b16 %v4967
  %v5209 = vunpack.c.l.b16 %v4968
  %v5210 = vunpack.c.h.b16 %v4968
  %v5211 = vunpack.c.l.b16 %v4969
  %v5212 = vunpack.c.l.b16 %v4970
  %v5213 = vunpack.c.h.b16 %v4970
  %v5214 = vunpack.c.l.b16 %v4971
  %v5215 = vunpack.c.l.b16 %v4972
  %v5216 = vunpack.c.h.b16 %v4972
  %v5217 = vunpack.c.l.b16 %v4973
  %v5218 = vunpack.c.l.b16 %v4974
  %v5219 = vunpack.c.h.b16 %v4974
  %v5220 = vunpack.c.l.b16 %v4975
  %v5221 = vunpack.c.l.b16 %v4976
  %v5222 = vunpack.c.h.b16 %v4976
  %v5223 = vunpack.c.l.b16 %v4977
  %v5224 = vunpack.c.l.b16 %v4978
  %v5225 = vunpack.c.h.b16 %v4978
  %v5226 = vunpack.c.l.b16 %v4979
  %v5227 = vunpack.c.l.b16 %v4980
  %v5228 = vunpack.c.h.b16 %v4980
  %v5229 = vunpack.c.l.b16 %v4981
  %v5230 = vunpack.c.l.b16 %v4982
  %v5231 = vunpack.c.h.b16 %v4982
  %v5232 = vunpack.c.l.b16 %v4983
  %v5233 = vunpack.c.l.b16 %v4984
  %v5234 = vunpack.c.h.b16 %v4984
  %v5235 = vunpack.c.l.b16 %v4985
  %v5236 = vunpack.c.l.b16 %v4986
  %v5237 = vunpack.c.h.b16 %v4986
  %v5238 = vunpack.c.l.b16 %v4987
  %v5239 = vunpack.c.l.b16 %v4988
  %v5240 = vunpack.c.h.b16 %v4988
  %v5241 = vunpack.c.l.b16 %v4989
  %v5242 = vpack.c.b16 %v5119, %v5116
  %v5243 = vpack.c.b16 %v5120, %v5117
  %v5244 = vpack.c.b16 %v5121, %v5118
  %v5245 = vpack.c.b16 %v5125, %v5122
  %v5246 = vpack.c.b16 %v5126, %v5123
  %v5247 = vpack.c.b16 %v5127, %v5124
  %v5248 = vpack.c.b16 %v5131, %v5128
  %v5249 = vpack.c.b16 %v5132, %v5129
  %v5250 = vpack.c.b16 %v5133, %v5130
  %v5251 = vpack.c.b16 %v5137, %v5134
  %v5252 = vpack.c.b16 %v5138, %v5135
  %v5253 = vpack.c.b16 %v5139, %v5136
  %v5254 = vpack.c.b16 %v5143, %v5140
  %v5255 = vpack.c.b16 %v5144, %v5141
  %v5256 = vpack.c.b16 %v5145, %v5142
  %v5257 = vpack.c.b16 %v5149, %v5146
  %v5258 = vpack.c.b16 %v5150, %v5147
  %v5259 = vpack.c.b16 %v5151, %v5148
  %v5260 = vpack.c.b16 %v5155, %v5152
  %v5261 = vpack.c.b16 %v5156, %v5153
  %v5262 = vpack.c.b16 %v5157, %v5154
  %v5263 = vpack.c.b16 %v5161, %v5158
  %v5264 = vpack.c.b16 %v5162, %v5159
  %v5265 = vpack.c.b16 %v5163, %v5160
  %v5266 = vpack.c.b16 %v5167, %v5164
  %v5267 = vpack.c.b16 %v5168, %v5165
  %v5268 = vpack.c.b16 %v5169, %v5166
  %v5269 = vpack.c.b16 %v5173, %v5170
  %v5270 = vpack.c.b16 %v5174, %v5171
  %v5271 = vpack.c.b16 %v5175, %v5172
  %v5272 = vpack.c.b16 %v5179, %v5176
  %v5273 = vpack.c.b16 %v5180, %v5177
  %v5274 = vpack.c.b16 %v5181, %v5178
  %v5275 = vpack.c.b16 %v5185, %v5182
  %v5276 = vpack.c.b16 %v5186, %v5183
  %v5277 = vpack.c.b16 %v5187, %v5184
  %v5278 = vpack.c.b16 %v5191, %v5188
  %v5279 = vpack.c.b16 %v5192, %v5189
  %v5280 = vpack.c.b16 %v5193, %v5190
  %v5281 = vpack.c.b16 %v5197, %v5194
  %v5282 = vpack.c.b16 %v5198, %v5195
  %v5283 = vpack.c.b16 %v5199, %v5196
  %v5284 = vpack.c.b16 %v5203, %v5200
  %v5285 = vpack.c.b16 %v5204, %v5201
  %v5286 = vpack.c.b16 %v5205, %v5202
  %v5287 = vpack.c.b16 %v5209, %v5206
  %v5288 = vpack.c.b16 %v5210, %v5207
  %v5289 = vpack.c.b16 %v5211, %v5208
  %v5290 = vpack.c.b16 %v5215, %v5212
  %v5291 = vpack.c.b16 %v5216, %v5213
  %v5292 = vpack.c.b16 %v5217, %v5214
  %v5293 = vpack.c.b16 %v5221, %v5218
  %v5294 = vpack.c.b16 %v5222, %v5219
  %v5295 = vpack.c.b16 %v5223, %v5220
  %v5296 = vpack.c.b16 %v5227, %v5224
  %v5297 = vpack.c.b16 %v5228, %v5225
  %v5298 = vpack.c.b16 %v5229, %v5226
  %v5299 = vpack.c.b16 %v5233, %v5230
  %v5300 = vpack.c.b16 %v5234, %v5231
  %v5301 = vpack.c.b16 %v5235, %v5232
  %v5302 = vpack.c.b16 %v5239, %v5236
  %v5303 = vpack.c.b16 %v5240, %v5237
  %v5304 = vpack.c.b16 %v5241, %v5238
  %v5348 = vsel %vm2137, %v5244, 0
  %v5351 = vsel %vm2137, %v5247, 0
  %v5354 = vsel %vm2137, %v5250, 0
  %v5357 = vsel %vm2137, %v5253, 0
  %v5360 = vsel %vm2137, %v5256, 0
  %v5363 = vsel %vm2137, %v5259, 0
  %v5366 = vsel %vm2137, %v5262, 0
  %v5369 = vsel %vm2137, %v5265, 0
  %v5372 = vsel %vm2137, %v5268, 0
  %v5375 = vsel %vm2137, %v5271, 0
  %v5378 = vsel %vm2137, %v5274, 0
  %v5381 = vsel %vm2137, %v5277, 0
  %v5384 = vsel %vm2137, %v5280, 0
  %v5387 = vsel %vm2137, %v5283, 0
  %v5390 = vsel %vm2137, %v5286, 0
  %v5393 = vsel %vm2137, %v5289, 0
  %v5396 = vsel %vm2137, %v5292, 0
  %v5399 = vsel %vm2137, %v5295, 0
  %v5402 = vsel %vm2137, %v5298, 0
  %v5405 = vsel %vm2137, %v5301, 0
  %v5408 = vsel %vm2137, %v5304, 0
  %5410 = vmatpush.bf16.msra.mxu0 %v5004
  %5411 = vmatpush.bf16.msra.mxu0 %v5002
  %5412 = vmatpush.bf16.msra.mxu0 %v5000
  %5413 = vmatpush.bf16.msra.mxu0 %v4998
  %5414 = vmatpush.bf16.msra.mxu0 %v4996
  %5415 = vmatpush.bf16.msra.mxu0 %v4994
  %5416 = vmatpush.bf16.msra.mxu0 %v4992
  %5417 = vmatpush.bf16.msra.mxu0 %v4990
  %5418 = vmatmul.bf16.gmra.mxu0 %v5242
  %v5419 = vpop.f32.mrf.mxu0
  %v5420 = vadd.f32 0.0, %v5419
  %v5421 = vpop.f32.mrf.mxu0
  %v5422 = vadd.f32 0.0, %v5421
  %5423 = vmatmul.bf16.gmra.mxu0 %v5245
  %v5424 = vpop.f32.mrf.mxu0
  %v5425 = vadd.f32 0.0, %v5424
  %v5426 = vpop.f32.mrf.mxu0
  %v5427 = vadd.f32 0.0, %v5426
  %5428 = vmatmul.bf16.gmra.mxu0 %v5248
  %v5429 = vpop.f32.mrf.mxu0
  %v5430 = vadd.f32 0.0, %v5429
  %v5431 = vpop.f32.mrf.mxu0
  %v5432 = vadd.f32 0.0, %v5431
  %5433 = vmatmul.bf16.gmra.mxu0 %v5251
  %v5434 = vpop.f32.mrf.mxu0
  %v5435 = vadd.f32 0.0, %v5434
  %v5436 = vpop.f32.mrf.mxu0
  %v5437 = vadd.f32 0.0, %v5436
  %5438 = vmatmul.bf16.gmra.mxu0 %v5254
  %v5439 = vpop.f32.mrf.mxu0
  %v5440 = vadd.f32 0.0, %v5439
  %v5441 = vpop.f32.mrf.mxu0
  %v5442 = vadd.f32 0.0, %v5441
  %5443 = vmatmul.bf16.gmra.mxu0 %v5257
  %v5444 = vpop.f32.mrf.mxu0
  %v5445 = vadd.f32 0.0, %v5444
  %v5446 = vpop.f32.mrf.mxu0
  %v5447 = vadd.f32 0.0, %v5446
  %5448 = vmatmul.bf16.gmra.mxu0 %v5260
  %v5449 = vpop.f32.mrf.mxu0
  %v5450 = vadd.f32 0.0, %v5449
  %v5451 = vpop.f32.mrf.mxu0
  %v5452 = vadd.f32 0.0, %v5451
  %5453 = vmatmul.bf16.gmra.mxu0 %v5263
  %v5454 = vpop.f32.mrf.mxu0
  %v5455 = vadd.f32 0.0, %v5454
  %v5456 = vpop.f32.mrf.mxu0
  %v5457 = vadd.f32 0.0, %v5456
  %5458 = vmatmul.bf16.gmra.mxu0 %v5266
  %v5459 = vpop.f32.mrf.mxu0
  %v5460 = vadd.f32 0.0, %v5459
  %v5461 = vpop.f32.mrf.mxu0
  %v5462 = vadd.f32 0.0, %v5461
  %5463 = vmatmul.bf16.gmra.mxu0 %v5269
  %v5464 = vpop.f32.mrf.mxu0
  %v5465 = vadd.f32 0.0, %v5464
  %v5466 = vpop.f32.mrf.mxu0
  %v5467 = vadd.f32 0.0, %v5466
  %5468 = vmatmul.bf16.gmra.mxu0 %v5272
  %v5469 = vpop.f32.mrf.mxu0
  %v5470 = vadd.f32 0.0, %v5469
  %v5471 = vpop.f32.mrf.mxu0
  %v5472 = vadd.f32 0.0, %v5471
  %5473 = vmatmul.bf16.gmra.mxu0 %v5275
  %v5474 = vpop.f32.mrf.mxu0
  %v5475 = vadd.f32 0.0, %v5474
  %v5476 = vpop.f32.mrf.mxu0
  %v5477 = vadd.f32 0.0, %v5476
  %5478 = vmatmul.bf16.gmra.mxu0 %v5278
  %v5479 = vpop.f32.mrf.mxu0
  %v5480 = vadd.f32 0.0, %v5479
  %v5481 = vpop.f32.mrf.mxu0
  %v5482 = vadd.f32 0.0, %v5481
  %5483 = vmatmul.bf16.gmra.mxu0 %v5281
  %v5484 = vpop.f32.mrf.mxu0
  %v5485 = vadd.f32 0.0, %v5484
  %v5486 = vpop.f32.mrf.mxu0
  %v5487 = vadd.f32 0.0, %v5486
  %5488 = vmatmul.bf16.gmra.mxu0 %v5284
  %v5489 = vpop.f32.mrf.mxu0
  %v5490 = vadd.f32 0.0, %v5489
  %v5491 = vpop.f32.mrf.mxu0
  %v5492 = vadd.f32 0.0, %v5491
  %5493 = vmatmul.bf16.gmra.mxu0 %v5287
  %v5494 = vpop.f32.mrf.mxu0
  %v5495 = vadd.f32 0.0, %v5494
  %v5496 = vpop.f32.mrf.mxu0
  %v5497 = vadd.f32 0.0, %v5496
  %5498 = vmatmul.bf16.gmra.mxu0 %v5290
  %v5499 = vpop.f32.mrf.mxu0
  %v5500 = vadd.f32 0.0, %v5499
  %v5501 = vpop.f32.mrf.mxu0
  %v5502 = vadd.f32 0.0, %v5501
  %5503 = vmatmul.bf16.gmra.mxu0 %v5293
  %v5504 = vpop.f32.mrf.mxu0
  %v5505 = vadd.f32 0.0, %v5504
  %v5506 = vpop.f32.mrf.mxu0
  %v5507 = vadd.f32 0.0, %v5506
  %5508 = vmatmul.bf16.gmra.mxu0 %v5296
  %v5509 = vpop.f32.mrf.mxu0
  %v5510 = vadd.f32 0.0, %v5509
  %v5511 = vpop.f32.mrf.mxu0
  %v5512 = vadd.f32 0.0, %v5511
  %5513 = vmatmul.bf16.gmra.mxu0 %v5299
  %v5514 = vpop.f32.mrf.mxu0
  %v5515 = vadd.f32 0.0, %v5514
  %v5516 = vpop.f32.mrf.mxu0
  %v5517 = vadd.f32 0.0, %v5516
  %5518 = vmatmul.bf16.gmra.mxu0 %v5302
  %v5519 = vpop.f32.mrf.mxu0
  %v5520 = vadd.f32 0.0, %v5519
  %v5521 = vpop.f32.mrf.mxu0
  %v5522 = vadd.f32 0.0, %v5521
  %5523 = vdwg.mxu0
  %5524 = vmatpush.bf16.msra.mxu0 %v5020
  %5525 = vmatpush.bf16.msra.mxu0 %v5018
  %5526 = vmatpush.bf16.msra.mxu0 %v5016
  %5527 = vmatpush.bf16.msra.mxu0 %v5014
  %5528 = vmatpush.bf16.msra.mxu0 %v5012
  %5529 = vmatpush.bf16.msra.mxu0 %v5010
  %5530 = vmatpush.bf16.msra.mxu0 %v5008
  %5531 = vmatpush.bf16.msra.mxu0 %v5006
  %5532 = vmatmul.bf16.gmra.mxu0 %v5243
  %v5533 = vpop.f32.mrf.mxu0
  %v5534 = vadd.f32 %v5420, %v5533
  %v5535 = vpop.f32.mrf.mxu0
  %v5536 = vadd.f32 %v5422, %v5535
  %5537 = vmatmul.bf16.gmra.mxu0 %v5246
  %v5538 = vpop.f32.mrf.mxu0
  %v5539 = vadd.f32 %v5425, %v5538
  %v5540 = vpop.f32.mrf.mxu0
  %v5541 = vadd.f32 %v5427, %v5540
  %5542 = vmatmul.bf16.gmra.mxu0 %v5249
  %v5543 = vpop.f32.mrf.mxu0
  %v5544 = vadd.f32 %v5430, %v5543
  %v5545 = vpop.f32.mrf.mxu0
  %v5546 = vadd.f32 %v5432, %v5545
  %5547 = vmatmul.bf16.gmra.mxu0 %v5252
  %v5548 = vpop.f32.mrf.mxu0
  %v5549 = vadd.f32 %v5435, %v5548
  %v5550 = vpop.f32.mrf.mxu0
  %v5551 = vadd.f32 %v5437, %v5550
  %5552 = vmatmul.bf16.gmra.mxu0 %v5255
  %v5553 = vpop.f32.mrf.mxu0
  %v5554 = vadd.f32 %v5440, %v5553
  %v5555 = vpop.f32.mrf.mxu0
  %v5556 = vadd.f32 %v5442, %v5555
  %5557 = vmatmul.bf16.gmra.mxu0 %v5258
  %v5558 = vpop.f32.mrf.mxu0
  %v5559 = vadd.f32 %v5445, %v5558
  %v5560 = vpop.f32.mrf.mxu0
  %v5561 = vadd.f32 %v5447, %v5560
  %5562 = vmatmul.bf16.gmra.mxu0 %v5261
  %v5563 = vpop.f32.mrf.mxu0
  %v5564 = vadd.f32 %v5450, %v5563
  %v5565 = vpop.f32.mrf.mxu0
  %v5566 = vadd.f32 %v5452, %v5565
  %5567 = vmatmul.bf16.gmra.mxu0 %v5264
  %v5568 = vpop.f32.mrf.mxu0
  %v5569 = vadd.f32 %v5455, %v5568
  %v5570 = vpop.f32.mrf.mxu0
  %v5571 = vadd.f32 %v5457, %v5570
  %5572 = vmatmul.bf16.gmra.mxu0 %v5267
  %v5573 = vpop.f32.mrf.mxu0
  %v5574 = vadd.f32 %v5460, %v5573
  %v5575 = vpop.f32.mrf.mxu0
  %v5576 = vadd.f32 %v5462, %v5575
  %5577 = vmatmul.bf16.gmra.mxu0 %v5270
  %v5578 = vpop.f32.mrf.mxu0
  %v5579 = vadd.f32 %v5465, %v5578
  %v5580 = vpop.f32.mrf.mxu0
  %v5581 = vadd.f32 %v5467, %v5580
  %5582 = vmatmul.bf16.gmra.mxu0 %v5273
  %v5583 = vpop.f32.mrf.mxu0
  %v5584 = vadd.f32 %v5470, %v5583
  %v5585 = vpop.f32.mrf.mxu0
  %v5586 = vadd.f32 %v5472, %v5585
  %5587 = vmatmul.bf16.gmra.mxu0 %v5276
  %v5588 = vpop.f32.mrf.mxu0
  %v5589 = vadd.f32 %v5475, %v5588
  %v5590 = vpop.f32.mrf.mxu0
  %v5591 = vadd.f32 %v5477, %v5590
  %5592 = vmatmul.bf16.gmra.mxu0 %v5279
  %v5593 = vpop.f32.mrf.mxu0
  %v5594 = vadd.f32 %v5480, %v5593
  %v5595 = vpop.f32.mrf.mxu0
  %v5596 = vadd.f32 %v5482, %v5595
  %5597 = vmatmul.bf16.gmra.mxu0 %v5282
  %v5598 = vpop.f32.mrf.mxu0
  %v5599 = vadd.f32 %v5485, %v5598
  %v5600 = vpop.f32.mrf.mxu0
  %v5601 = vadd.f32 %v5487, %v5600
  %5602 = vmatmul.bf16.gmra.mxu0 %v5285
  %v5603 = vpop.f32.mrf.mxu0
  %v5604 = vadd.f32 %v5490, %v5603
  %v5605 = vpop.f32.mrf.mxu0
  %v5606 = vadd.f32 %v5492, %v5605
  %5607 = vmatmul.bf16.gmra.mxu0 %v5288
  %v5608 = vpop.f32.mrf.mxu0
  %v5609 = vadd.f32 %v5495, %v5608
  %v5610 = vpop.f32.mrf.mxu0
  %v5611 = vadd.f32 %v5497, %v5610
  %5612 = vmatmul.bf16.gmra.mxu0 %v5291
  %v5613 = vpop.f32.mrf.mxu0
  %v5614 = vadd.f32 %v5500, %v5613
  %v5615 = vpop.f32.mrf.mxu0
  %v5616 = vadd.f32 %v5502, %v5615
  %5617 = vmatmul.bf16.gmra.mxu0 %v5294
  %v5618 = vpop.f32.mrf.mxu0
  %v5619 = vadd.f32 %v5505, %v5618
  %v5620 = vpop.f32.mrf.mxu0
  %v5621 = vadd.f32 %v5507, %v5620
  %5622 = vmatmul.bf16.gmra.mxu0 %v5297
  %v5623 = vpop.f32.mrf.mxu0
  %v5624 = vadd.f32 %v5510, %v5623
  %v5625 = vpop.f32.mrf.mxu0
  %v5626 = vadd.f32 %v5512, %v5625
  %5627 = vmatmul.bf16.gmra.mxu0 %v5300
  %v5628 = vpop.f32.mrf.mxu0
  %v5629 = vadd.f32 %v5515, %v5628
  %v5630 = vpop.f32.mrf.mxu0
  %v5631 = vadd.f32 %v5517, %v5630
  %5632 = vmatmul.bf16.gmra.mxu0 %v5303
  %v5633 = vpop.f32.mrf.mxu0
  %v5634 = vadd.f32 %v5520, %v5633
  %v5635 = vpop.f32.mrf.mxu0
  %v5636 = vadd.f32 %v5522, %v5635
  %5637 = vdwg.mxu0
  %5638 = vmatpush.bf16.msra.mxu0 0
  %5639 = vmatpush.bf16.msra.mxu0 0
  %5640 = vmatpush.bf16.msra.mxu0 0
  %5641 = vmatpush.bf16.msra.mxu0 %v5030
  %5642 = vmatpush.bf16.msra.mxu0 %v5028
  %5643 = vmatpush.bf16.msra.mxu0 %v5026
  %5644 = vmatpush.bf16.msra.mxu0 %v5024
  %5645 = vmatpush.bf16.msra.mxu0 %v5022
  %5646 = vmatmul.bf16.gmra.mxu0 %v5348
  %v5647 = vpop.f32.mrf.mxu0
  %v5648 = vadd.f32 %v5534, %v5647
  %v5649 = vpop.f32.mrf.mxu0
  %v5650 = vadd.f32 %v5536, %v5649
  %5651 = vmatmul.bf16.gmra.mxu0 %v5351
  %v5652 = vpop.f32.mrf.mxu0
  %v5653 = vadd.f32 %v5539, %v5652
  %v5654 = vpop.f32.mrf.mxu0
  %v5655 = vadd.f32 %v5541, %v5654
  %5656 = vmatmul.bf16.gmra.mxu0 %v5354
  %v5657 = vpop.f32.mrf.mxu0
  %v5658 = vadd.f32 %v5544, %v5657
  %v5659 = vpop.f32.mrf.mxu0
  %v5660 = vadd.f32 %v5546, %v5659
  %5661 = vmatmul.bf16.gmra.mxu0 %v5357
  %v5662 = vpop.f32.mrf.mxu0
  %v5663 = vadd.f32 %v5549, %v5662
  %v5664 = vpop.f32.mrf.mxu0
  %v5665 = vadd.f32 %v5551, %v5664
  %5666 = vmatmul.bf16.gmra.mxu0 %v5360
  %v5667 = vpop.f32.mrf.mxu0
  %v5668 = vadd.f32 %v5554, %v5667
  %v5669 = vpop.f32.mrf.mxu0
  %v5670 = vadd.f32 %v5556, %v5669
  %5671 = vmatmul.bf16.gmra.mxu0 %v5363
  %v5672 = vpop.f32.mrf.mxu0
  %v5673 = vadd.f32 %v5559, %v5672
  %v5674 = vpop.f32.mrf.mxu0
  %v5675 = vadd.f32 %v5561, %v5674
  %5676 = vmatmul.bf16.gmra.mxu0 %v5366
  %v5677 = vpop.f32.mrf.mxu0
  %v5678 = vadd.f32 %v5564, %v5677
  %v5679 = vpop.f32.mrf.mxu0
  %v5680 = vadd.f32 %v5566, %v5679
  %5681 = vmatmul.bf16.gmra.mxu0 %v5369
  %v5682 = vpop.f32.mrf.mxu0
  %v5683 = vadd.f32 %v5569, %v5682
  %v5684 = vpop.f32.mrf.mxu0
  %v5685 = vadd.f32 %v5571, %v5684
  %5686 = vmatmul.bf16.gmra.mxu0 %v5372
  %v5687 = vpop.f32.mrf.mxu0
  %v5688 = vadd.f32 %v5574, %v5687
  %v5689 = vpop.f32.mrf.mxu0
  %v5690 = vadd.f32 %v5576, %v5689
  %5691 = vmatmul.bf16.gmra.mxu0 %v5375
  %v5692 = vpop.f32.mrf.mxu0
  %v5693 = vadd.f32 %v5579, %v5692
  %v5694 = vpop.f32.mrf.mxu0
  %v5695 = vadd.f32 %v5581, %v5694
  %5696 = vmatmul.bf16.gmra.mxu0 %v5378
  %v5697 = vpop.f32.mrf.mxu0
  %v5698 = vadd.f32 %v5584, %v5697
  %v5699 = vpop.f32.mrf.mxu0
  %v5700 = vadd.f32 %v5586, %v5699
  %5701 = vmatmul.bf16.gmra.mxu0 %v5381
  %v5702 = vpop.f32.mrf.mxu0
  %v5703 = vadd.f32 %v5589, %v5702
  %v5704 = vpop.f32.mrf.mxu0
  %v5705 = vadd.f32 %v5591, %v5704
  %5706 = vmatmul.bf16.gmra.mxu0 %v5384
  %v5707 = vpop.f32.mrf.mxu0
  %v5708 = vadd.f32 %v5594, %v5707
  %v5709 = vpop.f32.mrf.mxu0
  %v5710 = vadd.f32 %v5596, %v5709
  %5711 = vmatmul.bf16.gmra.mxu0 %v5387
  %v5712 = vpop.f32.mrf.mxu0
  %v5713 = vadd.f32 %v5599, %v5712
  %v5714 = vpop.f32.mrf.mxu0
  %v5715 = vadd.f32 %v5601, %v5714
  %5716 = vmatmul.bf16.gmra.mxu0 %v5390
  %v5717 = vpop.f32.mrf.mxu0
  %v5718 = vadd.f32 %v5604, %v5717
  %v5719 = vpop.f32.mrf.mxu0
  %v5720 = vadd.f32 %v5606, %v5719
  %5721 = vmatmul.bf16.gmra.mxu0 %v5393
  %v5722 = vpop.f32.mrf.mxu0
  %v5723 = vadd.f32 %v5609, %v5722
  %v5724 = vpop.f32.mrf.mxu0
  %v5725 = vadd.f32 %v5611, %v5724
  %5726 = vmatmul.bf16.gmra.mxu0 %v5396
  %v5727 = vpop.f32.mrf.mxu0
  %v5728 = vadd.f32 %v5614, %v5727
  %v5729 = vpop.f32.mrf.mxu0
  %v5730 = vadd.f32 %v5616, %v5729
  %5731 = vmatmul.bf16.gmra.mxu0 %v5399
  %v5732 = vpop.f32.mrf.mxu0
  %v5733 = vadd.f32 %v5619, %v5732
  %v5734 = vpop.f32.mrf.mxu0
  %v5735 = vadd.f32 %v5621, %v5734
  %5736 = vmatmul.bf16.gmra.mxu0 %v5402
  %v5737 = vpop.f32.mrf.mxu0
  %v5738 = vadd.f32 %v5624, %v5737
  %v5739 = vpop.f32.mrf.mxu0
  %v5740 = vadd.f32 %v5626, %v5739
  %5741 = vmatmul.bf16.gmra.mxu0 %v5405
  %v5742 = vpop.f32.mrf.mxu0
  %v5743 = vadd.f32 %v5629, %v5742
  %v5744 = vpop.f32.mrf.mxu0
  %v5745 = vadd.f32 %v5631, %v5744
  %5746 = vmatmul.bf16.gmra.mxu0 %v5408
  %v5747 = vpop.f32.mrf.mxu0
  %v5748 = vadd.f32 %v5634, %v5747
  %v5749 = vpop.f32.mrf.mxu0
  %v5750 = vadd.f32 %v5636, %v5749
  %5751 = vdwg.mxu0
  %5752 = vmatpush.bf16.msra.mxu0 %v5005
  %5753 = vmatpush.bf16.msra.mxu0 %v5003
  %5754 = vmatpush.bf16.msra.mxu0 %v5001
  %5755 = vmatpush.bf16.msra.mxu0 %v4999
  %5756 = vmatpush.bf16.msra.mxu0 %v4997
  %5757 = vmatpush.bf16.msra.mxu0 %v4995
  %5758 = vmatpush.bf16.msra.mxu0 %v4993
  %5759 = vmatpush.bf16.msra.mxu0 %v4991
  %5760 = vmatmul.bf16.gmra.mxu0 %v5242
  %v5761 = vpop.f32.mrf.mxu0
  %v5762 = vadd.f32 0.0, %v5761
  %v5763 = vpop.f32.mrf.mxu0
  %v5764 = vadd.f32 0.0, %v5763
  %5765 = vmatmul.bf16.gmra.mxu0 %v5245
  %v5766 = vpop.f32.mrf.mxu0
  %v5767 = vadd.f32 0.0, %v5766
  %v5768 = vpop.f32.mrf.mxu0
  %v5769 = vadd.f32 0.0, %v5768
  %5770 = vmatmul.bf16.gmra.mxu0 %v5248
  %v5771 = vpop.f32.mrf.mxu0
  %v5772 = vadd.f32 0.0, %v5771
  %v5773 = vpop.f32.mrf.mxu0
  %v5774 = vadd.f32 0.0, %v5773
  %5775 = vmatmul.bf16.gmra.mxu0 %v5251
  %v5776 = vpop.f32.mrf.mxu0
  %v5777 = vadd.f32 0.0, %v5776
  %v5778 = vpop.f32.mrf.mxu0
  %v5779 = vadd.f32 0.0, %v5778
  %5780 = vmatmul.bf16.gmra.mxu0 %v5254
  %v5781 = vpop.f32.mrf.mxu0
  %v5782 = vadd.f32 0.0, %v5781
  %v5783 = vpop.f32.mrf.mxu0
  %v5784 = vadd.f32 0.0, %v5783
  %5785 = vmatmul.bf16.gmra.mxu0 %v5257
  %v5786 = vpop.f32.mrf.mxu0
  %v5787 = vadd.f32 0.0, %v5786
  %v5788 = vpop.f32.mrf.mxu0
  %v5789 = vadd.f32 0.0, %v5788
  %5790 = vmatmul.bf16.gmra.mxu0 %v5260
  %v5791 = vpop.f32.mrf.mxu0
  %v5792 = vadd.f32 0.0, %v5791
  %v5793 = vpop.f32.mrf.mxu0
  %v5794 = vadd.f32 0.0, %v5793
  %5795 = vmatmul.bf16.gmra.mxu0 %v5263
  %v5796 = vpop.f32.mrf.mxu0
  %v5797 = vadd.f32 0.0, %v5796
  %v5798 = vpop.f32.mrf.mxu0
  %v5799 = vadd.f32 0.0, %v5798
  %5800 = vmatmul.bf16.gmra.mxu0 %v5266
  %v5801 = vpop.f32.mrf.mxu0
  %v5802 = vadd.f32 0.0, %v5801
  %v5803 = vpop.f32.mrf.mxu0
  %v5804 = vadd.f32 0.0, %v5803
  %5805 = vmatmul.bf16.gmra.mxu0 %v5269
  %v5806 = vpop.f32.mrf.mxu0
  %v5807 = vadd.f32 0.0, %v5806
  %v5808 = vpop.f32.mrf.mxu0
  %v5809 = vadd.f32 0.0, %v5808
  %5810 = vmatmul.bf16.gmra.mxu0 %v5272
  %v5811 = vpop.f32.mrf.mxu0
  %v5812 = vadd.f32 0.0, %v5811
  %v5813 = vpop.f32.mrf.mxu0
  %v5814 = vadd.f32 0.0, %v5813
  %5815 = vmatmul.bf16.gmra.mxu0 %v5275
  %v5816 = vpop.f32.mrf.mxu0
  %v5817 = vadd.f32 0.0, %v5816
  %v5818 = vpop.f32.mrf.mxu0
  %v5819 = vadd.f32 0.0, %v5818
  %5820 = vmatmul.bf16.gmra.mxu0 %v5278
  %v5821 = vpop.f32.mrf.mxu0
  %v5822 = vadd.f32 0.0, %v5821
  %v5823 = vpop.f32.mrf.mxu0
  %v5824 = vadd.f32 0.0, %v5823
  %5825 = vmatmul.bf16.gmra.mxu0 %v5281
  %v5826 = vpop.f32.mrf.mxu0
  %v5827 = vadd.f32 0.0, %v5826
  %v5828 = vpop.f32.mrf.mxu0
  %v5829 = vadd.f32 0.0, %v5828
  %5830 = vmatmul.bf16.gmra.mxu0 %v5284
  %v5831 = vpop.f32.mrf.mxu0
  %v5832 = vadd.f32 0.0, %v5831
  %v5833 = vpop.f32.mrf.mxu0
  %v5834 = vadd.f32 0.0, %v5833
  %5835 = vmatmul.bf16.gmra.mxu0 %v5287
  %v5836 = vpop.f32.mrf.mxu0
  %v5837 = vadd.f32 0.0, %v5836
  %v5838 = vpop.f32.mrf.mxu0
  %v5839 = vadd.f32 0.0, %v5838
  %5840 = vmatmul.bf16.gmra.mxu0 %v5290
  %v5841 = vpop.f32.mrf.mxu0
  %v5842 = vadd.f32 0.0, %v5841
  %v5843 = vpop.f32.mrf.mxu0
  %v5844 = vadd.f32 0.0, %v5843
  %5845 = vmatmul.bf16.gmra.mxu0 %v5293
  %v5846 = vpop.f32.mrf.mxu0
  %v5847 = vadd.f32 0.0, %v5846
  %v5848 = vpop.f32.mrf.mxu0
  %v5849 = vadd.f32 0.0, %v5848
  %5850 = vmatmul.bf16.gmra.mxu0 %v5296
  %v5851 = vpop.f32.mrf.mxu0
  %v5852 = vadd.f32 0.0, %v5851
  %v5853 = vpop.f32.mrf.mxu0
  %v5854 = vadd.f32 0.0, %v5853
  %5855 = vmatmul.bf16.gmra.mxu0 %v5299
  %v5856 = vpop.f32.mrf.mxu0
  %v5857 = vadd.f32 0.0, %v5856
  %v5858 = vpop.f32.mrf.mxu0
  %v5859 = vadd.f32 0.0, %v5858
  %5860 = vmatmul.bf16.gmra.mxu0 %v5302
  %v5861 = vpop.f32.mrf.mxu0
  %v5862 = vadd.f32 0.0, %v5861
  %v5863 = vpop.f32.mrf.mxu0
  %v5864 = vadd.f32 0.0, %v5863
  %5865 = vdwg.mxu0
  %5866 = vmatpush.bf16.msra.mxu0 %v5021
  %5867 = vmatpush.bf16.msra.mxu0 %v5019
  %5868 = vmatpush.bf16.msra.mxu0 %v5017
  %5869 = vmatpush.bf16.msra.mxu0 %v5015
  %5870 = vmatpush.bf16.msra.mxu0 %v5013
  %5871 = vmatpush.bf16.msra.mxu0 %v5011
  %5872 = vmatpush.bf16.msra.mxu0 %v5009
  %5873 = vmatpush.bf16.msra.mxu0 %v5007
  %5874 = vmatmul.bf16.gmra.mxu0 %v5243
  %v5875 = vpop.f32.mrf.mxu0
  %v5876 = vadd.f32 %v5762, %v5875
  %v5877 = vpop.f32.mrf.mxu0
  %v5878 = vadd.f32 %v5764, %v5877
  %5879 = vmatmul.bf16.gmra.mxu0 %v5246
  %v5880 = vpop.f32.mrf.mxu0
  %v5881 = vadd.f32 %v5767, %v5880
  %v5882 = vpop.f32.mrf.mxu0
  %v5883 = vadd.f32 %v5769, %v5882
  %5884 = vmatmul.bf16.gmra.mxu0 %v5249
  %v5885 = vpop.f32.mrf.mxu0
  %v5886 = vadd.f32 %v5772, %v5885
  %v5887 = vpop.f32.mrf.mxu0
  %v5888 = vadd.f32 %v5774, %v5887
  %5889 = vmatmul.bf16.gmra.mxu0 %v5252
  %v5890 = vpop.f32.mrf.mxu0
  %v5891 = vadd.f32 %v5777, %v5890
  %v5892 = vpop.f32.mrf.mxu0
  %v5893 = vadd.f32 %v5779, %v5892
  %5894 = vmatmul.bf16.gmra.mxu0 %v5255
  %v5895 = vpop.f32.mrf.mxu0
  %v5896 = vadd.f32 %v5782, %v5895
  %v5897 = vpop.f32.mrf.mxu0
  %v5898 = vadd.f32 %v5784, %v5897
  %5899 = vmatmul.bf16.gmra.mxu0 %v5258
  %v5900 = vpop.f32.mrf.mxu0
  %v5901 = vadd.f32 %v5787, %v5900
  %v5902 = vpop.f32.mrf.mxu0
  %v5903 = vadd.f32 %v5789, %v5902
  %5904 = vmatmul.bf16.gmra.mxu0 %v5261
  %v5905 = vpop.f32.mrf.mxu0
  %v5906 = vadd.f32 %v5792, %v5905
  %v5907 = vpop.f32.mrf.mxu0
  %v5908 = vadd.f32 %v5794, %v5907
  %5909 = vmatmul.bf16.gmra.mxu0 %v5264
  %v5910 = vpop.f32.mrf.mxu0
  %v5911 = vadd.f32 %v5797, %v5910
  %v5912 = vpop.f32.mrf.mxu0
  %v5913 = vadd.f32 %v5799, %v5912
  %5914 = vmatmul.bf16.gmra.mxu0 %v5267
  %v5915 = vpop.f32.mrf.mxu0
  %v5916 = vadd.f32 %v5802, %v5915
  %v5917 = vpop.f32.mrf.mxu0
  %v5918 = vadd.f32 %v5804, %v5917
  %5919 = vmatmul.bf16.gmra.mxu0 %v5270
  %v5920 = vpop.f32.mrf.mxu0
  %v5921 = vadd.f32 %v5807, %v5920
  %v5922 = vpop.f32.mrf.mxu0
  %v5923 = vadd.f32 %v5809, %v5922
  %5924 = vmatmul.bf16.gmra.mxu0 %v5273
  %v5925 = vpop.f32.mrf.mxu0
  %v5926 = vadd.f32 %v5812, %v5925
  %v5927 = vpop.f32.mrf.mxu0
  %v5928 = vadd.f32 %v5814, %v5927
  %5929 = vmatmul.bf16.gmra.mxu0 %v5276
  %v5930 = vpop.f32.mrf.mxu0
  %v5931 = vadd.f32 %v5817, %v5930
  %v5932 = vpop.f32.mrf.mxu0
  %v5933 = vadd.f32 %v5819, %v5932
  %5934 = vmatmul.bf16.gmra.mxu0 %v5279
  %v5935 = vpop.f32.mrf.mxu0
  %v5936 = vadd.f32 %v5822, %v5935
  %v5937 = vpop.f32.mrf.mxu0
  %v5938 = vadd.f32 %v5824, %v5937
  %5939 = vmatmul.bf16.gmra.mxu0 %v5282
  %v5940 = vpop.f32.mrf.mxu0
  %v5941 = vadd.f32 %v5827, %v5940
  %v5942 = vpop.f32.mrf.mxu0
  %v5943 = vadd.f32 %v5829, %v5942
  %5944 = vmatmul.bf16.gmra.mxu0 %v5285
  %v5945 = vpop.f32.mrf.mxu0
  %v5946 = vadd.f32 %v5832, %v5945
  %v5947 = vpop.f32.mrf.mxu0
  %v5948 = vadd.f32 %v5834, %v5947
  %5949 = vmatmul.bf16.gmra.mxu0 %v5288
  %v5950 = vpop.f32.mrf.mxu0
  %v5951 = vadd.f32 %v5837, %v5950
  %v5952 = vpop.f32.mrf.mxu0
  %v5953 = vadd.f32 %v5839, %v5952
  %5954 = vmatmul.bf16.gmra.mxu0 %v5291
  %v5955 = vpop.f32.mrf.mxu0
  %v5956 = vadd.f32 %v5842, %v5955
  %v5957 = vpop.f32.mrf.mxu0
  %v5958 = vadd.f32 %v5844, %v5957
  %5959 = vmatmul.bf16.gmra.mxu0 %v5294
  %v5960 = vpop.f32.mrf.mxu0
  %v5961 = vadd.f32 %v5847, %v5960
  %v5962 = vpop.f32.mrf.mxu0
  %v5963 = vadd.f32 %v5849, %v5962
  %5964 = vmatmul.bf16.gmra.mxu0 %v5297
  %v5965 = vpop.f32.mrf.mxu0
  %v5966 = vadd.f32 %v5852, %v5965
  %v5967 = vpop.f32.mrf.mxu0
  %v5968 = vadd.f32 %v5854, %v5967
  %5969 = vmatmul.bf16.gmra.mxu0 %v5300
  %v5970 = vpop.f32.mrf.mxu0
  %v5971 = vadd.f32 %v5857, %v5970
  %v5972 = vpop.f32.mrf.mxu0
  %v5973 = vadd.f32 %v5859, %v5972
  %5974 = vmatmul.bf16.gmra.mxu0 %v5303
  %v5975 = vpop.f32.mrf.mxu0
  %v5976 = vadd.f32 %v5862, %v5975
  %v5977 = vpop.f32.mrf.mxu0
  %v5978 = vadd.f32 %v5864, %v5977
  %5979 = vdwg.mxu0
  %5980 = vmatpush.bf16.msra.mxu0 0
  %5981 = vmatpush.bf16.msra.mxu0 0
  %5982 = vmatpush.bf16.msra.mxu0 0
  %5983 = vmatpush.bf16.msra.mxu0 %v5031
  %5984 = vmatpush.bf16.msra.mxu0 %v5029
  %5985 = vmatpush.bf16.msra.mxu0 %v5027
  %5986 = vmatpush.bf16.msra.mxu0 %v5025
  %5987 = vmatpush.bf16.msra.mxu0 %v5023
  %5988 = vmatmul.bf16.gmra.mxu0 %v5348
  %v5989 = vpop.f32.mrf.mxu0
  %v5990 = vadd.f32 %v5876, %v5989
  %v5991 = vpop.f32.mrf.mxu0
  %v5992 = vadd.f32 %v5878, %v5991
  %5993 = vmatmul.bf16.gmra.mxu0 %v5351
  %v5994 = vpop.f32.mrf.mxu0
  %v5995 = vadd.f32 %v5881, %v5994
  %v5996 = vpop.f32.mrf.mxu0
  %v5997 = vadd.f32 %v5883, %v5996
  %5998 = vmatmul.bf16.gmra.mxu0 %v5354
  %v5999 = vpop.f32.mrf.mxu0
  %v6000 = vadd.f32 %v5886, %v5999
  %v6001 = vpop.f32.mrf.mxu0
  %v6002 = vadd.f32 %v5888, %v6001
  %6003 = vmatmul.bf16.gmra.mxu0 %v5357
  %v6004 = vpop.f32.mrf.mxu0
  %v6005 = vadd.f32 %v5891, %v6004
  %v6006 = vpop.f32.mrf.mxu0
  %v6007 = vadd.f32 %v5893, %v6006
  %6008 = vmatmul.bf16.gmra.mxu0 %v5360
  %v6009 = vpop.f32.mrf.mxu0
  %v6010 = vadd.f32 %v5896, %v6009
  %v6011 = vpop.f32.mrf.mxu0
  %v6012 = vadd.f32 %v5898, %v6011
  %6013 = vmatmul.bf16.gmra.mxu0 %v5363
  %v6014 = vpop.f32.mrf.mxu0
  %v6015 = vadd.f32 %v5901, %v6014
  %v6016 = vpop.f32.mrf.mxu0
  %v6017 = vadd.f32 %v5903, %v6016
  %6018 = vmatmul.bf16.gmra.mxu0 %v5366
  %v6019 = vpop.f32.mrf.mxu0
  %v6020 = vadd.f32 %v5906, %v6019
  %v6021 = vpop.f32.mrf.mxu0
  %v6022 = vadd.f32 %v5908, %v6021
  %6023 = vmatmul.bf16.gmra.mxu0 %v5369
  %v6024 = vpop.f32.mrf.mxu0
  %v6025 = vadd.f32 %v5911, %v6024
  %v6026 = vpop.f32.mrf.mxu0
  %v6027 = vadd.f32 %v5913, %v6026
  %6028 = vmatmul.bf16.gmra.mxu0 %v5372
  %v6029 = vpop.f32.mrf.mxu0
  %v6030 = vadd.f32 %v5916, %v6029
  %v6031 = vpop.f32.mrf.mxu0
  %v6032 = vadd.f32 %v5918, %v6031
  %6033 = vmatmul.bf16.gmra.mxu0 %v5375
  %v6034 = vpop.f32.mrf.mxu0
  %v6035 = vadd.f32 %v5921, %v6034
  %v6036 = vpop.f32.mrf.mxu0
  %v6037 = vadd.f32 %v5923, %v6036
  %6038 = vmatmul.bf16.gmra.mxu0 %v5378
  %v6039 = vpop.f32.mrf.mxu0
  %v6040 = vadd.f32 %v5926, %v6039
  %v6041 = vpop.f32.mrf.mxu0
  %v6042 = vadd.f32 %v5928, %v6041
  %6043 = vmatmul.bf16.gmra.mxu0 %v5381
  %v6044 = vpop.f32.mrf.mxu0
  %v6045 = vadd.f32 %v5931, %v6044
  %v6046 = vpop.f32.mrf.mxu0
  %v6047 = vadd.f32 %v5933, %v6046
  %6048 = vmatmul.bf16.gmra.mxu0 %v5384
  %v6049 = vpop.f32.mrf.mxu0
  %v6050 = vadd.f32 %v5936, %v6049
  %v6051 = vpop.f32.mrf.mxu0
  %v6052 = vadd.f32 %v5938, %v6051
  %6053 = vmatmul.bf16.gmra.mxu0 %v5387
  %v6054 = vpop.f32.mrf.mxu0
  %v6055 = vadd.f32 %v5941, %v6054
  %v6056 = vpop.f32.mrf.mxu0
  %v6057 = vadd.f32 %v5943, %v6056
  %6058 = vmatmul.bf16.gmra.mxu0 %v5390
  %v6059 = vpop.f32.mrf.mxu0
  %v6060 = vadd.f32 %v5946, %v6059
  %v6061 = vpop.f32.mrf.mxu0
  %v6062 = vadd.f32 %v5948, %v6061
  %6063 = vmatmul.bf16.gmra.mxu0 %v5393
  %v6064 = vpop.f32.mrf.mxu0
  %v6065 = vadd.f32 %v5951, %v6064
  %v6066 = vpop.f32.mrf.mxu0
  %v6067 = vadd.f32 %v5953, %v6066
  %6068 = vmatmul.bf16.gmra.mxu0 %v5396
  %v6069 = vpop.f32.mrf.mxu0
  %v6070 = vadd.f32 %v5956, %v6069
  %v6071 = vpop.f32.mrf.mxu0
  %v6072 = vadd.f32 %v5958, %v6071
  %6073 = vmatmul.bf16.gmra.mxu0 %v5399
  %v6074 = vpop.f32.mrf.mxu0
  %v6075 = vadd.f32 %v5961, %v6074
  %v6076 = vpop.f32.mrf.mxu0
  %v6077 = vadd.f32 %v5963, %v6076
  %6078 = vmatmul.bf16.gmra.mxu0 %v5402
  %v6079 = vpop.f32.mrf.mxu0
  %v6080 = vadd.f32 %v5966, %v6079
  %v6081 = vpop.f32.mrf.mxu0
  %v6082 = vadd.f32 %v5968, %v6081
  %6083 = vmatmul.bf16.gmra.mxu0 %v5405
  %v6084 = vpop.f32.mrf.mxu0
  %v6085 = vadd.f32 %v5971, %v6084
  %v6086 = vpop.f32.mrf.mxu0
  %v6087 = vadd.f32 %v5973, %v6086
  %6088 = vmatmul.bf16.gmra.mxu0 %v5408
  %v6089 = vpop.f32.mrf.mxu0
  %v6090 = vadd.f32 %v5976, %v6089
  %v6091 = vpop.f32.mrf.mxu0
  %v6092 = vadd.f32 %v5978, %v6091
  %6093 = vdwg.mxu0
  %v6094 = vsel %vm2885, %v5990, 0.0
  %v6095 = vadd.f32 %v5648, %v6094
  %6096 = vadd.xlane.f32.xlu0 %v6095
  %v6097 = vpop.xlane.xlu0 %6096
  %v6098 = vsel %vm2885, %v5992, 0.0
  %v6099 = vadd.f32 %v5650, %v6098
  %6100 = vadd.xlane.f32.xlu0 %v6099
  %v6101 = vpop.xlane.xlu0 %6100
  %v6102 = vsel %vm2885, %v5995, 0.0
  %v6103 = vadd.f32 %v5653, %v6102
  %6104 = vadd.xlane.f32.xlu0 %v6103
  %v6105 = vpop.xlane.xlu0 %6104
  %v6106 = vsel %vm2885, %v5997, 0.0
  %v6107 = vadd.f32 %v5655, %v6106
  %6108 = vadd.xlane.f32.xlu0 %v6107
  %v6109 = vpop.xlane.xlu0 %6108
  %v6110 = vsel %vm2885, %v6000, 0.0
  %v6111 = vadd.f32 %v5658, %v6110
  %6112 = vadd.xlane.f32.xlu0 %v6111
  %v6113 = vpop.xlane.xlu0 %6112
  %v6114 = vsel %vm2885, %v6002, 0.0
  %v6115 = vadd.f32 %v5660, %v6114
  %6116 = vadd.xlane.f32.xlu0 %v6115
  %v6117 = vpop.xlane.xlu0 %6116
  %v6118 = vsel %vm2885, %v6005, 0.0
  %v6119 = vadd.f32 %v5663, %v6118
  %6120 = vadd.xlane.f32.xlu0 %v6119
  %v6121 = vpop.xlane.xlu0 %6120
  %v6122 = vsel %vm2885, %v6007, 0.0
  %v6123 = vadd.f32 %v5665, %v6122
  %6124 = vadd.xlane.f32.xlu0 %v6123
  %v6125 = vpop.xlane.xlu0 %6124
  %v6126 = vsel %vm2885, %v6010, 0.0
  %v6127 = vadd.f32 %v5668, %v6126
  %6128 = vadd.xlane.f32.xlu0 %v6127
  %v6129 = vpop.xlane.xlu0 %6128
  %v6130 = vsel %vm2885, %v6012, 0.0
  %v6131 = vadd.f32 %v5670, %v6130
  %6132 = vadd.xlane.f32.xlu0 %v6131
  %v6133 = vpop.xlane.xlu0 %6132
  %v6134 = vsel %vm2885, %v6015, 0.0
  %v6135 = vadd.f32 %v5673, %v6134
  %6136 = vadd.xlane.f32.xlu0 %v6135
  %v6137 = vpop.xlane.xlu0 %6136
  %v6138 = vsel %vm2885, %v6017, 0.0
  %v6139 = vadd.f32 %v5675, %v6138
  %6140 = vadd.xlane.f32.xlu0 %v6139
  %v6141 = vpop.xlane.xlu0 %6140
  %v6142 = vsel %vm2885, %v6020, 0.0
  %v6143 = vadd.f32 %v5678, %v6142
  %6144 = vadd.xlane.f32.xlu0 %v6143
  %v6145 = vpop.xlane.xlu0 %6144
  %v6146 = vsel %vm2885, %v6022, 0.0
  %v6147 = vadd.f32 %v5680, %v6146
  %6148 = vadd.xlane.f32.xlu0 %v6147
  %v6149 = vpop.xlane.xlu0 %6148
  %v6150 = vsel %vm2885, %v6025, 0.0
  %v6151 = vadd.f32 %v5683, %v6150
  %6152 = vadd.xlane.f32.xlu0 %v6151
  %v6153 = vpop.xlane.xlu0 %6152
  %v6154 = vsel %vm2885, %v6027, 0.0
  %v6155 = vadd.f32 %v5685, %v6154
  %6156 = vadd.xlane.f32.xlu0 %v6155
  %v6157 = vpop.xlane.xlu0 %6156
  %v6158 = vsel %vm2885, %v6030, 0.0
  %v6159 = vadd.f32 %v5688, %v6158
  %6160 = vadd.xlane.f32.xlu0 %v6159
  %v6161 = vpop.xlane.xlu0 %6160
  %v6162 = vsel %vm2885, %v6032, 0.0
  %v6163 = vadd.f32 %v5690, %v6162
  %6164 = vadd.xlane.f32.xlu0 %v6163
  %v6165 = vpop.xlane.xlu0 %6164
  %v6166 = vsel %vm2885, %v6035, 0.0
  %v6167 = vadd.f32 %v5693, %v6166
  %6168 = vadd.xlane.f32.xlu0 %v6167
  %v6169 = vpop.xlane.xlu0 %6168
  %v6170 = vsel %vm2885, %v6037, 0.0
  %v6171 = vadd.f32 %v5695, %v6170
  %6172 = vadd.xlane.f32.xlu0 %v6171
  %v6173 = vpop.xlane.xlu0 %6172
  %v6174 = vsel %vm2885, %v6040, 0.0
  %v6175 = vadd.f32 %v5698, %v6174
  %6176 = vadd.xlane.f32.xlu0 %v6175
  %v6177 = vpop.xlane.xlu0 %6176
  %v6178 = vsel %vm2885, %v6042, 0.0
  %v6179 = vadd.f32 %v5700, %v6178
  %6180 = vadd.xlane.f32.xlu0 %v6179
  %v6181 = vpop.xlane.xlu0 %6180
  %v6182 = vsel %vm2885, %v6045, 0.0
  %v6183 = vadd.f32 %v5703, %v6182
  %6184 = vadd.xlane.f32.xlu0 %v6183
  %v6185 = vpop.xlane.xlu0 %6184
  %v6186 = vsel %vm2885, %v6047, 0.0
  %v6187 = vadd.f32 %v5705, %v6186
  %6188 = vadd.xlane.f32.xlu0 %v6187
  %v6189 = vpop.xlane.xlu0 %6188
  %v6190 = vsel %vm2885, %v6050, 0.0
  %v6191 = vadd.f32 %v5708, %v6190
  %6192 = vadd.xlane.f32.xlu0 %v6191
  %v6193 = vpop.xlane.xlu0 %6192
  %v6194 = vsel %vm2885, %v6052, 0.0
  %v6195 = vadd.f32 %v5710, %v6194
  %6196 = vadd.xlane.f32.xlu0 %v6195
  %v6197 = vpop.xlane.xlu0 %6196
  %v6198 = vsel %vm2885, %v6055, 0.0
  %v6199 = vadd.f32 %v5713, %v6198
  %6200 = vadd.xlane.f32.xlu0 %v6199
  %v6201 = vpop.xlane.xlu0 %6200
  %v6202 = vsel %vm2885, %v6057, 0.0
  %v6203 = vadd.f32 %v5715, %v6202
  %6204 = vadd.xlane.f32.xlu0 %v6203
  %v6205 = vpop.xlane.xlu0 %6204
  %v6206 = vsel %vm2885, %v6060, 0.0
  %v6207 = vadd.f32 %v5718, %v6206
  %6208 = vadd.xlane.f32.xlu0 %v6207
  %v6209 = vpop.xlane.xlu0 %6208
  %v6210 = vsel %vm2885, %v6062, 0.0
  %v6211 = vadd.f32 %v5720, %v6210
  %6212 = vadd.xlane.f32.xlu0 %v6211
  %v6213 = vpop.xlane.xlu0 %6212
  %v6214 = vsel %vm2885, %v6065, 0.0
  %v6215 = vadd.f32 %v5723, %v6214
  %6216 = vadd.xlane.f32.xlu0 %v6215
  %v6217 = vpop.xlane.xlu0 %6216
  %v6218 = vsel %vm2885, %v6067, 0.0
  %v6219 = vadd.f32 %v5725, %v6218
  %6220 = vadd.xlane.f32.xlu0 %v6219
  %v6221 = vpop.xlane.xlu0 %6220
  %v6222 = vsel %vm2885, %v6070, 0.0
  %v6223 = vadd.f32 %v5728, %v6222
  %6224 = vadd.xlane.f32.xlu0 %v6223
  %v6225 = vpop.xlane.xlu0 %6224
  %v6226 = vsel %vm2885, %v6072, 0.0
  %v6227 = vadd.f32 %v5730, %v6226
  %6228 = vadd.xlane.f32.xlu0 %v6227
  %v6229 = vpop.xlane.xlu0 %6228
  %v6230 = vsel %vm2885, %v6075, 0.0
  %v6231 = vadd.f32 %v5733, %v6230
  %6232 = vadd.xlane.f32.xlu0 %v6231
  %v6233 = vpop.xlane.xlu0 %6232
  %v6234 = vsel %vm2885, %v6077, 0.0
  %v6235 = vadd.f32 %v5735, %v6234
  %6236 = vadd.xlane.f32.xlu0 %v6235
  %v6237 = vpop.xlane.xlu0 %6236
  %v6238 = vsel %vm2885, %v6080, 0.0
  %v6239 = vadd.f32 %v5738, %v6238
  %6240 = vadd.xlane.f32.xlu0 %v6239
  %v6241 = vpop.xlane.xlu0 %6240
  %v6242 = vsel %vm2885, %v6082, 0.0
  %v6243 = vadd.f32 %v5740, %v6242
  %6244 = vadd.xlane.f32.xlu0 %v6243
  %v6245 = vpop.xlane.xlu0 %6244
  %v6246 = vsel %vm2885, %v6085, 0.0
  %v6247 = vadd.f32 %v5743, %v6246
  %6248 = vadd.xlane.f32.xlu0 %v6247
  %v6249 = vpop.xlane.xlu0 %6248
  %v6250 = vsel %vm2885, %v6087, 0.0
  %v6251 = vadd.f32 %v5745, %v6250
  %6252 = vadd.xlane.f32.xlu0 %v6251
  %v6253 = vpop.xlane.xlu0 %6252
  %v6254 = vsel %vm2885, %v6090, 0.0
  %v6255 = vadd.f32 %v5748, %v6254
  %6256 = vadd.xlane.f32.xlu0 %v6255
  %v6257 = vpop.xlane.xlu0 %6256
  %v6258 = vsel %vm2885, %v6092, 0.0
  %v6259 = vadd.f32 %v5750, %v6258
  %6260 = vadd.xlane.f32.xlu0 %v6259
  %v6261 = vpop.xlane.xlu0 %6260
  %v6262 = vmul.f32 %v6097, 0.0051020407
  %v6263 = vmul.f32 %v6101, 0.0051020407
  %v6264 = vmul.f32 %v6105, 0.0051020407
  %v6265 = vmul.f32 %v6109, 0.0051020407
  %v6266 = vmul.f32 %v6113, 0.0051020407
  %v6267 = vmul.f32 %v6117, 0.0051020407
  %v6268 = vmul.f32 %v6121, 0.0051020407
  %v6269 = vmul.f32 %v6125, 0.0051020407
  %v6270 = vmul.f32 %v6129, 0.0051020407
  %v6271 = vmul.f32 %v6133, 0.0051020407
  %v6272 = vmul.f32 %v6137, 0.0051020407
  %v6273 = vmul.f32 %v6141, 0.0051020407
  %v6274 = vmul.f32 %v6145, 0.0051020407
  %v6275 = vmul.f32 %v6149, 0.0051020407
  %v6276 = vmul.f32 %v6153, 0.0051020407
  %v6277 = vmul.f32 %v6157, 0.0051020407
  %v6278 = vmul.f32 %v6161, 0.0051020407
  %v6279 = vmul.f32 %v6165, 0.0051020407
  %v6280 = vmul.f32 %v6169, 0.0051020407
  %v6281 = vmul.f32 %v6173, 0.0051020407
  %v6282 = vmul.f32 %v6177, 0.0051020407
  %v6283 = vmul.f32 %v6181, 0.0051020407
  %v6284 = vmul.f32 %v6185, 0.0051020407
  %v6285 = vmul.f32 %v6189, 0.0051020407
  %v6286 = vmul.f32 %v6193, 0.0051020407
  %v6287 = vmul.f32 %v6197, 0.0051020407
  %v6288 = vmul.f32 %v6201, 0.0051020407
  %v6289 = vmul.f32 %v6205, 0.0051020407
  %v6290 = vmul.f32 %v6209, 0.0051020407
  %v6291 = vmul.f32 %v6213, 0.0051020407
  %v6292 = vmul.f32 %v6217, 0.0051020407
  %v6293 = vmul.f32 %v6221, 0.0051020407
  %v6294 = vmul.f32 %v6225, 0.0051020407
  %v6295 = vmul.f32 %v6229, 0.0051020407
  %v6296 = vmul.f32 %v6233, 0.0051020407
  %v6297 = vmul.f32 %v6237, 0.0051020407
  %v6298 = vmul.f32 %v6241, 0.0051020407
  %v6299 = vmul.f32 %v6245, 0.0051020407
  %v6300 = vmul.f32 %v6249, 0.0051020407
  %v6301 = vmul.f32 %v6253, 0.0051020407
  %v6302 = vmul.f32 %v6257, 0.0051020407
  %v6303 = vmul.f32 %v6261, 0.0051020407
  %v6304 = vsub.f32 %v5648, %v6262
  %v6305 = vsub.f32 %v5990, %v6262
  %v6306 = vsub.f32 %v5650, %v6263
  %v6307 = vsub.f32 %v5992, %v6263
  %v6308 = vsub.f32 %v5653, %v6264
  %v6309 = vsub.f32 %v5995, %v6264
  %v6310 = vsub.f32 %v5655, %v6265
  %v6311 = vsub.f32 %v5997, %v6265
  %v6312 = vsub.f32 %v5658, %v6266
  %v6313 = vsub.f32 %v6000, %v6266
  %v6314 = vsub.f32 %v5660, %v6267
  %v6315 = vsub.f32 %v6002, %v6267
  %v6316 = vsub.f32 %v5663, %v6268
  %v6317 = vsub.f32 %v6005, %v6268
  %v6318 = vsub.f32 %v5665, %v6269
  %v6319 = vsub.f32 %v6007, %v6269
  %v6320 = vsub.f32 %v5668, %v6270
  %v6321 = vsub.f32 %v6010, %v6270
  %v6322 = vsub.f32 %v5670, %v6271
  %v6323 = vsub.f32 %v6012, %v6271
  %v6324 = vsub.f32 %v5673, %v6272
  %v6325 = vsub.f32 %v6015, %v6272
  %v6326 = vsub.f32 %v5675, %v6273
  %v6327 = vsub.f32 %v6017, %v6273
  %v6328 = vsub.f32 %v5678, %v6274
  %v6329 = vsub.f32 %v6020, %v6274
  %v6330 = vsub.f32 %v5680, %v6275
  %v6331 = vsub.f32 %v6022, %v6275
  %v6332 = vsub.f32 %v5683, %v6276
  %v6333 = vsub.f32 %v6025, %v6276
  %v6334 = vsub.f32 %v5685, %v6277
  %v6335 = vsub.f32 %v6027, %v6277
  %v6336 = vsub.f32 %v5688, %v6278
  %v6337 = vsub.f32 %v6030, %v6278
  %v6338 = vsub.f32 %v5690, %v6279
  %v6339 = vsub.f32 %v6032, %v6279
  %v6340 = vsub.f32 %v5693, %v6280
  %v6341 = vsub.f32 %v6035, %v6280
  %v6342 = vsub.f32 %v5695, %v6281
  %v6343 = vsub.f32 %v6037, %v6281
  %v6344 = vsub.f32 %v5698, %v6282
  %v6345 = vsub.f32 %v6040, %v6282
  %v6346 = vsub.f32 %v5700, %v6283
  %v6347 = vsub.f32 %v6042, %v6283
  %v6348 = vsub.f32 %v5703, %v6284
  %v6349 = vsub.f32 %v6045, %v6284
  %v6350 = vsub.f32 %v5705, %v6285
  %v6351 = vsub.f32 %v6047, %v6285
  %v6352 = vsub.f32 %v5708, %v6286
  %v6353 = vsub.f32 %v6050, %v6286
  %v6354 = vsub.f32 %v5710, %v6287
  %v6355 = vsub.f32 %v6052, %v6287
  %v6356 = vsub.f32 %v5713, %v6288
  %v6357 = vsub.f32 %v6055, %v6288
  %v6358 = vsub.f32 %v5715, %v6289
  %v6359 = vsub.f32 %v6057, %v6289
  %v6360 = vsub.f32 %v5718, %v6290
  %v6361 = vsub.f32 %v6060, %v6290
  %v6362 = vsub.f32 %v5720, %v6291
  %v6363 = vsub.f32 %v6062, %v6291
  %v6364 = vsub.f32 %v5723, %v6292
  %v6365 = vsub.f32 %v6065, %v6292
  %v6366 = vsub.f32 %v5725, %v6293
  %v6367 = vsub.f32 %v6067, %v6293
  %v6368 = vsub.f32 %v5728, %v6294
  %v6369 = vsub.f32 %v6070, %v6294
  %v6370 = vsub.f32 %v5730, %v6295
  %v6371 = vsub.f32 %v6072, %v6295
  %v6372 = vsub.f32 %v5733, %v6296
  %v6373 = vsub.f32 %v6075, %v6296
  %v6374 = vsub.f32 %v5735, %v6297
  %v6375 = vsub.f32 %v6077, %v6297
  %v6376 = vsub.f32 %v5738, %v6298
  %v6377 = vsub.f32 %v6080, %v6298
  %v6378 = vsub.f32 %v5740, %v6299
  %v6379 = vsub.f32 %v6082, %v6299
  %v6380 = vsub.f32 %v5743, %v6300
  %v6381 = vsub.f32 %v6085, %v6300
  %v6382 = vsub.f32 %v5745, %v6301
  %v6383 = vsub.f32 %v6087, %v6301
  %v6384 = vsub.f32 %v5748, %v6302
  %v6385 = vsub.f32 %v6090, %v6302
  %v6386 = vsub.f32 %v5750, %v6303
  %v6387 = vsub.f32 %v6092, %v6303
  %v6388 = vmul.f32 %v6304, %v6304
  %v6389 = vmul.f32 %v6305, %v6305
  %v6390 = vmul.f32 %v6306, %v6306
  %v6391 = vmul.f32 %v6307, %v6307
  %v6392 = vmul.f32 %v6308, %v6308
  %v6393 = vmul.f32 %v6309, %v6309
  %v6394 = vmul.f32 %v6310, %v6310
  %v6395 = vmul.f32 %v6311, %v6311
  %v6396 = vmul.f32 %v6312, %v6312
  %v6397 = vmul.f32 %v6313, %v6313
  %v6398 = vmul.f32 %v6314, %v6314
  %v6399 = vmul.f32 %v6315, %v6315
  %v6400 = vmul.f32 %v6316, %v6316
  %v6401 = vmul.f32 %v6317, %v6317
  %v6402 = vmul.f32 %v6318, %v6318
  %v6403 = vmul.f32 %v6319, %v6319
  %v6404 = vmul.f32 %v6320, %v6320
  %v6405 = vmul.f32 %v6321, %v6321
  %v6406 = vmul.f32 %v6322, %v6322
  %v6407 = vmul.f32 %v6323, %v6323
  %v6408 = vmul.f32 %v6324, %v6324
  %v6409 = vmul.f32 %v6325, %v6325
  %v6410 = vmul.f32 %v6326, %v6326
  %v6411 = vmul.f32 %v6327, %v6327
  %v6412 = vmul.f32 %v6328, %v6328
  %v6413 = vmul.f32 %v6329, %v6329
  %v6414 = vmul.f32 %v6330, %v6330
  %v6415 = vmul.f32 %v6331, %v6331
  %v6416 = vmul.f32 %v6332, %v6332
  %v6417 = vmul.f32 %v6333, %v6333
  %v6418 = vmul.f32 %v6334, %v6334
  %v6419 = vmul.f32 %v6335, %v6335
  %v6420 = vmul.f32 %v6336, %v6336
  %v6421 = vmul.f32 %v6337, %v6337
  %v6422 = vmul.f32 %v6338, %v6338
  %v6423 = vmul.f32 %v6339, %v6339
  %v6424 = vmul.f32 %v6340, %v6340
  %v6425 = vmul.f32 %v6341, %v6341
  %v6426 = vmul.f32 %v6342, %v6342
  %v6427 = vmul.f32 %v6343, %v6343
  %v6428 = vmul.f32 %v6344, %v6344
  %v6429 = vmul.f32 %v6345, %v6345
  %v6430 = vmul.f32 %v6346, %v6346
  %v6431 = vmul.f32 %v6347, %v6347
  %v6432 = vmul.f32 %v6348, %v6348
  %v6433 = vmul.f32 %v6349, %v6349
  %v6434 = vmul.f32 %v6350, %v6350
  %v6435 = vmul.f32 %v6351, %v6351
  %v6436 = vmul.f32 %v6352, %v6352
  %v6437 = vmul.f32 %v6353, %v6353
  %v6438 = vmul.f32 %v6354, %v6354
  %v6439 = vmul.f32 %v6355, %v6355
  %v6440 = vmul.f32 %v6356, %v6356
  %v6441 = vmul.f32 %v6357, %v6357
  %v6442 = vmul.f32 %v6358, %v6358
  %v6443 = vmul.f32 %v6359, %v6359
  %v6444 = vmul.f32 %v6360, %v6360
  %v6445 = vmul.f32 %v6361, %v6361
  %v6446 = vmul.f32 %v6362, %v6362
  %v6447 = vmul.f32 %v6363, %v6363
  %v6448 = vmul.f32 %v6364, %v6364
  %v6449 = vmul.f32 %v6365, %v6365
  %v6450 = vmul.f32 %v6366, %v6366
  %v6451 = vmul.f32 %v6367, %v6367
  %v6452 = vmul.f32 %v6368, %v6368
  %v6453 = vmul.f32 %v6369, %v6369
  %v6454 = vmul.f32 %v6370, %v6370
  %v6455 = vmul.f32 %v6371, %v6371
  %v6456 = vmul.f32 %v6372, %v6372
  %v6457 = vmul.f32 %v6373, %v6373
  %v6458 = vmul.f32 %v6374, %v6374
  %v6459 = vmul.f32 %v6375, %v6375
  %v6460 = vmul.f32 %v6376, %v6376
  %v6461 = vmul.f32 %v6377, %v6377
  %v6462 = vmul.f32 %v6378, %v6378
  %v6463 = vmul.f32 %v6379, %v6379
  %v6464 = vmul.f32 %v6380, %v6380
  %v6465 = vmul.f32 %v6381, %v6381
  %v6466 = vmul.f32 %v6382, %v6382
  %v6467 = vmul.f32 %v6383, %v6383
  %v6468 = vmul.f32 %v6384, %v6384
  %v6469 = vmul.f32 %v6385, %v6385
  %v6470 = vmul.f32 %v6386, %v6386
  %v6471 = vmul.f32 %v6387, %v6387
  %v6472 = vsel %vm2885, %v6389, 0.0
  %v6473 = vadd.f32 %v6388, %v6472
  %6474 = vadd.xlane.f32.xlu0 %v6473
  %v6475 = vpop.xlane.xlu0 %6474
  %v6476 = vsel %vm2885, %v6391, 0.0
  %v6477 = vadd.f32 %v6390, %v6476
  %6478 = vadd.xlane.f32.xlu0 %v6477
  %v6479 = vpop.xlane.xlu0 %6478
  %v6480 = vsel %vm2885, %v6393, 0.0
  %v6481 = vadd.f32 %v6392, %v6480
  %6482 = vadd.xlane.f32.xlu0 %v6481
  %v6483 = vpop.xlane.xlu0 %6482
  %v6484 = vsel %vm2885, %v6395, 0.0
  %v6485 = vadd.f32 %v6394, %v6484
  %6486 = vadd.xlane.f32.xlu0 %v6485
  %v6487 = vpop.xlane.xlu0 %6486
  %v6488 = vsel %vm2885, %v6397, 0.0
  %v6489 = vadd.f32 %v6396, %v6488
  %6490 = vadd.xlane.f32.xlu0 %v6489
  %v6491 = vpop.xlane.xlu0 %6490
  %v6492 = vsel %vm2885, %v6399, 0.0
  %v6493 = vadd.f32 %v6398, %v6492
  %6494 = vadd.xlane.f32.xlu0 %v6493
  %v6495 = vpop.xlane.xlu0 %6494
  %v6496 = vsel %vm2885, %v6401, 0.0
  %v6497 = vadd.f32 %v6400, %v6496
  %6498 = vadd.xlane.f32.xlu0 %v6497
  %v6499 = vpop.xlane.xlu0 %6498
  %v6500 = vsel %vm2885, %v6403, 0.0
  %v6501 = vadd.f32 %v6402, %v6500
  %6502 = vadd.xlane.f32.xlu0 %v6501
  %v6503 = vpop.xlane.xlu0 %6502
  %v6504 = vsel %vm2885, %v6405, 0.0
  %v6505 = vadd.f32 %v6404, %v6504
  %6506 = vadd.xlane.f32.xlu0 %v6505
  %v6507 = vpop.xlane.xlu0 %6506
  %v6508 = vsel %vm2885, %v6407, 0.0
  %v6509 = vadd.f32 %v6406, %v6508
  %6510 = vadd.xlane.f32.xlu0 %v6509
  %v6511 = vpop.xlane.xlu0 %6510
  %v6512 = vsel %vm2885, %v6409, 0.0
  %v6513 = vadd.f32 %v6408, %v6512
  %6514 = vadd.xlane.f32.xlu0 %v6513
  %v6515 = vpop.xlane.xlu0 %6514
  %v6516 = vsel %vm2885, %v6411, 0.0
  %v6517 = vadd.f32 %v6410, %v6516
  %6518 = vadd.xlane.f32.xlu0 %v6517
  %v6519 = vpop.xlane.xlu0 %6518
  %v6520 = vsel %vm2885, %v6413, 0.0
  %v6521 = vadd.f32 %v6412, %v6520
  %6522 = vadd.xlane.f32.xlu0 %v6521
  %v6523 = vpop.xlane.xlu0 %6522
  %v6524 = vsel %vm2885, %v6415, 0.0
  %v6525 = vadd.f32 %v6414, %v6524
  %6526 = vadd.xlane.f32.xlu0 %v6525
  %v6527 = vpop.xlane.xlu0 %6526
  %v6528 = vsel %vm2885, %v6417, 0.0
  %v6529 = vadd.f32 %v6416, %v6528
  %6530 = vadd.xlane.f32.xlu0 %v6529
  %v6531 = vpop.xlane.xlu0 %6530
  %v6532 = vsel %vm2885, %v6419, 0.0
  %v6533 = vadd.f32 %v6418, %v6532
  %6534 = vadd.xlane.f32.xlu0 %v6533
  %v6535 = vpop.xlane.xlu0 %6534
  %v6536 = vsel %vm2885, %v6421, 0.0
  %v6537 = vadd.f32 %v6420, %v6536
  %6538 = vadd.xlane.f32.xlu0 %v6537
  %v6539 = vpop.xlane.xlu0 %6538
  %v6540 = vsel %vm2885, %v6423, 0.0
  %v6541 = vadd.f32 %v6422, %v6540
  %6542 = vadd.xlane.f32.xlu0 %v6541
  %v6543 = vpop.xlane.xlu0 %6542
  %v6544 = vsel %vm2885, %v6425, 0.0
  %v6545 = vadd.f32 %v6424, %v6544
  %6546 = vadd.xlane.f32.xlu0 %v6545
  %v6547 = vpop.xlane.xlu0 %6546
  %v6548 = vsel %vm2885, %v6427, 0.0
  %v6549 = vadd.f32 %v6426, %v6548
  %6550 = vadd.xlane.f32.xlu0 %v6549
  %v6551 = vpop.xlane.xlu0 %6550
  %v6552 = vsel %vm2885, %v6429, 0.0
  %v6553 = vadd.f32 %v6428, %v6552
  %6554 = vadd.xlane.f32.xlu0 %v6553
  %v6555 = vpop.xlane.xlu0 %6554
  %v6556 = vsel %vm2885, %v6431, 0.0
  %v6557 = vadd.f32 %v6430, %v6556
  %6558 = vadd.xlane.f32.xlu0 %v6557
  %v6559 = vpop.xlane.xlu0 %6558
  %v6560 = vsel %vm2885, %v6433, 0.0
  %v6561 = vadd.f32 %v6432, %v6560
  %6562 = vadd.xlane.f32.xlu0 %v6561
  %v6563 = vpop.xlane.xlu0 %6562
  %v6564 = vsel %vm2885, %v6435, 0.0
  %v6565 = vadd.f32 %v6434, %v6564
  %6566 = vadd.xlane.f32.xlu0 %v6565
  %v6567 = vpop.xlane.xlu0 %6566
  %v6568 = vsel %vm2885, %v6437, 0.0
  %v6569 = vadd.f32 %v6436, %v6568
  %6570 = vadd.xlane.f32.xlu0 %v6569
  %v6571 = vpop.xlane.xlu0 %6570
  %v6572 = vsel %vm2885, %v6439, 0.0
  %v6573 = vadd.f32 %v6438, %v6572
  %6574 = vadd.xlane.f32.xlu0 %v6573
  %v6575 = vpop.xlane.xlu0 %6574
  %v6576 = vsel %vm2885, %v6441, 0.0
  %v6577 = vadd.f32 %v6440, %v6576
  %6578 = vadd.xlane.f32.xlu0 %v6577
  %v6579 = vpop.xlane.xlu0 %6578
  %v6580 = vsel %vm2885, %v6443, 0.0
  %v6581 = vadd.f32 %v6442, %v6580
  %6582 = vadd.xlane.f32.xlu0 %v6581
  %v6583 = vpop.xlane.xlu0 %6582
  %v6584 = vsel %vm2885, %v6445, 0.0
  %v6585 = vadd.f32 %v6444, %v6584
  %6586 = vadd.xlane.f32.xlu0 %v6585
  %v6587 = vpop.xlane.xlu0 %6586
  %v6588 = vsel %vm2885, %v6447, 0.0
  %v6589 = vadd.f32 %v6446, %v6588
  %6590 = vadd.xlane.f32.xlu0 %v6589
  %v6591 = vpop.xlane.xlu0 %6590
  %v6592 = vsel %vm2885, %v6449, 0.0
  %v6593 = vadd.f32 %v6448, %v6592
  %6594 = vadd.xlane.f32.xlu0 %v6593
  %v6595 = vpop.xlane.xlu0 %6594
  %v6596 = vsel %vm2885, %v6451, 0.0
  %v6597 = vadd.f32 %v6450, %v6596
  %6598 = vadd.xlane.f32.xlu0 %v6597
  %v6599 = vpop.xlane.xlu0 %6598
  %v6600 = vsel %vm2885, %v6453, 0.0
  %v6601 = vadd.f32 %v6452, %v6600
  %6602 = vadd.xlane.f32.xlu0 %v6601
  %v6603 = vpop.xlane.xlu0 %6602
  %v6604 = vsel %vm2885, %v6455, 0.0
  %v6605 = vadd.f32 %v6454, %v6604
  %6606 = vadd.xlane.f32.xlu0 %v6605
  %v6607 = vpop.xlane.xlu0 %6606
  %v6608 = vsel %vm2885, %v6457, 0.0
  %v6609 = vadd.f32 %v6456, %v6608
  %6610 = vadd.xlane.f32.xlu0 %v6609
  %v6611 = vpop.xlane.xlu0 %6610
  %v6612 = vsel %vm2885, %v6459, 0.0
  %v6613 = vadd.f32 %v6458, %v6612
  %6614 = vadd.xlane.f32.xlu0 %v6613
  %v6615 = vpop.xlane.xlu0 %6614
  %v6616 = vsel %vm2885, %v6461, 0.0
  %v6617 = vadd.f32 %v6460, %v6616
  %6618 = vadd.xlane.f32.xlu0 %v6617
  %v6619 = vpop.xlane.xlu0 %6618
  %v6620 = vsel %vm2885, %v6463, 0.0
  %v6621 = vadd.f32 %v6462, %v6620
  %6622 = vadd.xlane.f32.xlu0 %v6621
  %v6623 = vpop.xlane.xlu0 %6622
  %v6624 = vsel %vm2885, %v6465, 0.0
  %v6625 = vadd.f32 %v6464, %v6624
  %6626 = vadd.xlane.f32.xlu0 %v6625
  %v6627 = vpop.xlane.xlu0 %6626
  %v6628 = vsel %vm2885, %v6467, 0.0
  %v6629 = vadd.f32 %v6466, %v6628
  %6630 = vadd.xlane.f32.xlu0 %v6629
  %v6631 = vpop.xlane.xlu0 %6630
  %v6632 = vsel %vm2885, %v6469, 0.0
  %v6633 = vadd.f32 %v6468, %v6632
  %6634 = vadd.xlane.f32.xlu0 %v6633
  %v6635 = vpop.xlane.xlu0 %6634
  %v6636 = vsel %vm2885, %v6471, 0.0
  %v6637 = vadd.f32 %v6470, %v6636
  %6638 = vadd.xlane.f32.xlu0 %v6637
  %v6639 = vpop.xlane.xlu0 %6638
  %v6640 = vmul.f32 %v6475, 0.0051020407
  %v6641 = vmul.f32 %v6479, 0.0051020407
  %v6642 = vmul.f32 %v6483, 0.0051020407
  %v6643 = vmul.f32 %v6487, 0.0051020407
  %v6644 = vmul.f32 %v6491, 0.0051020407
  %v6645 = vmul.f32 %v6495, 0.0051020407
  %v6646 = vmul.f32 %v6499, 0.0051020407
  %v6647 = vmul.f32 %v6503, 0.0051020407
  %v6648 = vmul.f32 %v6507, 0.0051020407
  %v6649 = vmul.f32 %v6511, 0.0051020407
  %v6650 = vmul.f32 %v6515, 0.0051020407
  %v6651 = vmul.f32 %v6519, 0.0051020407
  %v6652 = vmul.f32 %v6523, 0.0051020407
  %v6653 = vmul.f32 %v6527, 0.0051020407
  %v6654 = vmul.f32 %v6531, 0.0051020407
  %v6655 = vmul.f32 %v6535, 0.0051020407
  %v6656 = vmul.f32 %v6539, 0.0051020407
  %v6657 = vmul.f32 %v6543, 0.0051020407
  %v6658 = vmul.f32 %v6547, 0.0051020407
  %v6659 = vmul.f32 %v6551, 0.0051020407
  %v6660 = vmul.f32 %v6555, 0.0051020407
  %v6661 = vmul.f32 %v6559, 0.0051020407
  %v6662 = vmul.f32 %v6563, 0.0051020407
  %v6663 = vmul.f32 %v6567, 0.0051020407
  %v6664 = vmul.f32 %v6571, 0.0051020407
  %v6665 = vmul.f32 %v6575, 0.0051020407
  %v6666 = vmul.f32 %v6579, 0.0051020407
  %v6667 = vmul.f32 %v6583, 0.0051020407
  %v6668 = vmul.f32 %v6587, 0.0051020407
  %v6669 = vmul.f32 %v6591, 0.0051020407
  %v6670 = vmul.f32 %v6595, 0.0051020407
  %v6671 = vmul.f32 %v6599, 0.0051020407
  %v6672 = vmul.f32 %v6603, 0.0051020407
  %v6673 = vmul.f32 %v6607, 0.0051020407
  %v6674 = vmul.f32 %v6611, 0.0051020407
  %v6675 = vmul.f32 %v6615, 0.0051020407
  %v6676 = vmul.f32 %v6619, 0.0051020407
  %v6677 = vmul.f32 %v6623, 0.0051020407
  %v6678 = vmul.f32 %v6627, 0.0051020407
  %v6679 = vmul.f32 %v6631, 0.0051020407
  %v6680 = vmul.f32 %v6635, 0.0051020407
  %v6681 = vmul.f32 %v6639, 0.0051020407
  %v6682 = vld [vmem:[%s9] sm:$0xff]
  %v6683 = vld [vmem:[%s9 + $0x8] sm:$0xff]
  %v6684 = vld [vmem:[%s9 + $0x10] sm:$0xff]
  %v6685 = vld [vmem:[%s9 + $0x18] sm:$0xff]
  %v6686 = vld [vmem:[%s9 + $0x20] sm:$0xff]
  %v6687 = vld [vmem:[%s9 + $0x28] sm:$0xff]
  %v6688 = vld [vmem:[%s9 + $0x30] sm:$0xff]
  %v6689 = vld [vmem:[%s9 + $0x38] sm:$0xff]
  %v6690 = vld [vmem:[%s9 + $0x40] sm:$0xff]
  %v6691 = vld [vmem:[%s9 + $0x48] sm:$0xff]
  %v6692 = vld [vmem:[%s9 + $0x50] sm:$0xff]
  %v6693 = vld [vmem:[%s9 + $0x58] sm:$0xff]
  %v6694 = vld [vmem:[%s9 + $0x60] sm:$0xff]
  %v6695 = vld [vmem:[%s9 + $0x68] sm:$0xff]
  %v6696 = vld [vmem:[%s9 + $0x70] sm:$0xff]
  %v6697 = vld [vmem:[%s9 + $0x78] sm:$0xff]
  %v6698 = vld [vmem:[%s9 + $0x80] sm:$0xff]
  %v6699 = vld [vmem:[%s9 + $0x88] sm:$0xff]
  %v6700 = vld [vmem:[%s9 + $0x90] sm:$0xff]
  %v6701 = vld [vmem:[%s9 + $0x98] sm:$0xff]
  %v6702 = vld [vmem:[%s9 + $0xa0] sm:$0xff]
  %v6703 = vld [vmem:[%s9 + $0xa8] sm:$0xff]
  %v6704 = vld [vmem:[%s9 + $0xb0] sm:$0xff]
  %v6705 = vld [vmem:[%s9 + $0xb8] sm:$0xff]
  %v6706 = vld [vmem:[%s9 + $0xc0] sm:$0xff]
  %v6707 = vld [vmem:[%s9 + $0xc8] sm:$0xff]
  %v6708 = vld [vmem:[%s9 + $0xd0] sm:$0xff]
  %v6709 = vld [vmem:[%s9 + $0xd8] sm:$0xff]
  %v6710 = vld [vmem:[%s9 + $0xe0] sm:$0xff]
  %v6711 = vld [vmem:[%s9 + $0xe8] sm:$0xff]
  %v6712 = vld [vmem:[%s9 + $0xf0] sm:$0xff]
  %v6713 = vld [vmem:[%s9 + $0xf8] sm:$0xff]
  %v6714 = vld [vmem:[%s9 + $0x100] sm:$0xff]
  %v6715 = vld [vmem:[%s9 + $0x108] sm:$0xff]
  %v6716 = vld [vmem:[%s9 + $0x110] sm:$0xff]
  %v6717 = vld [vmem:[%s9 + $0x118] sm:$0xff]
  %v6718 = vld [vmem:[%s9 + $0x120] sm:$0xff]
  %v6719 = vld [vmem:[%s9 + $0x128] sm:$0xff]
  %v6720 = vld [vmem:[%s9 + $0x130] sm:$0xff]
  %v6721 = vld [vmem:[%s9 + $0x138] sm:$0xff]
  %v6722 = vld [vmem:[%s9 + $0x140] sm:$0xff]
  %v6723 = vld [vmem:[%s9 + $0x148] sm:$0xff]
  %v6724 = vadd.f32 %v6640, 1e-05
  %v6725 = vadd.f32 %v6641, 1e-05
  %v6726 = vadd.f32 %v6642, 1e-05
  %v6727 = vadd.f32 %v6643, 1e-05
  %v6728 = vadd.f32 %v6644, 1e-05
  %v6729 = vadd.f32 %v6645, 1e-05
  %v6730 = vadd.f32 %v6646, 1e-05
  %v6731 = vadd.f32 %v6647, 1e-05
  %v6732 = vadd.f32 %v6648, 1e-05
  %v6733 = vadd.f32 %v6649, 1e-05
  %v6734 = vadd.f32 %v6650, 1e-05
  %v6735 = vadd.f32 %v6651, 1e-05
  %v6736 = vadd.f32 %v6652, 1e-05
  %v6737 = vadd.f32 %v6653, 1e-05
  %v6738 = vadd.f32 %v6654, 1e-05
  %v6739 = vadd.f32 %v6655, 1e-05
  %v6740 = vadd.f32 %v6656, 1e-05
  %v6741 = vadd.f32 %v6657, 1e-05
  %v6742 = vadd.f32 %v6658, 1e-05
  %v6743 = vadd.f32 %v6659, 1e-05
  %v6744 = vadd.f32 %v6660, 1e-05
  %v6745 = vadd.f32 %v6661, 1e-05
  %v6746 = vadd.f32 %v6662, 1e-05
  %v6747 = vadd.f32 %v6663, 1e-05
  %v6748 = vadd.f32 %v6664, 1e-05
  %v6749 = vadd.f32 %v6665, 1e-05
  %v6750 = vadd.f32 %v6666, 1e-05
  %v6751 = vadd.f32 %v6667, 1e-05
  %v6752 = vadd.f32 %v6668, 1e-05
  %v6753 = vadd.f32 %v6669, 1e-05
  %v6754 = vadd.f32 %v6670, 1e-05
  %v6755 = vadd.f32 %v6671, 1e-05
  %v6756 = vadd.f32 %v6672, 1e-05
  %v6757 = vadd.f32 %v6673, 1e-05
  %v6758 = vadd.f32 %v6674, 1e-05
  %v6759 = vadd.f32 %v6675, 1e-05
  %v6760 = vadd.f32 %v6676, 1e-05
  %v6761 = vadd.f32 %v6677, 1e-05
  %v6762 = vadd.f32 %v6678, 1e-05
  %v6763 = vadd.f32 %v6679, 1e-05
  %v6764 = vadd.f32 %v6680, 1e-05
  %v6765 = vadd.f32 %v6681, 1e-05
  %v6766 = vrsqrt.pop %v6724
  %v6767 = vmul.f32 %v6766, %v6724
  %v6768 = vmul.f32 %v6767, %v6766
  %v6769 = vmul.f32 0.5, %v6768
  %v6770 = vsub.f32 1.5, %v6769
  %v6771 = vmul.f32 %v6766, %v6770
  %vm6772 = vweird.f32 %v6724
  %vm6773 = vweird.f32 %v6766
  %vm6774 = vmor %vm6772, %vm6773
  %v6775 = vsel %vm6774, %v6766, %v6771
  %v6776 = vrsqrt.pop %v6725
  %v6777 = vmul.f32 %v6776, %v6725
  %v6778 = vmul.f32 %v6777, %v6776
  %v6779 = vmul.f32 0.5, %v6778
  %v6780 = vsub.f32 1.5, %v6779
  %v6781 = vmul.f32 %v6776, %v6780
  %vm6782 = vweird.f32 %v6725
  %vm6783 = vweird.f32 %v6776
  %vm6784 = vmor %vm6782, %vm6783
  %v6785 = vsel %vm6784, %v6776, %v6781
  %v6786 = vrsqrt.pop %v6726
  %v6787 = vmul.f32 %v6786, %v6726
  %v6788 = vmul.f32 %v6787, %v6786
  %v6789 = vmul.f32 0.5, %v6788
  %v6790 = vsub.f32 1.5, %v6789
  %v6791 = vmul.f32 %v6786, %v6790
  %vm6792 = vweird.f32 %v6726
  %vm6793 = vweird.f32 %v6786
  %vm6794 = vmor %vm6792, %vm6793
  %v6795 = vsel %vm6794, %v6786, %v6791
  %v6796 = vrsqrt.pop %v6727
  %v6797 = vmul.f32 %v6796, %v6727
  %v6798 = vmul.f32 %v6797, %v6796
  %v6799 = vmul.f32 0.5, %v6798
  %v6800 = vsub.f32 1.5, %v6799
  %v6801 = vmul.f32 %v6796, %v6800
  %vm6802 = vweird.f32 %v6727
  %vm6803 = vweird.f32 %v6796
  %vm6804 = vmor %vm6802, %vm6803
  %v6805 = vsel %vm6804, %v6796, %v6801
  %v6806 = vrsqrt.pop %v6728
  %v6807 = vmul.f32 %v6806, %v6728
  %v6808 = vmul.f32 %v6807, %v6806
  %v6809 = vmul.f32 0.5, %v6808
  %v6810 = vsub.f32 1.5, %v6809
  %v6811 = vmul.f32 %v6806, %v6810
  %vm6812 = vweird.f32 %v6728
  %vm6813 = vweird.f32 %v6806
  %vm6814 = vmor %vm6812, %vm6813
  %v6815 = vsel %vm6814, %v6806, %v6811
  %v6816 = vrsqrt.pop %v6729
  %v6817 = vmul.f32 %v6816, %v6729
  %v6818 = vmul.f32 %v6817, %v6816
  %v6819 = vmul.f32 0.5, %v6818
  %v6820 = vsub.f32 1.5, %v6819
  %v6821 = vmul.f32 %v6816, %v6820
  %vm6822 = vweird.f32 %v6729
  %vm6823 = vweird.f32 %v6816
  %vm6824 = vmor %vm6822, %vm6823
  %v6825 = vsel %vm6824, %v6816, %v6821
  %v6826 = vrsqrt.pop %v6730
  %v6827 = vmul.f32 %v6826, %v6730
  %v6828 = vmul.f32 %v6827, %v6826
  %v6829 = vmul.f32 0.5, %v6828
  %v6830 = vsub.f32 1.5, %v6829
  %v6831 = vmul.f32 %v6826, %v6830
  %vm6832 = vweird.f32 %v6730
  %vm6833 = vweird.f32 %v6826
  %vm6834 = vmor %vm6832, %vm6833
  %v6835 = vsel %vm6834, %v6826, %v6831
  %v6836 = vrsqrt.pop %v6731
  %v6837 = vmul.f32 %v6836, %v6731
  %v6838 = vmul.f32 %v6837, %v6836
  %v6839 = vmul.f32 0.5, %v6838
  %v6840 = vsub.f32 1.5, %v6839
  %v6841 = vmul.f32 %v6836, %v6840
  %vm6842 = vweird.f32 %v6731
  %vm6843 = vweird.f32 %v6836
  %vm6844 = vmor %vm6842, %vm6843
  %v6845 = vsel %vm6844, %v6836, %v6841
  %v6846 = vrsqrt.pop %v6732
  %v6847 = vmul.f32 %v6846, %v6732
  %v6848 = vmul.f32 %v6847, %v6846
  %v6849 = vmul.f32 0.5, %v6848
  %v6850 = vsub.f32 1.5, %v6849
  %v6851 = vmul.f32 %v6846, %v6850
  %vm6852 = vweird.f32 %v6732
  %vm6853 = vweird.f32 %v6846
  %vm6854 = vmor %vm6852, %vm6853
  %v6855 = vsel %vm6854, %v6846, %v6851
  %v6856 = vrsqrt.pop %v6733
  %v6857 = vmul.f32 %v6856, %v6733
  %v6858 = vmul.f32 %v6857, %v6856
  %v6859 = vmul.f32 0.5, %v6858
  %v6860 = vsub.f32 1.5, %v6859
  %v6861 = vmul.f32 %v6856, %v6860
  %vm6862 = vweird.f32 %v6733
  %vm6863 = vweird.f32 %v6856
  %vm6864 = vmor %vm6862, %vm6863
  %v6865 = vsel %vm6864, %v6856, %v6861
  %v6866 = vrsqrt.pop %v6734
  %v6867 = vmul.f32 %v6866, %v6734
  %v6868 = vmul.f32 %v6867, %v6866
  %v6869 = vmul.f32 0.5, %v6868
  %v6870 = vsub.f32 1.5, %v6869
  %v6871 = vmul.f32 %v6866, %v6870
  %vm6872 = vweird.f32 %v6734
  %vm6873 = vweird.f32 %v6866
  %vm6874 = vmor %vm6872, %vm6873
  %v6875 = vsel %vm6874, %v6866, %v6871
  %v6876 = vrsqrt.pop %v6735
  %v6877 = vmul.f32 %v6876, %v6735
  %v6878 = vmul.f32 %v6877, %v6876
  %v6879 = vmul.f32 0.5, %v6878
  %v6880 = vsub.f32 1.5, %v6879
  %v6881 = vmul.f32 %v6876, %v6880
  %vm6882 = vweird.f32 %v6735
  %vm6883 = vweird.f32 %v6876
  %vm6884 = vmor %vm6882, %vm6883
  %v6885 = vsel %vm6884, %v6876, %v6881
  %v6886 = vrsqrt.pop %v6736
  %v6887 = vmul.f32 %v6886, %v6736
  %v6888 = vmul.f32 %v6887, %v6886
  %v6889 = vmul.f32 0.5, %v6888
  %v6890 = vsub.f32 1.5, %v6889
  %v6891 = vmul.f32 %v6886, %v6890
  %vm6892 = vweird.f32 %v6736
  %vm6893 = vweird.f32 %v6886
  %vm6894 = vmor %vm6892, %vm6893
  %v6895 = vsel %vm6894, %v6886, %v6891
  %v6896 = vrsqrt.pop %v6737
  %v6897 = vmul.f32 %v6896, %v6737
  %v6898 = vmul.f32 %v6897, %v6896
  %v6899 = vmul.f32 0.5, %v6898
  %v6900 = vsub.f32 1.5, %v6899
  %v6901 = vmul.f32 %v6896, %v6900
  %vm6902 = vweird.f32 %v6737
  %vm6903 = vweird.f32 %v6896
  %vm6904 = vmor %vm6902, %vm6903
  %v6905 = vsel %vm6904, %v6896, %v6901
  %v6906 = vrsqrt.pop %v6738
  %v6907 = vmul.f32 %v6906, %v6738
  %v6908 = vmul.f32 %v6907, %v6906
  %v6909 = vmul.f32 0.5, %v6908
  %v6910 = vsub.f32 1.5, %v6909
  %v6911 = vmul.f32 %v6906, %v6910
  %vm6912 = vweird.f32 %v6738
  %vm6913 = vweird.f32 %v6906
  %vm6914 = vmor %vm6912, %vm6913
  %v6915 = vsel %vm6914, %v6906, %v6911
  %v6916 = vrsqrt.pop %v6739
  %v6917 = vmul.f32 %v6916, %v6739
  %v6918 = vmul.f32 %v6917, %v6916
  %v6919 = vmul.f32 0.5, %v6918
  %v6920 = vsub.f32 1.5, %v6919
  %v6921 = vmul.f32 %v6916, %v6920
  %vm6922 = vweird.f32 %v6739
  %vm6923 = vweird.f32 %v6916
  %vm6924 = vmor %vm6922, %vm6923
  %v6925 = vsel %vm6924, %v6916, %v6921
  %v6926 = vrsqrt.pop %v6740
  %v6927 = vmul.f32 %v6926, %v6740
  %v6928 = vmul.f32 %v6927, %v6926
  %v6929 = vmul.f32 0.5, %v6928
  %v6930 = vsub.f32 1.5, %v6929
  %v6931 = vmul.f32 %v6926, %v6930
  %vm6932 = vweird.f32 %v6740
  %vm6933 = vweird.f32 %v6926
  %vm6934 = vmor %vm6932, %vm6933
  %v6935 = vsel %vm6934, %v6926, %v6931
  %v6936 = vrsqrt.pop %v6741
  %v6937 = vmul.f32 %v6936, %v6741
  %v6938 = vmul.f32 %v6937, %v6936
  %v6939 = vmul.f32 0.5, %v6938
  %v6940 = vsub.f32 1.5, %v6939
  %v6941 = vmul.f32 %v6936, %v6940
  %vm6942 = vweird.f32 %v6741
  %vm6943 = vweird.f32 %v6936
  %vm6944 = vmor %vm6942, %vm6943
  %v6945 = vsel %vm6944, %v6936, %v6941
  %v6946 = vrsqrt.pop %v6742
  %v6947 = vmul.f32 %v6946, %v6742
  %v6948 = vmul.f32 %v6947, %v6946
  %v6949 = vmul.f32 0.5, %v6948
  %v6950 = vsub.f32 1.5, %v6949
  %v6951 = vmul.f32 %v6946, %v6950
  %vm6952 = vweird.f32 %v6742
  %vm6953 = vweird.f32 %v6946
  %vm6954 = vmor %vm6952, %vm6953
  %v6955 = vsel %vm6954, %v6946, %v6951
  %v6956 = vrsqrt.pop %v6743
  %v6957 = vmul.f32 %v6956, %v6743
  %v6958 = vmul.f32 %v6957, %v6956
  %v6959 = vmul.f32 0.5, %v6958
  %v6960 = vsub.f32 1.5, %v6959
  %v6961 = vmul.f32 %v6956, %v6960
  %vm6962 = vweird.f32 %v6743
  %vm6963 = vweird.f32 %v6956
  %vm6964 = vmor %vm6962, %vm6963
  %v6965 = vsel %vm6964, %v6956, %v6961
  %v6966 = vrsqrt.pop %v6744
  %v6967 = vmul.f32 %v6966, %v6744
  %v6968 = vmul.f32 %v6967, %v6966
  %v6969 = vmul.f32 0.5, %v6968
  %v6970 = vsub.f32 1.5, %v6969
  %v6971 = vmul.f32 %v6966, %v6970
  %vm6972 = vweird.f32 %v6744
  %vm6973 = vweird.f32 %v6966
  %vm6974 = vmor %vm6972, %vm6973
  %v6975 = vsel %vm6974, %v6966, %v6971
  %v6976 = vrsqrt.pop %v6745
  %v6977 = vmul.f32 %v6976, %v6745
  %v6978 = vmul.f32 %v6977, %v6976
  %v6979 = vmul.f32 0.5, %v6978
  %v6980 = vsub.f32 1.5, %v6979
  %v6981 = vmul.f32 %v6976, %v6980
  %vm6982 = vweird.f32 %v6745
  %vm6983 = vweird.f32 %v6976
  %vm6984 = vmor %vm6982, %vm6983
  %v6985 = vsel %vm6984, %v6976, %v6981
  %v6986 = vrsqrt.pop %v6746
  %v6987 = vmul.f32 %v6986, %v6746
  %v6988 = vmul.f32 %v6987, %v6986
  %v6989 = vmul.f32 0.5, %v6988
  %v6990 = vsub.f32 1.5, %v6989
  %v6991 = vmul.f32 %v6986, %v6990
  %vm6992 = vweird.f32 %v6746
  %vm6993 = vweird.f32 %v6986
  %vm6994 = vmor %vm6992, %vm6993
  %v6995 = vsel %vm6994, %v6986, %v6991
  %v6996 = vrsqrt.pop %v6747
  %v6997 = vmul.f32 %v6996, %v6747
  %v6998 = vmul.f32 %v6997, %v6996
  %v6999 = vmul.f32 0.5, %v6998
  %v7000 = vsub.f32 1.5, %v6999
  %v7001 = vmul.f32 %v6996, %v7000
  %vm7002 = vweird.f32 %v6747
  %vm7003 = vweird.f32 %v6996
  %vm7004 = vmor %vm7002, %vm7003
  %v7005 = vsel %vm7004, %v6996, %v7001
  %v7006 = vrsqrt.pop %v6748
  %v7007 = vmul.f32 %v7006, %v6748
  %v7008 = vmul.f32 %v7007, %v7006
  %v7009 = vmul.f32 0.5, %v7008
  %v7010 = vsub.f32 1.5, %v7009
  %v7011 = vmul.f32 %v7006, %v7010
  %vm7012 = vweird.f32 %v6748
  %vm7013 = vweird.f32 %v7006
  %vm7014 = vmor %vm7012, %vm7013
  %v7015 = vsel %vm7014, %v7006, %v7011
  %v7016 = vrsqrt.pop %v6749
  %v7017 = vmul.f32 %v7016, %v6749
  %v7018 = vmul.f32 %v7017, %v7016
  %v7019 = vmul.f32 0.5, %v7018
  %v7020 = vsub.f32 1.5, %v7019
  %v7021 = vmul.f32 %v7016, %v7020
  %vm7022 = vweird.f32 %v6749
  %vm7023 = vweird.f32 %v7016
  %vm7024 = vmor %vm7022, %vm7023
  %v7025 = vsel %vm7024, %v7016, %v7021
  %v7026 = vrsqrt.pop %v6750
  %v7027 = vmul.f32 %v7026, %v6750
  %v7028 = vmul.f32 %v7027, %v7026
  %v7029 = vmul.f32 0.5, %v7028
  %v7030 = vsub.f32 1.5, %v7029
  %v7031 = vmul.f32 %v7026, %v7030
  %vm7032 = vweird.f32 %v6750
  %vm7033 = vweird.f32 %v7026
  %vm7034 = vmor %vm7032, %vm7033
  %v7035 = vsel %vm7034, %v7026, %v7031
  %v7036 = vrsqrt.pop %v6751
  %v7037 = vmul.f32 %v7036, %v6751
  %v7038 = vmul.f32 %v7037, %v7036
  %v7039 = vmul.f32 0.5, %v7038
  %v7040 = vsub.f32 1.5, %v7039
  %v7041 = vmul.f32 %v7036, %v7040
  %vm7042 = vweird.f32 %v6751
  %vm7043 = vweird.f32 %v7036
  %vm7044 = vmor %vm7042, %vm7043
  %v7045 = vsel %vm7044, %v7036, %v7041
  %v7046 = vrsqrt.pop %v6752
  %v7047 = vmul.f32 %v7046, %v6752
  %v7048 = vmul.f32 %v7047, %v7046
  %v7049 = vmul.f32 0.5, %v7048
  %v7050 = vsub.f32 1.5, %v7049
  %v7051 = vmul.f32 %v7046, %v7050
  %vm7052 = vweird.f32 %v6752
  %vm7053 = vweird.f32 %v7046
  %vm7054 = vmor %vm7052, %vm7053
  %v7055 = vsel %vm7054, %v7046, %v7051
  %v7056 = vrsqrt.pop %v6753
  %v7057 = vmul.f32 %v7056, %v6753
  %v7058 = vmul.f32 %v7057, %v7056
  %v7059 = vmul.f32 0.5, %v7058
  %v7060 = vsub.f32 1.5, %v7059
  %v7061 = vmul.f32 %v7056, %v7060
  %vm7062 = vweird.f32 %v6753
  %vm7063 = vweird.f32 %v7056
  %vm7064 = vmor %vm7062, %vm7063
  %v7065 = vsel %vm7064, %v7056, %v7061
  %v7066 = vrsqrt.pop %v6754
  %v7067 = vmul.f32 %v7066, %v6754
  %v7068 = vmul.f32 %v7067, %v7066
  %v7069 = vmul.f32 0.5, %v7068
  %v7070 = vsub.f32 1.5, %v7069
  %v7071 = vmul.f32 %v7066, %v7070
  %vm7072 = vweird.f32 %v6754
  %vm7073 = vweird.f32 %v7066
  %vm7074 = vmor %vm7072, %vm7073
  %v7075 = vsel %vm7074, %v7066, %v7071
  %v7076 = vrsqrt.pop %v6755
  %v7077 = vmul.f32 %v7076, %v6755
  %v7078 = vmul.f32 %v7077, %v7076
  %v7079 = vmul.f32 0.5, %v7078
  %v7080 = vsub.f32 1.5, %v7079
  %v7081 = vmul.f32 %v7076, %v7080
  %vm7082 = vweird.f32 %v6755
  %vm7083 = vweird.f32 %v7076
  %vm7084 = vmor %vm7082, %vm7083
  %v7085 = vsel %vm7084, %v7076, %v7081
  %v7086 = vrsqrt.pop %v6756
  %v7087 = vmul.f32 %v7086, %v6756
  %v7088 = vmul.f32 %v7087, %v7086
  %v7089 = vmul.f32 0.5, %v7088
  %v7090 = vsub.f32 1.5, %v7089
  %v7091 = vmul.f32 %v7086, %v7090
  %vm7092 = vweird.f32 %v6756
  %vm7093 = vweird.f32 %v7086
  %vm7094 = vmor %vm7092, %vm7093
  %v7095 = vsel %vm7094, %v7086, %v7091
  %v7096 = vrsqrt.pop %v6757
  %v7097 = vmul.f32 %v7096, %v6757
  %v7098 = vmul.f32 %v7097, %v7096
  %v7099 = vmul.f32 0.5, %v7098
  %v7100 = vsub.f32 1.5, %v7099
  %v7101 = vmul.f32 %v7096, %v7100
  %vm7102 = vweird.f32 %v6757
  %vm7103 = vweird.f32 %v7096
  %vm7104 = vmor %vm7102, %vm7103
  %v7105 = vsel %vm7104, %v7096, %v7101
  %v7106 = vrsqrt.pop %v6758
  %v7107 = vmul.f32 %v7106, %v6758
  %v7108 = vmul.f32 %v7107, %v7106
  %v7109 = vmul.f32 0.5, %v7108
  %v7110 = vsub.f32 1.5, %v7109
  %v7111 = vmul.f32 %v7106, %v7110
  %vm7112 = vweird.f32 %v6758
  %vm7113 = vweird.f32 %v7106
  %vm7114 = vmor %vm7112, %vm7113
  %v7115 = vsel %vm7114, %v7106, %v7111
  %v7116 = vrsqrt.pop %v6759
  %v7117 = vmul.f32 %v7116, %v6759
  %v7118 = vmul.f32 %v7117, %v7116
  %v7119 = vmul.f32 0.5, %v7118
  %v7120 = vsub.f32 1.5, %v7119
  %v7121 = vmul.f32 %v7116, %v7120
  %vm7122 = vweird.f32 %v6759
  %vm7123 = vweird.f32 %v7116
  %vm7124 = vmor %vm7122, %vm7123
  %v7125 = vsel %vm7124, %v7116, %v7121
  %v7126 = vrsqrt.pop %v6760
  %v7127 = vmul.f32 %v7126, %v6760
  %v7128 = vmul.f32 %v7127, %v7126
  %v7129 = vmul.f32 0.5, %v7128
  %v7130 = vsub.f32 1.5, %v7129
  %v7131 = vmul.f32 %v7126, %v7130
  %vm7132 = vweird.f32 %v6760
  %vm7133 = vweird.f32 %v7126
  %vm7134 = vmor %vm7132, %vm7133
  %v7135 = vsel %vm7134, %v7126, %v7131
  %v7136 = vrsqrt.pop %v6761
  %v7137 = vmul.f32 %v7136, %v6761
  %v7138 = vmul.f32 %v7137, %v7136
  %v7139 = vmul.f32 0.5, %v7138
  %v7140 = vsub.f32 1.5, %v7139
  %v7141 = vmul.f32 %v7136, %v7140
  %vm7142 = vweird.f32 %v6761
  %vm7143 = vweird.f32 %v7136
  %vm7144 = vmor %vm7142, %vm7143
  %v7145 = vsel %vm7144, %v7136, %v7141
  %v7146 = vrsqrt.pop %v6762
  %v7147 = vmul.f32 %v7146, %v6762
  %v7148 = vmul.f32 %v7147, %v7146
  %v7149 = vmul.f32 0.5, %v7148
  %v7150 = vsub.f32 1.5, %v7149
  %v7151 = vmul.f32 %v7146, %v7150
  %vm7152 = vweird.f32 %v6762
  %vm7153 = vweird.f32 %v7146
  %vm7154 = vmor %vm7152, %vm7153
  %v7155 = vsel %vm7154, %v7146, %v7151
  %v7156 = vrsqrt.pop %v6763
  %v7157 = vmul.f32 %v7156, %v6763
  %v7158 = vmul.f32 %v7157, %v7156
  %v7159 = vmul.f32 0.5, %v7158
  %v7160 = vsub.f32 1.5, %v7159
  %v7161 = vmul.f32 %v7156, %v7160
  %vm7162 = vweird.f32 %v6763
  %vm7163 = vweird.f32 %v7156
  %vm7164 = vmor %vm7162, %vm7163
  %v7165 = vsel %vm7164, %v7156, %v7161
  %v7166 = vrsqrt.pop %v6764
  %v7167 = vmul.f32 %v7166, %v6764
  %v7168 = vmul.f32 %v7167, %v7166
  %v7169 = vmul.f32 0.5, %v7168
  %v7170 = vsub.f32 1.5, %v7169
  %v7171 = vmul.f32 %v7166, %v7170
  %vm7172 = vweird.f32 %v6764
  %vm7173 = vweird.f32 %v7166
  %vm7174 = vmor %vm7172, %vm7173
  %v7175 = vsel %vm7174, %v7166, %v7171
  %v7176 = vrsqrt.pop %v6765
  %v7177 = vmul.f32 %v7176, %v6765
  %v7178 = vmul.f32 %v7177, %v7176
  %v7179 = vmul.f32 0.5, %v7178
  %v7180 = vsub.f32 1.5, %v7179
  %v7181 = vmul.f32 %v7176, %v7180
  %vm7182 = vweird.f32 %v6765
  %vm7183 = vweird.f32 %v7176
  %vm7184 = vmor %vm7182, %vm7183
  %v7185 = vsel %vm7184, %v7176, %v7181
  %v7186 = vmul.f32 %v6682, %v6775
  %v7187 = vmul.f32 %v6683, %v6785
  %v7188 = vmul.f32 %v6684, %v6795
  %v7189 = vmul.f32 %v6685, %v6805
  %v7190 = vmul.f32 %v6686, %v6815
  %v7191 = vmul.f32 %v6687, %v6825
  %v7192 = vmul.f32 %v6688, %v6835
  %v7193 = vmul.f32 %v6689, %v6845
  %v7194 = vmul.f32 %v6690, %v6855
  %v7195 = vmul.f32 %v6691, %v6865
  %v7196 = vmul.f32 %v6692, %v6875
  %v7197 = vmul.f32 %v6693, %v6885
  %v7198 = vmul.f32 %v6694, %v6895
  %v7199 = vmul.f32 %v6695, %v6905
  %v7200 = vmul.f32 %v6696, %v6915
  %v7201 = vmul.f32 %v6697, %v6925
  %v7202 = vmul.f32 %v6698, %v6935
  %v7203 = vmul.f32 %v6699, %v6945
  %v7204 = vmul.f32 %v6700, %v6955
  %v7205 = vmul.f32 %v6701, %v6965
  %v7206 = vmul.f32 %v6702, %v6975
  %v7207 = vmul.f32 %v6703, %v6985
  %v7208 = vmul.f32 %v6704, %v6995
  %v7209 = vmul.f32 %v6705, %v7005
  %v7210 = vmul.f32 %v6706, %v7015
  %v7211 = vmul.f32 %v6707, %v7025
  %v7212 = vmul.f32 %v6708, %v7035
  %v7213 = vmul.f32 %v6709, %v7045
  %v7214 = vmul.f32 %v6710, %v7055
  %v7215 = vmul.f32 %v6711, %v7065
  %v7216 = vmul.f32 %v6712, %v7075
  %v7217 = vmul.f32 %v6713, %v7085
  %v7218 = vmul.f32 %v6714, %v7095
  %v7219 = vmul.f32 %v6715, %v7105
  %v7220 = vmul.f32 %v6716, %v7115
  %v7221 = vmul.f32 %v6717, %v7125
  %v7222 = vmul.f32 %v6718, %v7135
  %v7223 = vmul.f32 %v6719, %v7145
  %v7224 = vmul.f32 %v6720, %v7155
  %v7225 = vmul.f32 %v6721, %v7165
  %v7226 = vmul.f32 %v6722, %v7175
  %v7227 = vmul.f32 %v6723, %v7185
  %7229 = vset.pattern.permute.xlu0 0
  %7230 = vperm.xlu0 %7229, %v7186
  %v7231 = vpop.permute.xlu0 %7230
  %7234 = vset.pattern.permute.xlu0 0
  %7235 = vperm.xlu0 %7234, %v7187
  %v7236 = vpop.permute.xlu0 %7235
  %7239 = vset.pattern.permute.xlu0 0
  %7240 = vperm.xlu0 %7239, %v7188
  %v7241 = vpop.permute.xlu0 %7240
  %7244 = vset.pattern.permute.xlu0 0
  %7245 = vperm.xlu0 %7244, %v7189
  %v7246 = vpop.permute.xlu0 %7245
  %7249 = vset.pattern.permute.xlu0 0
  %7250 = vperm.xlu0 %7249, %v7190
  %v7251 = vpop.permute.xlu0 %7250
  %7254 = vset.pattern.permute.xlu0 0
  %7255 = vperm.xlu0 %7254, %v7191
  %v7256 = vpop.permute.xlu0 %7255
  %7259 = vset.pattern.permute.xlu0 0
  %7260 = vperm.xlu0 %7259, %v7192
  %v7261 = vpop.permute.xlu0 %7260
  %7264 = vset.pattern.permute.xlu0 0
  %7265 = vperm.xlu0 %7264, %v7193
  %v7266 = vpop.permute.xlu0 %7265
  %7269 = vset.pattern.permute.xlu0 0
  %7270 = vperm.xlu0 %7269, %v7194
  %v7271 = vpop.permute.xlu0 %7270
  %7274 = vset.pattern.permute.xlu0 0
  %7275 = vperm.xlu0 %7274, %v7195
  %v7276 = vpop.permute.xlu0 %7275
  %7279 = vset.pattern.permute.xlu0 0
  %7280 = vperm.xlu0 %7279, %v7196
  %v7281 = vpop.permute.xlu0 %7280
  %7284 = vset.pattern.permute.xlu0 0
  %7285 = vperm.xlu0 %7284, %v7197
  %v7286 = vpop.permute.xlu0 %7285
  %7289 = vset.pattern.permute.xlu0 0
  %7290 = vperm.xlu0 %7289, %v7198
  %v7291 = vpop.permute.xlu0 %7290
  %7294 = vset.pattern.permute.xlu0 0
  %7295 = vperm.xlu0 %7294, %v7199
  %v7296 = vpop.permute.xlu0 %7295
  %7299 = vset.pattern.permute.xlu0 0
  %7300 = vperm.xlu0 %7299, %v7200
  %v7301 = vpop.permute.xlu0 %7300
  %7304 = vset.pattern.permute.xlu0 0
  %7305 = vperm.xlu0 %7304, %v7201
  %v7306 = vpop.permute.xlu0 %7305
  %7309 = vset.pattern.permute.xlu0 0
  %7310 = vperm.xlu0 %7309, %v7202
  %v7311 = vpop.permute.xlu0 %7310
  %7314 = vset.pattern.permute.xlu0 0
  %7315 = vperm.xlu0 %7314, %v7203
  %v7316 = vpop.permute.xlu0 %7315
  %7319 = vset.pattern.permute.xlu0 0
  %7320 = vperm.xlu0 %7319, %v7204
  %v7321 = vpop.permute.xlu0 %7320
  %7324 = vset.pattern.permute.xlu0 0
  %7325 = vperm.xlu0 %7324, %v7205
  %v7326 = vpop.permute.xlu0 %7325
  %7329 = vset.pattern.permute.xlu0 0
  %7330 = vperm.xlu0 %7329, %v7206
  %v7331 = vpop.permute.xlu0 %7330
  %7334 = vset.pattern.permute.xlu0 0
  %7335 = vperm.xlu0 %7334, %v7207
  %v7336 = vpop.permute.xlu0 %7335
  %7339 = vset.pattern.permute.xlu0 0
  %7340 = vperm.xlu0 %7339, %v7208
  %v7341 = vpop.permute.xlu0 %7340
  %7344 = vset.pattern.permute.xlu0 0
  %7345 = vperm.xlu0 %7344, %v7209
  %v7346 = vpop.permute.xlu0 %7345
  %7349 = vset.pattern.permute.xlu0 0
  %7350 = vperm.xlu0 %7349, %v7210
  %v7351 = vpop.permute.xlu0 %7350
  %7354 = vset.pattern.permute.xlu0 0
  %7355 = vperm.xlu0 %7354, %v7211
  %v7356 = vpop.permute.xlu0 %7355
  %7359 = vset.pattern.permute.xlu0 0
  %7360 = vperm.xlu0 %7359, %v7212
  %v7361 = vpop.permute.xlu0 %7360
  %7364 = vset.pattern.permute.xlu0 0
  %7365 = vperm.xlu0 %7364, %v7213
  %v7366 = vpop.permute.xlu0 %7365
  %7369 = vset.pattern.permute.xlu0 0
  %7370 = vperm.xlu0 %7369, %v7214
  %v7371 = vpop.permute.xlu0 %7370
  %7374 = vset.pattern.permute.xlu0 0
  %7375 = vperm.xlu0 %7374, %v7215
  %v7376 = vpop.permute.xlu0 %7375
  %7379 = vset.pattern.permute.xlu0 0
  %7380 = vperm.xlu0 %7379, %v7216
  %v7381 = vpop.permute.xlu0 %7380
  %7384 = vset.pattern.permute.xlu0 0
  %7385 = vperm.xlu0 %7384, %v7217
  %v7386 = vpop.permute.xlu0 %7385
  %7389 = vset.pattern.permute.xlu0 0
  %7390 = vperm.xlu0 %7389, %v7218
  %v7391 = vpop.permute.xlu0 %7390
  %7394 = vset.pattern.permute.xlu0 0
  %7395 = vperm.xlu0 %7394, %v7219
  %v7396 = vpop.permute.xlu0 %7395
  %7399 = vset.pattern.permute.xlu0 0
  %7400 = vperm.xlu0 %7399, %v7220
  %v7401 = vpop.permute.xlu0 %7400
  %7404 = vset.pattern.permute.xlu0 0
  %7405 = vperm.xlu0 %7404, %v7221
  %v7406 = vpop.permute.xlu0 %7405
  %7409 = vset.pattern.permute.xlu0 0
  %7410 = vperm.xlu0 %7409, %v7222
  %v7411 = vpop.permute.xlu0 %7410
  %7414 = vset.pattern.permute.xlu0 0
  %7415 = vperm.xlu0 %7414, %v7223
  %v7416 = vpop.permute.xlu0 %7415
  %7419 = vset.pattern.permute.xlu0 0
  %7420 = vperm.xlu0 %7419, %v7224
  %v7421 = vpop.permute.xlu0 %7420
  %7424 = vset.pattern.permute.xlu0 0
  %7425 = vperm.xlu0 %7424, %v7225
  %v7426 = vpop.permute.xlu0 %7425
  %7429 = vset.pattern.permute.xlu0 0
  %7430 = vperm.xlu0 %7429, %v7226
  %v7431 = vpop.permute.xlu0 %7430
  %7434 = vset.pattern.permute.xlu0 0
  %7435 = vperm.xlu0 %7434, %v7227
  %v7436 = vpop.permute.xlu0 %7435
  %v7438 = vmul.f32 %v6304, %v7231
  %v7439 = vmul.f32 %v6305, %v7231
  %v7440 = vmul.f32 %v6306, %v7236
  %v7441 = vmul.f32 %v6307, %v7236
  %v7442 = vmul.f32 %v6308, %v7241
  %v7443 = vmul.f32 %v6309, %v7241
  %v7444 = vmul.f32 %v6310, %v7246
  %v7445 = vmul.f32 %v6311, %v7246
  %v7446 = vmul.f32 %v6312, %v7251
  %v7447 = vmul.f32 %v6313, %v7251
  %v7448 = vmul.f32 %v6314, %v7256
  %v7449 = vmul.f32 %v6315, %v7256
  %v7450 = vmul.f32 %v6316, %v7261
  %v7451 = vmul.f32 %v6317, %v7261
  %v7452 = vmul.f32 %v6318, %v7266
  %v7453 = vmul.f32 %v6319, %v7266
  %v7454 = vmul.f32 %v6320, %v7271
  %v7455 = vmul.f32 %v6321, %v7271
  %v7456 = vmul.f32 %v6322, %v7276
  %v7457 = vmul.f32 %v6323, %v7276
  %v7458 = vmul.f32 %v6324, %v7281
  %v7459 = vmul.f32 %v6325, %v7281
  %v7460 = vmul.f32 %v6326, %v7286
  %v7461 = vmul.f32 %v6327, %v7286
  %v7462 = vmul.f32 %v6328, %v7291
  %v7463 = vmul.f32 %v6329, %v7291
  %v7464 = vmul.f32 %v6330, %v7296
  %v7465 = vmul.f32 %v6331, %v7296
  %v7466 = vmul.f32 %v6332, %v7301
  %v7467 = vmul.f32 %v6333, %v7301
  %v7468 = vmul.f32 %v6334, %v7306
  %v7469 = vmul.f32 %v6335, %v7306
  %v7470 = vmul.f32 %v6336, %v7311
  %v7471 = vmul.f32 %v6337, %v7311
  %v7472 = vmul.f32 %v6338, %v7316
  %v7473 = vmul.f32 %v6339, %v7316
  %v7474 = vmul.f32 %v6340, %v7321
  %v7475 = vmul.f32 %v6341, %v7321
  %v7476 = vmul.f32 %v6342, %v7326
  %v7477 = vmul.f32 %v6343, %v7326
  %v7478 = vmul.f32 %v6344, %v7331
  %v7479 = vmul.f32 %v6345, %v7331
  %v7480 = vmul.f32 %v6346, %v7336
  %v7481 = vmul.f32 %v6347, %v7336
  %v7482 = vmul.f32 %v6348, %v7341
  %v7483 = vmul.f32 %v6349, %v7341
  %v7484 = vmul.f32 %v6350, %v7346
  %v7485 = vmul.f32 %v6351, %v7346
  %v7486 = vmul.f32 %v6352, %v7351
  %v7487 = vmul.f32 %v6353, %v7351
  %v7488 = vmul.f32 %v6354, %v7356
  %v7489 = vmul.f32 %v6355, %v7356
  %v7490 = vmul.f32 %v6356, %v7361
  %v7491 = vmul.f32 %v6357, %v7361
  %v7492 = vmul.f32 %v6358, %v7366
  %v7493 = vmul.f32 %v6359, %v7366
  %v7494 = vmul.f32 %v6360, %v7371
  %v7495 = vmul.f32 %v6361, %v7371
  %v7496 = vmul.f32 %v6362, %v7376
  %v7497 = vmul.f32 %v6363, %v7376
  %v7498 = vmul.f32 %v6364, %v7381
  %v7499 = vmul.f32 %v6365, %v7381
  %v7500 = vmul.f32 %v6366, %v7386
  %v7501 = vmul.f32 %v6367, %v7386
  %v7502 = vmul.f32 %v6368, %v7391
  %v7503 = vmul.f32 %v6369, %v7391
  %v7504 = vmul.f32 %v6370, %v7396
  %v7505 = vmul.f32 %v6371, %v7396
  %v7506 = vmul.f32 %v6372, %v7401
  %v7507 = vmul.f32 %v6373, %v7401
  %v7508 = vmul.f32 %v6374, %v7406
  %v7509 = vmul.f32 %v6375, %v7406
  %v7510 = vmul.f32 %v6376, %v7411
  %v7511 = vmul.f32 %v6377, %v7411
  %v7512 = vmul.f32 %v6378, %v7416
  %v7513 = vmul.f32 %v6379, %v7416
  %v7514 = vmul.f32 %v6380, %v7421
  %v7515 = vmul.f32 %v6381, %v7421
  %v7516 = vmul.f32 %v6382, %v7426
  %v7517 = vmul.f32 %v6383, %v7426
  %v7518 = vmul.f32 %v6384, %v7431
  %v7519 = vmul.f32 %v6385, %v7431
  %v7520 = vmul.f32 %v6386, %v7436
  %v7521 = vmul.f32 %v6387, %v7436
  %v7522 = vld [vmem:[%s10] sm:$0xff]
  %v7523 = vld [vmem:[%s10 + $0x8] sm:$0xff]
  %v7524 = vld [vmem:[%s10 + $0x10] sm:$0xff]
  %v7525 = vld [vmem:[%s10 + $0x18] sm:$0xff]
  %v7526 = vld [vmem:[%s10 + $0x20] sm:$0xff]
  %v7527 = vld [vmem:[%s10 + $0x28] sm:$0xff]
  %v7528 = vld [vmem:[%s10 + $0x30] sm:$0xff]
  %v7529 = vld [vmem:[%s10 + $0x38] sm:$0xff]
  %v7530 = vld [vmem:[%s10 + $0x40] sm:$0xff]
  %v7531 = vld [vmem:[%s10 + $0x48] sm:$0xff]
  %v7532 = vld [vmem:[%s10 + $0x50] sm:$0xff]
  %v7533 = vld [vmem:[%s10 + $0x58] sm:$0xff]
  %v7534 = vld [vmem:[%s10 + $0x60] sm:$0xff]
  %v7535 = vld [vmem:[%s10 + $0x68] sm:$0xff]
  %v7536 = vld [vmem:[%s10 + $0x70] sm:$0xff]
  %v7537 = vld [vmem:[%s10 + $0x78] sm:$0xff]
  %v7538 = vld [vmem:[%s10 + $0x80] sm:$0xff]
  %v7539 = vld [vmem:[%s10 + $0x88] sm:$0xff]
  %v7540 = vld [vmem:[%s10 + $0x90] sm:$0xff]
  %v7541 = vld [vmem:[%s10 + $0x98] sm:$0xff]
  %v7542 = vld [vmem:[%s10 + $0xa0] sm:$0xff]
  %v7543 = vld [vmem:[%s10 + $0xa8] sm:$0xff]
  %v7544 = vld [vmem:[%s10 + $0xb0] sm:$0xff]
  %v7545 = vld [vmem:[%s10 + $0xb8] sm:$0xff]
  %v7546 = vld [vmem:[%s10 + $0xc0] sm:$0xff]
  %v7547 = vld [vmem:[%s10 + $0xc8] sm:$0xff]
  %v7548 = vld [vmem:[%s10 + $0xd0] sm:$0xff]
  %v7549 = vld [vmem:[%s10 + $0xd8] sm:$0xff]
  %v7550 = vld [vmem:[%s10 + $0xe0] sm:$0xff]
  %v7551 = vld [vmem:[%s10 + $0xe8] sm:$0xff]
  %v7552 = vld [vmem:[%s10 + $0xf0] sm:$0xff]
  %v7553 = vld [vmem:[%s10 + $0xf8] sm:$0xff]
  %v7554 = vld [vmem:[%s10 + $0x100] sm:$0xff]
  %v7555 = vld [vmem:[%s10 + $0x108] sm:$0xff]
  %v7556 = vld [vmem:[%s10 + $0x110] sm:$0xff]
  %v7557 = vld [vmem:[%s10 + $0x118] sm:$0xff]
  %v7558 = vld [vmem:[%s10 + $0x120] sm:$0xff]
  %v7559 = vld [vmem:[%s10 + $0x128] sm:$0xff]
  %v7560 = vld [vmem:[%s10 + $0x130] sm:$0xff]
  %v7561 = vld [vmem:[%s10 + $0x138] sm:$0xff]
  %v7562 = vld [vmem:[%s10 + $0x140] sm:$0xff]
  %v7563 = vld [vmem:[%s10 + $0x148] sm:$0xff]
  %7565 = vset.pattern.permute.xlu0 0
  %7566 = vperm.xlu0 %7565, %v7522
  %v7567 = vpop.permute.xlu0 %7566
  %7570 = vset.pattern.permute.xlu0 0
  %7571 = vperm.xlu0 %7570, %v7523
  %v7572 = vpop.permute.xlu0 %7571
  %7575 = vset.pattern.permute.xlu0 0
  %7576 = vperm.xlu0 %7575, %v7524
  %v7577 = vpop.permute.xlu0 %7576
  %7580 = vset.pattern.permute.xlu0 0
  %7581 = vperm.xlu0 %7580, %v7525
  %v7582 = vpop.permute.xlu0 %7581
  %7585 = vset.pattern.permute.xlu0 0
  %7586 = vperm.xlu0 %7585, %v7526
  %v7587 = vpop.permute.xlu0 %7586
  %7590 = vset.pattern.permute.xlu0 0
  %7591 = vperm.xlu0 %7590, %v7527
  %v7592 = vpop.permute.xlu0 %7591
  %7595 = vset.pattern.permute.xlu0 0
  %7596 = vperm.xlu0 %7595, %v7528
  %v7597 = vpop.permute.xlu0 %7596
  %7600 = vset.pattern.permute.xlu0 0
  %7601 = vperm.xlu0 %7600, %v7529
  %v7602 = vpop.permute.xlu0 %7601
  %7605 = vset.pattern.permute.xlu0 0
  %7606 = vperm.xlu0 %7605, %v7530
  %v7607 = vpop.permute.xlu0 %7606
  %7610 = vset.pattern.permute.xlu0 0
  %7611 = vperm.xlu0 %7610, %v7531
  %v7612 = vpop.permute.xlu0 %7611
  %7615 = vset.pattern.permute.xlu0 0
  %7616 = vperm.xlu0 %7615, %v7532
  %v7617 = vpop.permute.xlu0 %7616
  %7620 = vset.pattern.permute.xlu0 0
  %7621 = vperm.xlu0 %7620, %v7533
  %v7622 = vpop.permute.xlu0 %7621
  %7625 = vset.pattern.permute.xlu0 0
  %7626 = vperm.xlu0 %7625, %v7534
  %v7627 = vpop.permute.xlu0 %7626
  %7630 = vset.pattern.permute.xlu0 0
  %7631 = vperm.xlu0 %7630, %v7535
  %v7632 = vpop.permute.xlu0 %7631
  %7635 = vset.pattern.permute.xlu0 0
  %7636 = vperm.xlu0 %7635, %v7536
  %v7637 = vpop.permute.xlu0 %7636
  %7640 = vset.pattern.permute.xlu0 0
  %7641 = vperm.xlu0 %7640, %v7537
  %v7642 = vpop.permute.xlu0 %7641
  %7645 = vset.pattern.permute.xlu0 0
  %7646 = vperm.xlu0 %7645, %v7538
  %v7647 = vpop.permute.xlu0 %7646
  %7650 = vset.pattern.permute.xlu0 0
  %7651 = vperm.xlu0 %7650, %v7539
  %v7652 = vpop.permute.xlu0 %7651
  %7655 = vset.pattern.permute.xlu0 0
  %7656 = vperm.xlu0 %7655, %v7540
  %v7657 = vpop.permute.xlu0 %7656
  %7660 = vset.pattern.permute.xlu0 0
  %7661 = vperm.xlu0 %7660, %v7541
  %v7662 = vpop.permute.xlu0 %7661
  %7665 = vset.pattern.permute.xlu0 0
  %7666 = vperm.xlu0 %7665, %v7542
  %v7667 = vpop.permute.xlu0 %7666
  %7670 = vset.pattern.permute.xlu0 0
  %7671 = vperm.xlu0 %7670, %v7543
  %v7672 = vpop.permute.xlu0 %7671
  %7675 = vset.pattern.permute.xlu0 0
  %7676 = vperm.xlu0 %7675, %v7544
  %v7677 = vpop.permute.xlu0 %7676
  %7680 = vset.pattern.permute.xlu0 0
  %7681 = vperm.xlu0 %7680, %v7545
  %v7682 = vpop.permute.xlu0 %7681
  %7685 = vset.pattern.permute.xlu0 0
  %7686 = vperm.xlu0 %7685, %v7546
  %v7687 = vpop.permute.xlu0 %7686
  %7690 = vset.pattern.permute.xlu0 0
  %7691 = vperm.xlu0 %7690, %v7547
  %v7692 = vpop.permute.xlu0 %7691
  %7695 = vset.pattern.permute.xlu0 0
  %7696 = vperm.xlu0 %7695, %v7548
  %v7697 = vpop.permute.xlu0 %7696
  %7700 = vset.pattern.permute.xlu0 0
  %7701 = vperm.xlu0 %7700, %v7549
  %v7702 = vpop.permute.xlu0 %7701
  %7705 = vset.pattern.permute.xlu0 0
  %7706 = vperm.xlu0 %7705, %v7550
  %v7707 = vpop.permute.xlu0 %7706
  %7710 = vset.pattern.permute.xlu0 0
  %7711 = vperm.xlu0 %7710, %v7551
  %v7712 = vpop.permute.xlu0 %7711
  %7715 = vset.pattern.permute.xlu0 0
  %7716 = vperm.xlu0 %7715, %v7552
  %v7717 = vpop.permute.xlu0 %7716
  %7720 = vset.pattern.permute.xlu0 0
  %7721 = vperm.xlu0 %7720, %v7553
  %v7722 = vpop.permute.xlu0 %7721
  %7725 = vset.pattern.permute.xlu0 0
  %7726 = vperm.xlu0 %7725, %v7554
  %v7727 = vpop.permute.xlu0 %7726
  %7730 = vset.pattern.permute.xlu0 0
  %7731 = vperm.xlu0 %7730, %v7555
  %v7732 = vpop.permute.xlu0 %7731
  %7735 = vset.pattern.permute.xlu0 0
  %7736 = vperm.xlu0 %7735, %v7556
  %v7737 = vpop.permute.xlu0 %7736
  %7740 = vset.pattern.permute.xlu0 0
  %7741 = vperm.xlu0 %7740, %v7557
  %v7742 = vpop.permute.xlu0 %7741
  %7745 = vset.pattern.permute.xlu0 0
  %7746 = vperm.xlu0 %7745, %v7558
  %v7747 = vpop.permute.xlu0 %7746
  %7750 = vset.pattern.permute.xlu0 0
  %7751 = vperm.xlu0 %7750, %v7559
  %v7752 = vpop.permute.xlu0 %7751
  %7755 = vset.pattern.permute.xlu0 0
  %7756 = vperm.xlu0 %7755, %v7560
  %v7757 = vpop.permute.xlu0 %7756
  %7760 = vset.pattern.permute.xlu0 0
  %7761 = vperm.xlu0 %7760, %v7561
  %v7762 = vpop.permute.xlu0 %7761
  %7765 = vset.pattern.permute.xlu0 0
  %7766 = vperm.xlu0 %7765, %v7562
  %v7767 = vpop.permute.xlu0 %7766
  %7770 = vset.pattern.permute.xlu0 0
  %7771 = vperm.xlu0 %7770, %v7563
  %v7772 = vpop.permute.xlu0 %7771
  %v7774 = vadd.f32 %v7438, %v7567
  %v7775 = vadd.f32 %v7439, %v7567
  %v7776 = vadd.f32 %v7440, %v7572
  %v7777 = vadd.f32 %v7441, %v7572
  %v7778 = vadd.f32 %v7442, %v7577
  %v7779 = vadd.f32 %v7443, %v7577
  %v7780 = vadd.f32 %v7444, %v7582
  %v7781 = vadd.f32 %v7445, %v7582
  %v7782 = vadd.f32 %v7446, %v7587
  %v7783 = vadd.f32 %v7447, %v7587
  %v7784 = vadd.f32 %v7448, %v7592
  %v7785 = vadd.f32 %v7449, %v7592
  %v7786 = vadd.f32 %v7450, %v7597
  %v7787 = vadd.f32 %v7451, %v7597
  %v7788 = vadd.f32 %v7452, %v7602
  %v7789 = vadd.f32 %v7453, %v7602
  %v7790 = vadd.f32 %v7454, %v7607
  %v7791 = vadd.f32 %v7455, %v7607
  %v7792 = vadd.f32 %v7456, %v7612
  %v7793 = vadd.f32 %v7457, %v7612
  %v7794 = vadd.f32 %v7458, %v7617
  %v7795 = vadd.f32 %v7459, %v7617
  %v7796 = vadd.f32 %v7460, %v7622
  %v7797 = vadd.f32 %v7461, %v7622
  %v7798 = vadd.f32 %v7462, %v7627
  %v7799 = vadd.f32 %v7463, %v7627
  %v7800 = vadd.f32 %v7464, %v7632
  %v7801 = vadd.f32 %v7465, %v7632
  %v7802 = vadd.f32 %v7466, %v7637
  %v7803 = vadd.f32 %v7467, %v7637
  %v7804 = vadd.f32 %v7468, %v7642
  %v7805 = vadd.f32 %v7469, %v7642
  %v7806 = vadd.f32 %v7470, %v7647
  %v7807 = vadd.f32 %v7471, %v7647
  %v7808 = vadd.f32 %v7472, %v7652
  %v7809 = vadd.f32 %v7473, %v7652
  %v7810 = vadd.f32 %v7474, %v7657
  %v7811 = vadd.f32 %v7475, %v7657
  %v7812 = vadd.f32 %v7476, %v7662
  %v7813 = vadd.f32 %v7477, %v7662
  %v7814 = vadd.f32 %v7478, %v7667
  %v7815 = vadd.f32 %v7479, %v7667
  %v7816 = vadd.f32 %v7480, %v7672
  %v7817 = vadd.f32 %v7481, %v7672
  %v7818 = vadd.f32 %v7482, %v7677
  %v7819 = vadd.f32 %v7483, %v7677
  %v7820 = vadd.f32 %v7484, %v7682
  %v7821 = vadd.f32 %v7485, %v7682
  %v7822 = vadd.f32 %v7486, %v7687
  %v7823 = vadd.f32 %v7487, %v7687
  %v7824 = vadd.f32 %v7488, %v7692
  %v7825 = vadd.f32 %v7489, %v7692
  %v7826 = vadd.f32 %v7490, %v7697
  %v7827 = vadd.f32 %v7491, %v7697
  %v7828 = vadd.f32 %v7492, %v7702
  %v7829 = vadd.f32 %v7493, %v7702
  %v7830 = vadd.f32 %v7494, %v7707
  %v7831 = vadd.f32 %v7495, %v7707
  %v7832 = vadd.f32 %v7496, %v7712
  %v7833 = vadd.f32 %v7497, %v7712
  %v7834 = vadd.f32 %v7498, %v7717
  %v7835 = vadd.f32 %v7499, %v7717
  %v7836 = vadd.f32 %v7500, %v7722
  %v7837 = vadd.f32 %v7501, %v7722
  %v7838 = vadd.f32 %v7502, %v7727
  %v7839 = vadd.f32 %v7503, %v7727
  %v7840 = vadd.f32 %v7504, %v7732
  %v7841 = vadd.f32 %v7505, %v7732
  %v7842 = vadd.f32 %v7506, %v7737
  %v7843 = vadd.f32 %v7507, %v7737
  %v7844 = vadd.f32 %v7508, %v7742
  %v7845 = vadd.f32 %v7509, %v7742
  %v7846 = vadd.f32 %v7510, %v7747
  %v7847 = vadd.f32 %v7511, %v7747
  %v7848 = vadd.f32 %v7512, %v7752
  %v7849 = vadd.f32 %v7513, %v7752
  %v7850 = vadd.f32 %v7514, %v7757
  %v7851 = vadd.f32 %v7515, %v7757
  %v7852 = vadd.f32 %v7516, %v7762
  %v7853 = vadd.f32 %v7517, %v7762
  %v7854 = vadd.f32 %v7518, %v7767
  %v7855 = vadd.f32 %v7519, %v7767
  %v7856 = vadd.f32 %v7520, %v7772
  %v7857 = vadd.f32 %v7521, %v7772
  %7858 = vst [vmem:[%s11] sm:$0xff] %v7774
  %7859 = vst.msk [vmem:[%s11 + $0x8] sm:$0xff] %vm2885, %v7775
  %7860 = vst [vmem:[%s11 + $0x10] sm:$0xff] %v7776
  %7861 = vst.msk [vmem:[%s11 + $0x18] sm:$0xff] %vm2885, %v7777
  %7862 = vst [vmem:[%s11 + $0x20] sm:$0xff] %v7778
  %7863 = vst.msk [vmem:[%s11 + $0x28] sm:$0xff] %vm2885, %v7779
  %7864 = vst [vmem:[%s11 + $0x30] sm:$0xff] %v7780
  %7865 = vst.msk [vmem:[%s11 + $0x38] sm:$0xff] %vm2885, %v7781
  %7866 = vst [vmem:[%s11 + $0x40] sm:$0xff] %v7782
  %7867 = vst.msk [vmem:[%s11 + $0x48] sm:$0xff] %vm2885, %v7783
  %7868 = vst [vmem:[%s11 + $0x50] sm:$0xff] %v7784
  %7869 = vst.msk [vmem:[%s11 + $0x58] sm:$0xff] %vm2885, %v7785
  %7870 = vst [vmem:[%s11 + $0x60] sm:$0xff] %v7786
  %7871 = vst.msk [vmem:[%s11 + $0x68] sm:$0xff] %vm2885, %v7787
  %7872 = vst [vmem:[%s11 + $0x70] sm:$0xff] %v7788
  %7873 = vst.msk [vmem:[%s11 + $0x78] sm:$0xff] %vm2885, %v7789
  %7874 = vst [vmem:[%s11 + $0x80] sm:$0xff] %v7790
  %7875 = vst.msk [vmem:[%s11 + $0x88] sm:$0xff] %vm2885, %v7791
  %7876 = vst [vmem:[%s11 + $0x90] sm:$0xff] %v7792
  %7877 = vst.msk [vmem:[%s11 + $0x98] sm:$0xff] %vm2885, %v7793
  %7878 = vst [vmem:[%s11 + $0xa0] sm:$0xff] %v7794
  %7879 = vst.msk [vmem:[%s11 + $0xa8] sm:$0xff] %vm2885, %v7795
  %7880 = vst [vmem:[%s11 + $0xb0] sm:$0xff] %v7796
  %7881 = vst.msk [vmem:[%s11 + $0xb8] sm:$0xff] %vm2885, %v7797
  %7882 = vst [vmem:[%s11 + $0xc0] sm:$0xff] %v7798
  %7883 = vst.msk [vmem:[%s11 + $0xc8] sm:$0xff] %vm2885, %v7799
  %7884 = vst [vmem:[%s11 + $0xd0] sm:$0xff] %v7800
  %7885 = vst.msk [vmem:[%s11 + $0xd8] sm:$0xff] %vm2885, %v7801
  %7886 = vst [vmem:[%s11 + $0xe0] sm:$0xff] %v7802
  %7887 = vst.msk [vmem:[%s11 + $0xe8] sm:$0xff] %vm2885, %v7803
  %7888 = vst [vmem:[%s11 + $0xf0] sm:$0xff] %v7804
  %7889 = vst.msk [vmem:[%s11 + $0xf8] sm:$0xff] %vm2885, %v7805
  %7890 = vst [vmem:[%s11 + $0x100] sm:$0xff] %v7806
  %7891 = vst.msk [vmem:[%s11 + $0x108] sm:$0xff] %vm2885, %v7807
  %7892 = vst [vmem:[%s11 + $0x110] sm:$0xff] %v7808
  %7893 = vst.msk [vmem:[%s11 + $0x118] sm:$0xff] %vm2885, %v7809
  %7894 = vst [vmem:[%s11 + $0x120] sm:$0xff] %v7810
  %7895 = vst.msk [vmem:[%s11 + $0x128] sm:$0xff] %vm2885, %v7811
  %7896 = vst [vmem:[%s11 + $0x130] sm:$0xff] %v7812
  %7897 = vst.msk [vmem:[%s11 + $0x138] sm:$0xff] %vm2885, %v7813
  %7898 = vst [vmem:[%s11 + $0x140] sm:$0xff] %v7814
  %7899 = vst.msk [vmem:[%s11 + $0x148] sm:$0xff] %vm2885, %v7815
  %7900 = vst [vmem:[%s11 + $0x150] sm:$0xff] %v7816
  %7901 = vst.msk [vmem:[%s11 + $0x158] sm:$0xff] %vm2885, %v7817
  %7902 = vst [vmem:[%s11 + $0x160] sm:$0xff] %v7818
  %7903 = vst.msk [vmem:[%s11 + $0x168] sm:$0xff] %vm2885, %v7819
  %7904 = vst [vmem:[%s11 + $0x170] sm:$0xff] %v7820
  %7905 = vst.msk [vmem:[%s11 + $0x178] sm:$0xff] %vm2885, %v7821
  %7906 = vst [vmem:[%s11 + $0x180] sm:$0xff] %v7822
  %7907 = vst.msk [vmem:[%s11 + $0x188] sm:$0xff] %vm2885, %v7823
  %7908 = vst [vmem:[%s11 + $0x190] sm:$0xff] %v7824
  %7909 = vst.msk [vmem:[%s11 + $0x198] sm:$0xff] %vm2885, %v7825
  %7910 = vst [vmem:[%s11 + $0x1a0] sm:$0xff] %v7826
  %7911 = vst.msk [vmem:[%s11 + $0x1a8] sm:$0xff] %vm2885, %v7827
  %7912 = vst [vmem:[%s11 + $0x1b0] sm:$0xff] %v7828
  %7913 = vst.msk [vmem:[%s11 + $0x1b8] sm:$0xff] %vm2885, %v7829
  %7914 = vst [vmem:[%s11 + $0x1c0] sm:$0xff] %v7830
  %7915 = vst.msk [vmem:[%s11 + $0x1c8] sm:$0xff] %vm2885, %v7831
  %7916 = vst [vmem:[%s11 + $0x1d0] sm:$0xff] %v7832
  %7917 = vst.msk [vmem:[%s11 + $0x1d8] sm:$0xff] %vm2885, %v7833
  %7918 = vst [vmem:[%s11 + $0x1e0] sm:$0xff] %v7834
  %7919 = vst.msk [vmem:[%s11 + $0x1e8] sm:$0xff] %vm2885, %v7835
  %7920 = vst [vmem:[%s11 + $0x1f0] sm:$0xff] %v7836
  %7921 = vst.msk [vmem:[%s11 + $0x1f8] sm:$0xff] %vm2885, %v7837
  %7922 = vst [vmem:[%s11 + $0x200] sm:$0xff] %v7838
  %7923 = vst.msk [vmem:[%s11 + $0x208] sm:$0xff] %vm2885, %v7839
  %7924 = vst [vmem:[%s11 + $0x210] sm:$0xff] %v7840
  %7925 = vst.msk [vmem:[%s11 + $0x218] sm:$0xff] %vm2885, %v7841
  %7926 = vst [vmem:[%s11 + $0x220] sm:$0xff] %v7842
  %7927 = vst.msk [vmem:[%s11 + $0x228] sm:$0xff] %vm2885, %v7843
  %7928 = vst [vmem:[%s11 + $0x230] sm:$0xff] %v7844
  %7929 = vst.msk [vmem:[%s11 + $0x238] sm:$0xff] %vm2885, %v7845
  %7930 = vst [vmem:[%s11 + $0x240] sm:$0xff] %v7846
  %7931 = vst.msk [vmem:[%s11 + $0x248] sm:$0xff] %vm2885, %v7847
  %7932 = vst [vmem:[%s11 + $0x250] sm:$0xff] %v7848
  %7933 = vst.msk [vmem:[%s11 + $0x258] sm:$0xff] %vm2885, %v7849
  %7934 = vst [vmem:[%s11 + $0x260] sm:$0xff] %v7850
  %7935 = vst.msk [vmem:[%s11 + $0x268] sm:$0xff] %vm2885, %v7851
  %7936 = vst [vmem:[%s11 + $0x270] sm:$0xff] %v7852
  %7937 = vst.msk [vmem:[%s11 + $0x278] sm:$0xff] %vm2885, %v7853
  %7938 = vst [vmem:[%s11 + $0x280] sm:$0xff] %v7854
  %7939 = vst.msk [vmem:[%s11 + $0x288] sm:$0xff] %vm2885, %v7855
  %7940 = vst [vmem:[%s11 + $0x290] sm:$0xff] %v7856
  %7941 = vst.msk [vmem:[%s11 + $0x298] sm:$0xff] %vm2885, %v7857
  // Predicated region
  $region61: #{fused_forward.1} parent=0 // pred_check
    _
  $region62: #{fused_forward.1} parent=0 // pred_check_branch
    %7943 = sbr.rel (0) target = $region64
  $region63: #{fused_forward.1} parent=0 // pred_region
    _
  $region64: #{fused_forward.1} parent=0 // pred_fallthru
    _
  // Predicated region
  $region65: #{fused_forward.1} parent=0 // pred_check
    _
  $region66: #{fused_forward.1} parent=0 // pred_check_branch
    %7945 = sbr.rel (0) target = $region68
  $region67: #{fused_forward.1} parent=0 // pred_region
    _
  $region68: #{fused_forward.1} parent=0 // pred_fallthru
    _
  %7946 = vsyncmov [#allocation3]
  %s7947 = vpop.sfrf %7946
  %p7948 = scmp.eq.s32.totalorder %s7947, 0
  %p7949 = pneg %p7948
  %7951 = shalt.err (%p7949)

</llo_original>
